<compile_context>
chip_gen: v7x
topology: tpu7x:2x2x1
jax: 0.10.0
libtpu: 0.0.40
codegen_flags: <defaults>
</compile_context>

<pallas_src>
import functools

import jax
import jax.numpy as jnp
import numpy as np
from jax.experimental import pallas as pl
from jax.experimental.pallas import tpu as pltpu


def _round_up(x, m):
    return (x + m - 1) // m * m


# ----------------------------------------------------------------------------
# Pallas kernel: fused Conv3d(3x3x3, pad 1) + folded-BN + ReLU via im2col.
#   part_refs[pi]: (Dp_pad, C_p, ROW_L) bf16  (logically channel-concatenated)
#   w_ref:         (Cout_pad, 27*Cin)  bf16   K index = (kd*9+kh*3+kw)*Cin + ci
#   s_ref, b_ref:  (Cout_pad, 1)       f32    folded BN scale / bias
#   o_ref:         (Cout_pad, TD*OUT_L) f32   TD output depth slices, lane-dense
#   slab_ref:      (27*Cin, TD*OUT_L)  bf16   im2col scratch
# ----------------------------------------------------------------------------
def _im2col_conv_kernel(*args, part_channels, td, out_l, wp):
    n_parts = len(part_channels)
    part_refs = args[:n_parts]
    w_ref, s_ref, b_ref, o_ref, slab_ref = args[n_parts:n_parts + 5]
    cin_total = sum(part_channels)

    d0 = pl.program_id(1) * td                     # first output depth of tile

    # --- assemble the im2col slab --------------------------------------------
    # slab row block for tap t = kd*9+kh*3+kw and concat-channel ci is row
    # t*cin_total + ci; column block j holds output depth slice d0 + j.
    # Each padded input depth row is loaded once per (kh, kw) lane offset and
    # scattered to all (kd, j) pairs with j + kd == s (halo reuse).
    for s in range(td + 2):                        # padded input depth rows
        d_idx = d0 + s
        for kh in range(3):
            for kw in range(3):
                off = kh * wp + kw                 # static lane offset (9 values)
                for pi in range(n_parts):
                    cp = part_channels[pi]
                    base = sum(part_channels[:pi])
                    piece = part_refs[pi][pl.ds(d_idx, 1), :, off:off + out_l][0]
                    for kd in range(3):
                        j = s - kd
                        if 0 <= j < td:
                            t = kd * 9 + kh * 3 + kw
                            r0 = t * cin_total + base
                            slab_ref[r0:r0 + cp,
                                     j * out_l:(j + 1) * out_l] = piece

    # --- one MXU matmul over the folded contraction (K = 27*Cin) -------------
    acc = jnp.dot(w_ref[...], slab_ref[...],
                  preferred_element_type=jnp.float32)

    # --- folded BatchNorm affine + ReLU (f32 epilogue), lane-dense store -----
    y = acc * s_ref[...] + b_ref[...]
    o_ref[...] = jnp.maximum(y, 0.0)


def conv3x3x3_bn_relu(parts, w_flat, scale_p, bias_p, out_channels, *, td=4):
    """Fused Conv3d(3x3x3, pad 1) + BN(inference) + ReLU.

    parts: list of (N, C_p, D, H, W) f32 arrays (logically channel-concatenated
           in the given order). Returns (N, out_channels, D, H, W) f32.
    """
    N, _, D, H, W = parts[0].shape
    Hp, Wp = H + 2, W + 2
    out_span = (H - 1) * Wp + W                    # valid flat output width
    out_l = _round_up(out_span, 128)               # lane-dense output width
    row_l = _round_up(2 * Wp + 2 + out_l, 128)     # padded input row (>= Hp*Wp)
    d_pad = _round_up(D, td)
    num_dt = d_pad // td
    dp_pad = d_pad + 2
    cout_pad, k = w_flat.shape
    part_channels = tuple(int(p.shape[1]) for p in parts)

    def to_rows(x):
        # (N, C, D, H, W) f32 -> (N, Dp_pad, C, ROW_L) bf16, zero halo padding.
        c = x.shape[1]
        xp = jnp.pad(x, ((0, 0), (0, 0), (1, 1 + d_pad - D), (1, 1), (1, 1)))
        xp = jnp.transpose(xp, (0, 2, 1, 3, 4)).reshape(N, dp_pad, c, Hp * Wp)
        xp = jnp.pad(xp, ((0, 0), (0, 0), (0, 0), (0, row_l - Hp * Wp)))
        return xp.astype(jnp.bfloat16)

    rows = [to_rows(p) for p in parts]

    kernel = functools.partial(_im2col_conv_kernel, part_channels=part_channels,
                               td=td, out_l=out_l, wp=Wp)

    in_specs = [pl.BlockSpec((None, dp_pad, c, row_l), lambda n, dt: (n, 0, 0, 0))
                for c in part_channels]
    in_specs += [pl.BlockSpec((cout_pad, k), lambda n, dt: (0, 0)),
                 pl.BlockSpec((cout_pad, 1), lambda n, dt: (0, 0)),
                 pl.BlockSpec((cout_pad, 1), lambda n, dt: (0, 0))]
    out_spec = pl.BlockSpec((None, cout_pad, td * out_l), lambda n, dt: (n, 0, dt))

    z = pl.pallas_call(
        kernel,
        out_shape=jax.ShapeDtypeStruct((N, cout_pad, num_dt * td * out_l),
                                       jnp.float32),
        grid_spec=pltpu.PrefetchScalarGridSpec(
            num_scalar_prefetch=0,
            grid=(N, num_dt),
            in_specs=in_specs,
            out_specs=out_spec,
            scratch_shapes=[pltpu.VMEM((k, td * out_l), jnp.bfloat16)]),
        compiler_params=pltpu.CompilerParams(
            dimension_semantics=("parallel", "parallel"),
            vmem_limit_bytes=32 * 1024 * 1024),
    )(*rows, w_flat, scale_p, bias_p)

    # Un-flatten: lane p of output depth d holds (h, w) with p = h*Wp + w;
    # positions with w >= W (and padded channels / depths) are garbage -> slice.
    z = z.reshape(N, cout_pad, d_pad, out_l)[:, :out_channels, :D, :out_span]
    z = jnp.pad(z, ((0, 0), (0, 0), (0, 0), (0, H * Wp - out_span)))
    return z.reshape(N, out_channels, D, H, Wp)[..., :W]


# ----------------------------------------------------------------------------
# JAX glue: trilinear upsample (align_corners=True), pad to skip-connection size
# ----------------------------------------------------------------------------
def _linear_upsample_axis(x, axis, out_size):
    in_size = x.shape[axis]
    if out_size == in_size:
        return x
    if in_size == 1:
        return jnp.take(x, jnp.zeros((out_size,), jnp.int32), axis=axis)
    pos = jnp.arange(out_size, dtype=jnp.float32) * ((in_size - 1) / (out_size - 1))
    lo = jnp.clip(jnp.floor(pos).astype(jnp.int32), 0, in_size - 1)
    hi = jnp.clip(lo + 1, 0, in_size - 1)
    frac = pos - lo.astype(jnp.float32)
    xlo = jnp.take(x, lo, axis=axis)
    xhi = jnp.take(x, hi, axis=axis)
    bshape = [1] * x.ndim
    bshape[axis] = out_size
    return xlo * (1.0 - frac.reshape(bshape)) + xhi * frac.reshape(bshape)


def trilinear_upsample_x2(x):
    for ax in (2, 3, 4):
        x = _linear_upsample_axis(x, ax, 2 * x.shape[ax])
    return x


def _upsample_and_pad(x1, x2):
    x1 = trilinear_upsample_x2(x1)
    diff_y = x2.shape[3] - x1.shape[3]
    diff_x = x2.shape[4] - x1.shape[4]
    return jnp.pad(x1, ((0, 0), (0, 0), (0, 0),
                        (diff_y // 2, diff_y - diff_y // 2),
                        (diff_x // 2, diff_x - diff_x // 2)))


@functools.partial(jax.jit, static_argnames=("mid_channels", "out_channels"))
def up_forward(x1, x2, params, *, mid_channels, out_channels):
    """Forward pass of Up(in_channels, out_channels, trilinear=True)."""
    x1 = _upsample_and_pad(x1, x2)
    # No materialized channel concat: x2 and upsampled x1 go in as two Pallas
    # inputs; the concat happens while assembling the im2col slab.
    y = conv3x3x3_bn_relu([x2, x1], params["w1_flat"], params["scale1_p"],
                          params["bias1_p"], mid_channels)
    y = conv3x3x3_bn_relu([y], params["w2_flat"], params["scale2_p"],
                          params["bias2_p"], out_channels)
    return y


# ----------------------------------------------------------------------------
# Pure-JAX reference with the same bf16 input/weight quantization as the
# Pallas path (f32 accumulation + f32 epilogue), for a tight correctness check.
# ----------------------------------------------------------------------------
def _bf16_round(x):
    return x.astype(jnp.bfloat16).astype(jnp.float32)


def _ref_conv_bn_relu(x, w, scale, bias):
    y = jax.lax.conv_general_dilated(
        x, w, window_strides=(1, 1, 1), padding=((1, 1), (1, 1), (1, 1)),
        dimension_numbers=("NCDHW", "OIDHW", "NCDHW"),
        precision=jax.lax.Precision.HIGHEST)
    y = y * scale.reshape(1, -1, 1, 1, 1) + bias.reshape(1, -1, 1, 1, 1)
    return jnp.maximum(y, 0.0)


def up_forward_reference(x1, x2, params):
    x1 = _upsample_and_pad(x1, x2)
    x = jnp.concatenate([x2, x1], axis=1)
    y = _ref_conv_bn_relu(_bf16_round(x), _bf16_round(params["w1"]),
                          params["scale1"], params["bias1"])
    y = _ref_conv_bn_relu(_bf16_round(y), _bf16_round(params["w2"]),
                          params["scale2"], params["bias2"])
    return y


# ----------------------------------------------------------------------------
# Deterministic parameter init (synthetic weights; shapes from __init__)
# ----------------------------------------------------------------------------
def _init_conv_bn(key, cin, cout):
    kw_, kb, kg, kbe, km, kv = jax.random.split(key, 6)
    w = 0.1 * jax.random.normal(kw_, (cout, cin, 3, 3, 3), jnp.float32)
    conv_b = 0.1 * jax.random.normal(kb, (cout,), jnp.float32)
    gamma = 1.0 + 0.1 * jax.random.normal(kg, (cout,), jnp.float32)
    beta = 0.1 * jax.random.normal(kbe, (cout,), jnp.float32)
    run_mean = 0.1 * jax.random.normal(km, (cout,), jnp.float32)
    run_var = 0.5 + jax.random.uniform(kv, (cout,), jnp.float32)
    eps = 1e-5
    scale = gamma / jnp.sqrt(run_var + eps)
    bias = (conv_b - run_mean) * scale + beta

    cout_pad = max(8, _round_up(cout, 8))
    # Folded weight (Cout_pad, 27*Cin): K index = (kd*9 + kh*3 + kw)*Cin + ci.
    w_flat = jnp.transpose(w, (2, 3, 4, 1, 0)).reshape(27 * cin, cout).T
    w_flat = jnp.pad(w_flat, ((0, cout_pad - cout), (0, 0))).astype(jnp.bfloat16)
    scale_p = jnp.pad(scale, (0, cout_pad - cout)).reshape(cout_pad, 1)
    bias_p = jnp.pad(bias, (0, cout_pad - cout)).reshape(cout_pad, 1)
    return dict(w=w, w_flat=w_flat, scale=scale, bias=bias,
                scale_p=scale_p, bias_p=bias_p)


def init_up_params(key, in_channels, out_channels):
    mid_channels = in_channels // 2
    k1, k2 = jax.random.split(key)
    c1 = _init_conv_bn(k1, in_channels, mid_channels)
    c2 = _init_conv_bn(k2, mid_channels, out_channels)
    return {
        "w1": c1["w"], "w1_flat": c1["w_flat"], "scale1": c1["scale"],
        "bias1": c1["bias"], "scale1_p": c1["scale_p"], "bias1_p": c1["bias_p"],
        "w2": c2["w"], "w2_flat": c2["w_flat"], "scale2": c2["scale"],
        "bias2": c2["bias"], "scale2_p": c2["scale_p"], "bias2_p": c2["bias_p"],
    }


# ----------------------------------------------------------------------------
if __name__ == "__main__":
    key = jax.random.PRNGKey(0)
    k1, k2, kp = jax.random.split(key, 3)

    N = 2
    c_half = 4                       # channels of x1 and of x2 (skip connection)
    in_channels = 2 * c_half         # concatenated channels seen by DoubleConv
    out_channels = 4

    # x1: low-res features to upsample; x2: skip connection (slightly larger
    # H/W so the F.pad path is exercised: 2*4=8 -> padded to 10).
    x1 = jax.random.normal(k1, (N, c_half, 4, 4, 4), jnp.float32)
    x2 = jax.random.normal(k2, (N, c_half, 8, 10, 10), jnp.float32)

    params = init_up_params(kp, in_channels, out_channels)

    out = up_forward(x1, x2, params,
                     mid_channels=in_channels // 2, out_channels=out_channels)
    out = jax.block_until_ready(out)

    ref = jax.block_until_ready(up_forward_reference(x1, x2, params))
    assert out.shape == (N, out_channels, 8, 10, 10), out.shape
    assert np.allclose(np.asarray(out), np.asarray(ref), rtol=1e-2, atol=1e-2)

    print("KERNEL_OK")
</pallas_src>

<mosaic_0001>
module attributes {stable_mosaic.version = 11 : i64} {
  func.func @_im2col_conv_kernel(%arg0: i32, %arg1: i32, %arg2: memref<1x10x4x256xbf16, #tpu.memory_space<vmem>>, %arg3: memref<1x10x4x256xbf16, #tpu.memory_space<vmem>>, %arg4: memref<8x216xbf16, #tpu.memory_space<vmem>>, %arg5: memref<8x1xf32, #tpu.memory_space<vmem>>, %arg6: memref<8x1xf32, #tpu.memory_space<vmem>>, %arg7: memref<1x8x512xf32, #tpu.memory_space<vmem>>, %arg8: memref<216x512xbf16, #tpu.memory_space<vmem>>) attributes {dimension_semantics = [#tpu.dimension_semantics<parallel>, #tpu.dimension_semantics<parallel>], iteration_bounds = array<i64: 2, 2>, scalar_prefetch = 0 : i64, scratch_operands = 1 : i64, tpu.core_type = #tpu.core_type<tc>, window_params = [{transform_indices = @transform_0, window_bounds = array<i64: 1, 10, 4, 256>}, {transform_indices = @transform_1, window_bounds = array<i64: 1, 10, 4, 256>}, {pipeline_mode = #tpu.pipeline_mode<synchronous>, transform_indices = @transform_2, window_bounds = array<i64: 8, 216>}, {pipeline_mode = #tpu.pipeline_mode<synchronous>, transform_indices = @transform_3, window_bounds = array<i64: 8, 1>}, {pipeline_mode = #tpu.pipeline_mode<synchronous>, transform_indices = @transform_4, window_bounds = array<i64: 8, 1>}, {transform_indices = @transform_5, window_bounds = array<i64: 1, 8, 512>}]} {
    %c4_i32 = arith.constant 4 : i32
    %0 = arith.muli %arg1, %c4_i32 : i32
    %c0_i32 = arith.constant 0 : i32
    %1 = arith.addi %0, %c0_i32 : i32
    %c0 = arith.constant 0 : index
    %2 = arith.index_cast %1 : i32 to index
    %c0_0 = arith.constant 0 : index
    %c0_1 = arith.constant 0 : index
    %3 = vector.load %arg2[%c0, %2, %c0_0, %c0_1] : memref<1x10x4x256xbf16, #tpu.memory_space<vmem>>, vector<1x1x4x128xbf16>
    %4 = vector.shape_cast %3 : vector<1x1x4x128xbf16> to vector<1x4x128xbf16>
    %5 = vector.shape_cast %4 : vector<1x4x128xbf16> to vector<4x128xbf16>
    %c0_2 = arith.constant 0 : index
    %c0_3 = arith.constant 0 : index
    %6 = vector.load %arg8[%c0_2, %c0_3] : memref<216x512xbf16, #tpu.memory_space<vmem>>, vector<4x128xbf16>
    tpu.vector_store %arg8[%c0_2, %c0_3], %5 {strides = array<i32>} : memref<216x512xbf16, #tpu.memory_space<vmem>>, vector<4x128xbf16>,
    %c0_4 = arith.constant 0 : index
    %7 = arith.index_cast %1 : i32 to index
    %c0_5 = arith.constant 0 : index
    %c0_6 = arith.constant 0 : index
    %8 = vector.load %arg3[%c0_4, %7, %c0_5, %c0_6] : memref<1x10x4x256xbf16, #tpu.memory_space<vmem>>, vector<1x1x4x128xbf16>
    %9 = vector.shape_cast %8 : vector<1x1x4x128xbf16> to vector<1x4x128xbf16>
    %10 = vector.shape_cast %9 : vector<1x4x128xbf16> to vector<4x128xbf16>
    %c4 = arith.constant 4 : index
    %c0_7 = arith.constant 0 : index
    %11 = vector.load %arg8[%c4, %c0_7] : memref<216x512xbf16, #tpu.memory_space<vmem>>, vector<4x128xbf16>
    tpu.vector_store %arg8[%c4, %c0_7], %10 {strides = array<i32>} : memref<216x512xbf16, #tpu.memory_space<vmem>>, vector<4x128xbf16>,
    %c0_8 = arith.constant 0 : index
    %12 = arith.index_cast %1 : i32 to index
    %c0_9 = arith.constant 0 : index
    %c1 = arith.constant 1 : index
    %13 = vector.load %arg2[%c0_8, %12, %c0_9, %c1] : memref<1x10x4x256xbf16, #tpu.memory_space<vmem>>, vector<1x1x4x128xbf16>
    %14 = vector.shape_cast %13 : vector<1x1x4x128xbf16> to vector<1x4x128xbf16>
    %15 = vector.shape_cast %14 : vector<1x4x128xbf16> to vector<4x128xbf16>
    %c8 = arith.constant 8 : index
    %c0_10 = arith.constant 0 : index
    %16 = vector.load %arg8[%c8, %c0_10] : memref<216x512xbf16, #tpu.memory_space<vmem>>, vector<4x128xbf16>
    tpu.vector_store %arg8[%c8, %c0_10], %15 {strides = array<i32>} : memref<216x512xbf16, #tpu.memory_space<vmem>>, vector<4x128xbf16>,
    %c0_11 = arith.constant 0 : index
    %17 = arith.index_cast %1 : i32 to index
    %c0_12 = arith.constant 0 : index
    %c1_13 = arith.constant 1 : index
    %18 = vector.load %arg3[%c0_11, %17, %c0_12, %c1_13] : memref<1x10x4x256xbf16, #tpu.memory_space<vmem>>, vector<1x1x4x128xbf16>
    %19 = vector.shape_cast %18 : vector<1x1x4x128xbf16> to vector<1x4x128xbf16>
    %20 = vector.shape_cast %19 : vector<1x4x128xbf16> to vector<4x128xbf16>
    %c12 = arith.constant 12 : index
    %c0_14 = arith.constant 0 : index
    %21 = vector.load %arg8[%c12, %c0_14] : memref<216x512xbf16, #tpu.memory_space<vmem>>, vector<4x128xbf16>
    tpu.vector_store %arg8[%c12, %c0_14], %20 {strides = array<i32>} : memref<216x512xbf16, #tpu.memory_space<vmem>>, vector<4x128xbf16>,
    %c0_15 = arith.constant 0 : index
    %22 = arith.index_cast %1 : i32 to index
    %c0_16 = arith.constant 0 : index
    %c2 = arith.constant 2 : index
    %23 = vector.load %arg2[%c0_15, %22, %c0_16, %c2] : memref<1x10x4x256xbf16, #tpu.memory_space<vmem>>, vector<1x1x4x128xbf16>
    %24 = vector.shape_cast %23 : vector<1x1x4x128xbf16> to vector<1x4x128xbf16>
    %25 = vector.shape_cast %24 : vector<1x4x128xbf16> to vector<4x128xbf16>
    %c16 = arith.constant 16 : index
    %c0_17 = arith.constant 0 : index
    %26 = vector.load %arg8[%c16, %c0_17] : memref<216x512xbf16, #tpu.memory_space<vmem>>, vector<4x128xbf16>
    tpu.vector_store %arg8[%c16, %c0_17], %25 {strides = array<i32>} : memref<216x512xbf16, #tpu.memory_space<vmem>>, vector<4x128xbf16>,
    %c0_18 = arith.constant 0 : index
    %27 = arith.index_cast %1 : i32 to index
    %c0_19 = arith.constant 0 : index
    %c2_20 = arith.constant 2 : index
    %28 = vector.load %arg3[%c0_18, %27, %c0_19, %c2_20] : memref<1x10x4x256xbf16, #tpu.memory_space<vmem>>, vector<1x1x4x128xbf16>
    %29 = vector.shape_cast %28 : vector<1x1x4x128xbf16> to vector<1x4x128xbf16>
    %30 = vector.shape_cast %29 : vector<1x4x128xbf16> to vector<4x128xbf16>
    %c20 = arith.constant 20 : index
    %c0_21 = arith.constant 0 : index
    %31 = vector.load %arg8[%c20, %c0_21] : memref<216x512xbf16, #tpu.memory_space<vmem>>, vector<4x128xbf16>
    tpu.vector_store %arg8[%c20, %c0_21], %30 {strides = array<i32>} : memref<216x512xbf16, #tpu.memory_space<vmem>>, vector<4x128xbf16>,
    %c0_22 = arith.constant 0 : index
    %32 = arith.index_cast %1 : i32 to index
    %c0_23 = arith.constant 0 : index
    %c12_24 = arith.constant 12 : index
    %33 = vector.load %arg2[%c0_22, %32, %c0_23, %c12_24] : memref<1x10x4x256xbf16, #tpu.memory_space<vmem>>, vector<1x1x4x128xbf16>
    %34 = vector.shape_cast %33 : vector<1x1x4x128xbf16> to vector<1x4x128xbf16>
    %35 = vector.shape_cast %34 : vector<1x4x128xbf16> to vector<4x128xbf16>
    %c24 = arith.constant 24 : index
    %c0_25 = arith.constant 0 : index
    %36 = vector.load %arg8[%c24, %c0_25] : memref<216x512xbf16, #tpu.memory_space<vmem>>, vector<4x128xbf16>
    tpu.vector_store %arg8[%c24, %c0_25], %35 {strides = array<i32>} : memref<216x512xbf16, #tpu.memory_space<vmem>>, vector<4x128xbf16>,
    %c0_26 = arith.constant 0 : index
    %37 = arith.index_cast %1 : i32 to index
    %c0_27 = arith.constant 0 : index
    %c12_28 = arith.constant 12 : index
    %38 = vector.load %arg3[%c0_26, %37, %c0_27, %c12_28] : memref<1x10x4x256xbf16, #tpu.memory_space<vmem>>, vector<1x1x4x128xbf16>
    %39 = vector.shape_cast %38 : vector<1x1x4x128xbf16> to vector<1x4x128xbf16>
    %40 = vector.shape_cast %39 : vector<1x4x128xbf16> to vector<4x128xbf16>
    %c28 = arith.constant 28 : index
    %c0_29 = arith.constant 0 : index
    %41 = vector.load %arg8[%c28, %c0_29] : memref<216x512xbf16, #tpu.memory_space<vmem>>, vector<4x128xbf16>
    tpu.vector_store %arg8[%c28, %c0_29], %40 {strides = array<i32>} : memref<216x512xbf16, #tpu.memory_space<vmem>>, vector<4x128xbf16>,
    %c0_30 = arith.constant 0 : index
    %42 = arith.index_cast %1 : i32 to index
    %c0_31 = arith.constant 0 : index
    %c13 = arith.constant 13 : index
    %43 = vector.load %arg2[%c0_30, %42, %c0_31, %c13] : memref<1x10x4x256xbf16, #tpu.memory_space<vmem>>, vector<1x1x4x128xbf16>
    %44 = vector.shape_cast %43 : vector<1x1x4x128xbf16> to vector<1x4x128xbf16>
    %45 = vector.shape_cast %44 : vector<1x4x128xbf16> to vector<4x128xbf16>
    %c32 = arith.constant 32 : index
    %c0_32 = arith.constant 0 : index
    %46 = vector.load %arg8[%c32, %c0_32] : memref<216x512xbf16, #tpu.memory_space<vmem>>, vector<4x128xbf16>
    tpu.vector_store %arg8[%c32, %c0_32], %45 {strides = array<i32>} : memref<216x512xbf16, #tpu.memory_space<vmem>>, vector<4x128xbf16>,
    %c0_33 = arith.constant 0 : index
    %47 = arith.index_cast %1 : i32 to index
    %c0_34 = arith.constant 0 : index
    %c13_35 = arith.constant 13 : index
    %48 = vector.load %arg3[%c0_33, %47, %c0_34, %c13_35] : memref<1x10x4x256xbf16, #tpu.memory_space<vmem>>, vector<1x1x4x128xbf16>
    %49 = vector.shape_cast %48 : vector<1x1x4x128xbf16> to vector<1x4x128xbf16>
    %50 = vector.shape_cast %49 : vector<1x4x128xbf16> to vector<4x128xbf16>
    %c36 = arith.constant 36 : index
    %c0_36 = arith.constant 0 : index
    %51 = vector.load %arg8[%c36, %c0_36] : memref<216x512xbf16, #tpu.memory_space<vmem>>, vector<4x128xbf16>
    tpu.vector_store %arg8[%c36, %c0_36], %50 {strides = array<i32>} : memref<216x512xbf16, #tpu.memory_space<vmem>>, vector<4x128xbf16>,
    %c0_37 = arith.constant 0 : index
    %52 = arith.index_cast %1 : i32 to index
    %c0_38 = arith.constant 0 : index
    %c14 = arith.constant 14 : index
    %53 = vector.load %arg2[%c0_37, %52, %c0_38, %c14] : memref<1x10x4x256xbf16, #tpu.memory_space<vmem>>, vector<1x1x4x128xbf16>
    %54 = vector.shape_cast %53 : vector<1x1x4x128xbf16> to vector<1x4x128xbf16>
    %55 = vector.shape_cast %54 : vector<1x4x128xbf16> to vector<4x128xbf16>
    %c40 = arith.constant 40 : index
    %c0_39 = arith.constant 0 : index
    %56 = vector.load %arg8[%c40, %c0_39] : memref<216x512xbf16, #tpu.memory_space<vmem>>, vector<4x128xbf16>
    tpu.vector_store %arg8[%c40, %c0_39], %55 {strides = array<i32>} : memref<216x512xbf16, #tpu.memory_space<vmem>>, vector<4x128xbf16>,
    %c0_40 = arith.constant 0 : index
    %57 = arith.index_cast %1 : i32 to index
    %c0_41 = arith.constant 0 : index
    %c14_42 = arith.constant 14 : index
    %58 = vector.load %arg3[%c0_40, %57, %c0_41, %c14_42] : memref<1x10x4x256xbf16, #tpu.memory_space<vmem>>, vector<1x1x4x128xbf16>
    %59 = vector.shape_cast %58 : vector<1x1x4x128xbf16> to vector<1x4x128xbf16>
    %60 = vector.shape_cast %59 : vector<1x4x128xbf16> to vector<4x128xbf16>
    %c44 = arith.constant 44 : index
    %c0_43 = arith.constant 0 : index
    %61 = vector.load %arg8[%c44, %c0_43] : memref<216x512xbf16, #tpu.memory_space<vmem>>, vector<4x128xbf16>
    tpu.vector_store %arg8[%c44, %c0_43], %60 {strides = array<i32>} : memref<216x512xbf16, #tpu.memory_space<vmem>>, vector<4x128xbf16>,
    %c0_44 = arith.constant 0 : index
    %62 = arith.index_cast %1 : i32 to index
    %c0_45 = arith.constant 0 : index
    %c24_46 = arith.constant 24 : index
    %63 = vector.load %arg2[%c0_44, %62, %c0_45, %c24_46] : memref<1x10x4x256xbf16, #tpu.memory_space<vmem>>, vector<1x1x4x128xbf16>
    %64 = vector.shape_cast %63 : vector<1x1x4x128xbf16> to vector<1x4x128xbf16>
    %65 = vector.shape_cast %64 : vector<1x4x128xbf16> to vector<4x128xbf16>
    %c48 = arith.constant 48 : index
    %c0_47 = arith.constant 0 : index
    %66 = vector.load %arg8[%c48, %c0_47] : memref<216x512xbf16, #tpu.memory_space<vmem>>, vector<4x128xbf16>
    tpu.vector_store %arg8[%c48, %c0_47], %65 {strides = array<i32>} : memref<216x512xbf16, #tpu.memory_space<vmem>>, vector<4x128xbf16>,
    %c0_48 = arith.constant 0 : index
    %67 = arith.index_cast %1 : i32 to index
    %c0_49 = arith.constant 0 : index
    %c24_50 = arith.constant 24 : index
    %68 = vector.load %arg3[%c0_48, %67, %c0_49, %c24_50] : memref<1x10x4x256xbf16, #tpu.memory_space<vmem>>, vector<1x1x4x128xbf16>
    %69 = vector.shape_cast %68 : vector<1x1x4x128xbf16> to vector<1x4x128xbf16>
    %70 = vector.shape_cast %69 : vector<1x4x128xbf16> to vector<4x128xbf16>
    %c52 = arith.constant 52 : index
    %c0_51 = arith.constant 0 : index
    %71 = vector.load %arg8[%c52, %c0_51] : memref<216x512xbf16, #tpu.memory_space<vmem>>, vector<4x128xbf16>
    tpu.vector_store %arg8[%c52, %c0_51], %70 {strides = array<i32>} : memref<216x512xbf16, #tpu.memory_space<vmem>>, vector<4x128xbf16>,
    %c0_52 = arith.constant 0 : index
    %72 = arith.index_cast %1 : i32 to index
    %c0_53 = arith.constant 0 : index
    %c25 = arith.constant 25 : index
    %73 = vector.load %arg2[%c0_52, %72, %c0_53, %c25] : memref<1x10x4x256xbf16, #tpu.memory_space<vmem>>, vector<1x1x4x128xbf16>
    %74 = vector.shape_cast %73 : vector<1x1x4x128xbf16> to vector<1x4x128xbf16>
    %75 = vector.shape_cast %74 : vector<1x4x128xbf16> to vector<4x128xbf16>
    %c56 = arith.constant 56 : index
    %c0_54 = arith.constant 0 : index
    %76 = vector.load %arg8[%c56, %c0_54] : memref<216x512xbf16, #tpu.memory_space<vmem>>, vector<4x128xbf16>
    tpu.vector_store %arg8[%c56, %c0_54], %75 {strides = array<i32>} : memref<216x512xbf16, #tpu.memory_space<vmem>>, vector<4x128xbf16>,
    %c0_55 = arith.constant 0 : index
    %77 = arith.index_cast %1 : i32 to index
    %c0_56 = arith.constant 0 : index
    %c25_57 = arith.constant 25 : index
    %78 = vector.load %arg3[%c0_55, %77, %c0_56, %c25_57] : memref<1x10x4x256xbf16, #tpu.memory_space<vmem>>, vector<1x1x4x128xbf16>
    %79 = vector.shape_cast %78 : vector<1x1x4x128xbf16> to vector<1x4x128xbf16>
    %80 = vector.shape_cast %79 : vector<1x4x128xbf16> to vector<4x128xbf16>
    %c60 = arith.constant 60 : index
    %c0_58 = arith.constant 0 : index
    %81 = vector.load %arg8[%c60, %c0_58] : memref<216x512xbf16, #tpu.memory_space<vmem>>, vector<4x128xbf16>
    tpu.vector_store %arg8[%c60, %c0_58], %80 {strides = array<i32>} : memref<216x512xbf16, #tpu.memory_space<vmem>>, vector<4x128xbf16>,
    %c0_59 = arith.constant 0 : index
    %82 = arith.index_cast %1 : i32 to index
    %c0_60 = arith.constant 0 : index
    %c26 = arith.constant 26 : index
    %83 = vector.load %arg2[%c0_59, %82, %c0_60, %c26] : memref<1x10x4x256xbf16, #tpu.memory_space<vmem>>, vector<1x1x4x128xbf16>
    %84 = vector.shape_cast %83 : vector<1x1x4x128xbf16> to vector<1x4x128xbf16>
    %85 = vector.shape_cast %84 : vector<1x4x128xbf16> to vector<4x128xbf16>
    %c64 = arith.constant 64 : index
    %c0_61 = arith.constant 0 : index
    %86 = vector.load %arg8[%c64, %c0_61] : memref<216x512xbf16, #tpu.memory_space<vmem>>, vector<4x128xbf16>
    tpu.vector_store %arg8[%c64, %c0_61], %85 {strides = array<i32>} : memref<216x512xbf16, #tpu.memory_space<vmem>>, vector<4x128xbf16>,
    %c0_62 = arith.constant 0 : index
    %87 = arith.index_cast %1 : i32 to index
    %c0_63 = arith.constant 0 : index
    %c26_64 = arith.constant 26 : index
    %88 = vector.load %arg3[%c0_62, %87, %c0_63, %c26_64] : memref<1x10x4x256xbf16, #tpu.memory_space<vmem>>, vector<1x1x4x128xbf16>
    %89 = vector.shape_cast %88 : vector<1x1x4x128xbf16> to vector<1x4x128xbf16>
    %90 = vector.shape_cast %89 : vector<1x4x128xbf16> to vector<4x128xbf16>
    %c68 = arith.constant 68 : index
    %c0_65 = arith.constant 0 : index
    %91 = vector.load %arg8[%c68, %c0_65] : memref<216x512xbf16, #tpu.memory_space<vmem>>, vector<4x128xbf16>
    tpu.vector_store %arg8[%c68, %c0_65], %90 {strides = array<i32>} : memref<216x512xbf16, #tpu.memory_space<vmem>>, vector<4x128xbf16>,
    %c1_i32 = arith.constant 1 : i32
    %92 = arith.addi %0, %c1_i32 : i32
    %c0_66 = arith.constant 0 : index
    %93 = arith.index_cast %92 : i32 to index
    %c0_67 = arith.constant 0 : index
    %c0_68 = arith.constant 0 : index
    %94 = vector.load %arg2[%c0_66, %93, %c0_67, %c0_68] : memref<1x10x4x256xbf16, #tpu.memory_space<vmem>>, vector<1x1x4x128xbf16>
    %95 = vector.shape_cast %94 : vector<1x1x4x128xbf16> to vector<1x4x128xbf16>
    %96 = vector.shape_cast %95 : vector<1x4x128xbf16> to vector<4x128xbf16>
    %c0_69 = arith.constant 0 : index
    %c128 = arith.constant 128 : index
    %97 = vector.load %arg8[%c0_69, %c128] : memref<216x512xbf16, #tpu.memory_space<vmem>>, vector<4x128xbf16>
    tpu.vector_store %arg8[%c0_69, %c128], %96 {strides = array<i32>} : memref<216x512xbf16, #tpu.memory_space<vmem>>, vector<4x128xbf16>,
    %c72 = arith.constant 72 : index
    %c0_70 = arith.constant 0 : index
    %98 = vector.load %arg8[%c72, %c0_70] : memref<216x512xbf16, #tpu.memory_space<vmem>>, vector<4x128xbf16>
    tpu.vector_store %arg8[%c72, %c0_70], %96 {strides = array<i32>} : memref<216x512xbf16, #tpu.memory_space<vmem>>, vector<4x128xbf16>,
    %c0_71 = arith.constant 0 : index
    %99 = arith.index_cast %92 : i32 to index
    %c0_72 = arith.constant 0 : index
    %c0_73 = arith.constant 0 : index
    %100 = vector.load %arg3[%c0_71, %99, %c0_72, %c0_73] : memref<1x10x4x256xbf16, #tpu.memory_space<vmem>>, vector<1x1x4x128xbf16>
    %101 = vector.shape_cast %100 : vector<1x1x4x128xbf16> to vector<1x4x128xbf16>
    %102 = vector.shape_cast %101 : vector<1x4x128xbf16> to vector<4x128xbf16>
    %c4_74 = arith.constant 4 : index
    %c128_75 = arith.constant 128 : index
    %103 = vector.load %arg8[%c4_74, %c128_75] : memref<216x512xbf16, #tpu.memory_space<vmem>>, vector<4x128xbf16>
    tpu.vector_store %arg8[%c4_74, %c128_75], %102 {strides = array<i32>} : memref<216x512xbf16, #tpu.memory_space<vmem>>, vector<4x128xbf16>,
    %c76 = arith.constant 76 : index
    %c0_76 = arith.constant 0 : index
    %104 = vector.load %arg8[%c76, %c0_76] : memref<216x512xbf16, #tpu.memory_space<vmem>>, vector<4x128xbf16>
    tpu.vector_store %arg8[%c76, %c0_76], %102 {strides = array<i32>} : memref<216x512xbf16, #tpu.memory_space<vmem>>, vector<4x128xbf16>,
    %c0_77 = arith.constant 0 : index
    %105 = arith.index_cast %92 : i32 to index
    %c0_78 = arith.constant 0 : index
    %c1_79 = arith.constant 1 : index
    %106 = vector.load %arg2[%c0_77, %105, %c0_78, %c1_79] : memref<1x10x4x256xbf16, #tpu.memory_space<vmem>>, vector<1x1x4x128xbf16>
    %107 = vector.shape_cast %106 : vector<1x1x4x128xbf16> to vector<1x4x128xbf16>
    %108 = vector.shape_cast %107 : vector<1x4x128xbf16> to vector<4x128xbf16>
    %c8_80 = arith.constant 8 : index
    %c128_81 = arith.constant 128 : index
    %109 = vector.load %arg8[%c8_80, %c128_81] : memref<216x512xbf16, #tpu.memory_space<vmem>>, vector<4x128xbf16>
    tpu.vector_store %arg8[%c8_80, %c128_81], %108 {strides = array<i32>} : memref<216x512xbf16, #tpu.memory_space<vmem>>, vector<4x128xbf16>,
    %c80 = arith.constant 80 : index
    %c0_82 = arith.constant 0 : index
    %110 = vector.load %arg8[%c80, %c0_82] : memref<216x512xbf16, #tpu.memory_space<vmem>>, vector<4x128xbf16>
    tpu.vector_store %arg8[%c80, %c0_82], %108 {strides = array<i32>} : memref<216x512xbf16, #tpu.memory_space<vmem>>, vector<4x128xbf16>,
    %c0_83 = arith.constant 0 : index
    %111 = arith.index_cast %92 : i32 to index
    %c0_84 = arith.constant 0 : index
    %c1_85 = arith.constant 1 : index
    %112 = vector.load %arg3[%c0_83, %111, %c0_84, %c1_85] : memref<1x10x4x256xbf16, #tpu.memory_space<vmem>>, vector<1x1x4x128xbf16>
    %113 = vector.shape_cast %112 : vector<1x1x4x128xbf16> to vector<1x4x128xbf16>
    %114 = vector.shape_cast %113 : vector<1x4x128xbf16> to vector<4x128xbf16>
    %c12_86 = arith.constant 12 : index
    %c128_87 = arith.constant 128 : index
    %115 = vector.load %arg8[%c12_86, %c128_87] : memref<216x512xbf16, #tpu.memory_space<vmem>>, vector<4x128xbf16>
    tpu.vector_store %arg8[%c12_86, %c128_87], %114 {strides = array<i32>} : memref<216x512xbf16, #tpu.memory_space<vmem>>, vector<4x128xbf16>,
    %c84 = arith.constant 84 : index
    %c0_88 = arith.constant 0 : index
    %116 = vector.load %arg8[%c84, %c0_88] : memref<216x512xbf16, #tpu.memory_space<vmem>>, vector<4x128xbf16>
    tpu.vector_store %arg8[%c84, %c0_88], %114 {strides = array<i32>} : memref<216x512xbf16, #tpu.memory_space<vmem>>, vector<4x128xbf16>,
    %c0_89 = arith.constant 0 : index
    %117 = arith.index_cast %92 : i32 to index
    %c0_90 = arith.constant 0 : index
    %c2_91 = arith.constant 2 : index
    %118 = vector.load %arg2[%c0_89, %117, %c0_90, %c2_91] : memref<1x10x4x256xbf16, #tpu.memory_space<vmem>>, vector<1x1x4x128xbf16>
    %119 = vector.shape_cast %118 : vector<1x1x4x128xbf16> to vector<1x4x128xbf16>
    %120 = vector.shape_cast %119 : vector<1x4x128xbf16> to vector<4x128xbf16>
    %c16_92 = arith.constant 16 : index
    %c128_93 = arith.constant 128 : index
    %121 = vector.load %arg8[%c16_92, %c128_93] : memref<216x512xbf16, #tpu.memory_space<vmem>>, vector<4x128xbf16>
    tpu.vector_store %arg8[%c16_92, %c128_93], %120 {strides = array<i32>} : memref<216x512xbf16, #tpu.memory_space<vmem>>, vector<4x128xbf16>,
    %c88 = arith.constant 88 : index
    %c0_94 = arith.constant 0 : index
    %122 = vector.load %arg8[%c88, %c0_94] : memref<216x512xbf16, #tpu.memory_space<vmem>>, vector<4x128xbf16>
    tpu.vector_store %arg8[%c88, %c0_94], %120 {strides = array<i32>} : memref<216x512xbf16, #tpu.memory_space<vmem>>, vector<4x128xbf16>,
    %c0_95 = arith.constant 0 : index
    %123 = arith.index_cast %92 : i32 to index
    %c0_96 = arith.constant 0 : index
    %c2_97 = arith.constant 2 : index
    %124 = vector.load %arg3[%c0_95, %123, %c0_96, %c2_97] : memref<1x10x4x256xbf16, #tpu.memory_space<vmem>>, vector<1x1x4x128xbf16>
    %125 = vector.shape_cast %124 : vector<1x1x4x128xbf16> to vector<1x4x128xbf16>
    %126 = vector.shape_cast %125 : vector<1x4x128xbf16> to vector<4x128xbf16>
    %c20_98 = arith.constant 20 : index
    %c128_99 = arith.constant 128 : index
    %127 = vector.load %arg8[%c20_98, %c128_99] : memref<216x512xbf16, #tpu.memory_space<vmem>>, vector<4x128xbf16>
    tpu.vector_store %arg8[%c20_98, %c128_99], %126 {strides = array<i32>} : memref<216x512xbf16, #tpu.memory_space<vmem>>, vector<4x128xbf16>,
    %c92 = arith.constant 92 : index
    %c0_100 = arith.constant 0 : index
    %128 = vector.load %arg8[%c92, %c0_100] : memref<216x512xbf16, #tpu.memory_space<vmem>>, vector<4x128xbf16>
    tpu.vector_store %arg8[%c92, %c0_100], %126 {strides = array<i32>} : memref<216x512xbf16, #tpu.memory_space<vmem>>, vector<4x128xbf16>,
    %c0_101 = arith.constant 0 : index
    %129 = arith.index_cast %92 : i32 to index
    %c0_102 = arith.constant 0 : index
    %c12_103 = arith.constant 12 : index
    %130 = vector.load %arg2[%c0_101, %129, %c0_102, %c12_103] : memref<1x10x4x256xbf16, #tpu.memory_space<vmem>>, vector<1x1x4x128xbf16>
    %131 = vector.shape_cast %130 : vector<1x1x4x128xbf16> to vector<1x4x128xbf16>
    %132 = vector.shape_cast %131 : vector<1x4x128xbf16> to vector<4x128xbf16>
    %c24_104 = arith.constant 24 : index
    %c128_105 = arith.constant 128 : index
    %133 = vector.load %arg8[%c24_104, %c128_105] : memref<216x512xbf16, #tpu.memory_space<vmem>>, vector<4x128xbf16>
    tpu.vector_store %arg8[%c24_104, %c128_105], %132 {strides = array<i32>} : memref<216x512xbf16, #tpu.memory_space<vmem>>, vector<4x128xbf16>,
    %c96 = arith.constant 96 : index
    %c0_106 = arith.constant 0 : index
    %134 = vector.load %arg8[%c96, %c0_106] : memref<216x512xbf16, #tpu.memory_space<vmem>>, vector<4x128xbf16>
    tpu.vector_store %arg8[%c96, %c0_106], %132 {strides = array<i32>} : memref<216x512xbf16, #tpu.memory_space<vmem>>, vector<4x128xbf16>,
    %c0_107 = arith.constant 0 : index
    %135 = arith.index_cast %92 : i32 to index
    %c0_108 = arith.constant 0 : index
    %c12_109 = arith.constant 12 : index
    %136 = vector.load %arg3[%c0_107, %135, %c0_108, %c12_109] : memref<1x10x4x256xbf16, #tpu.memory_space<vmem>>, vector<1x1x4x128xbf16>
    %137 = vector.shape_cast %136 : vector<1x1x4x128xbf16> to vector<1x4x128xbf16>
    %138 = vector.shape_cast %137 : vector<1x4x128xbf16> to vector<4x128xbf16>
    %c28_110 = arith.constant 28 : index
    %c128_111 = arith.constant 128 : index
    %139 = vector.load %arg8[%c28_110, %c128_111] : memref<216x512xbf16, #tpu.memory_space<vmem>>, vector<4x128xbf16>
    tpu.vector_store %arg8[%c28_110, %c128_111], %138 {strides = array<i32>} : memref<216x512xbf16, #tpu.memory_space<vmem>>, vector<4x128xbf16>,
    %c100 = arith.constant 100 : index
    %c0_112 = arith.constant 0 : index
    %140 = vector.load %arg8[%c100, %c0_112] : memref<216x512xbf16, #tpu.memory_space<vmem>>, vector<4x128xbf16>
    tpu.vector_store %arg8[%c100, %c0_112], %138 {strides = array<i32>} : memref<216x512xbf16, #tpu.memory_space<vmem>>, vector<4x128xbf16>,
    %c0_113 = arith.constant 0 : index
    %141 = arith.index_cast %92 : i32 to index
    %c0_114 = arith.constant 0 : index
    %c13_115 = arith.constant 13 : index
    %142 = vector.load %arg2[%c0_113, %141, %c0_114, %c13_115] : memref<1x10x4x256xbf16, #tpu.memory_space<vmem>>, vector<1x1x4x128xbf16>
    %143 = vector.shape_cast %142 : vector<1x1x4x128xbf16> to vector<1x4x128xbf16>
    %144 = vector.shape_cast %143 : vector<1x4x128xbf16> to vector<4x128xbf16>
    %c32_116 = arith.constant 32 : index
    %c128_117 = arith.constant 128 : index
    %145 = vector.load %arg8[%c32_116, %c128_117] : memref<216x512xbf16, #tpu.memory_space<vmem>>, vector<4x128xbf16>
    tpu.vector_store %arg8[%c32_116, %c128_117], %144 {strides = array<i32>} : memref<216x512xbf16, #tpu.memory_space<vmem>>, vector<4x128xbf16>,
    %c104 = arith.constant 104 : index
    %c0_118 = arith.constant 0 : index
    %146 = vector.load %arg8[%c104, %c0_118] : memref<216x512xbf16, #tpu.memory_space<vmem>>, vector<4x128xbf16>
    tpu.vector_store %arg8[%c104, %c0_118], %144 {strides = array<i32>} : memref<216x512xbf16, #tpu.memory_space<vmem>>, vector<4x128xbf16>,
    %c0_119 = arith.constant 0 : index
    %147 = arith.index_cast %92 : i32 to index
    %c0_120 = arith.constant 0 : index
    %c13_121 = arith.constant 13 : index
    %148 = vector.load %arg3[%c0_119, %147, %c0_120, %c13_121] : memref<1x10x4x256xbf16, #tpu.memory_space<vmem>>, vector<1x1x4x128xbf16>
    %149 = vector.shape_cast %148 : vector<1x1x4x128xbf16> to vector<1x4x128xbf16>
    %150 = vector.shape_cast %149 : vector<1x4x128xbf16> to vector<4x128xbf16>
    %c36_122 = arith.constant 36 : index
    %c128_123 = arith.constant 128 : index
    %151 = vector.load %arg8[%c36_122, %c128_123] : memref<216x512xbf16, #tpu.memory_space<vmem>>, vector<4x128xbf16>
    tpu.vector_store %arg8[%c36_122, %c128_123], %150 {strides = array<i32>} : memref<216x512xbf16, #tpu.memory_space<vmem>>, vector<4x128xbf16>,
    %c108 = arith.constant 108 : index
    %c0_124 = arith.constant 0 : index
    %152 = vector.load %arg8[%c108, %c0_124] : memref<216x512xbf16, #tpu.memory_space<vmem>>, vector<4x128xbf16>
    tpu.vector_store %arg8[%c108, %c0_124], %150 {strides = array<i32>} : memref<216x512xbf16, #tpu.memory_space<vmem>>, vector<4x128xbf16>,
    %c0_125 = arith.constant 0 : index
    %153 = arith.index_cast %92 : i32 to index
    %c0_126 = arith.constant 0 : index
    %c14_127 = arith.constant 14 : index
    %154 = vector.load %arg2[%c0_125, %153, %c0_126, %c14_127] : memref<1x10x4x256xbf16, #tpu.memory_space<vmem>>, vector<1x1x4x128xbf16>
    %155 = vector.shape_cast %154 : vector<1x1x4x128xbf16> to vector<1x4x128xbf16>
    %156 = vector.shape_cast %155 : vector<1x4x128xbf16> to vector<4x128xbf16>
    %c40_128 = arith.constant 40 : index
    %c128_129 = arith.constant 128 : index
    %157 = vector.load %arg8[%c40_128, %c128_129] : memref<216x512xbf16, #tpu.memory_space<vmem>>, vector<4x128xbf16>
    tpu.vector_store %arg8[%c40_128, %c128_129], %156 {strides = array<i32>} : memref<216x512xbf16, #tpu.memory_space<vmem>>, vector<4x128xbf16>,
    %c112 = arith.constant 112 : index
    %c0_130 = arith.constant 0 : index
    %158 = vector.load %arg8[%c112, %c0_130] : memref<216x512xbf16, #tpu.memory_space<vmem>>, vector<4x128xbf16>
    tpu.vector_store %arg8[%c112, %c0_130], %156 {strides = array<i32>} : memref<216x512xbf16, #tpu.memory_space<vmem>>, vector<4x128xbf16>,
    %c0_131 = arith.constant 0 : index
    %159 = arith.index_cast %92 : i32 to index
    %c0_132 = arith.constant 0 : index
    %c14_133 = arith.constant 14 : index
    %160 = vector.load %arg3[%c0_131, %159, %c0_132, %c14_133] : memref<1x10x4x256xbf16, #tpu.memory_space<vmem>>, vector<1x1x4x128xbf16>
    %161 = vector.shape_cast %160 : vector<1x1x4x128xbf16> to vector<1x4x128xbf16>
    %162 = vector.shape_cast %161 : vector<1x4x128xbf16> to vector<4x128xbf16>
    %c44_134 = arith.constant 44 : index
    %c128_135 = arith.constant 128 : index
    %163 = vector.load %arg8[%c44_134, %c128_135] : memref<216x512xbf16, #tpu.memory_space<vmem>>, vector<4x128xbf16>
    tpu.vector_store %arg8[%c44_134, %c128_135], %162 {strides = array<i32>} : memref<216x512xbf16, #tpu.memory_space<vmem>>, vector<4x128xbf16>,
    %c116 = arith.constant 116 : index
    %c0_136 = arith.constant 0 : index
    %164 = vector.load %arg8[%c116, %c0_136] : memref<216x512xbf16, #tpu.memory_space<vmem>>, vector<4x128xbf16>
    tpu.vector_store %arg8[%c116, %c0_136], %162 {strides = array<i32>} : memref<216x512xbf16, #tpu.memory_space<vmem>>, vector<4x128xbf16>,
    %c0_137 = arith.constant 0 : index
    %165 = arith.index_cast %92 : i32 to index
    %c0_138 = arith.constant 0 : index
    %c24_139 = arith.constant 24 : index
    %166 = vector.load %arg2[%c0_137, %165, %c0_138, %c24_139] : memref<1x10x4x256xbf16, #tpu.memory_space<vmem>>, vector<1x1x4x128xbf16>
    %167 = vector.shape_cast %166 : vector<1x1x4x128xbf16> to vector<1x4x128xbf16>
    %168 = vector.shape_cast %167 : vector<1x4x128xbf16> to vector<4x128xbf16>
    %c48_140 = arith.constant 48 : index
    %c128_141 = arith.constant 128 : index
    %169 = vector.load %arg8[%c48_140, %c128_141] : memref<216x512xbf16, #tpu.memory_space<vmem>>, vector<4x128xbf16>
    tpu.vector_store %arg8[%c48_140, %c128_141], %168 {strides = array<i32>} : memref<216x512xbf16, #tpu.memory_space<vmem>>, vector<4x128xbf16>,
    %c120 = arith.constant 120 : index
    %c0_142 = arith.constant 0 : index
    %170 = vector.load %arg8[%c120, %c0_142] : memref<216x512xbf16, #tpu.memory_space<vmem>>, vector<4x128xbf16>
    tpu.vector_store %arg8[%c120, %c0_142], %168 {strides = array<i32>} : memref<216x512xbf16, #tpu.memory_space<vmem>>, vector<4x128xbf16>,
    %c0_143 = arith.constant 0 : index
    %171 = arith.index_cast %92 : i32 to index
    %c0_144 = arith.constant 0 : index
    %c24_145 = arith.constant 24 : index
    %172 = vector.load %arg3[%c0_143, %171, %c0_144, %c24_145] : memref<1x10x4x256xbf16, #tpu.memory_space<vmem>>, vector<1x1x4x128xbf16>
    %173 = vector.shape_cast %172 : vector<1x1x4x128xbf16> to vector<1x4x128xbf16>
    %174 = vector.shape_cast %173 : vector<1x4x128xbf16> to vector<4x128xbf16>
    %c52_146 = arith.constant 52 : index
    %c128_147 = arith.constant 128 : index
    %175 = vector.load %arg8[%c52_146, %c128_147] : memref<216x512xbf16, #tpu.memory_space<vmem>>, vector<4x128xbf16>
    tpu.vector_store %arg8[%c52_146, %c128_147], %174 {strides = array<i32>} : memref<216x512xbf16, #tpu.memory_space<vmem>>, vector<4x128xbf16>,
    %c124 = arith.constant 124 : index
    %c0_148 = arith.constant 0 : index
    %176 = vector.load %arg8[%c124, %c0_148] : memref<216x512xbf16, #tpu.memory_space<vmem>>, vector<4x128xbf16>
    tpu.vector_store %arg8[%c124, %c0_148], %174 {strides = array<i32>} : memref<216x512xbf16, #tpu.memory_space<vmem>>, vector<4x128xbf16>,
    %c0_149 = arith.constant 0 : index
    %177 = arith.index_cast %92 : i32 to index
    %c0_150 = arith.constant 0 : index
    %c25_151 = arith.constant 25 : index
    %178 = vector.load %arg2[%c0_149, %177, %c0_150, %c25_151] : memref<1x10x4x256xbf16, #tpu.memory_space<vmem>>, vector<1x1x4x128xbf16>
    %179 = vector.shape_cast %178 : vector<1x1x4x128xbf16> to vector<1x4x128xbf16>
    %180 = vector.shape_cast %179 : vector<1x4x128xbf16> to vector<4x128xbf16>
    %c56_152 = arith.constant 56 : index
    %c128_153 = arith.constant 128 : index
    %181 = vector.load %arg8[%c56_152, %c128_153] : memref<216x512xbf16, #tpu.memory_space<vmem>>, vector<4x128xbf16>
    tpu.vector_store %arg8[%c56_152, %c128_153], %180 {strides = array<i32>} : memref<216x512xbf16, #tpu.memory_space<vmem>>, vector<4x128xbf16>,
    %c128_154 = arith.constant 128 : index
    %c0_155 = arith.constant 0 : index
    %182 = vector.load %arg8[%c128_154, %c0_155] : memref<216x512xbf16, #tpu.memory_space<vmem>>, vector<4x128xbf16>
    tpu.vector_store %arg8[%c128_154, %c0_155], %180 {strides = array<i32>} : memref<216x512xbf16, #tpu.memory_space<vmem>>, vector<4x128xbf16>,
    %c0_156 = arith.constant 0 : index
    %183 = arith.index_cast %92 : i32 to index
    %c0_157 = arith.constant 0 : index
    %c25_158 = arith.constant 25 : index
    %184 = vector.load %arg3[%c0_156, %183, %c0_157, %c25_158] : memref<1x10x4x256xbf16, #tpu.memory_space<vmem>>, vector<1x1x4x128xbf16>
    %185 = vector.shape_cast %184 : vector<1x1x4x128xbf16> to vector<1x4x128xbf16>
    %186 = vector.shape_cast %185 : vector<1x4x128xbf16> to vector<4x128xbf16>
    %c60_159 = arith.constant 60 : index
    %c128_160 = arith.constant 128 : index
    %187 = vector.load %arg8[%c60_159, %c128_160] : memref<216x512xbf16, #tpu.memory_space<vmem>>, vector<4x128xbf16>
    tpu.vector_store %arg8[%c60_159, %c128_160], %186 {strides = array<i32>} : memref<216x512xbf16, #tpu.memory_space<vmem>>, vector<4x128xbf16>,
    %c132 = arith.constant 132 : index
    %c0_161 = arith.constant 0 : index
    %188 = vector.load %arg8[%c132, %c0_161] : memref<216x512xbf16, #tpu.memory_space<vmem>>, vector<4x128xbf16>
    tpu.vector_store %arg8[%c132, %c0_161], %186 {strides = array<i32>} : memref<216x512xbf16, #tpu.memory_space<vmem>>, vector<4x128xbf16>,
    %c0_162 = arith.constant 0 : index
    %189 = arith.index_cast %92 : i32 to index
    %c0_163 = arith.constant 0 : index
    %c26_164 = arith.constant 26 : index
    %190 = vector.load %arg2[%c0_162, %189, %c0_163, %c26_164] : memref<1x10x4x256xbf16, #tpu.memory_space<vmem>>, vector<1x1x4x128xbf16>
    %191 = vector.shape_cast %190 : vector<1x1x4x128xbf16> to vector<1x4x128xbf16>
    %192 = vector.shape_cast %191 : vector<1x4x128xbf16> to vector<4x128xbf16>
    %c64_165 = arith.constant 64 : index
    %c128_166 = arith.constant 128 : index
    %193 = vector.load %arg8[%c64_165, %c128_166] : memref<216x512xbf16, #tpu.memory_space<vmem>>, vector<4x128xbf16>
    tpu.vector_store %arg8[%c64_165, %c128_166], %192 {strides = array<i32>} : memref<216x512xbf16, #tpu.memory_space<vmem>>, vector<4x128xbf16>,
    %c136 = arith.constant 136 : index
    %c0_167 = arith.constant 0 : index
    %194 = vector.load %arg8[%c136, %c0_167] : memref<216x512xbf16, #tpu.memory_space<vmem>>, vector<4x128xbf16>
    tpu.vector_store %arg8[%c136, %c0_167], %192 {strides = array<i32>} : memref<216x512xbf16, #tpu.memory_space<vmem>>, vector<4x128xbf16>,
    %c0_168 = arith.constant 0 : index
    %195 = arith.index_cast %92 : i32 to index
    %c0_169 = arith.constant 0 : index
    %c26_170 = arith.constant 26 : index
    %196 = vector.load %arg3[%c0_168, %195, %c0_169, %c26_170] : memref<1x10x4x256xbf16, #tpu.memory_space<vmem>>, vector<1x1x4x128xbf16>
    %197 = vector.shape_cast %196 : vector<1x1x4x128xbf16> to vector<1x4x128xbf16>
    %198 = vector.shape_cast %197 : vector<1x4x128xbf16> to vector<4x128xbf16>
    %c68_171 = arith.constant 68 : index
    %c128_172 = arith.constant 128 : index
    %199 = vector.load %arg8[%c68_171, %c128_172] : memref<216x512xbf16, #tpu.memory_space<vmem>>, vector<4x128xbf16>
    tpu.vector_store %arg8[%c68_171, %c128_172], %198 {strides = array<i32>} : memref<216x512xbf16, #tpu.memory_space<vmem>>, vector<4x128xbf16>,
    %c140 = arith.constant 140 : index
    %c0_173 = arith.constant 0 : index
    %200 = vector.load %arg8[%c140, %c0_173] : memref<216x512xbf16, #tpu.memory_space<vmem>>, vector<4x128xbf16>
    tpu.vector_store %arg8[%c140, %c0_173], %198 {strides = array<i32>} : memref<216x512xbf16, #tpu.memory_space<vmem>>, vector<4x128xbf16>,
    %c2_i32 = arith.constant 2 : i32
    %201 = arith.addi %0, %c2_i32 : i32
    %c0_174 = arith.constant 0 : index
    %202 = arith.index_cast %201 : i32 to index
    %c0_175 = arith.constant 0 : index
    %c0_176 = arith.constant 0 : index
    %203 = vector.load %arg2[%c0_174, %202, %c0_175, %c0_176] : memref<1x10x4x256xbf16, #tpu.memory_space<vmem>>, vector<1x1x4x128xbf16>
    %204 = vector.shape_cast %203 : vector<1x1x4x128xbf16> to vector<1x4x128xbf16>
    %205 = vector.shape_cast %204 : vector<1x4x128xbf16> to vector<4x128xbf16>
    %c0_177 = arith.constant 0 : index
    %c256 = arith.constant 256 : index
    %206 = vector.load %arg8[%c0_177, %c256] : memref<216x512xbf16, #tpu.memory_space<vmem>>, vector<4x128xbf16>
    tpu.vector_store %arg8[%c0_177, %c256], %205 {strides = array<i32>} : memref<216x512xbf16, #tpu.memory_space<vmem>>, vector<4x128xbf16>,
    %c72_178 = arith.constant 72 : index
    %c128_179 = arith.constant 128 : index
    %207 = vector.load %arg8[%c72_178, %c128_179] : memref<216x512xbf16, #tpu.memory_space<vmem>>, vector<4x128xbf16>
    tpu.vector_store %arg8[%c72_178, %c128_179], %205 {strides = array<i32>} : memref<216x512xbf16, #tpu.memory_space<vmem>>, vector<4x128xbf16>,
    %c144 = arith.constant 144 : index
    %c0_180 = arith.constant 0 : index
    %208 = vector.load %arg8[%c144, %c0_180] : memref<216x512xbf16, #tpu.memory_space<vmem>>, vector<4x128xbf16>
    tpu.vector_store %arg8[%c144, %c0_180], %205 {strides = array<i32>} : memref<216x512xbf16, #tpu.memory_space<vmem>>, vector<4x128xbf16>,
    %c0_181 = arith.constant 0 : index
    %209 = arith.index_cast %201 : i32 to index
    %c0_182 = arith.constant 0 : index
    %c0_183 = arith.constant 0 : index
    %210 = vector.load %arg3[%c0_181, %209, %c0_182, %c0_183] : memref<1x10x4x256xbf16, #tpu.memory_space<vmem>>, vector<1x1x4x128xbf16>
    %211 = vector.shape_cast %210 : vector<1x1x4x128xbf16> to vector<1x4x128xbf16>
    %212 = vector.shape_cast %211 : vector<1x4x128xbf16> to vector<4x128xbf16>
    %c4_184 = arith.constant 4 : index
    %c256_185 = arith.constant 256 : index
    %213 = vector.load %arg8[%c4_184, %c256_185] : memref<216x512xbf16, #tpu.memory_space<vmem>>, vector<4x128xbf16>
    tpu.vector_store %arg8[%c4_184, %c256_185], %212 {strides = array<i32>} : memref<216x512xbf16, #tpu.memory_space<vmem>>, vector<4x128xbf16>,
    %c76_186 = arith.constant 76 : index
    %c128_187 = arith.constant 128 : index
    %214 = vector.load %arg8[%c76_186, %c128_187] : memref<216x512xbf16, #tpu.memory_space<vmem>>, vector<4x128xbf16>
    tpu.vector_store %arg8[%c76_186, %c128_187], %212 {strides = array<i32>} : memref<216x512xbf16, #tpu.memory_space<vmem>>, vector<4x128xbf16>,
    %c148 = arith.constant 148 : index
    %c0_188 = arith.constant 0 : index
    %215 = vector.load %arg8[%c148, %c0_188] : memref<216x512xbf16, #tpu.memory_space<vmem>>, vector<4x128xbf16>
    tpu.vector_store %arg8[%c148, %c0_188], %212 {strides = array<i32>} : memref<216x512xbf16, #tpu.memory_space<vmem>>, vector<4x128xbf16>,
    %c0_189 = arith.constant 0 : index
    %216 = arith.index_cast %201 : i32 to index
    %c0_190 = arith.constant 0 : index
    %c1_191 = arith.constant 1 : index
    %217 = vector.load %arg2[%c0_189, %216, %c0_190, %c1_191] : memref<1x10x4x256xbf16, #tpu.memory_space<vmem>>, vector<1x1x4x128xbf16>
    %218 = vector.shape_cast %217 : vector<1x1x4x128xbf16> to vector<1x4x128xbf16>
    %219 = vector.shape_cast %218 : vector<1x4x128xbf16> to vector<4x128xbf16>
    %c8_192 = arith.constant 8 : index
    %c256_193 = arith.constant 256 : index
    %220 = vector.load %arg8[%c8_192, %c256_193] : memref<216x512xbf16, #tpu.memory_space<vmem>>, vector<4x128xbf16>
    tpu.vector_store %arg8[%c8_192, %c256_193], %219 {strides = array<i32>} : memref<216x512xbf16, #tpu.memory_space<vmem>>, vector<4x128xbf16>,
    %c80_194 = arith.constant 80 : index
    %c128_195 = arith.constant 128 : index
    %221 = vector.load %arg8[%c80_194, %c128_195] : memref<216x512xbf16, #tpu.memory_space<vmem>>, vector<4x128xbf16>
    tpu.vector_store %arg8[%c80_194, %c128_195], %219 {strides = array<i32>} : memref<216x512xbf16, #tpu.memory_space<vmem>>, vector<4x128xbf16>,
    %c152 = arith.constant 152 : index
    %c0_196 = arith.constant 0 : index
    %222 = vector.load %arg8[%c152, %c0_196] : memref<216x512xbf16, #tpu.memory_space<vmem>>, vector<4x128xbf16>
    tpu.vector_store %arg8[%c152, %c0_196], %219 {strides = array<i32>} : memref<216x512xbf16, #tpu.memory_space<vmem>>, vector<4x128xbf16>,
    %c0_197 = arith.constant 0 : index
    %223 = arith.index_cast %201 : i32 to index
    %c0_198 = arith.constant 0 : index
    %c1_199 = arith.constant 1 : index
    %224 = vector.load %arg3[%c0_197, %223, %c0_198, %c1_199] : memref<1x10x4x256xbf16, #tpu.memory_space<vmem>>, vector<1x1x4x128xbf16>
    %225 = vector.shape_cast %224 : vector<1x1x4x128xbf16> to vector<1x4x128xbf16>
    %226 = vector.shape_cast %225 : vector<1x4x128xbf16> to vector<4x128xbf16>
    %c12_200 = arith.constant 12 : index
    %c256_201 = arith.constant 256 : index
    %227 = vector.load %arg8[%c12_200, %c256_201] : memref<216x512xbf16, #tpu.memory_space<vmem>>, vector<4x128xbf16>
    tpu.vector_store %arg8[%c12_200, %c256_201], %226 {strides = array<i32>} : memref<216x512xbf16, #tpu.memory_space<vmem>>, vector<4x128xbf16>,
    %c84_202 = arith.constant 84 : index
    %c128_203 = arith.constant 128 : index
    %228 = vector.load %arg8[%c84_202, %c128_203] : memref<216x512xbf16, #tpu.memory_space<vmem>>, vector<4x128xbf16>
    tpu.vector_store %arg8[%c84_202, %c128_203], %226 {strides = array<i32>} : memref<216x512xbf16, #tpu.memory_space<vmem>>, vector<4x128xbf16>,
    %c156 = arith.constant 156 : index
    %c0_204 = arith.constant 0 : index
    %229 = vector.load %arg8[%c156, %c0_204] : memref<216x512xbf16, #tpu.memory_space<vmem>>, vector<4x128xbf16>
    tpu.vector_store %arg8[%c156, %c0_204], %226 {strides = array<i32>} : memref<216x512xbf16, #tpu.memory_space<vmem>>, vector<4x128xbf16>,
    %c0_205 = arith.constant 0 : index
    %230 = arith.index_cast %201 : i32 to index
    %c0_206 = arith.constant 0 : index
    %c2_207 = arith.constant 2 : index
    %231 = vector.load %arg2[%c0_205, %230, %c0_206, %c2_207] : memref<1x10x4x256xbf16, #tpu.memory_space<vmem>>, vector<1x1x4x128xbf16>
    %232 = vector.shape_cast %231 : vector<1x1x4x128xbf16> to vector<1x4x128xbf16>
    %233 = vector.shape_cast %232 : vector<1x4x128xbf16> to vector<4x128xbf16>
    %c16_208 = arith.constant 16 : index
    %c256_209 = arith.constant 256 : index
    %234 = vector.load %arg8[%c16_208, %c256_209] : memref<216x512xbf16, #tpu.memory_space<vmem>>, vector<4x128xbf16>
    tpu.vector_store %arg8[%c16_208, %c256_209], %233 {strides = array<i32>} : memref<216x512xbf16, #tpu.memory_space<vmem>>, vector<4x128xbf16>,
    %c88_210 = arith.constant 88 : index
    %c128_211 = arith.constant 128 : index
    %235 = vector.load %arg8[%c88_210, %c128_211] : memref<216x512xbf16, #tpu.memory_space<vmem>>, vector<4x128xbf16>
    tpu.vector_store %arg8[%c88_210, %c128_211], %233 {strides = array<i32>} : memref<216x512xbf16, #tpu.memory_space<vmem>>, vector<4x128xbf16>,
    %c160 = arith.constant 160 : index
    %c0_212 = arith.constant 0 : index
    %236 = vector.load %arg8[%c160, %c0_212] : memref<216x512xbf16, #tpu.memory_space<vmem>>, vector<4x128xbf16>
    tpu.vector_store %arg8[%c160, %c0_212], %233 {strides = array<i32>} : memref<216x512xbf16, #tpu.memory_space<vmem>>, vector<4x128xbf16>,
    %c0_213 = arith.constant 0 : index
    %237 = arith.index_cast %201 : i32 to index
    %c0_214 = arith.constant 0 : index
    %c2_215 = arith.constant 2 : index
    %238 = vector.load %arg3[%c0_213, %237, %c0_214, %c2_215] : memref<1x10x4x256xbf16, #tpu.memory_space<vmem>>, vector<1x1x4x128xbf16>
    %239 = vector.shape_cast %238 : vector<1x1x4x128xbf16> to vector<1x4x128xbf16>
    %240 = vector.shape_cast %239 : vector<1x4x128xbf16> to vector<4x128xbf16>
    %c20_216 = arith.constant 20 : index
    %c256_217 = arith.constant 256 : index
    %241 = vector.load %arg8[%c20_216, %c256_217] : memref<216x512xbf16, #tpu.memory_space<vmem>>, vector<4x128xbf16>
    tpu.vector_store %arg8[%c20_216, %c256_217], %240 {strides = array<i32>} : memref<216x512xbf16, #tpu.memory_space<vmem>>, vector<4x128xbf16>,
    %c92_218 = arith.constant 92 : index
    %c128_219 = arith.constant 128 : index
    %242 = vector.load %arg8[%c92_218, %c128_219] : memref<216x512xbf16, #tpu.memory_space<vmem>>, vector<4x128xbf16>
    tpu.vector_store %arg8[%c92_218, %c128_219], %240 {strides = array<i32>} : memref<216x512xbf16, #tpu.memory_space<vmem>>, vector<4x128xbf16>,
    %c164 = arith.constant 164 : index
    %c0_220 = arith.constant 0 : index
    %243 = vector.load %arg8[%c164, %c0_220] : memref<216x512xbf16, #tpu.memory_space<vmem>>, vector<4x128xbf16>
    tpu.vector_store %arg8[%c164, %c0_220], %240 {strides = array<i32>} : memref<216x512xbf16, #tpu.memory_space<vmem>>, vector<4x128xbf16>,
    %c0_221 = arith.constant 0 : index
    %244 = arith.index_cast %201 : i32 to index
    %c0_222 = arith.constant 0 : index
    %c12_223 = arith.constant 12 : index
    %245 = vector.load %arg2[%c0_221, %244, %c0_222, %c12_223] : memref<1x10x4x256xbf16, #tpu.memory_space<vmem>>, vector<1x1x4x128xbf16>
    %246 = vector.shape_cast %245 : vector<1x1x4x128xbf16> to vector<1x4x128xbf16>
    %247 = vector.shape_cast %246 : vector<1x4x128xbf16> to vector<4x128xbf16>
    %c24_224 = arith.constant 24 : index
    %c256_225 = arith.constant 256 : index
    %248 = vector.load %arg8[%c24_224, %c256_225] : memref<216x512xbf16, #tpu.memory_space<vmem>>, vector<4x128xbf16>
    tpu.vector_store %arg8[%c24_224, %c256_225], %247 {strides = array<i32>} : memref<216x512xbf16, #tpu.memory_space<vmem>>, vector<4x128xbf16>,
    %c96_226 = arith.constant 96 : index
    %c128_227 = arith.constant 128 : index
    %249 = vector.load %arg8[%c96_226, %c128_227] : memref<216x512xbf16, #tpu.memory_space<vmem>>, vector<4x128xbf16>
    tpu.vector_store %arg8[%c96_226, %c128_227], %247 {strides = array<i32>} : memref<216x512xbf16, #tpu.memory_space<vmem>>, vector<4x128xbf16>,
    %c168 = arith.constant 168 : index
    %c0_228 = arith.constant 0 : index
    %250 = vector.load %arg8[%c168, %c0_228] : memref<216x512xbf16, #tpu.memory_space<vmem>>, vector<4x128xbf16>
    tpu.vector_store %arg8[%c168, %c0_228], %247 {strides = array<i32>} : memref<216x512xbf16, #tpu.memory_space<vmem>>, vector<4x128xbf16>,
    %c0_229 = arith.constant 0 : index
    %251 = arith.index_cast %201 : i32 to index
    %c0_230 = arith.constant 0 : index
    %c12_231 = arith.constant 12 : index
    %252 = vector.load %arg3[%c0_229, %251, %c0_230, %c12_231] : memref<1x10x4x256xbf16, #tpu.memory_space<vmem>>, vector<1x1x4x128xbf16>
    %253 = vector.shape_cast %252 : vector<1x1x4x128xbf16> to vector<1x4x128xbf16>
    %254 = vector.shape_cast %253 : vector<1x4x128xbf16> to vector<4x128xbf16>
    %c28_232 = arith.constant 28 : index
    %c256_233 = arith.constant 256 : index
    %255 = vector.load %arg8[%c28_232, %c256_233] : memref<216x512xbf16, #tpu.memory_space<vmem>>, vector<4x128xbf16>
    tpu.vector_store %arg8[%c28_232, %c256_233], %254 {strides = array<i32>} : memref<216x512xbf16, #tpu.memory_space<vmem>>, vector<4x128xbf16>,
    %c100_234 = arith.constant 100 : index
    %c128_235 = arith.constant 128 : index
    %256 = vector.load %arg8[%c100_234, %c128_235] : memref<216x512xbf16, #tpu.memory_space<vmem>>, vector<4x128xbf16>
    tpu.vector_store %arg8[%c100_234, %c128_235], %254 {strides = array<i32>} : memref<216x512xbf16, #tpu.memory_space<vmem>>, vector<4x128xbf16>,
    %c172 = arith.constant 172 : index
    %c0_236 = arith.constant 0 : index
    %257 = vector.load %arg8[%c172, %c0_236] : memref<216x512xbf16, #tpu.memory_space<vmem>>, vector<4x128xbf16>
    tpu.vector_store %arg8[%c172, %c0_236], %254 {strides = array<i32>} : memref<216x512xbf16, #tpu.memory_space<vmem>>, vector<4x128xbf16>,
    %c0_237 = arith.constant 0 : index
    %258 = arith.index_cast %201 : i32 to index
    %c0_238 = arith.constant 0 : index
    %c13_239 = arith.constant 13 : index
    %259 = vector.load %arg2[%c0_237, %258, %c0_238, %c13_239] : memref<1x10x4x256xbf16, #tpu.memory_space<vmem>>, vector<1x1x4x128xbf16>
    %260 = vector.shape_cast %259 : vector<1x1x4x128xbf16> to vector<1x4x128xbf16>
    %261 = vector.shape_cast %260 : vector<1x4x128xbf16> to vector<4x128xbf16>
    %c32_240 = arith.constant 32 : index
    %c256_241 = arith.constant 256 : index
    %262 = vector.load %arg8[%c32_240, %c256_241] : memref<216x512xbf16, #tpu.memory_space<vmem>>, vector<4x128xbf16>
    tpu.vector_store %arg8[%c32_240, %c256_241], %261 {strides = array<i32>} : memref<216x512xbf16, #tpu.memory_space<vmem>>, vector<4x128xbf16>,
    %c104_242 = arith.constant 104 : index
    %c128_243 = arith.constant 128 : index
    %263 = vector.load %arg8[%c104_242, %c128_243] : memref<216x512xbf16, #tpu.memory_space<vmem>>, vector<4x128xbf16>
    tpu.vector_store %arg8[%c104_242, %c128_243], %261 {strides = array<i32>} : memref<216x512xbf16, #tpu.memory_space<vmem>>, vector<4x128xbf16>,
    %c176 = arith.constant 176 : index
    %c0_244 = arith.constant 0 : index
    %264 = vector.load %arg8[%c176, %c0_244] : memref<216x512xbf16, #tpu.memory_space<vmem>>, vector<4x128xbf16>
    tpu.vector_store %arg8[%c176, %c0_244], %261 {strides = array<i32>} : memref<216x512xbf16, #tpu.memory_space<vmem>>, vector<4x128xbf16>,
    %c0_245 = arith.constant 0 : index
    %265 = arith.index_cast %201 : i32 to index
    %c0_246 = arith.constant 0 : index
    %c13_247 = arith.constant 13 : index
    %266 = vector.load %arg3[%c0_245, %265, %c0_246, %c13_247] : memref<1x10x4x256xbf16, #tpu.memory_space<vmem>>, vector<1x1x4x128xbf16>
    %267 = vector.shape_cast %266 : vector<1x1x4x128xbf16> to vector<1x4x128xbf16>
    %268 = vector.shape_cast %267 : vector<1x4x128xbf16> to vector<4x128xbf16>
    %c36_248 = arith.constant 36 : index
    %c256_249 = arith.constant 256 : index
    %269 = vector.load %arg8[%c36_248, %c256_249] : memref<216x512xbf16, #tpu.memory_space<vmem>>, vector<4x128xbf16>
    tpu.vector_store %arg8[%c36_248, %c256_249], %268 {strides = array<i32>} : memref<216x512xbf16, #tpu.memory_space<vmem>>, vector<4x128xbf16>,
    %c108_250 = arith.constant 108 : index
    %c128_251 = arith.constant 128 : index
    %270 = vector.load %arg8[%c108_250, %c128_251] : memref<216x512xbf16, #tpu.memory_space<vmem>>, vector<4x128xbf16>
    tpu.vector_store %arg8[%c108_250, %c128_251], %268 {strides = array<i32>} : memref<216x512xbf16, #tpu.memory_space<vmem>>, vector<4x128xbf16>,
    %c180 = arith.constant 180 : index
    %c0_252 = arith.constant 0 : index
    %271 = vector.load %arg8[%c180, %c0_252] : memref<216x512xbf16, #tpu.memory_space<vmem>>, vector<4x128xbf16>
    tpu.vector_store %arg8[%c180, %c0_252], %268 {strides = array<i32>} : memref<216x512xbf16, #tpu.memory_space<vmem>>, vector<4x128xbf16>,
    %c0_253 = arith.constant 0 : index
    %272 = arith.index_cast %201 : i32 to index
    %c0_254 = arith.constant 0 : index
    %c14_255 = arith.constant 14 : index
    %273 = vector.load %arg2[%c0_253, %272, %c0_254, %c14_255] : memref<1x10x4x256xbf16, #tpu.memory_space<vmem>>, vector<1x1x4x128xbf16>
    %274 = vector.shape_cast %273 : vector<1x1x4x128xbf16> to vector<1x4x128xbf16>
    %275 = vector.shape_cast %274 : vector<1x4x128xbf16> to vector<4x128xbf16>
    %c40_256 = arith.constant 40 : index
    %c256_257 = arith.constant 256 : index
    %276 = vector.load %arg8[%c40_256, %c256_257] : memref<216x512xbf16, #tpu.memory_space<vmem>>, vector<4x128xbf16>
    tpu.vector_store %arg8[%c40_256, %c256_257], %275 {strides = array<i32>} : memref<216x512xbf16, #tpu.memory_space<vmem>>, vector<4x128xbf16>,
    %c112_258 = arith.constant 112 : index
    %c128_259 = arith.constant 128 : index
    %277 = vector.load %arg8[%c112_258, %c128_259] : memref<216x512xbf16, #tpu.memory_space<vmem>>, vector<4x128xbf16>
    tpu.vector_store %arg8[%c112_258, %c128_259], %275 {strides = array<i32>} : memref<216x512xbf16, #tpu.memory_space<vmem>>, vector<4x128xbf16>,
    %c184 = arith.constant 184 : index
    %c0_260 = arith.constant 0 : index
    %278 = vector.load %arg8[%c184, %c0_260] : memref<216x512xbf16, #tpu.memory_space<vmem>>, vector<4x128xbf16>
    tpu.vector_store %arg8[%c184, %c0_260], %275 {strides = array<i32>} : memref<216x512xbf16, #tpu.memory_space<vmem>>, vector<4x128xbf16>,
    %c0_261 = arith.constant 0 : index
    %279 = arith.index_cast %201 : i32 to index
    %c0_262 = arith.constant 0 : index
    %c14_263 = arith.constant 14 : index
    %280 = vector.load %arg3[%c0_261, %279, %c0_262, %c14_263] : memref<1x10x4x256xbf16, #tpu.memory_space<vmem>>, vector<1x1x4x128xbf16>
    %281 = vector.shape_cast %280 : vector<1x1x4x128xbf16> to vector<1x4x128xbf16>
    %282 = vector.shape_cast %281 : vector<1x4x128xbf16> to vector<4x128xbf16>
    %c44_264 = arith.constant 44 : index
    %c256_265 = arith.constant 256 : index
    %283 = vector.load %arg8[%c44_264, %c256_265] : memref<216x512xbf16, #tpu.memory_space<vmem>>, vector<4x128xbf16>
    tpu.vector_store %arg8[%c44_264, %c256_265], %282 {strides = array<i32>} : memref<216x512xbf16, #tpu.memory_space<vmem>>, vector<4x128xbf16>,
    %c116_266 = arith.constant 116 : index
    %c128_267 = arith.constant 128 : index
    %284 = vector.load %arg8[%c116_266, %c128_267] : memref<216x512xbf16, #tpu.memory_space<vmem>>, vector<4x128xbf16>
    tpu.vector_store %arg8[%c116_266, %c128_267], %282 {strides = array<i32>} : memref<216x512xbf16, #tpu.memory_space<vmem>>, vector<4x128xbf16>,
    %c188 = arith.constant 188 : index
    %c0_268 = arith.constant 0 : index
    %285 = vector.load %arg8[%c188, %c0_268] : memref<216x512xbf16, #tpu.memory_space<vmem>>, vector<4x128xbf16>
    tpu.vector_store %arg8[%c188, %c0_268], %282 {strides = array<i32>} : memref<216x512xbf16, #tpu.memory_space<vmem>>, vector<4x128xbf16>,
    %c0_269 = arith.constant 0 : index
    %286 = arith.index_cast %201 : i32 to index
    %c0_270 = arith.constant 0 : index
    %c24_271 = arith.constant 24 : index
    %287 = vector.load %arg2[%c0_269, %286, %c0_270, %c24_271] : memref<1x10x4x256xbf16, #tpu.memory_space<vmem>>, vector<1x1x4x128xbf16>
    %288 = vector.shape_cast %287 : vector<1x1x4x128xbf16> to vector<1x4x128xbf16>
    %289 = vector.shape_cast %288 : vector<1x4x128xbf16> to vector<4x128xbf16>
    %c48_272 = arith.constant 48 : index
    %c256_273 = arith.constant 256 : index
    %290 = vector.load %arg8[%c48_272, %c256_273] : memref<216x512xbf16, #tpu.memory_space<vmem>>, vector<4x128xbf16>
    tpu.vector_store %arg8[%c48_272, %c256_273], %289 {strides = array<i32>} : memref<216x512xbf16, #tpu.memory_space<vmem>>, vector<4x128xbf16>,
    %c120_274 = arith.constant 120 : index
    %c128_275 = arith.constant 128 : index
    %291 = vector.load %arg8[%c120_274, %c128_275] : memref<216x512xbf16, #tpu.memory_space<vmem>>, vector<4x128xbf16>
    tpu.vector_store %arg8[%c120_274, %c128_275], %289 {strides = array<i32>} : memref<216x512xbf16, #tpu.memory_space<vmem>>, vector<4x128xbf16>,
    %c192 = arith.constant 192 : index
    %c0_276 = arith.constant 0 : index
    %292 = vector.load %arg8[%c192, %c0_276] : memref<216x512xbf16, #tpu.memory_space<vmem>>, vector<4x128xbf16>
    tpu.vector_store %arg8[%c192, %c0_276], %289 {strides = array<i32>} : memref<216x512xbf16, #tpu.memory_space<vmem>>, vector<4x128xbf16>,
    %c0_277 = arith.constant 0 : index
    %293 = arith.index_cast %201 : i32 to index
    %c0_278 = arith.constant 0 : index
    %c24_279 = arith.constant 24 : index
    %294 = vector.load %arg3[%c0_277, %293, %c0_278, %c24_279] : memref<1x10x4x256xbf16, #tpu.memory_space<vmem>>, vector<1x1x4x128xbf16>
    %295 = vector.shape_cast %294 : vector<1x1x4x128xbf16> to vector<1x4x128xbf16>
    %296 = vector.shape_cast %295 : vector<1x4x128xbf16> to vector<4x128xbf16>
    %c52_280 = arith.constant 52 : index
    %c256_281 = arith.constant 256 : index
    %297 = vector.load %arg8[%c52_280, %c256_281] : memref<216x512xbf16, #tpu.memory_space<vmem>>, vector<4x128xbf16>
    tpu.vector_store %arg8[%c52_280, %c256_281], %296 {strides = array<i32>} : memref<216x512xbf16, #tpu.memory_space<vmem>>, vector<4x128xbf16>,
    %c124_282 = arith.constant 124 : index
    %c128_283 = arith.constant 128 : index
    %298 = vector.load %arg8[%c124_282, %c128_283] : memref<216x512xbf16, #tpu.memory_space<vmem>>, vector<4x128xbf16>
    tpu.vector_store %arg8[%c124_282, %c128_283], %296 {strides = array<i32>} : memref<216x512xbf16, #tpu.memory_space<vmem>>, vector<4x128xbf16>,
    %c196 = arith.constant 196 : index
    %c0_284 = arith.constant 0 : index
    %299 = vector.load %arg8[%c196, %c0_284] : memref<216x512xbf16, #tpu.memory_space<vmem>>, vector<4x128xbf16>
    tpu.vector_store %arg8[%c196, %c0_284], %296 {strides = array<i32>} : memref<216x512xbf16, #tpu.memory_space<vmem>>, vector<4x128xbf16>,
    %c0_285 = arith.constant 0 : index
    %300 = arith.index_cast %201 : i32 to index
    %c0_286 = arith.constant 0 : index
    %c25_287 = arith.constant 25 : index
    %301 = vector.load %arg2[%c0_285, %300, %c0_286, %c25_287] : memref<1x10x4x256xbf16, #tpu.memory_space<vmem>>, vector<1x1x4x128xbf16>
    %302 = vector.shape_cast %301 : vector<1x1x4x128xbf16> to vector<1x4x128xbf16>
    %303 = vector.shape_cast %302 : vector<1x4x128xbf16> to vector<4x128xbf16>
    %c56_288 = arith.constant 56 : index
    %c256_289 = arith.constant 256 : index
    %304 = vector.load %arg8[%c56_288, %c256_289] : memref<216x512xbf16, #tpu.memory_space<vmem>>, vector<4x128xbf16>
    tpu.vector_store %arg8[%c56_288, %c256_289], %303 {strides = array<i32>} : memref<216x512xbf16, #tpu.memory_space<vmem>>, vector<4x128xbf16>,
    %c128_290 = arith.constant 128 : index
    %c128_291 = arith.constant 128 : index
    %305 = vector.load %arg8[%c128_290, %c128_291] : memref<216x512xbf16, #tpu.memory_space<vmem>>, vector<4x128xbf16>
    tpu.vector_store %arg8[%c128_290, %c128_291], %303 {strides = array<i32>} : memref<216x512xbf16, #tpu.memory_space<vmem>>, vector<4x128xbf16>,
    %c200 = arith.constant 200 : index
    %c0_292 = arith.constant 0 : index
    %306 = vector.load %arg8[%c200, %c0_292] : memref<216x512xbf16, #tpu.memory_space<vmem>>, vector<4x128xbf16>
    tpu.vector_store %arg8[%c200, %c0_292], %303 {strides = array<i32>} : memref<216x512xbf16, #tpu.memory_space<vmem>>, vector<4x128xbf16>,
    %c0_293 = arith.constant 0 : index
    %307 = arith.index_cast %201 : i32 to index
    %c0_294 = arith.constant 0 : index
    %c25_295 = arith.constant 25 : index
    %308 = vector.load %arg3[%c0_293, %307, %c0_294, %c25_295] : memref<1x10x4x256xbf16, #tpu.memory_space<vmem>>, vector<1x1x4x128xbf16>
    %309 = vector.shape_cast %308 : vector<1x1x4x128xbf16> to vector<1x4x128xbf16>
    %310 = vector.shape_cast %309 : vector<1x4x128xbf16> to vector<4x128xbf16>
    %c60_296 = arith.constant 60 : index
    %c256_297 = arith.constant 256 : index
    %311 = vector.load %arg8[%c60_296, %c256_297] : memref<216x512xbf16, #tpu.memory_space<vmem>>, vector<4x128xbf16>
    tpu.vector_store %arg8[%c60_296, %c256_297], %310 {strides = array<i32>} : memref<216x512xbf16, #tpu.memory_space<vmem>>, vector<4x128xbf16>,
    %c132_298 = arith.constant 132 : index
    %c128_299 = arith.constant 128 : index
    %312 = vector.load %arg8[%c132_298, %c128_299] : memref<216x512xbf16, #tpu.memory_space<vmem>>, vector<4x128xbf16>
    tpu.vector_store %arg8[%c132_298, %c128_299], %310 {strides = array<i32>} : memref<216x512xbf16, #tpu.memory_space<vmem>>, vector<4x128xbf16>,
    %c204 = arith.constant 204 : index
    %c0_300 = arith.constant 0 : index
    %313 = vector.load %arg8[%c204, %c0_300] : memref<216x512xbf16, #tpu.memory_space<vmem>>, vector<4x128xbf16>
    tpu.vector_store %arg8[%c204, %c0_300], %310 {strides = array<i32>} : memref<216x512xbf16, #tpu.memory_space<vmem>>, vector<4x128xbf16>,
    %c0_301 = arith.constant 0 : index
    %314 = arith.index_cast %201 : i32 to index
    %c0_302 = arith.constant 0 : index
    %c26_303 = arith.constant 26 : index
    %315 = vector.load %arg2[%c0_301, %314, %c0_302, %c26_303] : memref<1x10x4x256xbf16, #tpu.memory_space<vmem>>, vector<1x1x4x128xbf16>
    %316 = vector.shape_cast %315 : vector<1x1x4x128xbf16> to vector<1x4x128xbf16>
    %317 = vector.shape_cast %316 : vector<1x4x128xbf16> to vector<4x128xbf16>
    %c64_304 = arith.constant 64 : index
    %c256_305 = arith.constant 256 : index
    %318 = vector.load %arg8[%c64_304, %c256_305] : memref<216x512xbf16, #tpu.memory_space<vmem>>, vector<4x128xbf16>
    tpu.vector_store %arg8[%c64_304, %c256_305], %317 {strides = array<i32>} : memref<216x512xbf16, #tpu.memory_space<vmem>>, vector<4x128xbf16>,
    %c136_306 = arith.constant 136 : index
    %c128_307 = arith.constant 128 : index
    %319 = vector.load %arg8[%c136_306, %c128_307] : memref<216x512xbf16, #tpu.memory_space<vmem>>, vector<4x128xbf16>
    tpu.vector_store %arg8[%c136_306, %c128_307], %317 {strides = array<i32>} : memref<216x512xbf16, #tpu.memory_space<vmem>>, vector<4x128xbf16>,
    %c208 = arith.constant 208 : index
    %c0_308 = arith.constant 0 : index
    %320 = vector.load %arg8[%c208, %c0_308] : memref<216x512xbf16, #tpu.memory_space<vmem>>, vector<4x128xbf16>
    tpu.vector_store %arg8[%c208, %c0_308], %317 {strides = array<i32>} : memref<216x512xbf16, #tpu.memory_space<vmem>>, vector<4x128xbf16>,
    %c0_309 = arith.constant 0 : index
    %321 = arith.index_cast %201 : i32 to index
    %c0_310 = arith.constant 0 : index
    %c26_311 = arith.constant 26 : index
    %322 = vector.load %arg3[%c0_309, %321, %c0_310, %c26_311] : memref<1x10x4x256xbf16, #tpu.memory_space<vmem>>, vector<1x1x4x128xbf16>
    %323 = vector.shape_cast %322 : vector<1x1x4x128xbf16> to vector<1x4x128xbf16>
    %324 = vector.shape_cast %323 : vector<1x4x128xbf16> to vector<4x128xbf16>
    %c68_312 = arith.constant 68 : index
    %c256_313 = arith.constant 256 : index
    %325 = vector.load %arg8[%c68_312, %c256_313] : memref<216x512xbf16, #tpu.memory_space<vmem>>, vector<4x128xbf16>
    tpu.vector_store %arg8[%c68_312, %c256_313], %324 {strides = array<i32>} : memref<216x512xbf16, #tpu.memory_space<vmem>>, vector<4x128xbf16>,
    %c140_314 = arith.constant 140 : index
    %c128_315 = arith.constant 128 : index
    %326 = vector.load %arg8[%c140_314, %c128_315] : memref<216x512xbf16, #tpu.memory_space<vmem>>, vector<4x128xbf16>
    tpu.vector_store %arg8[%c140_314, %c128_315], %324 {strides = array<i32>} : memref<216x512xbf16, #tpu.memory_space<vmem>>, vector<4x128xbf16>,
    %c212 = arith.constant 212 : index
    %c0_316 = arith.constant 0 : index
    %327 = vector.load %arg8[%c212, %c0_316] : memref<216x512xbf16, #tpu.memory_space<vmem>>, vector<4x128xbf16>
    tpu.vector_store %arg8[%c212, %c0_316], %324 {strides = array<i32>} : memref<216x512xbf16, #tpu.memory_space<vmem>>, vector<4x128xbf16>,
    %c3_i32 = arith.constant 3 : i32
    %328 = arith.addi %0, %c3_i32 : i32
    %c0_317 = arith.constant 0 : index
    %329 = arith.index_cast %328 : i32 to index
    %c0_318 = arith.constant 0 : index
    %c0_319 = arith.constant 0 : index
    %330 = vector.load %arg2[%c0_317, %329, %c0_318, %c0_319] : memref<1x10x4x256xbf16, #tpu.memory_space<vmem>>, vector<1x1x4x128xbf16>
    %331 = vector.shape_cast %330 : vector<1x1x4x128xbf16> to vector<1x4x128xbf16>
    %332 = vector.shape_cast %331 : vector<1x4x128xbf16> to vector<4x128xbf16>
    %c0_320 = arith.constant 0 : index
    %c384 = arith.constant 384 : index
    %333 = vector.load %arg8[%c0_320, %c384] : memref<216x512xbf16, #tpu.memory_space<vmem>>, vector<4x128xbf16>
    tpu.vector_store %arg8[%c0_320, %c384], %332 {strides = array<i32>} : memref<216x512xbf16, #tpu.memory_space<vmem>>, vector<4x128xbf16>,
    %c72_321 = arith.constant 72 : index
    %c256_322 = arith.constant 256 : index
    %334 = vector.load %arg8[%c72_321, %c256_322] : memref<216x512xbf16, #tpu.memory_space<vmem>>, vector<4x128xbf16>
    tpu.vector_store %arg8[%c72_321, %c256_322], %332 {strides = array<i32>} : memref<216x512xbf16, #tpu.memory_space<vmem>>, vector<4x128xbf16>,
    %c144_323 = arith.constant 144 : index
    %c128_324 = arith.constant 128 : index
    %335 = vector.load %arg8[%c144_323, %c128_324] : memref<216x512xbf16, #tpu.memory_space<vmem>>, vector<4x128xbf16>
    tpu.vector_store %arg8[%c144_323, %c128_324], %332 {strides = array<i32>} : memref<216x512xbf16, #tpu.memory_space<vmem>>, vector<4x128xbf16>,
    %c0_325 = arith.constant 0 : index
    %336 = arith.index_cast %328 : i32 to index
    %c0_326 = arith.constant 0 : index
    %c0_327 = arith.constant 0 : index
    %337 = vector.load %arg3[%c0_325, %336, %c0_326, %c0_327] : memref<1x10x4x256xbf16, #tpu.memory_space<vmem>>, vector<1x1x4x128xbf16>
    %338 = vector.shape_cast %337 : vector<1x1x4x128xbf16> to vector<1x4x128xbf16>
    %339 = vector.shape_cast %338 : vector<1x4x128xbf16> to vector<4x128xbf16>
    %c4_328 = arith.constant 4 : index
    %c384_329 = arith.constant 384 : index
    %340 = vector.load %arg8[%c4_328, %c384_329] : memref<216x512xbf16, #tpu.memory_space<vmem>>, vector<4x128xbf16>
    tpu.vector_store %arg8[%c4_328, %c384_329], %339 {strides = array<i32>} : memref<216x512xbf16, #tpu.memory_space<vmem>>, vector<4x128xbf16>,
    %c76_330 = arith.constant 76 : index
    %c256_331 = arith.constant 256 : index
    %341 = vector.load %arg8[%c76_330, %c256_331] : memref<216x512xbf16, #tpu.memory_space<vmem>>, vector<4x128xbf16>
    tpu.vector_store %arg8[%c76_330, %c256_331], %339 {strides = array<i32>} : memref<216x512xbf16, #tpu.memory_space<vmem>>, vector<4x128xbf16>,
    %c148_332 = arith.constant 148 : index
    %c128_333 = arith.constant 128 : index
    %342 = vector.load %arg8[%c148_332, %c128_333] : memref<216x512xbf16, #tpu.memory_space<vmem>>, vector<4x128xbf16>
    tpu.vector_store %arg8[%c148_332, %c128_333], %339 {strides = array<i32>} : memref<216x512xbf16, #tpu.memory_space<vmem>>, vector<4x128xbf16>,
    %c0_334 = arith.constant 0 : index
    %343 = arith.index_cast %328 : i32 to index
    %c0_335 = arith.constant 0 : index
    %c1_336 = arith.constant 1 : index
    %344 = vector.load %arg2[%c0_334, %343, %c0_335, %c1_336] : memref<1x10x4x256xbf16, #tpu.memory_space<vmem>>, vector<1x1x4x128xbf16>
    %345 = vector.shape_cast %344 : vector<1x1x4x128xbf16> to vector<1x4x128xbf16>
    %346 = vector.shape_cast %345 : vector<1x4x128xbf16> to vector<4x128xbf16>
    %c8_337 = arith.constant 8 : index
    %c384_338 = arith.constant 384 : index
    %347 = vector.load %arg8[%c8_337, %c384_338] : memref<216x512xbf16, #tpu.memory_space<vmem>>, vector<4x128xbf16>
    tpu.vector_store %arg8[%c8_337, %c384_338], %346 {strides = array<i32>} : memref<216x512xbf16, #tpu.memory_space<vmem>>, vector<4x128xbf16>,
    %c80_339 = arith.constant 80 : index
    %c256_340 = arith.constant 256 : index
    %348 = vector.load %arg8[%c80_339, %c256_340] : memref<216x512xbf16, #tpu.memory_space<vmem>>, vector<4x128xbf16>
    tpu.vector_store %arg8[%c80_339, %c256_340], %346 {strides = array<i32>} : memref<216x512xbf16, #tpu.memory_space<vmem>>, vector<4x128xbf16>,
    %c152_341 = arith.constant 152 : index
    %c128_342 = arith.constant 128 : index
    %349 = vector.load %arg8[%c152_341, %c128_342] : memref<216x512xbf16, #tpu.memory_space<vmem>>, vector<4x128xbf16>
    tpu.vector_store %arg8[%c152_341, %c128_342], %346 {strides = array<i32>} : memref<216x512xbf16, #tpu.memory_space<vmem>>, vector<4x128xbf16>,
    %c0_343 = arith.constant 0 : index
    %350 = arith.index_cast %328 : i32 to index
    %c0_344 = arith.constant 0 : index
    %c1_345 = arith.constant 1 : index
    %351 = vector.load %arg3[%c0_343, %350, %c0_344, %c1_345] : memref<1x10x4x256xbf16, #tpu.memory_space<vmem>>, vector<1x1x4x128xbf16>
    %352 = vector.shape_cast %351 : vector<1x1x4x128xbf16> to vector<1x4x128xbf16>
    %353 = vector.shape_cast %352 : vector<1x4x128xbf16> to vector<4x128xbf16>
    %c12_346 = arith.constant 12 : index
    %c384_347 = arith.constant 384 : index
    %354 = vector.load %arg8[%c12_346, %c384_347] : memref<216x512xbf16, #tpu.memory_space<vmem>>, vector<4x128xbf16>
    tpu.vector_store %arg8[%c12_346, %c384_347], %353 {strides = array<i32>} : memref<216x512xbf16, #tpu.memory_space<vmem>>, vector<4x128xbf16>,
    %c84_348 = arith.constant 84 : index
    %c256_349 = arith.constant 256 : index
    %355 = vector.load %arg8[%c84_348, %c256_349] : memref<216x512xbf16, #tpu.memory_space<vmem>>, vector<4x128xbf16>
    tpu.vector_store %arg8[%c84_348, %c256_349], %353 {strides = array<i32>} : memref<216x512xbf16, #tpu.memory_space<vmem>>, vector<4x128xbf16>,
    %c156_350 = arith.constant 156 : index
    %c128_351 = arith.constant 128 : index
    %356 = vector.load %arg8[%c156_350, %c128_351] : memref<216x512xbf16, #tpu.memory_space<vmem>>, vector<4x128xbf16>
    tpu.vector_store %arg8[%c156_350, %c128_351], %353 {strides = array<i32>} : memref<216x512xbf16, #tpu.memory_space<vmem>>, vector<4x128xbf16>,
    %c0_352 = arith.constant 0 : index
    %357 = arith.index_cast %328 : i32 to index
    %c0_353 = arith.constant 0 : index
    %c2_354 = arith.constant 2 : index
    %358 = vector.load %arg2[%c0_352, %357, %c0_353, %c2_354] : memref<1x10x4x256xbf16, #tpu.memory_space<vmem>>, vector<1x1x4x128xbf16>
    %359 = vector.shape_cast %358 : vector<1x1x4x128xbf16> to vector<1x4x128xbf16>
    %360 = vector.shape_cast %359 : vector<1x4x128xbf16> to vector<4x128xbf16>
    %c16_355 = arith.constant 16 : index
    %c384_356 = arith.constant 384 : index
    %361 = vector.load %arg8[%c16_355, %c384_356] : memref<216x512xbf16, #tpu.memory_space<vmem>>, vector<4x128xbf16>
    tpu.vector_store %arg8[%c16_355, %c384_356], %360 {strides = array<i32>} : memref<216x512xbf16, #tpu.memory_space<vmem>>, vector<4x128xbf16>,
    %c88_357 = arith.constant 88 : index
    %c256_358 = arith.constant 256 : index
    %362 = vector.load %arg8[%c88_357, %c256_358] : memref<216x512xbf16, #tpu.memory_space<vmem>>, vector<4x128xbf16>
    tpu.vector_store %arg8[%c88_357, %c256_358], %360 {strides = array<i32>} : memref<216x512xbf16, #tpu.memory_space<vmem>>, vector<4x128xbf16>,
    %c160_359 = arith.constant 160 : index
    %c128_360 = arith.constant 128 : index
    %363 = vector.load %arg8[%c160_359, %c128_360] : memref<216x512xbf16, #tpu.memory_space<vmem>>, vector<4x128xbf16>
    tpu.vector_store %arg8[%c160_359, %c128_360], %360 {strides = array<i32>} : memref<216x512xbf16, #tpu.memory_space<vmem>>, vector<4x128xbf16>,
    %c0_361 = arith.constant 0 : index
    %364 = arith.index_cast %328 : i32 to index
    %c0_362 = arith.constant 0 : index
    %c2_363 = arith.constant 2 : index
    %365 = vector.load %arg3[%c0_361, %364, %c0_362, %c2_363] : memref<1x10x4x256xbf16, #tpu.memory_space<vmem>>, vector<1x1x4x128xbf16>
    %366 = vector.shape_cast %365 : vector<1x1x4x128xbf16> to vector<1x4x128xbf16>
    %367 = vector.shape_cast %366 : vector<1x4x128xbf16> to vector<4x128xbf16>
    %c20_364 = arith.constant 20 : index
    %c384_365 = arith.constant 384 : index
    %368 = vector.load %arg8[%c20_364, %c384_365] : memref<216x512xbf16, #tpu.memory_space<vmem>>, vector<4x128xbf16>
    tpu.vector_store %arg8[%c20_364, %c384_365], %367 {strides = array<i32>} : memref<216x512xbf16, #tpu.memory_space<vmem>>, vector<4x128xbf16>,
    %c92_366 = arith.constant 92 : index
    %c256_367 = arith.constant 256 : index
    %369 = vector.load %arg8[%c92_366, %c256_367] : memref<216x512xbf16, #tpu.memory_space<vmem>>, vector<4x128xbf16>
    tpu.vector_store %arg8[%c92_366, %c256_367], %367 {strides = array<i32>} : memref<216x512xbf16, #tpu.memory_space<vmem>>, vector<4x128xbf16>,
    %c164_368 = arith.constant 164 : index
    %c128_369 = arith.constant 128 : index
    %370 = vector.load %arg8[%c164_368, %c128_369] : memref<216x512xbf16, #tpu.memory_space<vmem>>, vector<4x128xbf16>
    tpu.vector_store %arg8[%c164_368, %c128_369], %367 {strides = array<i32>} : memref<216x512xbf16, #tpu.memory_space<vmem>>, vector<4x128xbf16>,
    %c0_370 = arith.constant 0 : index
    %371 = arith.index_cast %328 : i32 to index
    %c0_371 = arith.constant 0 : index
    %c12_372 = arith.constant 12 : index
    %372 = vector.load %arg2[%c0_370, %371, %c0_371, %c12_372] : memref<1x10x4x256xbf16, #tpu.memory_space<vmem>>, vector<1x1x4x128xbf16>
    %373 = vector.shape_cast %372 : vector<1x1x4x128xbf16> to vector<1x4x128xbf16>
    %374 = vector.shape_cast %373 : vector<1x4x128xbf16> to vector<4x128xbf16>
    %c24_373 = arith.constant 24 : index
    %c384_374 = arith.constant 384 : index
    %375 = vector.load %arg8[%c24_373, %c384_374] : memref<216x512xbf16, #tpu.memory_space<vmem>>, vector<4x128xbf16>
    tpu.vector_store %arg8[%c24_373, %c384_374], %374 {strides = array<i32>} : memref<216x512xbf16, #tpu.memory_space<vmem>>, vector<4x128xbf16>,
    %c96_375 = arith.constant 96 : index
    %c256_376 = arith.constant 256 : index
    %376 = vector.load %arg8[%c96_375, %c256_376] : memref<216x512xbf16, #tpu.memory_space<vmem>>, vector<4x128xbf16>
    tpu.vector_store %arg8[%c96_375, %c256_376], %374 {strides = array<i32>} : memref<216x512xbf16, #tpu.memory_space<vmem>>, vector<4x128xbf16>,
    %c168_377 = arith.constant 168 : index
    %c128_378 = arith.constant 128 : index
    %377 = vector.load %arg8[%c168_377, %c128_378] : memref<216x512xbf16, #tpu.memory_space<vmem>>, vector<4x128xbf16>
    tpu.vector_store %arg8[%c168_377, %c128_378], %374 {strides = array<i32>} : memref<216x512xbf16, #tpu.memory_space<vmem>>, vector<4x128xbf16>,
    %c0_379 = arith.constant 0 : index
    %378 = arith.index_cast %328 : i32 to index
    %c0_380 = arith.constant 0 : index
    %c12_381 = arith.constant 12 : index
    %379 = vector.load %arg3[%c0_379, %378, %c0_380, %c12_381] : memref<1x10x4x256xbf16, #tpu.memory_space<vmem>>, vector<1x1x4x128xbf16>
    %380 = vector.shape_cast %379 : vector<1x1x4x128xbf16> to vector<1x4x128xbf16>
    %381 = vector.shape_cast %380 : vector<1x4x128xbf16> to vector<4x128xbf16>
    %c28_382 = arith.constant 28 : index
    %c384_383 = arith.constant 384 : index
    %382 = vector.load %arg8[%c28_382, %c384_383] : memref<216x512xbf16, #tpu.memory_space<vmem>>, vector<4x128xbf16>
    tpu.vector_store %arg8[%c28_382, %c384_383], %381 {strides = array<i32>} : memref<216x512xbf16, #tpu.memory_space<vmem>>, vector<4x128xbf16>,
    %c100_384 = arith.constant 100 : index
    %c256_385 = arith.constant 256 : index
    %383 = vector.load %arg8[%c100_384, %c256_385] : memref<216x512xbf16, #tpu.memory_space<vmem>>, vector<4x128xbf16>
    tpu.vector_store %arg8[%c100_384, %c256_385], %381 {strides = array<i32>} : memref<216x512xbf16, #tpu.memory_space<vmem>>, vector<4x128xbf16>,
    %c172_386 = arith.constant 172 : index
    %c128_387 = arith.constant 128 : index
    %384 = vector.load %arg8[%c172_386, %c128_387] : memref<216x512xbf16, #tpu.memory_space<vmem>>, vector<4x128xbf16>
    tpu.vector_store %arg8[%c172_386, %c128_387], %381 {strides = array<i32>} : memref<216x512xbf16, #tpu.memory_space<vmem>>, vector<4x128xbf16>,
    %c0_388 = arith.constant 0 : index
    %385 = arith.index_cast %328 : i32 to index
    %c0_389 = arith.constant 0 : index
    %c13_390 = arith.constant 13 : index
    %386 = vector.load %arg2[%c0_388, %385, %c0_389, %c13_390] : memref<1x10x4x256xbf16, #tpu.memory_space<vmem>>, vector<1x1x4x128xbf16>
    %387 = vector.shape_cast %386 : vector<1x1x4x128xbf16> to vector<1x4x128xbf16>
    %388 = vector.shape_cast %387 : vector<1x4x128xbf16> to vector<4x128xbf16>
    %c32_391 = arith.constant 32 : index
    %c384_392 = arith.constant 384 : index
    %389 = vector.load %arg8[%c32_391, %c384_392] : memref<216x512xbf16, #tpu.memory_space<vmem>>, vector<4x128xbf16>
    tpu.vector_store %arg8[%c32_391, %c384_392], %388 {strides = array<i32>} : memref<216x512xbf16, #tpu.memory_space<vmem>>, vector<4x128xbf16>,
    %c104_393 = arith.constant 104 : index
    %c256_394 = arith.constant 256 : index
    %390 = vector.load %arg8[%c104_393, %c256_394] : memref<216x512xbf16, #tpu.memory_space<vmem>>, vector<4x128xbf16>
    tpu.vector_store %arg8[%c104_393, %c256_394], %388 {strides = array<i32>} : memref<216x512xbf16, #tpu.memory_space<vmem>>, vector<4x128xbf16>,
    %c176_395 = arith.constant 176 : index
    %c128_396 = arith.constant 128 : index
    %391 = vector.load %arg8[%c176_395, %c128_396] : memref<216x512xbf16, #tpu.memory_space<vmem>>, vector<4x128xbf16>
    tpu.vector_store %arg8[%c176_395, %c128_396], %388 {strides = array<i32>} : memref<216x512xbf16, #tpu.memory_space<vmem>>, vector<4x128xbf16>,
    %c0_397 = arith.constant 0 : index
    %392 = arith.index_cast %328 : i32 to index
    %c0_398 = arith.constant 0 : index
    %c13_399 = arith.constant 13 : index
    %393 = vector.load %arg3[%c0_397, %392, %c0_398, %c13_399] : memref<1x10x4x256xbf16, #tpu.memory_space<vmem>>, vector<1x1x4x128xbf16>
    %394 = vector.shape_cast %393 : vector<1x1x4x128xbf16> to vector<1x4x128xbf16>
    %395 = vector.shape_cast %394 : vector<1x4x128xbf16> to vector<4x128xbf16>
    %c36_400 = arith.constant 36 : index
    %c384_401 = arith.constant 384 : index
    %396 = vector.load %arg8[%c36_400, %c384_401] : memref<216x512xbf16, #tpu.memory_space<vmem>>, vector<4x128xbf16>
    tpu.vector_store %arg8[%c36_400, %c384_401], %395 {strides = array<i32>} : memref<216x512xbf16, #tpu.memory_space<vmem>>, vector<4x128xbf16>,
    %c108_402 = arith.constant 108 : index
    %c256_403 = arith.constant 256 : index
    %397 = vector.load %arg8[%c108_402, %c256_403] : memref<216x512xbf16, #tpu.memory_space<vmem>>, vector<4x128xbf16>
    tpu.vector_store %arg8[%c108_402, %c256_403], %395 {strides = array<i32>} : memref<216x512xbf16, #tpu.memory_space<vmem>>, vector<4x128xbf16>,
    %c180_404 = arith.constant 180 : index
    %c128_405 = arith.constant 128 : index
    %398 = vector.load %arg8[%c180_404, %c128_405] : memref<216x512xbf16, #tpu.memory_space<vmem>>, vector<4x128xbf16>
    tpu.vector_store %arg8[%c180_404, %c128_405], %395 {strides = array<i32>} : memref<216x512xbf16, #tpu.memory_space<vmem>>, vector<4x128xbf16>,
    %c0_406 = arith.constant 0 : index
    %399 = arith.index_cast %328 : i32 to index
    %c0_407 = arith.constant 0 : index
    %c14_408 = arith.constant 14 : index
    %400 = vector.load %arg2[%c0_406, %399, %c0_407, %c14_408] : memref<1x10x4x256xbf16, #tpu.memory_space<vmem>>, vector<1x1x4x128xbf16>
    %401 = vector.shape_cast %400 : vector<1x1x4x128xbf16> to vector<1x4x128xbf16>
    %402 = vector.shape_cast %401 : vector<1x4x128xbf16> to vector<4x128xbf16>
    %c40_409 = arith.constant 40 : index
    %c384_410 = arith.constant 384 : index
    %403 = vector.load %arg8[%c40_409, %c384_410] : memref<216x512xbf16, #tpu.memory_space<vmem>>, vector<4x128xbf16>
    tpu.vector_store %arg8[%c40_409, %c384_410], %402 {strides = array<i32>} : memref<216x512xbf16, #tpu.memory_space<vmem>>, vector<4x128xbf16>,
    %c112_411 = arith.constant 112 : index
    %c256_412 = arith.constant 256 : index
    %404 = vector.load %arg8[%c112_411, %c256_412] : memref<216x512xbf16, #tpu.memory_space<vmem>>, vector<4x128xbf16>
    tpu.vector_store %arg8[%c112_411, %c256_412], %402 {strides = array<i32>} : memref<216x512xbf16, #tpu.memory_space<vmem>>, vector<4x128xbf16>,
    %c184_413 = arith.constant 184 : index
    %c128_414 = arith.constant 128 : index
    %405 = vector.load %arg8[%c184_413, %c128_414] : memref<216x512xbf16, #tpu.memory_space<vmem>>, vector<4x128xbf16>
    tpu.vector_store %arg8[%c184_413, %c128_414], %402 {strides = array<i32>} : memref<216x512xbf16, #tpu.memory_space<vmem>>, vector<4x128xbf16>,
    %c0_415 = arith.constant 0 : index
    %406 = arith.index_cast %328 : i32 to index
    %c0_416 = arith.constant 0 : index
    %c14_417 = arith.constant 14 : index
    %407 = vector.load %arg3[%c0_415, %406, %c0_416, %c14_417] : memref<1x10x4x256xbf16, #tpu.memory_space<vmem>>, vector<1x1x4x128xbf16>
    %408 = vector.shape_cast %407 : vector<1x1x4x128xbf16> to vector<1x4x128xbf16>
    %409 = vector.shape_cast %408 : vector<1x4x128xbf16> to vector<4x128xbf16>
    %c44_418 = arith.constant 44 : index
    %c384_419 = arith.constant 384 : index
    %410 = vector.load %arg8[%c44_418, %c384_419] : memref<216x512xbf16, #tpu.memory_space<vmem>>, vector<4x128xbf16>
    tpu.vector_store %arg8[%c44_418, %c384_419], %409 {strides = array<i32>} : memref<216x512xbf16, #tpu.memory_space<vmem>>, vector<4x128xbf16>,
    %c116_420 = arith.constant 116 : index
    %c256_421 = arith.constant 256 : index
    %411 = vector.load %arg8[%c116_420, %c256_421] : memref<216x512xbf16, #tpu.memory_space<vmem>>, vector<4x128xbf16>
    tpu.vector_store %arg8[%c116_420, %c256_421], %409 {strides = array<i32>} : memref<216x512xbf16, #tpu.memory_space<vmem>>, vector<4x128xbf16>,
    %c188_422 = arith.constant 188 : index
    %c128_423 = arith.constant 128 : index
    %412 = vector.load %arg8[%c188_422, %c128_423] : memref<216x512xbf16, #tpu.memory_space<vmem>>, vector<4x128xbf16>
    tpu.vector_store %arg8[%c188_422, %c128_423], %409 {strides = array<i32>} : memref<216x512xbf16, #tpu.memory_space<vmem>>, vector<4x128xbf16>,
    %c0_424 = arith.constant 0 : index
    %413 = arith.index_cast %328 : i32 to index
    %c0_425 = arith.constant 0 : index
    %c24_426 = arith.constant 24 : index
    %414 = vector.load %arg2[%c0_424, %413, %c0_425, %c24_426] : memref<1x10x4x256xbf16, #tpu.memory_space<vmem>>, vector<1x1x4x128xbf16>
    %415 = vector.shape_cast %414 : vector<1x1x4x128xbf16> to vector<1x4x128xbf16>
    %416 = vector.shape_cast %415 : vector<1x4x128xbf16> to vector<4x128xbf16>
    %c48_427 = arith.constant 48 : index
    %c384_428 = arith.constant 384 : index
    %417 = vector.load %arg8[%c48_427, %c384_428] : memref<216x512xbf16, #tpu.memory_space<vmem>>, vector<4x128xbf16>
    tpu.vector_store %arg8[%c48_427, %c384_428], %416 {strides = array<i32>} : memref<216x512xbf16, #tpu.memory_space<vmem>>, vector<4x128xbf16>,
    %c120_429 = arith.constant 120 : index
    %c256_430 = arith.constant 256 : index
    %418 = vector.load %arg8[%c120_429, %c256_430] : memref<216x512xbf16, #tpu.memory_space<vmem>>, vector<4x128xbf16>
    tpu.vector_store %arg8[%c120_429, %c256_430], %416 {strides = array<i32>} : memref<216x512xbf16, #tpu.memory_space<vmem>>, vector<4x128xbf16>,
    %c192_431 = arith.constant 192 : index
    %c128_432 = arith.constant 128 : index
    %419 = vector.load %arg8[%c192_431, %c128_432] : memref<216x512xbf16, #tpu.memory_space<vmem>>, vector<4x128xbf16>
    tpu.vector_store %arg8[%c192_431, %c128_432], %416 {strides = array<i32>} : memref<216x512xbf16, #tpu.memory_space<vmem>>, vector<4x128xbf16>,
    %c0_433 = arith.constant 0 : index
    %420 = arith.index_cast %328 : i32 to index
    %c0_434 = arith.constant 0 : index
    %c24_435 = arith.constant 24 : index
    %421 = vector.load %arg3[%c0_433, %420, %c0_434, %c24_435] : memref<1x10x4x256xbf16, #tpu.memory_space<vmem>>, vector<1x1x4x128xbf16>
    %422 = vector.shape_cast %421 : vector<1x1x4x128xbf16> to vector<1x4x128xbf16>
    %423 = vector.shape_cast %422 : vector<1x4x128xbf16> to vector<4x128xbf16>
    %c52_436 = arith.constant 52 : index
    %c384_437 = arith.constant 384 : index
    %424 = vector.load %arg8[%c52_436, %c384_437] : memref<216x512xbf16, #tpu.memory_space<vmem>>, vector<4x128xbf16>
    tpu.vector_store %arg8[%c52_436, %c384_437], %423 {strides = array<i32>} : memref<216x512xbf16, #tpu.memory_space<vmem>>, vector<4x128xbf16>,
    %c124_438 = arith.constant 124 : index
    %c256_439 = arith.constant 256 : index
    %425 = vector.load %arg8[%c124_438, %c256_439] : memref<216x512xbf16, #tpu.memory_space<vmem>>, vector<4x128xbf16>
    tpu.vector_store %arg8[%c124_438, %c256_439], %423 {strides = array<i32>} : memref<216x512xbf16, #tpu.memory_space<vmem>>, vector<4x128xbf16>,
    %c196_440 = arith.constant 196 : index
    %c128_441 = arith.constant 128 : index
    %426 = vector.load %arg8[%c196_440, %c128_441] : memref<216x512xbf16, #tpu.memory_space<vmem>>, vector<4x128xbf16>
    tpu.vector_store %arg8[%c196_440, %c128_441], %423 {strides = array<i32>} : memref<216x512xbf16, #tpu.memory_space<vmem>>, vector<4x128xbf16>,
    %c0_442 = arith.constant 0 : index
    %427 = arith.index_cast %328 : i32 to index
    %c0_443 = arith.constant 0 : index
    %c25_444 = arith.constant 25 : index
    %428 = vector.load %arg2[%c0_442, %427, %c0_443, %c25_444] : memref<1x10x4x256xbf16, #tpu.memory_space<vmem>>, vector<1x1x4x128xbf16>
    %429 = vector.shape_cast %428 : vector<1x1x4x128xbf16> to vector<1x4x128xbf16>
    %430 = vector.shape_cast %429 : vector<1x4x128xbf16> to vector<4x128xbf16>
    %c56_445 = arith.constant 56 : index
    %c384_446 = arith.constant 384 : index
    %431 = vector.load %arg8[%c56_445, %c384_446] : memref<216x512xbf16, #tpu.memory_space<vmem>>, vector<4x128xbf16>
    tpu.vector_store %arg8[%c56_445, %c384_446], %430 {strides = array<i32>} : memref<216x512xbf16, #tpu.memory_space<vmem>>, vector<4x128xbf16>,
    %c128_447 = arith.constant 128 : index
    %c256_448 = arith.constant 256 : index
    %432 = vector.load %arg8[%c128_447, %c256_448] : memref<216x512xbf16, #tpu.memory_space<vmem>>, vector<4x128xbf16>
    tpu.vector_store %arg8[%c128_447, %c256_448], %430 {strides = array<i32>} : memref<216x512xbf16, #tpu.memory_space<vmem>>, vector<4x128xbf16>,
    %c200_449 = arith.constant 200 : index
    %c128_450 = arith.constant 128 : index
    %433 = vector.load %arg8[%c200_449, %c128_450] : memref<216x512xbf16, #tpu.memory_space<vmem>>, vector<4x128xbf16>
    tpu.vector_store %arg8[%c200_449, %c128_450], %430 {strides = array<i32>} : memref<216x512xbf16, #tpu.memory_space<vmem>>, vector<4x128xbf16>,
    %c0_451 = arith.constant 0 : index
    %434 = arith.index_cast %328 : i32 to index
    %c0_452 = arith.constant 0 : index
    %c25_453 = arith.constant 25 : index
    %435 = vector.load %arg3[%c0_451, %434, %c0_452, %c25_453] : memref<1x10x4x256xbf16, #tpu.memory_space<vmem>>, vector<1x1x4x128xbf16>
    %436 = vector.shape_cast %435 : vector<1x1x4x128xbf16> to vector<1x4x128xbf16>
    %437 = vector.shape_cast %436 : vector<1x4x128xbf16> to vector<4x128xbf16>
    %c60_454 = arith.constant 60 : index
    %c384_455 = arith.constant 384 : index
    %438 = vector.load %arg8[%c60_454, %c384_455] : memref<216x512xbf16, #tpu.memory_space<vmem>>, vector<4x128xbf16>
    tpu.vector_store %arg8[%c60_454, %c384_455], %437 {strides = array<i32>} : memref<216x512xbf16, #tpu.memory_space<vmem>>, vector<4x128xbf16>,
    %c132_456 = arith.constant 132 : index
    %c256_457 = arith.constant 256 : index
    %439 = vector.load %arg8[%c132_456, %c256_457] : memref<216x512xbf16, #tpu.memory_space<vmem>>, vector<4x128xbf16>
    tpu.vector_store %arg8[%c132_456, %c256_457], %437 {strides = array<i32>} : memref<216x512xbf16, #tpu.memory_space<vmem>>, vector<4x128xbf16>,
    %c204_458 = arith.constant 204 : index
    %c128_459 = arith.constant 128 : index
    %440 = vector.load %arg8[%c204_458, %c128_459] : memref<216x512xbf16, #tpu.memory_space<vmem>>, vector<4x128xbf16>
    tpu.vector_store %arg8[%c204_458, %c128_459], %437 {strides = array<i32>} : memref<216x512xbf16, #tpu.memory_space<vmem>>, vector<4x128xbf16>,
    %c0_460 = arith.constant 0 : index
    %441 = arith.index_cast %328 : i32 to index
    %c0_461 = arith.constant 0 : index
    %c26_462 = arith.constant 26 : index
    %442 = vector.load %arg2[%c0_460, %441, %c0_461, %c26_462] : memref<1x10x4x256xbf16, #tpu.memory_space<vmem>>, vector<1x1x4x128xbf16>
    %443 = vector.shape_cast %442 : vector<1x1x4x128xbf16> to vector<1x4x128xbf16>
    %444 = vector.shape_cast %443 : vector<1x4x128xbf16> to vector<4x128xbf16>
    %c64_463 = arith.constant 64 : index
    %c384_464 = arith.constant 384 : index
    %445 = vector.load %arg8[%c64_463, %c384_464] : memref<216x512xbf16, #tpu.memory_space<vmem>>, vector<4x128xbf16>
    tpu.vector_store %arg8[%c64_463, %c384_464], %444 {strides = array<i32>} : memref<216x512xbf16, #tpu.memory_space<vmem>>, vector<4x128xbf16>,
    %c136_465 = arith.constant 136 : index
    %c256_466 = arith.constant 256 : index
    %446 = vector.load %arg8[%c136_465, %c256_466] : memref<216x512xbf16, #tpu.memory_space<vmem>>, vector<4x128xbf16>
    tpu.vector_store %arg8[%c136_465, %c256_466], %444 {strides = array<i32>} : memref<216x512xbf16, #tpu.memory_space<vmem>>, vector<4x128xbf16>,
    %c208_467 = arith.constant 208 : index
    %c128_468 = arith.constant 128 : index
    %447 = vector.load %arg8[%c208_467, %c128_468] : memref<216x512xbf16, #tpu.memory_space<vmem>>, vector<4x128xbf16>
    tpu.vector_store %arg8[%c208_467, %c128_468], %444 {strides = array<i32>} : memref<216x512xbf16, #tpu.memory_space<vmem>>, vector<4x128xbf16>,
    %c0_469 = arith.constant 0 : index
    %448 = arith.index_cast %328 : i32 to index
    %c0_470 = arith.constant 0 : index
    %c26_471 = arith.constant 26 : index
    %449 = vector.load %arg3[%c0_469, %448, %c0_470, %c26_471] : memref<1x10x4x256xbf16, #tpu.memory_space<vmem>>, vector<1x1x4x128xbf16>
    %450 = vector.shape_cast %449 : vector<1x1x4x128xbf16> to vector<1x4x128xbf16>
    %451 = vector.shape_cast %450 : vector<1x4x128xbf16> to vector<4x128xbf16>
    %c68_472 = arith.constant 68 : index
    %c384_473 = arith.constant 384 : index
    %452 = vector.load %arg8[%c68_472, %c384_473] : memref<216x512xbf16, #tpu.memory_space<vmem>>, vector<4x128xbf16>
    tpu.vector_store %arg8[%c68_472, %c384_473], %451 {strides = array<i32>} : memref<216x512xbf16, #tpu.memory_space<vmem>>, vector<4x128xbf16>,
    %c140_474 = arith.constant 140 : index
    %c256_475 = arith.constant 256 : index
    %453 = vector.load %arg8[%c140_474, %c256_475] : memref<216x512xbf16, #tpu.memory_space<vmem>>, vector<4x128xbf16>
    tpu.vector_store %arg8[%c140_474, %c256_475], %451 {strides = array<i32>} : memref<216x512xbf16, #tpu.memory_space<vmem>>, vector<4x128xbf16>,
    %c212_476 = arith.constant 212 : index
    %c128_477 = arith.constant 128 : index
    %454 = vector.load %arg8[%c212_476, %c128_477] : memref<216x512xbf16, #tpu.memory_space<vmem>>, vector<4x128xbf16>
    tpu.vector_store %arg8[%c212_476, %c128_477], %451 {strides = array<i32>} : memref<216x512xbf16, #tpu.memory_space<vmem>>, vector<4x128xbf16>,
    %c4_i32_478 = arith.constant 4 : i32
    %455 = arith.addi %0, %c4_i32_478 : i32
    %c0_479 = arith.constant 0 : index
    %456 = arith.index_cast %455 : i32 to index
    %c0_480 = arith.constant 0 : index
    %c0_481 = arith.constant 0 : index
    %457 = vector.load %arg2[%c0_479, %456, %c0_480, %c0_481] : memref<1x10x4x256xbf16, #tpu.memory_space<vmem>>, vector<1x1x4x128xbf16>
    %458 = vector.shape_cast %457 : vector<1x1x4x128xbf16> to vector<1x4x128xbf16>
    %459 = vector.shape_cast %458 : vector<1x4x128xbf16> to vector<4x128xbf16>
    %c72_482 = arith.constant 72 : index
    %c384_483 = arith.constant 384 : index
    %460 = vector.load %arg8[%c72_482, %c384_483] : memref<216x512xbf16, #tpu.memory_space<vmem>>, vector<4x128xbf16>
    tpu.vector_store %arg8[%c72_482, %c384_483], %459 {strides = array<i32>} : memref<216x512xbf16, #tpu.memory_space<vmem>>, vector<4x128xbf16>,
    %c144_484 = arith.constant 144 : index
    %c256_485 = arith.constant 256 : index
    %461 = vector.load %arg8[%c144_484, %c256_485] : memref<216x512xbf16, #tpu.memory_space<vmem>>, vector<4x128xbf16>
    tpu.vector_store %arg8[%c144_484, %c256_485], %459 {strides = array<i32>} : memref<216x512xbf16, #tpu.memory_space<vmem>>, vector<4x128xbf16>,
    %c0_486 = arith.constant 0 : index
    %462 = arith.index_cast %455 : i32 to index
    %c0_487 = arith.constant 0 : index
    %c0_488 = arith.constant 0 : index
    %463 = vector.load %arg3[%c0_486, %462, %c0_487, %c0_488] : memref<1x10x4x256xbf16, #tpu.memory_space<vmem>>, vector<1x1x4x128xbf16>
    %464 = vector.shape_cast %463 : vector<1x1x4x128xbf16> to vector<1x4x128xbf16>
    %465 = vector.shape_cast %464 : vector<1x4x128xbf16> to vector<4x128xbf16>
    %c76_489 = arith.constant 76 : index
    %c384_490 = arith.constant 384 : index
    %466 = vector.load %arg8[%c76_489, %c384_490] : memref<216x512xbf16, #tpu.memory_space<vmem>>, vector<4x128xbf16>
    tpu.vector_store %arg8[%c76_489, %c384_490], %465 {strides = array<i32>} : memref<216x512xbf16, #tpu.memory_space<vmem>>, vector<4x128xbf16>,
    %c148_491 = arith.constant 148 : index
    %c256_492 = arith.constant 256 : index
    %467 = vector.load %arg8[%c148_491, %c256_492] : memref<216x512xbf16, #tpu.memory_space<vmem>>, vector<4x128xbf16>
    tpu.vector_store %arg8[%c148_491, %c256_492], %465 {strides = array<i32>} : memref<216x512xbf16, #tpu.memory_space<vmem>>, vector<4x128xbf16>,
    %c0_493 = arith.constant 0 : index
    %468 = arith.index_cast %455 : i32 to index
    %c0_494 = arith.constant 0 : index
    %c1_495 = arith.constant 1 : index
    %469 = vector.load %arg2[%c0_493, %468, %c0_494, %c1_495] : memref<1x10x4x256xbf16, #tpu.memory_space<vmem>>, vector<1x1x4x128xbf16>
    %470 = vector.shape_cast %469 : vector<1x1x4x128xbf16> to vector<1x4x128xbf16>
    %471 = vector.shape_cast %470 : vector<1x4x128xbf16> to vector<4x128xbf16>
    %c80_496 = arith.constant 80 : index
    %c384_497 = arith.constant 384 : index
    %472 = vector.load %arg8[%c80_496, %c384_497] : memref<216x512xbf16, #tpu.memory_space<vmem>>, vector<4x128xbf16>
    tpu.vector_store %arg8[%c80_496, %c384_497], %471 {strides = array<i32>} : memref<216x512xbf16, #tpu.memory_space<vmem>>, vector<4x128xbf16>,
    %c152_498 = arith.constant 152 : index
    %c256_499 = arith.constant 256 : index
    %473 = vector.load %arg8[%c152_498, %c256_499] : memref<216x512xbf16, #tpu.memory_space<vmem>>, vector<4x128xbf16>
    tpu.vector_store %arg8[%c152_498, %c256_499], %471 {strides = array<i32>} : memref<216x512xbf16, #tpu.memory_space<vmem>>, vector<4x128xbf16>,
    %c0_500 = arith.constant 0 : index
    %474 = arith.index_cast %455 : i32 to index
    %c0_501 = arith.constant 0 : index
    %c1_502 = arith.constant 1 : index
    %475 = vector.load %arg3[%c0_500, %474, %c0_501, %c1_502] : memref<1x10x4x256xbf16, #tpu.memory_space<vmem>>, vector<1x1x4x128xbf16>
    %476 = vector.shape_cast %475 : vector<1x1x4x128xbf16> to vector<1x4x128xbf16>
    %477 = vector.shape_cast %476 : vector<1x4x128xbf16> to vector<4x128xbf16>
    %c84_503 = arith.constant 84 : index
    %c384_504 = arith.constant 384 : index
    %478 = vector.load %arg8[%c84_503, %c384_504] : memref<216x512xbf16, #tpu.memory_space<vmem>>, vector<4x128xbf16>
    tpu.vector_store %arg8[%c84_503, %c384_504], %477 {strides = array<i32>} : memref<216x512xbf16, #tpu.memory_space<vmem>>, vector<4x128xbf16>,
    %c156_505 = arith.constant 156 : index
    %c256_506 = arith.constant 256 : index
    %479 = vector.load %arg8[%c156_505, %c256_506] : memref<216x512xbf16, #tpu.memory_space<vmem>>, vector<4x128xbf16>
    tpu.vector_store %arg8[%c156_505, %c256_506], %477 {strides = array<i32>} : memref<216x512xbf16, #tpu.memory_space<vmem>>, vector<4x128xbf16>,
    %c0_507 = arith.constant 0 : index
    %480 = arith.index_cast %455 : i32 to index
    %c0_508 = arith.constant 0 : index
    %c2_509 = arith.constant 2 : index
    %481 = vector.load %arg2[%c0_507, %480, %c0_508, %c2_509] : memref<1x10x4x256xbf16, #tpu.memory_space<vmem>>, vector<1x1x4x128xbf16>
    %482 = vector.shape_cast %481 : vector<1x1x4x128xbf16> to vector<1x4x128xbf16>
    %483 = vector.shape_cast %482 : vector<1x4x128xbf16> to vector<4x128xbf16>
    %c88_510 = arith.constant 88 : index
    %c384_511 = arith.constant 384 : index
    %484 = vector.load %arg8[%c88_510, %c384_511] : memref<216x512xbf16, #tpu.memory_space<vmem>>, vector<4x128xbf16>
    tpu.vector_store %arg8[%c88_510, %c384_511], %483 {strides = array<i32>} : memref<216x512xbf16, #tpu.memory_space<vmem>>, vector<4x128xbf16>,
    %c160_512 = arith.constant 160 : index
    %c256_513 = arith.constant 256 : index
    %485 = vector.load %arg8[%c160_512, %c256_513] : memref<216x512xbf16, #tpu.memory_space<vmem>>, vector<4x128xbf16>
    tpu.vector_store %arg8[%c160_512, %c256_513], %483 {strides = array<i32>} : memref<216x512xbf16, #tpu.memory_space<vmem>>, vector<4x128xbf16>,
    %c0_514 = arith.constant 0 : index
    %486 = arith.index_cast %455 : i32 to index
    %c0_515 = arith.constant 0 : index
    %c2_516 = arith.constant 2 : index
    %487 = vector.load %arg3[%c0_514, %486, %c0_515, %c2_516] : memref<1x10x4x256xbf16, #tpu.memory_space<vmem>>, vector<1x1x4x128xbf16>
    %488 = vector.shape_cast %487 : vector<1x1x4x128xbf16> to vector<1x4x128xbf16>
    %489 = vector.shape_cast %488 : vector<1x4x128xbf16> to vector<4x128xbf16>
    %c92_517 = arith.constant 92 : index
    %c384_518 = arith.constant 384 : index
    %490 = vector.load %arg8[%c92_517, %c384_518] : memref<216x512xbf16, #tpu.memory_space<vmem>>, vector<4x128xbf16>
    tpu.vector_store %arg8[%c92_517, %c384_518], %489 {strides = array<i32>} : memref<216x512xbf16, #tpu.memory_space<vmem>>, vector<4x128xbf16>,
    %c164_519 = arith.constant 164 : index
    %c256_520 = arith.constant 256 : index
    %491 = vector.load %arg8[%c164_519, %c256_520] : memref<216x512xbf16, #tpu.memory_space<vmem>>, vector<4x128xbf16>
    tpu.vector_store %arg8[%c164_519, %c256_520], %489 {strides = array<i32>} : memref<216x512xbf16, #tpu.memory_space<vmem>>, vector<4x128xbf16>,
    %c0_521 = arith.constant 0 : index
    %492 = arith.index_cast %455 : i32 to index
    %c0_522 = arith.constant 0 : index
    %c12_523 = arith.constant 12 : index
    %493 = vector.load %arg2[%c0_521, %492, %c0_522, %c12_523] : memref<1x10x4x256xbf16, #tpu.memory_space<vmem>>, vector<1x1x4x128xbf16>
    %494 = vector.shape_cast %493 : vector<1x1x4x128xbf16> to vector<1x4x128xbf16>
    %495 = vector.shape_cast %494 : vector<1x4x128xbf16> to vector<4x128xbf16>
    %c96_524 = arith.constant 96 : index
    %c384_525 = arith.constant 384 : index
    %496 = vector.load %arg8[%c96_524, %c384_525] : memref<216x512xbf16, #tpu.memory_space<vmem>>, vector<4x128xbf16>
    tpu.vector_store %arg8[%c96_524, %c384_525], %495 {strides = array<i32>} : memref<216x512xbf16, #tpu.memory_space<vmem>>, vector<4x128xbf16>,
    %c168_526 = arith.constant 168 : index
    %c256_527 = arith.constant 256 : index
    %497 = vector.load %arg8[%c168_526, %c256_527] : memref<216x512xbf16, #tpu.memory_space<vmem>>, vector<4x128xbf16>
    tpu.vector_store %arg8[%c168_526, %c256_527], %495 {strides = array<i32>} : memref<216x512xbf16, #tpu.memory_space<vmem>>, vector<4x128xbf16>,
    %c0_528 = arith.constant 0 : index
    %498 = arith.index_cast %455 : i32 to index
    %c0_529 = arith.constant 0 : index
    %c12_530 = arith.constant 12 : index
    %499 = vector.load %arg3[%c0_528, %498, %c0_529, %c12_530] : memref<1x10x4x256xbf16, #tpu.memory_space<vmem>>, vector<1x1x4x128xbf16>
    %500 = vector.shape_cast %499 : vector<1x1x4x128xbf16> to vector<1x4x128xbf16>
    %501 = vector.shape_cast %500 : vector<1x4x128xbf16> to vector<4x128xbf16>
    %c100_531 = arith.constant 100 : index
    %c384_532 = arith.constant 384 : index
    %502 = vector.load %arg8[%c100_531, %c384_532] : memref<216x512xbf16, #tpu.memory_space<vmem>>, vector<4x128xbf16>
    tpu.vector_store %arg8[%c100_531, %c384_532], %501 {strides = array<i32>} : memref<216x512xbf16, #tpu.memory_space<vmem>>, vector<4x128xbf16>,
    %c172_533 = arith.constant 172 : index
    %c256_534 = arith.constant 256 : index
    %503 = vector.load %arg8[%c172_533, %c256_534] : memref<216x512xbf16, #tpu.memory_space<vmem>>, vector<4x128xbf16>
    tpu.vector_store %arg8[%c172_533, %c256_534], %501 {strides = array<i32>} : memref<216x512xbf16, #tpu.memory_space<vmem>>, vector<4x128xbf16>,
    %c0_535 = arith.constant 0 : index
    %504 = arith.index_cast %455 : i32 to index
    %c0_536 = arith.constant 0 : index
    %c13_537 = arith.constant 13 : index
    %505 = vector.load %arg2[%c0_535, %504, %c0_536, %c13_537] : memref<1x10x4x256xbf16, #tpu.memory_space<vmem>>, vector<1x1x4x128xbf16>
    %506 = vector.shape_cast %505 : vector<1x1x4x128xbf16> to vector<1x4x128xbf16>
    %507 = vector.shape_cast %506 : vector<1x4x128xbf16> to vector<4x128xbf16>
    %c104_538 = arith.constant 104 : index
    %c384_539 = arith.constant 384 : index
    %508 = vector.load %arg8[%c104_538, %c384_539] : memref<216x512xbf16, #tpu.memory_space<vmem>>, vector<4x128xbf16>
    tpu.vector_store %arg8[%c104_538, %c384_539], %507 {strides = array<i32>} : memref<216x512xbf16, #tpu.memory_space<vmem>>, vector<4x128xbf16>,
    %c176_540 = arith.constant 176 : index
    %c256_541 = arith.constant 256 : index
    %509 = vector.load %arg8[%c176_540, %c256_541] : memref<216x512xbf16, #tpu.memory_space<vmem>>, vector<4x128xbf16>
    tpu.vector_store %arg8[%c176_540, %c256_541], %507 {strides = array<i32>} : memref<216x512xbf16, #tpu.memory_space<vmem>>, vector<4x128xbf16>,
    %c0_542 = arith.constant 0 : index
    %510 = arith.index_cast %455 : i32 to index
    %c0_543 = arith.constant 0 : index
    %c13_544 = arith.constant 13 : index
    %511 = vector.load %arg3[%c0_542, %510, %c0_543, %c13_544] : memref<1x10x4x256xbf16, #tpu.memory_space<vmem>>, vector<1x1x4x128xbf16>
    %512 = vector.shape_cast %511 : vector<1x1x4x128xbf16> to vector<1x4x128xbf16>
    %513 = vector.shape_cast %512 : vector<1x4x128xbf16> to vector<4x128xbf16>
    %c108_545 = arith.constant 108 : index
    %c384_546 = arith.constant 384 : index
    %514 = vector.load %arg8[%c108_545, %c384_546] : memref<216x512xbf16, #tpu.memory_space<vmem>>, vector<4x128xbf16>
    tpu.vector_store %arg8[%c108_545, %c384_546], %513 {strides = array<i32>} : memref<216x512xbf16, #tpu.memory_space<vmem>>, vector<4x128xbf16>,
    %c180_547 = arith.constant 180 : index
    %c256_548 = arith.constant 256 : index
    %515 = vector.load %arg8[%c180_547, %c256_548] : memref<216x512xbf16, #tpu.memory_space<vmem>>, vector<4x128xbf16>
    tpu.vector_store %arg8[%c180_547, %c256_548], %513 {strides = array<i32>} : memref<216x512xbf16, #tpu.memory_space<vmem>>, vector<4x128xbf16>,
    %c0_549 = arith.constant 0 : index
    %516 = arith.index_cast %455 : i32 to index
    %c0_550 = arith.constant 0 : index
    %c14_551 = arith.constant 14 : index
    %517 = vector.load %arg2[%c0_549, %516, %c0_550, %c14_551] : memref<1x10x4x256xbf16, #tpu.memory_space<vmem>>, vector<1x1x4x128xbf16>
    %518 = vector.shape_cast %517 : vector<1x1x4x128xbf16> to vector<1x4x128xbf16>
    %519 = vector.shape_cast %518 : vector<1x4x128xbf16> to vector<4x128xbf16>
    %c112_552 = arith.constant 112 : index
    %c384_553 = arith.constant 384 : index
    %520 = vector.load %arg8[%c112_552, %c384_553] : memref<216x512xbf16, #tpu.memory_space<vmem>>, vector<4x128xbf16>
    tpu.vector_store %arg8[%c112_552, %c384_553], %519 {strides = array<i32>} : memref<216x512xbf16, #tpu.memory_space<vmem>>, vector<4x128xbf16>,
    %c184_554 = arith.constant 184 : index
    %c256_555 = arith.constant 256 : index
    %521 = vector.load %arg8[%c184_554, %c256_555] : memref<216x512xbf16, #tpu.memory_space<vmem>>, vector<4x128xbf16>
    tpu.vector_store %arg8[%c184_554, %c256_555], %519 {strides = array<i32>} : memref<216x512xbf16, #tpu.memory_space<vmem>>, vector<4x128xbf16>,
    %c0_556 = arith.constant 0 : index
    %522 = arith.index_cast %455 : i32 to index
    %c0_557 = arith.constant 0 : index
    %c14_558 = arith.constant 14 : index
    %523 = vector.load %arg3[%c0_556, %522, %c0_557, %c14_558] : memref<1x10x4x256xbf16, #tpu.memory_space<vmem>>, vector<1x1x4x128xbf16>
    %524 = vector.shape_cast %523 : vector<1x1x4x128xbf16> to vector<1x4x128xbf16>
    %525 = vector.shape_cast %524 : vector<1x4x128xbf16> to vector<4x128xbf16>
    %c116_559 = arith.constant 116 : index
    %c384_560 = arith.constant 384 : index
    %526 = vector.load %arg8[%c116_559, %c384_560] : memref<216x512xbf16, #tpu.memory_space<vmem>>, vector<4x128xbf16>
    tpu.vector_store %arg8[%c116_559, %c384_560], %525 {strides = array<i32>} : memref<216x512xbf16, #tpu.memory_space<vmem>>, vector<4x128xbf16>,
    %c188_561 = arith.constant 188 : index
    %c256_562 = arith.constant 256 : index
    %527 = vector.load %arg8[%c188_561, %c256_562] : memref<216x512xbf16, #tpu.memory_space<vmem>>, vector<4x128xbf16>
    tpu.vector_store %arg8[%c188_561, %c256_562], %525 {strides = array<i32>} : memref<216x512xbf16, #tpu.memory_space<vmem>>, vector<4x128xbf16>,
    %c0_563 = arith.constant 0 : index
    %528 = arith.index_cast %455 : i32 to index
    %c0_564 = arith.constant 0 : index
    %c24_565 = arith.constant 24 : index
    %529 = vector.load %arg2[%c0_563, %528, %c0_564, %c24_565] : memref<1x10x4x256xbf16, #tpu.memory_space<vmem>>, vector<1x1x4x128xbf16>
    %530 = vector.shape_cast %529 : vector<1x1x4x128xbf16> to vector<1x4x128xbf16>
    %531 = vector.shape_cast %530 : vector<1x4x128xbf16> to vector<4x128xbf16>
    %c120_566 = arith.constant 120 : index
    %c384_567 = arith.constant 384 : index
    %532 = vector.load %arg8[%c120_566, %c384_567] : memref<216x512xbf16, #tpu.memory_space<vmem>>, vector<4x128xbf16>
    tpu.vector_store %arg8[%c120_566, %c384_567], %531 {strides = array<i32>} : memref<216x512xbf16, #tpu.memory_space<vmem>>, vector<4x128xbf16>,
    %c192_568 = arith.constant 192 : index
    %c256_569 = arith.constant 256 : index
    %533 = vector.load %arg8[%c192_568, %c256_569] : memref<216x512xbf16, #tpu.memory_space<vmem>>, vector<4x128xbf16>
    tpu.vector_store %arg8[%c192_568, %c256_569], %531 {strides = array<i32>} : memref<216x512xbf16, #tpu.memory_space<vmem>>, vector<4x128xbf16>,
    %c0_570 = arith.constant 0 : index
    %534 = arith.index_cast %455 : i32 to index
    %c0_571 = arith.constant 0 : index
    %c24_572 = arith.constant 24 : index
    %535 = vector.load %arg3[%c0_570, %534, %c0_571, %c24_572] : memref<1x10x4x256xbf16, #tpu.memory_space<vmem>>, vector<1x1x4x128xbf16>
    %536 = vector.shape_cast %535 : vector<1x1x4x128xbf16> to vector<1x4x128xbf16>
    %537 = vector.shape_cast %536 : vector<1x4x128xbf16> to vector<4x128xbf16>
    %c124_573 = arith.constant 124 : index
    %c384_574 = arith.constant 384 : index
    %538 = vector.load %arg8[%c124_573, %c384_574] : memref<216x512xbf16, #tpu.memory_space<vmem>>, vector<4x128xbf16>
    tpu.vector_store %arg8[%c124_573, %c384_574], %537 {strides = array<i32>} : memref<216x512xbf16, #tpu.memory_space<vmem>>, vector<4x128xbf16>,
    %c196_575 = arith.constant 196 : index
    %c256_576 = arith.constant 256 : index
    %539 = vector.load %arg8[%c196_575, %c256_576] : memref<216x512xbf16, #tpu.memory_space<vmem>>, vector<4x128xbf16>
    tpu.vector_store %arg8[%c196_575, %c256_576], %537 {strides = array<i32>} : memref<216x512xbf16, #tpu.memory_space<vmem>>, vector<4x128xbf16>,
    %c0_577 = arith.constant 0 : index
    %540 = arith.index_cast %455 : i32 to index
    %c0_578 = arith.constant 0 : index
    %c25_579 = arith.constant 25 : index
    %541 = vector.load %arg2[%c0_577, %540, %c0_578, %c25_579] : memref<1x10x4x256xbf16, #tpu.memory_space<vmem>>, vector<1x1x4x128xbf16>
    %542 = vector.shape_cast %541 : vector<1x1x4x128xbf16> to vector<1x4x128xbf16>
    %543 = vector.shape_cast %542 : vector<1x4x128xbf16> to vector<4x128xbf16>
    %c128_580 = arith.constant 128 : index
    %c384_581 = arith.constant 384 : index
    %544 = vector.load %arg8[%c128_580, %c384_581] : memref<216x512xbf16, #tpu.memory_space<vmem>>, vector<4x128xbf16>
    tpu.vector_store %arg8[%c128_580, %c384_581], %543 {strides = array<i32>} : memref<216x512xbf16, #tpu.memory_space<vmem>>, vector<4x128xbf16>,
    %c200_582 = arith.constant 200 : index
    %c256_583 = arith.constant 256 : index
    %545 = vector.load %arg8[%c200_582, %c256_583] : memref<216x512xbf16, #tpu.memory_space<vmem>>, vector<4x128xbf16>
    tpu.vector_store %arg8[%c200_582, %c256_583], %543 {strides = array<i32>} : memref<216x512xbf16, #tpu.memory_space<vmem>>, vector<4x128xbf16>,
    %c0_584 = arith.constant 0 : index
    %546 = arith.index_cast %455 : i32 to index
    %c0_585 = arith.constant 0 : index
    %c25_586 = arith.constant 25 : index
    %547 = vector.load %arg3[%c0_584, %546, %c0_585, %c25_586] : memref<1x10x4x256xbf16, #tpu.memory_space<vmem>>, vector<1x1x4x128xbf16>
    %548 = vector.shape_cast %547 : vector<1x1x4x128xbf16> to vector<1x4x128xbf16>
    %549 = vector.shape_cast %548 : vector<1x4x128xbf16> to vector<4x128xbf16>
    %c132_587 = arith.constant 132 : index
    %c384_588 = arith.constant 384 : index
    %550 = vector.load %arg8[%c132_587, %c384_588] : memref<216x512xbf16, #tpu.memory_space<vmem>>, vector<4x128xbf16>
    tpu.vector_store %arg8[%c132_587, %c384_588], %549 {strides = array<i32>} : memref<216x512xbf16, #tpu.memory_space<vmem>>, vector<4x128xbf16>,
    %c204_589 = arith.constant 204 : index
    %c256_590 = arith.constant 256 : index
    %551 = vector.load %arg8[%c204_589, %c256_590] : memref<216x512xbf16, #tpu.memory_space<vmem>>, vector<4x128xbf16>
    tpu.vector_store %arg8[%c204_589, %c256_590], %549 {strides = array<i32>} : memref<216x512xbf16, #tpu.memory_space<vmem>>, vector<4x128xbf16>,
    %c0_591 = arith.constant 0 : index
    %552 = arith.index_cast %455 : i32 to index
    %c0_592 = arith.constant 0 : index
    %c26_593 = arith.constant 26 : index
    %553 = vector.load %arg2[%c0_591, %552, %c0_592, %c26_593] : memref<1x10x4x256xbf16, #tpu.memory_space<vmem>>, vector<1x1x4x128xbf16>
    %554 = vector.shape_cast %553 : vector<1x1x4x128xbf16> to vector<1x4x128xbf16>
    %555 = vector.shape_cast %554 : vector<1x4x128xbf16> to vector<4x128xbf16>
    %c136_594 = arith.constant 136 : index
    %c384_595 = arith.constant 384 : index
    %556 = vector.load %arg8[%c136_594, %c384_595] : memref<216x512xbf16, #tpu.memory_space<vmem>>, vector<4x128xbf16>
    tpu.vector_store %arg8[%c136_594, %c384_595], %555 {strides = array<i32>} : memref<216x512xbf16, #tpu.memory_space<vmem>>, vector<4x128xbf16>,
    %c208_596 = arith.constant 208 : index
    %c256_597 = arith.constant 256 : index
    %557 = vector.load %arg8[%c208_596, %c256_597] : memref<216x512xbf16, #tpu.memory_space<vmem>>, vector<4x128xbf16>
    tpu.vector_store %arg8[%c208_596, %c256_597], %555 {strides = array<i32>} : memref<216x512xbf16, #tpu.memory_space<vmem>>, vector<4x128xbf16>,
    %c0_598 = arith.constant 0 : index
    %558 = arith.index_cast %455 : i32 to index
    %c0_599 = arith.constant 0 : index
    %c26_600 = arith.constant 26 : index
    %559 = vector.load %arg3[%c0_598, %558, %c0_599, %c26_600] : memref<1x10x4x256xbf16, #tpu.memory_space<vmem>>, vector<1x1x4x128xbf16>
    %560 = vector.shape_cast %559 : vector<1x1x4x128xbf16> to vector<1x4x128xbf16>
    %561 = vector.shape_cast %560 : vector<1x4x128xbf16> to vector<4x128xbf16>
    %c140_601 = arith.constant 140 : index
    %c384_602 = arith.constant 384 : index
    %562 = vector.load %arg8[%c140_601, %c384_602] : memref<216x512xbf16, #tpu.memory_space<vmem>>, vector<4x128xbf16>
    tpu.vector_store %arg8[%c140_601, %c384_602], %561 {strides = array<i32>} : memref<216x512xbf16, #tpu.memory_space<vmem>>, vector<4x128xbf16>,
    %c212_603 = arith.constant 212 : index
    %c256_604 = arith.constant 256 : index
    %563 = vector.load %arg8[%c212_603, %c256_604] : memref<216x512xbf16, #tpu.memory_space<vmem>>, vector<4x128xbf16>
    tpu.vector_store %arg8[%c212_603, %c256_604], %561 {strides = array<i32>} : memref<216x512xbf16, #tpu.memory_space<vmem>>, vector<4x128xbf16>,
    %c5_i32 = arith.constant 5 : i32
    %564 = arith.addi %0, %c5_i32 : i32
    %c0_605 = arith.constant 0 : index
    %565 = arith.index_cast %564 : i32 to index
    %c0_606 = arith.constant 0 : index
    %c0_607 = arith.constant 0 : index
    %566 = vector.load %arg2[%c0_605, %565, %c0_606, %c0_607] : memref<1x10x4x256xbf16, #tpu.memory_space<vmem>>, vector<1x1x4x128xbf16>
    %567 = vector.shape_cast %566 : vector<1x1x4x128xbf16> to vector<1x4x128xbf16>
    %568 = vector.shape_cast %567 : vector<1x4x128xbf16> to vector<4x128xbf16>
    %c144_608 = arith.constant 144 : index
    %c384_609 = arith.constant 384 : index
    %569 = vector.load %arg8[%c144_608, %c384_609] : memref<216x512xbf16, #tpu.memory_space<vmem>>, vector<4x128xbf16>
    tpu.vector_store %arg8[%c144_608, %c384_609], %568 {strides = array<i32>} : memref<216x512xbf16, #tpu.memory_space<vmem>>, vector<4x128xbf16>,
    %c0_610 = arith.constant 0 : index
    %570 = arith.index_cast %564 : i32 to index
    %c0_611 = arith.constant 0 : index
    %c0_612 = arith.constant 0 : index
    %571 = vector.load %arg3[%c0_610, %570, %c0_611, %c0_612] : memref<1x10x4x256xbf16, #tpu.memory_space<vmem>>, vector<1x1x4x128xbf16>
    %572 = vector.shape_cast %571 : vector<1x1x4x128xbf16> to vector<1x4x128xbf16>
    %573 = vector.shape_cast %572 : vector<1x4x128xbf16> to vector<4x128xbf16>
    %c148_613 = arith.constant 148 : index
    %c384_614 = arith.constant 384 : index
    %574 = vector.load %arg8[%c148_613, %c384_614] : memref<216x512xbf16, #tpu.memory_space<vmem>>, vector<4x128xbf16>
    tpu.vector_store %arg8[%c148_613, %c384_614], %573 {strides = array<i32>} : memref<216x512xbf16, #tpu.memory_space<vmem>>, vector<4x128xbf16>,
    %c0_615 = arith.constant 0 : index
    %575 = arith.index_cast %564 : i32 to index
    %c0_616 = arith.constant 0 : index
    %c1_617 = arith.constant 1 : index
    %576 = vector.load %arg2[%c0_615, %575, %c0_616, %c1_617] : memref<1x10x4x256xbf16, #tpu.memory_space<vmem>>, vector<1x1x4x128xbf16>
    %577 = vector.shape_cast %576 : vector<1x1x4x128xbf16> to vector<1x4x128xbf16>
    %578 = vector.shape_cast %577 : vector<1x4x128xbf16> to vector<4x128xbf16>
    %c152_618 = arith.constant 152 : index
    %c384_619 = arith.constant 384 : index
    %579 = vector.load %arg8[%c152_618, %c384_619] : memref<216x512xbf16, #tpu.memory_space<vmem>>, vector<4x128xbf16>
    tpu.vector_store %arg8[%c152_618, %c384_619], %578 {strides = array<i32>} : memref<216x512xbf16, #tpu.memory_space<vmem>>, vector<4x128xbf16>,
    %c0_620 = arith.constant 0 : index
    %580 = arith.index_cast %564 : i32 to index
    %c0_621 = arith.constant 0 : index
    %c1_622 = arith.constant 1 : index
    %581 = vector.load %arg3[%c0_620, %580, %c0_621, %c1_622] : memref<1x10x4x256xbf16, #tpu.memory_space<vmem>>, vector<1x1x4x128xbf16>
    %582 = vector.shape_cast %581 : vector<1x1x4x128xbf16> to vector<1x4x128xbf16>
    %583 = vector.shape_cast %582 : vector<1x4x128xbf16> to vector<4x128xbf16>
    %c156_623 = arith.constant 156 : index
    %c384_624 = arith.constant 384 : index
    %584 = vector.load %arg8[%c156_623, %c384_624] : memref<216x512xbf16, #tpu.memory_space<vmem>>, vector<4x128xbf16>
    tpu.vector_store %arg8[%c156_623, %c384_624], %583 {strides = array<i32>} : memref<216x512xbf16, #tpu.memory_space<vmem>>, vector<4x128xbf16>,
    %c0_625 = arith.constant 0 : index
    %585 = arith.index_cast %564 : i32 to index
    %c0_626 = arith.constant 0 : index
    %c2_627 = arith.constant 2 : index
    %586 = vector.load %arg2[%c0_625, %585, %c0_626, %c2_627] : memref<1x10x4x256xbf16, #tpu.memory_space<vmem>>, vector<1x1x4x128xbf16>
    %587 = vector.shape_cast %586 : vector<1x1x4x128xbf16> to vector<1x4x128xbf16>
    %588 = vector.shape_cast %587 : vector<1x4x128xbf16> to vector<4x128xbf16>
    %c160_628 = arith.constant 160 : index
    %c384_629 = arith.constant 384 : index
    %589 = vector.load %arg8[%c160_628, %c384_629] : memref<216x512xbf16, #tpu.memory_space<vmem>>, vector<4x128xbf16>
    tpu.vector_store %arg8[%c160_628, %c384_629], %588 {strides = array<i32>} : memref<216x512xbf16, #tpu.memory_space<vmem>>, vector<4x128xbf16>,
    %c0_630 = arith.constant 0 : index
    %590 = arith.index_cast %564 : i32 to index
    %c0_631 = arith.constant 0 : index
    %c2_632 = arith.constant 2 : index
    %591 = vector.load %arg3[%c0_630, %590, %c0_631, %c2_632] : memref<1x10x4x256xbf16, #tpu.memory_space<vmem>>, vector<1x1x4x128xbf16>
    %592 = vector.shape_cast %591 : vector<1x1x4x128xbf16> to vector<1x4x128xbf16>
    %593 = vector.shape_cast %592 : vector<1x4x128xbf16> to vector<4x128xbf16>
    %c164_633 = arith.constant 164 : index
    %c384_634 = arith.constant 384 : index
    %594 = vector.load %arg8[%c164_633, %c384_634] : memref<216x512xbf16, #tpu.memory_space<vmem>>, vector<4x128xbf16>
    tpu.vector_store %arg8[%c164_633, %c384_634], %593 {strides = array<i32>} : memref<216x512xbf16, #tpu.memory_space<vmem>>, vector<4x128xbf16>,
    %c0_635 = arith.constant 0 : index
    %595 = arith.index_cast %564 : i32 to index
    %c0_636 = arith.constant 0 : index
    %c12_637 = arith.constant 12 : index
    %596 = vector.load %arg2[%c0_635, %595, %c0_636, %c12_637] : memref<1x10x4x256xbf16, #tpu.memory_space<vmem>>, vector<1x1x4x128xbf16>
    %597 = vector.shape_cast %596 : vector<1x1x4x128xbf16> to vector<1x4x128xbf16>
    %598 = vector.shape_cast %597 : vector<1x4x128xbf16> to vector<4x128xbf16>
    %c168_638 = arith.constant 168 : index
    %c384_639 = arith.constant 384 : index
    %599 = vector.load %arg8[%c168_638, %c384_639] : memref<216x512xbf16, #tpu.memory_space<vmem>>, vector<4x128xbf16>
    tpu.vector_store %arg8[%c168_638, %c384_639], %598 {strides = array<i32>} : memref<216x512xbf16, #tpu.memory_space<vmem>>, vector<4x128xbf16>,
    %c0_640 = arith.constant 0 : index
    %600 = arith.index_cast %564 : i32 to index
    %c0_641 = arith.constant 0 : index
    %c12_642 = arith.constant 12 : index
    %601 = vector.load %arg3[%c0_640, %600, %c0_641, %c12_642] : memref<1x10x4x256xbf16, #tpu.memory_space<vmem>>, vector<1x1x4x128xbf16>
    %602 = vector.shape_cast %601 : vector<1x1x4x128xbf16> to vector<1x4x128xbf16>
    %603 = vector.shape_cast %602 : vector<1x4x128xbf16> to vector<4x128xbf16>
    %c172_643 = arith.constant 172 : index
    %c384_644 = arith.constant 384 : index
    %604 = vector.load %arg8[%c172_643, %c384_644] : memref<216x512xbf16, #tpu.memory_space<vmem>>, vector<4x128xbf16>
    tpu.vector_store %arg8[%c172_643, %c384_644], %603 {strides = array<i32>} : memref<216x512xbf16, #tpu.memory_space<vmem>>, vector<4x128xbf16>,
    %c0_645 = arith.constant 0 : index
    %605 = arith.index_cast %564 : i32 to index
    %c0_646 = arith.constant 0 : index
    %c13_647 = arith.constant 13 : index
    %606 = vector.load %arg2[%c0_645, %605, %c0_646, %c13_647] : memref<1x10x4x256xbf16, #tpu.memory_space<vmem>>, vector<1x1x4x128xbf16>
    %607 = vector.shape_cast %606 : vector<1x1x4x128xbf16> to vector<1x4x128xbf16>
    %608 = vector.shape_cast %607 : vector<1x4x128xbf16> to vector<4x128xbf16>
    %c176_648 = arith.constant 176 : index
    %c384_649 = arith.constant 384 : index
    %609 = vector.load %arg8[%c176_648, %c384_649] : memref<216x512xbf16, #tpu.memory_space<vmem>>, vector<4x128xbf16>
    tpu.vector_store %arg8[%c176_648, %c384_649], %608 {strides = array<i32>} : memref<216x512xbf16, #tpu.memory_space<vmem>>, vector<4x128xbf16>,
    %c0_650 = arith.constant 0 : index
    %610 = arith.index_cast %564 : i32 to index
    %c0_651 = arith.constant 0 : index
    %c13_652 = arith.constant 13 : index
    %611 = vector.load %arg3[%c0_650, %610, %c0_651, %c13_652] : memref<1x10x4x256xbf16, #tpu.memory_space<vmem>>, vector<1x1x4x128xbf16>
    %612 = vector.shape_cast %611 : vector<1x1x4x128xbf16> to vector<1x4x128xbf16>
    %613 = vector.shape_cast %612 : vector<1x4x128xbf16> to vector<4x128xbf16>
    %c180_653 = arith.constant 180 : index
    %c384_654 = arith.constant 384 : index
    %614 = vector.load %arg8[%c180_653, %c384_654] : memref<216x512xbf16, #tpu.memory_space<vmem>>, vector<4x128xbf16>
    tpu.vector_store %arg8[%c180_653, %c384_654], %613 {strides = array<i32>} : memref<216x512xbf16, #tpu.memory_space<vmem>>, vector<4x128xbf16>,
    %c0_655 = arith.constant 0 : index
    %615 = arith.index_cast %564 : i32 to index
    %c0_656 = arith.constant 0 : index
    %c14_657 = arith.constant 14 : index
    %616 = vector.load %arg2[%c0_655, %615, %c0_656, %c14_657] : memref<1x10x4x256xbf16, #tpu.memory_space<vmem>>, vector<1x1x4x128xbf16>
    %617 = vector.shape_cast %616 : vector<1x1x4x128xbf16> to vector<1x4x128xbf16>
    %618 = vector.shape_cast %617 : vector<1x4x128xbf16> to vector<4x128xbf16>
    %c184_658 = arith.constant 184 : index
    %c384_659 = arith.constant 384 : index
    %619 = vector.load %arg8[%c184_658, %c384_659] : memref<216x512xbf16, #tpu.memory_space<vmem>>, vector<4x128xbf16>
    tpu.vector_store %arg8[%c184_658, %c384_659], %618 {strides = array<i32>} : memref<216x512xbf16, #tpu.memory_space<vmem>>, vector<4x128xbf16>,
    %c0_660 = arith.constant 0 : index
    %620 = arith.index_cast %564 : i32 to index
    %c0_661 = arith.constant 0 : index
    %c14_662 = arith.constant 14 : index
    %621 = vector.load %arg3[%c0_660, %620, %c0_661, %c14_662] : memref<1x10x4x256xbf16, #tpu.memory_space<vmem>>, vector<1x1x4x128xbf16>
    %622 = vector.shape_cast %621 : vector<1x1x4x128xbf16> to vector<1x4x128xbf16>
    %623 = vector.shape_cast %622 : vector<1x4x128xbf16> to vector<4x128xbf16>
    %c188_663 = arith.constant 188 : index
    %c384_664 = arith.constant 384 : index
    %624 = vector.load %arg8[%c188_663, %c384_664] : memref<216x512xbf16, #tpu.memory_space<vmem>>, vector<4x128xbf16>
    tpu.vector_store %arg8[%c188_663, %c384_664], %623 {strides = array<i32>} : memref<216x512xbf16, #tpu.memory_space<vmem>>, vector<4x128xbf16>,
    %c0_665 = arith.constant 0 : index
    %625 = arith.index_cast %564 : i32 to index
    %c0_666 = arith.constant 0 : index
    %c24_667 = arith.constant 24 : index
    %626 = vector.load %arg2[%c0_665, %625, %c0_666, %c24_667] : memref<1x10x4x256xbf16, #tpu.memory_space<vmem>>, vector<1x1x4x128xbf16>
    %627 = vector.shape_cast %626 : vector<1x1x4x128xbf16> to vector<1x4x128xbf16>
    %628 = vector.shape_cast %627 : vector<1x4x128xbf16> to vector<4x128xbf16>
    %c192_668 = arith.constant 192 : index
    %c384_669 = arith.constant 384 : index
    %629 = vector.load %arg8[%c192_668, %c384_669] : memref<216x512xbf16, #tpu.memory_space<vmem>>, vector<4x128xbf16>
    tpu.vector_store %arg8[%c192_668, %c384_669], %628 {strides = array<i32>} : memref<216x512xbf16, #tpu.memory_space<vmem>>, vector<4x128xbf16>,
    %c0_670 = arith.constant 0 : index
    %630 = arith.index_cast %564 : i32 to index
    %c0_671 = arith.constant 0 : index
    %c24_672 = arith.constant 24 : index
    %631 = vector.load %arg3[%c0_670, %630, %c0_671, %c24_672] : memref<1x10x4x256xbf16, #tpu.memory_space<vmem>>, vector<1x1x4x128xbf16>
    %632 = vector.shape_cast %631 : vector<1x1x4x128xbf16> to vector<1x4x128xbf16>
    %633 = vector.shape_cast %632 : vector<1x4x128xbf16> to vector<4x128xbf16>
    %c196_673 = arith.constant 196 : index
    %c384_674 = arith.constant 384 : index
    %634 = vector.load %arg8[%c196_673, %c384_674] : memref<216x512xbf16, #tpu.memory_space<vmem>>, vector<4x128xbf16>
    tpu.vector_store %arg8[%c196_673, %c384_674], %633 {strides = array<i32>} : memref<216x512xbf16, #tpu.memory_space<vmem>>, vector<4x128xbf16>,
    %c0_675 = arith.constant 0 : index
    %635 = arith.index_cast %564 : i32 to index
    %c0_676 = arith.constant 0 : index
    %c25_677 = arith.constant 25 : index
    %636 = vector.load %arg2[%c0_675, %635, %c0_676, %c25_677] : memref<1x10x4x256xbf16, #tpu.memory_space<vmem>>, vector<1x1x4x128xbf16>
    %637 = vector.shape_cast %636 : vector<1x1x4x128xbf16> to vector<1x4x128xbf16>
    %638 = vector.shape_cast %637 : vector<1x4x128xbf16> to vector<4x128xbf16>
    %c200_678 = arith.constant 200 : index
    %c384_679 = arith.constant 384 : index
    %639 = vector.load %arg8[%c200_678, %c384_679] : memref<216x512xbf16, #tpu.memory_space<vmem>>, vector<4x128xbf16>
    tpu.vector_store %arg8[%c200_678, %c384_679], %638 {strides = array<i32>} : memref<216x512xbf16, #tpu.memory_space<vmem>>, vector<4x128xbf16>,
    %c0_680 = arith.constant 0 : index
    %640 = arith.index_cast %564 : i32 to index
    %c0_681 = arith.constant 0 : index
    %c25_682 = arith.constant 25 : index
    %641 = vector.load %arg3[%c0_680, %640, %c0_681, %c25_682] : memref<1x10x4x256xbf16, #tpu.memory_space<vmem>>, vector<1x1x4x128xbf16>
    %642 = vector.shape_cast %641 : vector<1x1x4x128xbf16> to vector<1x4x128xbf16>
    %643 = vector.shape_cast %642 : vector<1x4x128xbf16> to vector<4x128xbf16>
    %c204_683 = arith.constant 204 : index
    %c384_684 = arith.constant 384 : index
    %644 = vector.load %arg8[%c204_683, %c384_684] : memref<216x512xbf16, #tpu.memory_space<vmem>>, vector<4x128xbf16>
    tpu.vector_store %arg8[%c204_683, %c384_684], %643 {strides = array<i32>} : memref<216x512xbf16, #tpu.memory_space<vmem>>, vector<4x128xbf16>,
    %c0_685 = arith.constant 0 : index
    %645 = arith.index_cast %564 : i32 to index
    %c0_686 = arith.constant 0 : index
    %c26_687 = arith.constant 26 : index
    %646 = vector.load %arg2[%c0_685, %645, %c0_686, %c26_687] : memref<1x10x4x256xbf16, #tpu.memory_space<vmem>>, vector<1x1x4x128xbf16>
    %647 = vector.shape_cast %646 : vector<1x1x4x128xbf16> to vector<1x4x128xbf16>
    %648 = vector.shape_cast %647 : vector<1x4x128xbf16> to vector<4x128xbf16>
    %c208_688 = arith.constant 208 : index
    %c384_689 = arith.constant 384 : index
    %649 = vector.load %arg8[%c208_688, %c384_689] : memref<216x512xbf16, #tpu.memory_space<vmem>>, vector<4x128xbf16>
    tpu.vector_store %arg8[%c208_688, %c384_689], %648 {strides = array<i32>} : memref<216x512xbf16, #tpu.memory_space<vmem>>, vector<4x128xbf16>,
    %c0_690 = arith.constant 0 : index
    %650 = arith.index_cast %564 : i32 to index
    %c0_691 = arith.constant 0 : index
    %c26_692 = arith.constant 26 : index
    %651 = vector.load %arg3[%c0_690, %650, %c0_691, %c26_692] : memref<1x10x4x256xbf16, #tpu.memory_space<vmem>>, vector<1x1x4x128xbf16>
    %652 = vector.shape_cast %651 : vector<1x1x4x128xbf16> to vector<1x4x128xbf16>
    %653 = vector.shape_cast %652 : vector<1x4x128xbf16> to vector<4x128xbf16>
    %c212_693 = arith.constant 212 : index
    %c384_694 = arith.constant 384 : index
    %654 = vector.load %arg8[%c212_693, %c384_694] : memref<216x512xbf16, #tpu.memory_space<vmem>>, vector<4x128xbf16>
    tpu.vector_store %arg8[%c212_693, %c384_694], %653 {strides = array<i32>} : memref<216x512xbf16, #tpu.memory_space<vmem>>, vector<4x128xbf16>,
    %c0_695 = arith.constant 0 : index
    %c0_696 = arith.constant 0 : index
    %655 = vector.load %arg4[%c0_695, %c0_696] : memref<8x216xbf16, #tpu.memory_space<vmem>>, vector<8x216xbf16>
    %c0_697 = arith.constant 0 : index
    %c0_698 = arith.constant 0 : index
    %656 = vector.load %arg8[%c0_697, %c0_698] : memref<216x512xbf16, #tpu.memory_space<vmem>>, vector<216x512xbf16>
    %cst = arith.constant dense<0.000000e+00> : vector<8x512xf32>
    %657 = tpu.matmul %655, %656, %cst {dimension_numbers = #tpu.dot_dimension_numbers<[1], [0], [0], [1], [0, 0, 1, 1], [], []>} : vector<8x216xbf16>, vector<216x512xbf16>, vector<8x512xf32> -> vector<8x512xf32>
    %c0_699 = arith.constant 0 : index
    %c0_700 = arith.constant 0 : index
    %658 = vector.load %arg5[%c0_699, %c0_700] : memref<8x1xf32, #tpu.memory_space<vmem>>, vector<8x1xf32>
    %659 = vector.broadcast %658 : vector<8x1xf32> to vector<8x512xf32>
    %660 = arith.mulf %657, %659 : vector<8x512xf32>
    %c0_701 = arith.constant 0 : index
    %c0_702 = arith.constant 0 : index
    %661 = vector.load %arg6[%c0_701, %c0_702] : memref<8x1xf32, #tpu.memory_space<vmem>>, vector<8x1xf32>
    %662 = vector.broadcast %661 : vector<8x1xf32> to vector<8x512xf32>
    %663 = arith.addf %660, %662 : vector<8x512xf32>
    %cst_703 = arith.constant 0.000000e+00 : f32
    %664 = vector.broadcast %cst_703 : f32 to vector<8x512xf32>
    %665 = arith.maximumf %663, %664 : vector<8x512xf32>
    %c0_704 = arith.constant 0 : index
    %c0_705 = arith.constant 0 : index
    %c0_706 = arith.constant 0 : index
    %666 = vector.load %arg7[%c0_704, %c0_705, %c0_706] : memref<1x8x512xf32, #tpu.memory_space<vmem>>, vector<1x8x512xf32>
    %667 = vector.shape_cast %666 : vector<1x8x512xf32> to vector<8x512xf32>
    %668 = vector.shape_cast %665 : vector<8x512xf32> to vector<1x8x512xf32>
    tpu.vector_store %arg7[%c0_704, %c0_705, %c0_706], %668 {strides = array<i32>} : memref<1x8x512xf32, #tpu.memory_space<vmem>>, vector<1x8x512xf32>,
    return
  }
  func.func @transform_0(%arg0: i32, %arg1: i32) -> (i32, i32, i32, i32) {
    %c0_i32 = arith.constant 0 : i32
    %c0_i32_0 = arith.constant 0 : i32
    %c0_i32_1 = arith.constant 0 : i32
    %c0_i32_2 = arith.constant 0 : i32
    return %arg0, %c0_i32, %c0_i32_0, %c0_i32_1 : i32, i32, i32, i32
  }
  func.func @transform_1(%arg0: i32, %arg1: i32) -> (i32, i32, i32, i32) {
    %c0_i32 = arith.constant 0 : i32
    %c0_i32_0 = arith.constant 0 : i32
    %c0_i32_1 = arith.constant 0 : i32
    %c0_i32_2 = arith.constant 0 : i32
    return %arg0, %c0_i32, %c0_i32_0, %c0_i32_1 : i32, i32, i32, i32
  }
  func.func @transform_2(%arg0: i32, %arg1: i32) -> (i32, i32) {
    %c0_i32 = arith.constant 0 : i32
    %c0_i32_0 = arith.constant 0 : i32
    %c0_i32_1 = arith.constant 0 : i32
    return %c0_i32, %c0_i32_0 : i32, i32
  }
  func.func @transform_3(%arg0: i32, %arg1: i32) -> (i32, i32) {
    %c0_i32 = arith.constant 0 : i32
    %c0_i32_0 = arith.constant 0 : i32
    %c0_i32_1 = arith.constant 0 : i32
    return %c0_i32, %c0_i32_0 : i32, i32
  }
  func.func @transform_4(%arg0: i32, %arg1: i32) -> (i32, i32) {
    %c0_i32 = arith.constant 0 : i32
    %c0_i32_0 = arith.constant 0 : i32
    %c0_i32_1 = arith.constant 0 : i32
    return %c0_i32, %c0_i32_0 : i32, i32
  }
  func.func @transform_5(%arg0: i32, %arg1: i32) -> (i32, i32, i32) {
    %c0_i32 = arith.constant 0 : i32
    %c0_i32_0 = arith.constant 0 : i32
    return %arg0, %c0_i32, %arg1 : i32, i32, i32
  }
}

module attributes {stable_mosaic.version = 11 : i64} {
  func.func @_im2col_conv_kernel(%arg0: i32, %arg1: i32, %arg2: memref<1x10x4x256xbf16, #tpu.memory_space<vmem>>, %arg3: memref<8x108xbf16, #tpu.memory_space<vmem>>, %arg4: memref<8x1xf32, #tpu.memory_space<vmem>>, %arg5: memref<8x1xf32, #tpu.memory_space<vmem>>, %arg6: memref<1x8x512xf32, #tpu.memory_space<vmem>>, %arg7: memref<108x512xbf16, #tpu.memory_space<vmem>>) attributes {dimension_semantics = [#tpu.dimension_semantics<parallel>, #tpu.dimension_semantics<parallel>], iteration_bounds = array<i64: 2, 2>, scalar_prefetch = 0 : i64, scratch_operands = 1 : i64, tpu.core_type = #tpu.core_type<tc>, window_params = [{transform_indices = @transform_0, window_bounds = array<i64: 1, 10, 4, 256>}, {pipeline_mode = #tpu.pipeline_mode<synchronous>, transform_indices = @transform_1, window_bounds = array<i64: 8, 108>}, {pipeline_mode = #tpu.pipeline_mode<synchronous>, transform_indices = @transform_2, window_bounds = array<i64: 8, 1>}, {pipeline_mode = #tpu.pipeline_mode<synchronous>, transform_indices = @transform_3, window_bounds = array<i64: 8, 1>}, {transform_indices = @transform_4, window_bounds = array<i64: 1, 8, 512>}]} {
    %c4_i32 = arith.constant 4 : i32
    %0 = arith.muli %arg1, %c4_i32 : i32
    %c0_i32 = arith.constant 0 : i32
    %1 = arith.addi %0, %c0_i32 : i32
    %c0 = arith.constant 0 : index
    %2 = arith.index_cast %1 : i32 to index
    %c0_0 = arith.constant 0 : index
    %c0_1 = arith.constant 0 : index
    %3 = vector.load %arg2[%c0, %2, %c0_0, %c0_1] : memref<1x10x4x256xbf16, #tpu.memory_space<vmem>>, vector<1x1x4x128xbf16>
    %4 = vector.shape_cast %3 : vector<1x1x4x128xbf16> to vector<1x4x128xbf16>
    %5 = vector.shape_cast %4 : vector<1x4x128xbf16> to vector<4x128xbf16>
    %c0_2 = arith.constant 0 : index
    %c0_3 = arith.constant 0 : index
    %6 = vector.load %arg7[%c0_2, %c0_3] : memref<108x512xbf16, #tpu.memory_space<vmem>>, vector<4x128xbf16>
    tpu.vector_store %arg7[%c0_2, %c0_3], %5 {strides = array<i32>} : memref<108x512xbf16, #tpu.memory_space<vmem>>, vector<4x128xbf16>,
    %c0_4 = arith.constant 0 : index
    %7 = arith.index_cast %1 : i32 to index
    %c0_5 = arith.constant 0 : index
    %c1 = arith.constant 1 : index
    %8 = vector.load %arg2[%c0_4, %7, %c0_5, %c1] : memref<1x10x4x256xbf16, #tpu.memory_space<vmem>>, vector<1x1x4x128xbf16>
    %9 = vector.shape_cast %8 : vector<1x1x4x128xbf16> to vector<1x4x128xbf16>
    %10 = vector.shape_cast %9 : vector<1x4x128xbf16> to vector<4x128xbf16>
    %c4 = arith.constant 4 : index
    %c0_6 = arith.constant 0 : index
    %11 = vector.load %arg7[%c4, %c0_6] : memref<108x512xbf16, #tpu.memory_space<vmem>>, vector<4x128xbf16>
    tpu.vector_store %arg7[%c4, %c0_6], %10 {strides = array<i32>} : memref<108x512xbf16, #tpu.memory_space<vmem>>, vector<4x128xbf16>,
    %c0_7 = arith.constant 0 : index
    %12 = arith.index_cast %1 : i32 to index
    %c0_8 = arith.constant 0 : index
    %c2 = arith.constant 2 : index
    %13 = vector.load %arg2[%c0_7, %12, %c0_8, %c2] : memref<1x10x4x256xbf16, #tpu.memory_space<vmem>>, vector<1x1x4x128xbf16>
    %14 = vector.shape_cast %13 : vector<1x1x4x128xbf16> to vector<1x4x128xbf16>
    %15 = vector.shape_cast %14 : vector<1x4x128xbf16> to vector<4x128xbf16>
    %c8 = arith.constant 8 : index
    %c0_9 = arith.constant 0 : index
    %16 = vector.load %arg7[%c8, %c0_9] : memref<108x512xbf16, #tpu.memory_space<vmem>>, vector<4x128xbf16>
    tpu.vector_store %arg7[%c8, %c0_9], %15 {strides = array<i32>} : memref<108x512xbf16, #tpu.memory_space<vmem>>, vector<4x128xbf16>,
    %c0_10 = arith.constant 0 : index
    %17 = arith.index_cast %1 : i32 to index
    %c0_11 = arith.constant 0 : index
    %c12 = arith.constant 12 : index
    %18 = vector.load %arg2[%c0_10, %17, %c0_11, %c12] : memref<1x10x4x256xbf16, #tpu.memory_space<vmem>>, vector<1x1x4x128xbf16>
    %19 = vector.shape_cast %18 : vector<1x1x4x128xbf16> to vector<1x4x128xbf16>
    %20 = vector.shape_cast %19 : vector<1x4x128xbf16> to vector<4x128xbf16>
    %c12_12 = arith.constant 12 : index
    %c0_13 = arith.constant 0 : index
    %21 = vector.load %arg7[%c12_12, %c0_13] : memref<108x512xbf16, #tpu.memory_space<vmem>>, vector<4x128xbf16>
    tpu.vector_store %arg7[%c12_12, %c0_13], %20 {strides = array<i32>} : memref<108x512xbf16, #tpu.memory_space<vmem>>, vector<4x128xbf16>,
    %c0_14 = arith.constant 0 : index
    %22 = arith.index_cast %1 : i32 to index
    %c0_15 = arith.constant 0 : index
    %c13 = arith.constant 13 : index
    %23 = vector.load %arg2[%c0_14, %22, %c0_15, %c13] : memref<1x10x4x256xbf16, #tpu.memory_space<vmem>>, vector<1x1x4x128xbf16>
    %24 = vector.shape_cast %23 : vector<1x1x4x128xbf16> to vector<1x4x128xbf16>
    %25 = vector.shape_cast %24 : vector<1x4x128xbf16> to vector<4x128xbf16>
    %c16 = arith.constant 16 : index
    %c0_16 = arith.constant 0 : index
    %26 = vector.load %arg7[%c16, %c0_16] : memref<108x512xbf16, #tpu.memory_space<vmem>>, vector<4x128xbf16>
    tpu.vector_store %arg7[%c16, %c0_16], %25 {strides = array<i32>} : memref<108x512xbf16, #tpu.memory_space<vmem>>, vector<4x128xbf16>,
    %c0_17 = arith.constant 0 : index
    %27 = arith.index_cast %1 : i32 to index
    %c0_18 = arith.constant 0 : index
    %c14 = arith.constant 14 : index
    %28 = vector.load %arg2[%c0_17, %27, %c0_18, %c14] : memref<1x10x4x256xbf16, #tpu.memory_space<vmem>>, vector<1x1x4x128xbf16>
    %29 = vector.shape_cast %28 : vector<1x1x4x128xbf16> to vector<1x4x128xbf16>
    %30 = vector.shape_cast %29 : vector<1x4x128xbf16> to vector<4x128xbf16>
    %c20 = arith.constant 20 : index
    %c0_19 = arith.constant 0 : index
    %31 = vector.load %arg7[%c20, %c0_19] : memref<108x512xbf16, #tpu.memory_space<vmem>>, vector<4x128xbf16>
    tpu.vector_store %arg7[%c20, %c0_19], %30 {strides = array<i32>} : memref<108x512xbf16, #tpu.memory_space<vmem>>, vector<4x128xbf16>,
    %c0_20 = arith.constant 0 : index
    %32 = arith.index_cast %1 : i32 to index
    %c0_21 = arith.constant 0 : index
    %c24 = arith.constant 24 : index
    %33 = vector.load %arg2[%c0_20, %32, %c0_21, %c24] : memref<1x10x4x256xbf16, #tpu.memory_space<vmem>>, vector<1x1x4x128xbf16>
    %34 = vector.shape_cast %33 : vector<1x1x4x128xbf16> to vector<1x4x128xbf16>
    %35 = vector.shape_cast %34 : vector<1x4x128xbf16> to vector<4x128xbf16>
    %c24_22 = arith.constant 24 : index
    %c0_23 = arith.constant 0 : index
    %36 = vector.load %arg7[%c24_22, %c0_23] : memref<108x512xbf16, #tpu.memory_space<vmem>>, vector<4x128xbf16>
    tpu.vector_store %arg7[%c24_22, %c0_23], %35 {strides = array<i32>} : memref<108x512xbf16, #tpu.memory_space<vmem>>, vector<4x128xbf16>,
    %c0_24 = arith.constant 0 : index
    %37 = arith.index_cast %1 : i32 to index
    %c0_25 = arith.constant 0 : index
    %c25 = arith.constant 25 : index
    %38 = vector.load %arg2[%c0_24, %37, %c0_25, %c25] : memref<1x10x4x256xbf16, #tpu.memory_space<vmem>>, vector<1x1x4x128xbf16>
    %39 = vector.shape_cast %38 : vector<1x1x4x128xbf16> to vector<1x4x128xbf16>
    %40 = vector.shape_cast %39 : vector<1x4x128xbf16> to vector<4x128xbf16>
    %c28 = arith.constant 28 : index
    %c0_26 = arith.constant 0 : index
    %41 = vector.load %arg7[%c28, %c0_26] : memref<108x512xbf16, #tpu.memory_space<vmem>>, vector<4x128xbf16>
    tpu.vector_store %arg7[%c28, %c0_26], %40 {strides = array<i32>} : memref<108x512xbf16, #tpu.memory_space<vmem>>, vector<4x128xbf16>,
    %c0_27 = arith.constant 0 : index
    %42 = arith.index_cast %1 : i32 to index
    %c0_28 = arith.constant 0 : index
    %c26 = arith.constant 26 : index
    %43 = vector.load %arg2[%c0_27, %42, %c0_28, %c26] : memref<1x10x4x256xbf16, #tpu.memory_space<vmem>>, vector<1x1x4x128xbf16>
    %44 = vector.shape_cast %43 : vector<1x1x4x128xbf16> to vector<1x4x128xbf16>
    %45 = vector.shape_cast %44 : vector<1x4x128xbf16> to vector<4x128xbf16>
    %c32 = arith.constant 32 : index
    %c0_29 = arith.constant 0 : index
    %46 = vector.load %arg7[%c32, %c0_29] : memref<108x512xbf16, #tpu.memory_space<vmem>>, vector<4x128xbf16>
    tpu.vector_store %arg7[%c32, %c0_29], %45 {strides = array<i32>} : memref<108x512xbf16, #tpu.memory_space<vmem>>, vector<4x128xbf16>,
    %c1_i32 = arith.constant 1 : i32
    %47 = arith.addi %0, %c1_i32 : i32
    %c0_30 = arith.constant 0 : index
    %48 = arith.index_cast %47 : i32 to index
    %c0_31 = arith.constant 0 : index
    %c0_32 = arith.constant 0 : index
    %49 = vector.load %arg2[%c0_30, %48, %c0_31, %c0_32] : memref<1x10x4x256xbf16, #tpu.memory_space<vmem>>, vector<1x1x4x128xbf16>
    %50 = vector.shape_cast %49 : vector<1x1x4x128xbf16> to vector<1x4x128xbf16>
    %51 = vector.shape_cast %50 : vector<1x4x128xbf16> to vector<4x128xbf16>
    %c0_33 = arith.constant 0 : index
    %c128 = arith.constant 128 : index
    %52 = vector.load %arg7[%c0_33, %c128] : memref<108x512xbf16, #tpu.memory_space<vmem>>, vector<4x128xbf16>
    tpu.vector_store %arg7[%c0_33, %c128], %51 {strides = array<i32>} : memref<108x512xbf16, #tpu.memory_space<vmem>>, vector<4x128xbf16>,
    %c36 = arith.constant 36 : index
    %c0_34 = arith.constant 0 : index
    %53 = vector.load %arg7[%c36, %c0_34] : memref<108x512xbf16, #tpu.memory_space<vmem>>, vector<4x128xbf16>
    tpu.vector_store %arg7[%c36, %c0_34], %51 {strides = array<i32>} : memref<108x512xbf16, #tpu.memory_space<vmem>>, vector<4x128xbf16>,
    %c0_35 = arith.constant 0 : index
    %54 = arith.index_cast %47 : i32 to index
    %c0_36 = arith.constant 0 : index
    %c1_37 = arith.constant 1 : index
    %55 = vector.load %arg2[%c0_35, %54, %c0_36, %c1_37] : memref<1x10x4x256xbf16, #tpu.memory_space<vmem>>, vector<1x1x4x128xbf16>
    %56 = vector.shape_cast %55 : vector<1x1x4x128xbf16> to vector<1x4x128xbf16>
    %57 = vector.shape_cast %56 : vector<1x4x128xbf16> to vector<4x128xbf16>
    %c4_38 = arith.constant 4 : index
    %c128_39 = arith.constant 128 : index
    %58 = vector.load %arg7[%c4_38, %c128_39] : memref<108x512xbf16, #tpu.memory_space<vmem>>, vector<4x128xbf16>
    tpu.vector_store %arg7[%c4_38, %c128_39], %57 {strides = array<i32>} : memref<108x512xbf16, #tpu.memory_space<vmem>>, vector<4x128xbf16>,
    %c40 = arith.constant 40 : index
    %c0_40 = arith.constant 0 : index
    %59 = vector.load %arg7[%c40, %c0_40] : memref<108x512xbf16, #tpu.memory_space<vmem>>, vector<4x128xbf16>
    tpu.vector_store %arg7[%c40, %c0_40], %57 {strides = array<i32>} : memref<108x512xbf16, #tpu.memory_space<vmem>>, vector<4x128xbf16>,
    %c0_41 = arith.constant 0 : index
    %60 = arith.index_cast %47 : i32 to index
    %c0_42 = arith.constant 0 : index
    %c2_43 = arith.constant 2 : index
    %61 = vector.load %arg2[%c0_41, %60, %c0_42, %c2_43] : memref<1x10x4x256xbf16, #tpu.memory_space<vmem>>, vector<1x1x4x128xbf16>
    %62 = vector.shape_cast %61 : vector<1x1x4x128xbf16> to vector<1x4x128xbf16>
    %63 = vector.shape_cast %62 : vector<1x4x128xbf16> to vector<4x128xbf16>
    %c8_44 = arith.constant 8 : index
    %c128_45 = arith.constant 128 : index
    %64 = vector.load %arg7[%c8_44, %c128_45] : memref<108x512xbf16, #tpu.memory_space<vmem>>, vector<4x128xbf16>
    tpu.vector_store %arg7[%c8_44, %c128_45], %63 {strides = array<i32>} : memref<108x512xbf16, #tpu.memory_space<vmem>>, vector<4x128xbf16>,
    %c44 = arith.constant 44 : index
    %c0_46 = arith.constant 0 : index
    %65 = vector.load %arg7[%c44, %c0_46] : memref<108x512xbf16, #tpu.memory_space<vmem>>, vector<4x128xbf16>
    tpu.vector_store %arg7[%c44, %c0_46], %63 {strides = array<i32>} : memref<108x512xbf16, #tpu.memory_space<vmem>>, vector<4x128xbf16>,
    %c0_47 = arith.constant 0 : index
    %66 = arith.index_cast %47 : i32 to index
    %c0_48 = arith.constant 0 : index
    %c12_49 = arith.constant 12 : index
    %67 = vector.load %arg2[%c0_47, %66, %c0_48, %c12_49] : memref<1x10x4x256xbf16, #tpu.memory_space<vmem>>, vector<1x1x4x128xbf16>
    %68 = vector.shape_cast %67 : vector<1x1x4x128xbf16> to vector<1x4x128xbf16>
    %69 = vector.shape_cast %68 : vector<1x4x128xbf16> to vector<4x128xbf16>
    %c12_50 = arith.constant 12 : index
    %c128_51 = arith.constant 128 : index
    %70 = vector.load %arg7[%c12_50, %c128_51] : memref<108x512xbf16, #tpu.memory_space<vmem>>, vector<4x128xbf16>
    tpu.vector_store %arg7[%c12_50, %c128_51], %69 {strides = array<i32>} : memref<108x512xbf16, #tpu.memory_space<vmem>>, vector<4x128xbf16>,
    %c48 = arith.constant 48 : index
    %c0_52 = arith.constant 0 : index
    %71 = vector.load %arg7[%c48, %c0_52] : memref<108x512xbf16, #tpu.memory_space<vmem>>, vector<4x128xbf16>
    tpu.vector_store %arg7[%c48, %c0_52], %69 {strides = array<i32>} : memref<108x512xbf16, #tpu.memory_space<vmem>>, vector<4x128xbf16>,
    %c0_53 = arith.constant 0 : index
    %72 = arith.index_cast %47 : i32 to index
    %c0_54 = arith.constant 0 : index
    %c13_55 = arith.constant 13 : index
    %73 = vector.load %arg2[%c0_53, %72, %c0_54, %c13_55] : memref<1x10x4x256xbf16, #tpu.memory_space<vmem>>, vector<1x1x4x128xbf16>
    %74 = vector.shape_cast %73 : vector<1x1x4x128xbf16> to vector<1x4x128xbf16>
    %75 = vector.shape_cast %74 : vector<1x4x128xbf16> to vector<4x128xbf16>
    %c16_56 = arith.constant 16 : index
    %c128_57 = arith.constant 128 : index
    %76 = vector.load %arg7[%c16_56, %c128_57] : memref<108x512xbf16, #tpu.memory_space<vmem>>, vector<4x128xbf16>
    tpu.vector_store %arg7[%c16_56, %c128_57], %75 {strides = array<i32>} : memref<108x512xbf16, #tpu.memory_space<vmem>>, vector<4x128xbf16>,
    %c52 = arith.constant 52 : index
    %c0_58 = arith.constant 0 : index
    %77 = vector.load %arg7[%c52, %c0_58] : memref<108x512xbf16, #tpu.memory_space<vmem>>, vector<4x128xbf16>
    tpu.vector_store %arg7[%c52, %c0_58], %75 {strides = array<i32>} : memref<108x512xbf16, #tpu.memory_space<vmem>>, vector<4x128xbf16>,
    %c0_59 = arith.constant 0 : index
    %78 = arith.index_cast %47 : i32 to index
    %c0_60 = arith.constant 0 : index
    %c14_61 = arith.constant 14 : index
    %79 = vector.load %arg2[%c0_59, %78, %c0_60, %c14_61] : memref<1x10x4x256xbf16, #tpu.memory_space<vmem>>, vector<1x1x4x128xbf16>
    %80 = vector.shape_cast %79 : vector<1x1x4x128xbf16> to vector<1x4x128xbf16>
    %81 = vector.shape_cast %80 : vector<1x4x128xbf16> to vector<4x128xbf16>
    %c20_62 = arith.constant 20 : index
    %c128_63 = arith.constant 128 : index
    %82 = vector.load %arg7[%c20_62, %c128_63] : memref<108x512xbf16, #tpu.memory_space<vmem>>, vector<4x128xbf16>
    tpu.vector_store %arg7[%c20_62, %c128_63], %81 {strides = array<i32>} : memref<108x512xbf16, #tpu.memory_space<vmem>>, vector<4x128xbf16>,
    %c56 = arith.constant 56 : index
    %c0_64 = arith.constant 0 : index
    %83 = vector.load %arg7[%c56, %c0_64] : memref<108x512xbf16, #tpu.memory_space<vmem>>, vector<4x128xbf16>
    tpu.vector_store %arg7[%c56, %c0_64], %81 {strides = array<i32>} : memref<108x512xbf16, #tpu.memory_space<vmem>>, vector<4x128xbf16>,
    %c0_65 = arith.constant 0 : index
    %84 = arith.index_cast %47 : i32 to index
    %c0_66 = arith.constant 0 : index
    %c24_67 = arith.constant 24 : index
    %85 = vector.load %arg2[%c0_65, %84, %c0_66, %c24_67] : memref<1x10x4x256xbf16, #tpu.memory_space<vmem>>, vector<1x1x4x128xbf16>
    %86 = vector.shape_cast %85 : vector<1x1x4x128xbf16> to vector<1x4x128xbf16>
    %87 = vector.shape_cast %86 : vector<1x4x128xbf16> to vector<4x128xbf16>
    %c24_68 = arith.constant 24 : index
    %c128_69 = arith.constant 128 : index
    %88 = vector.load %arg7[%c24_68, %c128_69] : memref<108x512xbf16, #tpu.memory_space<vmem>>, vector<4x128xbf16>
    tpu.vector_store %arg7[%c24_68, %c128_69], %87 {strides = array<i32>} : memref<108x512xbf16, #tpu.memory_space<vmem>>, vector<4x128xbf16>,
    %c60 = arith.constant 60 : index
    %c0_70 = arith.constant 0 : index
    %89 = vector.load %arg7[%c60, %c0_70] : memref<108x512xbf16, #tpu.memory_space<vmem>>, vector<4x128xbf16>
    tpu.vector_store %arg7[%c60, %c0_70], %87 {strides = array<i32>} : memref<108x512xbf16, #tpu.memory_space<vmem>>, vector<4x128xbf16>,
    %c0_71 = arith.constant 0 : index
    %90 = arith.index_cast %47 : i32 to index
    %c0_72 = arith.constant 0 : index
    %c25_73 = arith.constant 25 : index
    %91 = vector.load %arg2[%c0_71, %90, %c0_72, %c25_73] : memref<1x10x4x256xbf16, #tpu.memory_space<vmem>>, vector<1x1x4x128xbf16>
    %92 = vector.shape_cast %91 : vector<1x1x4x128xbf16> to vector<1x4x128xbf16>
    %93 = vector.shape_cast %92 : vector<1x4x128xbf16> to vector<4x128xbf16>
    %c28_74 = arith.constant 28 : index
    %c128_75 = arith.constant 128 : index
    %94 = vector.load %arg7[%c28_74, %c128_75] : memref<108x512xbf16, #tpu.memory_space<vmem>>, vector<4x128xbf16>
    tpu.vector_store %arg7[%c28_74, %c128_75], %93 {strides = array<i32>} : memref<108x512xbf16, #tpu.memory_space<vmem>>, vector<4x128xbf16>,
    %c64 = arith.constant 64 : index
    %c0_76 = arith.constant 0 : index
    %95 = vector.load %arg7[%c64, %c0_76] : memref<108x512xbf16, #tpu.memory_space<vmem>>, vector<4x128xbf16>
    tpu.vector_store %arg7[%c64, %c0_76], %93 {strides = array<i32>} : memref<108x512xbf16, #tpu.memory_space<vmem>>, vector<4x128xbf16>,
    %c0_77 = arith.constant 0 : index
    %96 = arith.index_cast %47 : i32 to index
    %c0_78 = arith.constant 0 : index
    %c26_79 = arith.constant 26 : index
    %97 = vector.load %arg2[%c0_77, %96, %c0_78, %c26_79] : memref<1x10x4x256xbf16, #tpu.memory_space<vmem>>, vector<1x1x4x128xbf16>
    %98 = vector.shape_cast %97 : vector<1x1x4x128xbf16> to vector<1x4x128xbf16>
    %99 = vector.shape_cast %98 : vector<1x4x128xbf16> to vector<4x128xbf16>
    %c32_80 = arith.constant 32 : index
    %c128_81 = arith.constant 128 : index
    %100 = vector.load %arg7[%c32_80, %c128_81] : memref<108x512xbf16, #tpu.memory_space<vmem>>, vector<4x128xbf16>
    tpu.vector_store %arg7[%c32_80, %c128_81], %99 {strides = array<i32>} : memref<108x512xbf16, #tpu.memory_space<vmem>>, vector<4x128xbf16>,
    %c68 = arith.constant 68 : index
    %c0_82 = arith.constant 0 : index
    %101 = vector.load %arg7[%c68, %c0_82] : memref<108x512xbf16, #tpu.memory_space<vmem>>, vector<4x128xbf16>
    tpu.vector_store %arg7[%c68, %c0_82], %99 {strides = array<i32>} : memref<108x512xbf16, #tpu.memory_space<vmem>>, vector<4x128xbf16>,
    %c2_i32 = arith.constant 2 : i32
    %102 = arith.addi %0, %c2_i32 : i32
    %c0_83 = arith.constant 0 : index
    %103 = arith.index_cast %102 : i32 to index
    %c0_84 = arith.constant 0 : index
    %c0_85 = arith.constant 0 : index
    %104 = vector.load %arg2[%c0_83, %103, %c0_84, %c0_85] : memref<1x10x4x256xbf16, #tpu.memory_space<vmem>>, vector<1x1x4x128xbf16>
    %105 = vector.shape_cast %104 : vector<1x1x4x128xbf16> to vector<1x4x128xbf16>
    %106 = vector.shape_cast %105 : vector<1x4x128xbf16> to vector<4x128xbf16>
    %c0_86 = arith.constant 0 : index
    %c256 = arith.constant 256 : index
    %107 = vector.load %arg7[%c0_86, %c256] : memref<108x512xbf16, #tpu.memory_space<vmem>>, vector<4x128xbf16>
    tpu.vector_store %arg7[%c0_86, %c256], %106 {strides = array<i32>} : memref<108x512xbf16, #tpu.memory_space<vmem>>, vector<4x128xbf16>,
    %c36_87 = arith.constant 36 : index
    %c128_88 = arith.constant 128 : index
    %108 = vector.load %arg7[%c36_87, %c128_88] : memref<108x512xbf16, #tpu.memory_space<vmem>>, vector<4x128xbf16>
    tpu.vector_store %arg7[%c36_87, %c128_88], %106 {strides = array<i32>} : memref<108x512xbf16, #tpu.memory_space<vmem>>, vector<4x128xbf16>,
    %c72 = arith.constant 72 : index
    %c0_89 = arith.constant 0 : index
    %109 = vector.load %arg7[%c72, %c0_89] : memref<108x512xbf16, #tpu.memory_space<vmem>>, vector<4x128xbf16>
    tpu.vector_store %arg7[%c72, %c0_89], %106 {strides = array<i32>} : memref<108x512xbf16, #tpu.memory_space<vmem>>, vector<4x128xbf16>,
    %c0_90 = arith.constant 0 : index
    %110 = arith.index_cast %102 : i32 to index
    %c0_91 = arith.constant 0 : index
    %c1_92 = arith.constant 1 : index
    %111 = vector.load %arg2[%c0_90, %110, %c0_91, %c1_92] : memref<1x10x4x256xbf16, #tpu.memory_space<vmem>>, vector<1x1x4x128xbf16>
    %112 = vector.shape_cast %111 : vector<1x1x4x128xbf16> to vector<1x4x128xbf16>
    %113 = vector.shape_cast %112 : vector<1x4x128xbf16> to vector<4x128xbf16>
    %c4_93 = arith.constant 4 : index
    %c256_94 = arith.constant 256 : index
    %114 = vector.load %arg7[%c4_93, %c256_94] : memref<108x512xbf16, #tpu.memory_space<vmem>>, vector<4x128xbf16>
    tpu.vector_store %arg7[%c4_93, %c256_94], %113 {strides = array<i32>} : memref<108x512xbf16, #tpu.memory_space<vmem>>, vector<4x128xbf16>,
    %c40_95 = arith.constant 40 : index
    %c128_96 = arith.constant 128 : index
    %115 = vector.load %arg7[%c40_95, %c128_96] : memref<108x512xbf16, #tpu.memory_space<vmem>>, vector<4x128xbf16>
    tpu.vector_store %arg7[%c40_95, %c128_96], %113 {strides = array<i32>} : memref<108x512xbf16, #tpu.memory_space<vmem>>, vector<4x128xbf16>,
    %c76 = arith.constant 76 : index
    %c0_97 = arith.constant 0 : index
    %116 = vector.load %arg7[%c76, %c0_97] : memref<108x512xbf16, #tpu.memory_space<vmem>>, vector<4x128xbf16>
    tpu.vector_store %arg7[%c76, %c0_97], %113 {strides = array<i32>} : memref<108x512xbf16, #tpu.memory_space<vmem>>, vector<4x128xbf16>,
    %c0_98 = arith.constant 0 : index
    %117 = arith.index_cast %102 : i32 to index
    %c0_99 = arith.constant 0 : index
    %c2_100 = arith.constant 2 : index
    %118 = vector.load %arg2[%c0_98, %117, %c0_99, %c2_100] : memref<1x10x4x256xbf16, #tpu.memory_space<vmem>>, vector<1x1x4x128xbf16>
    %119 = vector.shape_cast %118 : vector<1x1x4x128xbf16> to vector<1x4x128xbf16>
    %120 = vector.shape_cast %119 : vector<1x4x128xbf16> to vector<4x128xbf16>
    %c8_101 = arith.constant 8 : index
    %c256_102 = arith.constant 256 : index
    %121 = vector.load %arg7[%c8_101, %c256_102] : memref<108x512xbf16, #tpu.memory_space<vmem>>, vector<4x128xbf16>
    tpu.vector_store %arg7[%c8_101, %c256_102], %120 {strides = array<i32>} : memref<108x512xbf16, #tpu.memory_space<vmem>>, vector<4x128xbf16>,
    %c44_103 = arith.constant 44 : index
    %c128_104 = arith.constant 128 : index
    %122 = vector.load %arg7[%c44_103, %c128_104] : memref<108x512xbf16, #tpu.memory_space<vmem>>, vector<4x128xbf16>
    tpu.vector_store %arg7[%c44_103, %c128_104], %120 {strides = array<i32>} : memref<108x512xbf16, #tpu.memory_space<vmem>>, vector<4x128xbf16>,
    %c80 = arith.constant 80 : index
    %c0_105 = arith.constant 0 : index
    %123 = vector.load %arg7[%c80, %c0_105] : memref<108x512xbf16, #tpu.memory_space<vmem>>, vector<4x128xbf16>
    tpu.vector_store %arg7[%c80, %c0_105], %120 {strides = array<i32>} : memref<108x512xbf16, #tpu.memory_space<vmem>>, vector<4x128xbf16>,
    %c0_106 = arith.constant 0 : index
    %124 = arith.index_cast %102 : i32 to index
    %c0_107 = arith.constant 0 : index
    %c12_108 = arith.constant 12 : index
    %125 = vector.load %arg2[%c0_106, %124, %c0_107, %c12_108] : memref<1x10x4x256xbf16, #tpu.memory_space<vmem>>, vector<1x1x4x128xbf16>
    %126 = vector.shape_cast %125 : vector<1x1x4x128xbf16> to vector<1x4x128xbf16>
    %127 = vector.shape_cast %126 : vector<1x4x128xbf16> to vector<4x128xbf16>
    %c12_109 = arith.constant 12 : index
    %c256_110 = arith.constant 256 : index
    %128 = vector.load %arg7[%c12_109, %c256_110] : memref<108x512xbf16, #tpu.memory_space<vmem>>, vector<4x128xbf16>
    tpu.vector_store %arg7[%c12_109, %c256_110], %127 {strides = array<i32>} : memref<108x512xbf16, #tpu.memory_space<vmem>>, vector<4x128xbf16>,
    %c48_111 = arith.constant 48 : index
    %c128_112 = arith.constant 128 : index
    %129 = vector.load %arg7[%c48_111, %c128_112] : memref<108x512xbf16, #tpu.memory_space<vmem>>, vector<4x128xbf16>
    tpu.vector_store %arg7[%c48_111, %c128_112], %127 {strides = array<i32>} : memref<108x512xbf16, #tpu.memory_space<vmem>>, vector<4x128xbf16>,
    %c84 = arith.constant 84 : index
    %c0_113 = arith.constant 0 : index
    %130 = vector.load %arg7[%c84, %c0_113] : memref<108x512xbf16, #tpu.memory_space<vmem>>, vector<4x128xbf16>
    tpu.vector_store %arg7[%c84, %c0_113], %127 {strides = array<i32>} : memref<108x512xbf16, #tpu.memory_space<vmem>>, vector<4x128xbf16>,
    %c0_114 = arith.constant 0 : index
    %131 = arith.index_cast %102 : i32 to index
    %c0_115 = arith.constant 0 : index
    %c13_116 = arith.constant 13 : index
    %132 = vector.load %arg2[%c0_114, %131, %c0_115, %c13_116] : memref<1x10x4x256xbf16, #tpu.memory_space<vmem>>, vector<1x1x4x128xbf16>
    %133 = vector.shape_cast %132 : vector<1x1x4x128xbf16> to vector<1x4x128xbf16>
    %134 = vector.shape_cast %133 : vector<1x4x128xbf16> to vector<4x128xbf16>
    %c16_117 = arith.constant 16 : index
    %c256_118 = arith.constant 256 : index
    %135 = vector.load %arg7[%c16_117, %c256_118] : memref<108x512xbf16, #tpu.memory_space<vmem>>, vector<4x128xbf16>
    tpu.vector_store %arg7[%c16_117, %c256_118], %134 {strides = array<i32>} : memref<108x512xbf16, #tpu.memory_space<vmem>>, vector<4x128xbf16>,
    %c52_119 = arith.constant 52 : index
    %c128_120 = arith.constant 128 : index
    %136 = vector.load %arg7[%c52_119, %c128_120] : memref<108x512xbf16, #tpu.memory_space<vmem>>, vector<4x128xbf16>
    tpu.vector_store %arg7[%c52_119, %c128_120], %134 {strides = array<i32>} : memref<108x512xbf16, #tpu.memory_space<vmem>>, vector<4x128xbf16>,
    %c88 = arith.constant 88 : index
    %c0_121 = arith.constant 0 : index
    %137 = vector.load %arg7[%c88, %c0_121] : memref<108x512xbf16, #tpu.memory_space<vmem>>, vector<4x128xbf16>
    tpu.vector_store %arg7[%c88, %c0_121], %134 {strides = array<i32>} : memref<108x512xbf16, #tpu.memory_space<vmem>>, vector<4x128xbf16>,
    %c0_122 = arith.constant 0 : index
    %138 = arith.index_cast %102 : i32 to index
    %c0_123 = arith.constant 0 : index
    %c14_124 = arith.constant 14 : index
    %139 = vector.load %arg2[%c0_122, %138, %c0_123, %c14_124] : memref<1x10x4x256xbf16, #tpu.memory_space<vmem>>, vector<1x1x4x128xbf16>
    %140 = vector.shape_cast %139 : vector<1x1x4x128xbf16> to vector<1x4x128xbf16>
    %141 = vector.shape_cast %140 : vector<1x4x128xbf16> to vector<4x128xbf16>
    %c20_125 = arith.constant 20 : index
    %c256_126 = arith.constant 256 : index
    %142 = vector.load %arg7[%c20_125, %c256_126] : memref<108x512xbf16, #tpu.memory_space<vmem>>, vector<4x128xbf16>
    tpu.vector_store %arg7[%c20_125, %c256_126], %141 {strides = array<i32>} : memref<108x512xbf16, #tpu.memory_space<vmem>>, vector<4x128xbf16>,
    %c56_127 = arith.constant 56 : index
    %c128_128 = arith.constant 128 : index
    %143 = vector.load %arg7[%c56_127, %c128_128] : memref<108x512xbf16, #tpu.memory_space<vmem>>, vector<4x128xbf16>
    tpu.vector_store %arg7[%c56_127, %c128_128], %141 {strides = array<i32>} : memref<108x512xbf16, #tpu.memory_space<vmem>>, vector<4x128xbf16>,
    %c92 = arith.constant 92 : index
    %c0_129 = arith.constant 0 : index
    %144 = vector.load %arg7[%c92, %c0_129] : memref<108x512xbf16, #tpu.memory_space<vmem>>, vector<4x128xbf16>
    tpu.vector_store %arg7[%c92, %c0_129], %141 {strides = array<i32>} : memref<108x512xbf16, #tpu.memory_space<vmem>>, vector<4x128xbf16>,
    %c0_130 = arith.constant 0 : index
    %145 = arith.index_cast %102 : i32 to index
    %c0_131 = arith.constant 0 : index
    %c24_132 = arith.constant 24 : index
    %146 = vector.load %arg2[%c0_130, %145, %c0_131, %c24_132] : memref<1x10x4x256xbf16, #tpu.memory_space<vmem>>, vector<1x1x4x128xbf16>
    %147 = vector.shape_cast %146 : vector<1x1x4x128xbf16> to vector<1x4x128xbf16>
    %148 = vector.shape_cast %147 : vector<1x4x128xbf16> to vector<4x128xbf16>
    %c24_133 = arith.constant 24 : index
    %c256_134 = arith.constant 256 : index
    %149 = vector.load %arg7[%c24_133, %c256_134] : memref<108x512xbf16, #tpu.memory_space<vmem>>, vector<4x128xbf16>
    tpu.vector_store %arg7[%c24_133, %c256_134], %148 {strides = array<i32>} : memref<108x512xbf16, #tpu.memory_space<vmem>>, vector<4x128xbf16>,
    %c60_135 = arith.constant 60 : index
    %c128_136 = arith.constant 128 : index
    %150 = vector.load %arg7[%c60_135, %c128_136] : memref<108x512xbf16, #tpu.memory_space<vmem>>, vector<4x128xbf16>
    tpu.vector_store %arg7[%c60_135, %c128_136], %148 {strides = array<i32>} : memref<108x512xbf16, #tpu.memory_space<vmem>>, vector<4x128xbf16>,
    %c96 = arith.constant 96 : index
    %c0_137 = arith.constant 0 : index
    %151 = vector.load %arg7[%c96, %c0_137] : memref<108x512xbf16, #tpu.memory_space<vmem>>, vector<4x128xbf16>
    tpu.vector_store %arg7[%c96, %c0_137], %148 {strides = array<i32>} : memref<108x512xbf16, #tpu.memory_space<vmem>>, vector<4x128xbf16>,
    %c0_138 = arith.constant 0 : index
    %152 = arith.index_cast %102 : i32 to index
    %c0_139 = arith.constant 0 : index
    %c25_140 = arith.constant 25 : index
    %153 = vector.load %arg2[%c0_138, %152, %c0_139, %c25_140] : memref<1x10x4x256xbf16, #tpu.memory_space<vmem>>, vector<1x1x4x128xbf16>
    %154 = vector.shape_cast %153 : vector<1x1x4x128xbf16> to vector<1x4x128xbf16>
    %155 = vector.shape_cast %154 : vector<1x4x128xbf16> to vector<4x128xbf16>
    %c28_141 = arith.constant 28 : index
    %c256_142 = arith.constant 256 : index
    %156 = vector.load %arg7[%c28_141, %c256_142] : memref<108x512xbf16, #tpu.memory_space<vmem>>, vector<4x128xbf16>
    tpu.vector_store %arg7[%c28_141, %c256_142], %155 {strides = array<i32>} : memref<108x512xbf16, #tpu.memory_space<vmem>>, vector<4x128xbf16>,
    %c64_143 = arith.constant 64 : index
    %c128_144 = arith.constant 128 : index
    %157 = vector.load %arg7[%c64_143, %c128_144] : memref<108x512xbf16, #tpu.memory_space<vmem>>, vector<4x128xbf16>
    tpu.vector_store %arg7[%c64_143, %c128_144], %155 {strides = array<i32>} : memref<108x512xbf16, #tpu.memory_space<vmem>>, vector<4x128xbf16>,
    %c100 = arith.constant 100 : index
    %c0_145 = arith.constant 0 : index
    %158 = vector.load %arg7[%c100, %c0_145] : memref<108x512xbf16, #tpu.memory_space<vmem>>, vector<4x128xbf16>
    tpu.vector_store %arg7[%c100, %c0_145], %155 {strides = array<i32>} : memref<108x512xbf16, #tpu.memory_space<vmem>>, vector<4x128xbf16>,
    %c0_146 = arith.constant 0 : index
    %159 = arith.index_cast %102 : i32 to index
    %c0_147 = arith.constant 0 : index
    %c26_148 = arith.constant 26 : index
    %160 = vector.load %arg2[%c0_146, %159, %c0_147, %c26_148] : memref<1x10x4x256xbf16, #tpu.memory_space<vmem>>, vector<1x1x4x128xbf16>
    %161 = vector.shape_cast %160 : vector<1x1x4x128xbf16> to vector<1x4x128xbf16>
    %162 = vector.shape_cast %161 : vector<1x4x128xbf16> to vector<4x128xbf16>
    %c32_149 = arith.constant 32 : index
    %c256_150 = arith.constant 256 : index
    %163 = vector.load %arg7[%c32_149, %c256_150] : memref<108x512xbf16, #tpu.memory_space<vmem>>, vector<4x128xbf16>
    tpu.vector_store %arg7[%c32_149, %c256_150], %162 {strides = array<i32>} : memref<108x512xbf16, #tpu.memory_space<vmem>>, vector<4x128xbf16>,
    %c68_151 = arith.constant 68 : index
    %c128_152 = arith.constant 128 : index
    %164 = vector.load %arg7[%c68_151, %c128_152] : memref<108x512xbf16, #tpu.memory_space<vmem>>, vector<4x128xbf16>
    tpu.vector_store %arg7[%c68_151, %c128_152], %162 {strides = array<i32>} : memref<108x512xbf16, #tpu.memory_space<vmem>>, vector<4x128xbf16>,
    %c104 = arith.constant 104 : index
    %c0_153 = arith.constant 0 : index
    %165 = vector.load %arg7[%c104, %c0_153] : memref<108x512xbf16, #tpu.memory_space<vmem>>, vector<4x128xbf16>
    tpu.vector_store %arg7[%c104, %c0_153], %162 {strides = array<i32>} : memref<108x512xbf16, #tpu.memory_space<vmem>>, vector<4x128xbf16>,
    %c3_i32 = arith.constant 3 : i32
    %166 = arith.addi %0, %c3_i32 : i32
    %c0_154 = arith.constant 0 : index
    %167 = arith.index_cast %166 : i32 to index
    %c0_155 = arith.constant 0 : index
    %c0_156 = arith.constant 0 : index
    %168 = vector.load %arg2[%c0_154, %167, %c0_155, %c0_156] : memref<1x10x4x256xbf16, #tpu.memory_space<vmem>>, vector<1x1x4x128xbf16>
    %169 = vector.shape_cast %168 : vector<1x1x4x128xbf16> to vector<1x4x128xbf16>
    %170 = vector.shape_cast %169 : vector<1x4x128xbf16> to vector<4x128xbf16>
    %c0_157 = arith.constant 0 : index
    %c384 = arith.constant 384 : index
    %171 = vector.load %arg7[%c0_157, %c384] : memref<108x512xbf16, #tpu.memory_space<vmem>>, vector<4x128xbf16>
    tpu.vector_store %arg7[%c0_157, %c384], %170 {strides = array<i32>} : memref<108x512xbf16, #tpu.memory_space<vmem>>, vector<4x128xbf16>,
    %c36_158 = arith.constant 36 : index
    %c256_159 = arith.constant 256 : index
    %172 = vector.load %arg7[%c36_158, %c256_159] : memref<108x512xbf16, #tpu.memory_space<vmem>>, vector<4x128xbf16>
    tpu.vector_store %arg7[%c36_158, %c256_159], %170 {strides = array<i32>} : memref<108x512xbf16, #tpu.memory_space<vmem>>, vector<4x128xbf16>,
    %c72_160 = arith.constant 72 : index
    %c128_161 = arith.constant 128 : index
    %173 = vector.load %arg7[%c72_160, %c128_161] : memref<108x512xbf16, #tpu.memory_space<vmem>>, vector<4x128xbf16>
    tpu.vector_store %arg7[%c72_160, %c128_161], %170 {strides = array<i32>} : memref<108x512xbf16, #tpu.memory_space<vmem>>, vector<4x128xbf16>,
    %c0_162 = arith.constant 0 : index
    %174 = arith.index_cast %166 : i32 to index
    %c0_163 = arith.constant 0 : index
    %c1_164 = arith.constant 1 : index
    %175 = vector.load %arg2[%c0_162, %174, %c0_163, %c1_164] : memref<1x10x4x256xbf16, #tpu.memory_space<vmem>>, vector<1x1x4x128xbf16>
    %176 = vector.shape_cast %175 : vector<1x1x4x128xbf16> to vector<1x4x128xbf16>
    %177 = vector.shape_cast %176 : vector<1x4x128xbf16> to vector<4x128xbf16>
    %c4_165 = arith.constant 4 : index
    %c384_166 = arith.constant 384 : index
    %178 = vector.load %arg7[%c4_165, %c384_166] : memref<108x512xbf16, #tpu.memory_space<vmem>>, vector<4x128xbf16>
    tpu.vector_store %arg7[%c4_165, %c384_166], %177 {strides = array<i32>} : memref<108x512xbf16, #tpu.memory_space<vmem>>, vector<4x128xbf16>,
    %c40_167 = arith.constant 40 : index
    %c256_168 = arith.constant 256 : index
    %179 = vector.load %arg7[%c40_167, %c256_168] : memref<108x512xbf16, #tpu.memory_space<vmem>>, vector<4x128xbf16>
    tpu.vector_store %arg7[%c40_167, %c256_168], %177 {strides = array<i32>} : memref<108x512xbf16, #tpu.memory_space<vmem>>, vector<4x128xbf16>,
    %c76_169 = arith.constant 76 : index
    %c128_170 = arith.constant 128 : index
    %180 = vector.load %arg7[%c76_169, %c128_170] : memref<108x512xbf16, #tpu.memory_space<vmem>>, vector<4x128xbf16>
    tpu.vector_store %arg7[%c76_169, %c128_170], %177 {strides = array<i32>} : memref<108x512xbf16, #tpu.memory_space<vmem>>, vector<4x128xbf16>,
    %c0_171 = arith.constant 0 : index
    %181 = arith.index_cast %166 : i32 to index
    %c0_172 = arith.constant 0 : index
    %c2_173 = arith.constant 2 : index
    %182 = vector.load %arg2[%c0_171, %181, %c0_172, %c2_173] : memref<1x10x4x256xbf16, #tpu.memory_space<vmem>>, vector<1x1x4x128xbf16>
    %183 = vector.shape_cast %182 : vector<1x1x4x128xbf16> to vector<1x4x128xbf16>
    %184 = vector.shape_cast %183 : vector<1x4x128xbf16> to vector<4x128xbf16>
    %c8_174 = arith.constant 8 : index
    %c384_175 = arith.constant 384 : index
    %185 = vector.load %arg7[%c8_174, %c384_175] : memref<108x512xbf16, #tpu.memory_space<vmem>>, vector<4x128xbf16>
    tpu.vector_store %arg7[%c8_174, %c384_175], %184 {strides = array<i32>} : memref<108x512xbf16, #tpu.memory_space<vmem>>, vector<4x128xbf16>,
    %c44_176 = arith.constant 44 : index
    %c256_177 = arith.constant 256 : index
    %186 = vector.load %arg7[%c44_176, %c256_177] : memref<108x512xbf16, #tpu.memory_space<vmem>>, vector<4x128xbf16>
    tpu.vector_store %arg7[%c44_176, %c256_177], %184 {strides = array<i32>} : memref<108x512xbf16, #tpu.memory_space<vmem>>, vector<4x128xbf16>,
    %c80_178 = arith.constant 80 : index
    %c128_179 = arith.constant 128 : index
    %187 = vector.load %arg7[%c80_178, %c128_179] : memref<108x512xbf16, #tpu.memory_space<vmem>>, vector<4x128xbf16>
    tpu.vector_store %arg7[%c80_178, %c128_179], %184 {strides = array<i32>} : memref<108x512xbf16, #tpu.memory_space<vmem>>, vector<4x128xbf16>,
    %c0_180 = arith.constant 0 : index
    %188 = arith.index_cast %166 : i32 to index
    %c0_181 = arith.constant 0 : index
    %c12_182 = arith.constant 12 : index
    %189 = vector.load %arg2[%c0_180, %188, %c0_181, %c12_182] : memref<1x10x4x256xbf16, #tpu.memory_space<vmem>>, vector<1x1x4x128xbf16>
    %190 = vector.shape_cast %189 : vector<1x1x4x128xbf16> to vector<1x4x128xbf16>
    %191 = vector.shape_cast %190 : vector<1x4x128xbf16> to vector<4x128xbf16>
    %c12_183 = arith.constant 12 : index
    %c384_184 = arith.constant 384 : index
    %192 = vector.load %arg7[%c12_183, %c384_184] : memref<108x512xbf16, #tpu.memory_space<vmem>>, vector<4x128xbf16>
    tpu.vector_store %arg7[%c12_183, %c384_184], %191 {strides = array<i32>} : memref<108x512xbf16, #tpu.memory_space<vmem>>, vector<4x128xbf16>,
    %c48_185 = arith.constant 48 : index
    %c256_186 = arith.constant 256 : index
    %193 = vector.load %arg7[%c48_185, %c256_186] : memref<108x512xbf16, #tpu.memory_space<vmem>>, vector<4x128xbf16>
    tpu.vector_store %arg7[%c48_185, %c256_186], %191 {strides = array<i32>} : memref<108x512xbf16, #tpu.memory_space<vmem>>, vector<4x128xbf16>,
    %c84_187 = arith.constant 84 : index
    %c128_188 = arith.constant 128 : index
    %194 = vector.load %arg7[%c84_187, %c128_188] : memref<108x512xbf16, #tpu.memory_space<vmem>>, vector<4x128xbf16>
    tpu.vector_store %arg7[%c84_187, %c128_188], %191 {strides = array<i32>} : memref<108x512xbf16, #tpu.memory_space<vmem>>, vector<4x128xbf16>,
    %c0_189 = arith.constant 0 : index
    %195 = arith.index_cast %166 : i32 to index
    %c0_190 = arith.constant 0 : index
    %c13_191 = arith.constant 13 : index
    %196 = vector.load %arg2[%c0_189, %195, %c0_190, %c13_191] : memref<1x10x4x256xbf16, #tpu.memory_space<vmem>>, vector<1x1x4x128xbf16>
    %197 = vector.shape_cast %196 : vector<1x1x4x128xbf16> to vector<1x4x128xbf16>
    %198 = vector.shape_cast %197 : vector<1x4x128xbf16> to vector<4x128xbf16>
    %c16_192 = arith.constant 16 : index
    %c384_193 = arith.constant 384 : index
    %199 = vector.load %arg7[%c16_192, %c384_193] : memref<108x512xbf16, #tpu.memory_space<vmem>>, vector<4x128xbf16>
    tpu.vector_store %arg7[%c16_192, %c384_193], %198 {strides = array<i32>} : memref<108x512xbf16, #tpu.memory_space<vmem>>, vector<4x128xbf16>,
    %c52_194 = arith.constant 52 : index
    %c256_195 = arith.constant 256 : index
    %200 = vector.load %arg7[%c52_194, %c256_195] : memref<108x512xbf16, #tpu.memory_space<vmem>>, vector<4x128xbf16>
    tpu.vector_store %arg7[%c52_194, %c256_195], %198 {strides = array<i32>} : memref<108x512xbf16, #tpu.memory_space<vmem>>, vector<4x128xbf16>,
    %c88_196 = arith.constant 88 : index
    %c128_197 = arith.constant 128 : index
    %201 = vector.load %arg7[%c88_196, %c128_197] : memref<108x512xbf16, #tpu.memory_space<vmem>>, vector<4x128xbf16>
    tpu.vector_store %arg7[%c88_196, %c128_197], %198 {strides = array<i32>} : memref<108x512xbf16, #tpu.memory_space<vmem>>, vector<4x128xbf16>,
    %c0_198 = arith.constant 0 : index
    %202 = arith.index_cast %166 : i32 to index
    %c0_199 = arith.constant 0 : index
    %c14_200 = arith.constant 14 : index
    %203 = vector.load %arg2[%c0_198, %202, %c0_199, %c14_200] : memref<1x10x4x256xbf16, #tpu.memory_space<vmem>>, vector<1x1x4x128xbf16>
    %204 = vector.shape_cast %203 : vector<1x1x4x128xbf16> to vector<1x4x128xbf16>
    %205 = vector.shape_cast %204 : vector<1x4x128xbf16> to vector<4x128xbf16>
    %c20_201 = arith.constant 20 : index
    %c384_202 = arith.constant 384 : index
    %206 = vector.load %arg7[%c20_201, %c384_202] : memref<108x512xbf16, #tpu.memory_space<vmem>>, vector<4x128xbf16>
    tpu.vector_store %arg7[%c20_201, %c384_202], %205 {strides = array<i32>} : memref<108x512xbf16, #tpu.memory_space<vmem>>, vector<4x128xbf16>,
    %c56_203 = arith.constant 56 : index
    %c256_204 = arith.constant 256 : index
    %207 = vector.load %arg7[%c56_203, %c256_204] : memref<108x512xbf16, #tpu.memory_space<vmem>>, vector<4x128xbf16>
    tpu.vector_store %arg7[%c56_203, %c256_204], %205 {strides = array<i32>} : memref<108x512xbf16, #tpu.memory_space<vmem>>, vector<4x128xbf16>,
    %c92_205 = arith.constant 92 : index
    %c128_206 = arith.constant 128 : index
    %208 = vector.load %arg7[%c92_205, %c128_206] : memref<108x512xbf16, #tpu.memory_space<vmem>>, vector<4x128xbf16>
    tpu.vector_store %arg7[%c92_205, %c128_206], %205 {strides = array<i32>} : memref<108x512xbf16, #tpu.memory_space<vmem>>, vector<4x128xbf16>,
    %c0_207 = arith.constant 0 : index
    %209 = arith.index_cast %166 : i32 to index
    %c0_208 = arith.constant 0 : index
    %c24_209 = arith.constant 24 : index
    %210 = vector.load %arg2[%c0_207, %209, %c0_208, %c24_209] : memref<1x10x4x256xbf16, #tpu.memory_space<vmem>>, vector<1x1x4x128xbf16>
    %211 = vector.shape_cast %210 : vector<1x1x4x128xbf16> to vector<1x4x128xbf16>
    %212 = vector.shape_cast %211 : vector<1x4x128xbf16> to vector<4x128xbf16>
    %c24_210 = arith.constant 24 : index
    %c384_211 = arith.constant 384 : index
    %213 = vector.load %arg7[%c24_210, %c384_211] : memref<108x512xbf16, #tpu.memory_space<vmem>>, vector<4x128xbf16>
    tpu.vector_store %arg7[%c24_210, %c384_211], %212 {strides = array<i32>} : memref<108x512xbf16, #tpu.memory_space<vmem>>, vector<4x128xbf16>,
    %c60_212 = arith.constant 60 : index
    %c256_213 = arith.constant 256 : index
    %214 = vector.load %arg7[%c60_212, %c256_213] : memref<108x512xbf16, #tpu.memory_space<vmem>>, vector<4x128xbf16>
    tpu.vector_store %arg7[%c60_212, %c256_213], %212 {strides = array<i32>} : memref<108x512xbf16, #tpu.memory_space<vmem>>, vector<4x128xbf16>,
    %c96_214 = arith.constant 96 : index
    %c128_215 = arith.constant 128 : index
    %215 = vector.load %arg7[%c96_214, %c128_215] : memref<108x512xbf16, #tpu.memory_space<vmem>>, vector<4x128xbf16>
    tpu.vector_store %arg7[%c96_214, %c128_215], %212 {strides = array<i32>} : memref<108x512xbf16, #tpu.memory_space<vmem>>, vector<4x128xbf16>,
    %c0_216 = arith.constant 0 : index
    %216 = arith.index_cast %166 : i32 to index
    %c0_217 = arith.constant 0 : index
    %c25_218 = arith.constant 25 : index
    %217 = vector.load %arg2[%c0_216, %216, %c0_217, %c25_218] : memref<1x10x4x256xbf16, #tpu.memory_space<vmem>>, vector<1x1x4x128xbf16>
    %218 = vector.shape_cast %217 : vector<1x1x4x128xbf16> to vector<1x4x128xbf16>
    %219 = vector.shape_cast %218 : vector<1x4x128xbf16> to vector<4x128xbf16>
    %c28_219 = arith.constant 28 : index
    %c384_220 = arith.constant 384 : index
    %220 = vector.load %arg7[%c28_219, %c384_220] : memref<108x512xbf16, #tpu.memory_space<vmem>>, vector<4x128xbf16>
    tpu.vector_store %arg7[%c28_219, %c384_220], %219 {strides = array<i32>} : memref<108x512xbf16, #tpu.memory_space<vmem>>, vector<4x128xbf16>,
    %c64_221 = arith.constant 64 : index
    %c256_222 = arith.constant 256 : index
    %221 = vector.load %arg7[%c64_221, %c256_222] : memref<108x512xbf16, #tpu.memory_space<vmem>>, vector<4x128xbf16>
    tpu.vector_store %arg7[%c64_221, %c256_222], %219 {strides = array<i32>} : memref<108x512xbf16, #tpu.memory_space<vmem>>, vector<4x128xbf16>,
    %c100_223 = arith.constant 100 : index
    %c128_224 = arith.constant 128 : index
    %222 = vector.load %arg7[%c100_223, %c128_224] : memref<108x512xbf16, #tpu.memory_space<vmem>>, vector<4x128xbf16>
    tpu.vector_store %arg7[%c100_223, %c128_224], %219 {strides = array<i32>} : memref<108x512xbf16, #tpu.memory_space<vmem>>, vector<4x128xbf16>,
    %c0_225 = arith.constant 0 : index
    %223 = arith.index_cast %166 : i32 to index
    %c0_226 = arith.constant 0 : index
    %c26_227 = arith.constant 26 : index
    %224 = vector.load %arg2[%c0_225, %223, %c0_226, %c26_227] : memref<1x10x4x256xbf16, #tpu.memory_space<vmem>>, vector<1x1x4x128xbf16>
    %225 = vector.shape_cast %224 : vector<1x1x4x128xbf16> to vector<1x4x128xbf16>
    %226 = vector.shape_cast %225 : vector<1x4x128xbf16> to vector<4x128xbf16>
    %c32_228 = arith.constant 32 : index
    %c384_229 = arith.constant 384 : index
    %227 = vector.load %arg7[%c32_228, %c384_229] : memref<108x512xbf16, #tpu.memory_space<vmem>>, vector<4x128xbf16>
    tpu.vector_store %arg7[%c32_228, %c384_229], %226 {strides = array<i32>} : memref<108x512xbf16, #tpu.memory_space<vmem>>, vector<4x128xbf16>,
    %c68_230 = arith.constant 68 : index
    %c256_231 = arith.constant 256 : index
    %228 = vector.load %arg7[%c68_230, %c256_231] : memref<108x512xbf16, #tpu.memory_space<vmem>>, vector<4x128xbf16>
    tpu.vector_store %arg7[%c68_230, %c256_231], %226 {strides = array<i32>} : memref<108x512xbf16, #tpu.memory_space<vmem>>, vector<4x128xbf16>,
    %c104_232 = arith.constant 104 : index
    %c128_233 = arith.constant 128 : index
    %229 = vector.load %arg7[%c104_232, %c128_233] : memref<108x512xbf16, #tpu.memory_space<vmem>>, vector<4x128xbf16>
    tpu.vector_store %arg7[%c104_232, %c128_233], %226 {strides = array<i32>} : memref<108x512xbf16, #tpu.memory_space<vmem>>, vector<4x128xbf16>,
    %c4_i32_234 = arith.constant 4 : i32
    %230 = arith.addi %0, %c4_i32_234 : i32
    %c0_235 = arith.constant 0 : index
    %231 = arith.index_cast %230 : i32 to index
    %c0_236 = arith.constant 0 : index
    %c0_237 = arith.constant 0 : index
    %232 = vector.load %arg2[%c0_235, %231, %c0_236, %c0_237] : memref<1x10x4x256xbf16, #tpu.memory_space<vmem>>, vector<1x1x4x128xbf16>
    %233 = vector.shape_cast %232 : vector<1x1x4x128xbf16> to vector<1x4x128xbf16>
    %234 = vector.shape_cast %233 : vector<1x4x128xbf16> to vector<4x128xbf16>
    %c36_238 = arith.constant 36 : index
    %c384_239 = arith.constant 384 : index
    %235 = vector.load %arg7[%c36_238, %c384_239] : memref<108x512xbf16, #tpu.memory_space<vmem>>, vector<4x128xbf16>
    tpu.vector_store %arg7[%c36_238, %c384_239], %234 {strides = array<i32>} : memref<108x512xbf16, #tpu.memory_space<vmem>>, vector<4x128xbf16>,
    %c72_240 = arith.constant 72 : index
    %c256_241 = arith.constant 256 : index
    %236 = vector.load %arg7[%c72_240, %c256_241] : memref<108x512xbf16, #tpu.memory_space<vmem>>, vector<4x128xbf16>
    tpu.vector_store %arg7[%c72_240, %c256_241], %234 {strides = array<i32>} : memref<108x512xbf16, #tpu.memory_space<vmem>>, vector<4x128xbf16>,
    %c0_242 = arith.constant 0 : index
    %237 = arith.index_cast %230 : i32 to index
    %c0_243 = arith.constant 0 : index
    %c1_244 = arith.constant 1 : index
    %238 = vector.load %arg2[%c0_242, %237, %c0_243, %c1_244] : memref<1x10x4x256xbf16, #tpu.memory_space<vmem>>, vector<1x1x4x128xbf16>
    %239 = vector.shape_cast %238 : vector<1x1x4x128xbf16> to vector<1x4x128xbf16>
    %240 = vector.shape_cast %239 : vector<1x4x128xbf16> to vector<4x128xbf16>
    %c40_245 = arith.constant 40 : index
    %c384_246 = arith.constant 384 : index
    %241 = vector.load %arg7[%c40_245, %c384_246] : memref<108x512xbf16, #tpu.memory_space<vmem>>, vector<4x128xbf16>
    tpu.vector_store %arg7[%c40_245, %c384_246], %240 {strides = array<i32>} : memref<108x512xbf16, #tpu.memory_space<vmem>>, vector<4x128xbf16>,
    %c76_247 = arith.constant 76 : index
    %c256_248 = arith.constant 256 : index
    %242 = vector.load %arg7[%c76_247, %c256_248] : memref<108x512xbf16, #tpu.memory_space<vmem>>, vector<4x128xbf16>
    tpu.vector_store %arg7[%c76_247, %c256_248], %240 {strides = array<i32>} : memref<108x512xbf16, #tpu.memory_space<vmem>>, vector<4x128xbf16>,
    %c0_249 = arith.constant 0 : index
    %243 = arith.index_cast %230 : i32 to index
    %c0_250 = arith.constant 0 : index
    %c2_251 = arith.constant 2 : index
    %244 = vector.load %arg2[%c0_249, %243, %c0_250, %c2_251] : memref<1x10x4x256xbf16, #tpu.memory_space<vmem>>, vector<1x1x4x128xbf16>
    %245 = vector.shape_cast %244 : vector<1x1x4x128xbf16> to vector<1x4x128xbf16>
    %246 = vector.shape_cast %245 : vector<1x4x128xbf16> to vector<4x128xbf16>
    %c44_252 = arith.constant 44 : index
    %c384_253 = arith.constant 384 : index
    %247 = vector.load %arg7[%c44_252, %c384_253] : memref<108x512xbf16, #tpu.memory_space<vmem>>, vector<4x128xbf16>
    tpu.vector_store %arg7[%c44_252, %c384_253], %246 {strides = array<i32>} : memref<108x512xbf16, #tpu.memory_space<vmem>>, vector<4x128xbf16>,
    %c80_254 = arith.constant 80 : index
    %c256_255 = arith.constant 256 : index
    %248 = vector.load %arg7[%c80_254, %c256_255] : memref<108x512xbf16, #tpu.memory_space<vmem>>, vector<4x128xbf16>
    tpu.vector_store %arg7[%c80_254, %c256_255], %246 {strides = array<i32>} : memref<108x512xbf16, #tpu.memory_space<vmem>>, vector<4x128xbf16>,
    %c0_256 = arith.constant 0 : index
    %249 = arith.index_cast %230 : i32 to index
    %c0_257 = arith.constant 0 : index
    %c12_258 = arith.constant 12 : index
    %250 = vector.load %arg2[%c0_256, %249, %c0_257, %c12_258] : memref<1x10x4x256xbf16, #tpu.memory_space<vmem>>, vector<1x1x4x128xbf16>
    %251 = vector.shape_cast %250 : vector<1x1x4x128xbf16> to vector<1x4x128xbf16>
    %252 = vector.shape_cast %251 : vector<1x4x128xbf16> to vector<4x128xbf16>
    %c48_259 = arith.constant 48 : index
    %c384_260 = arith.constant 384 : index
    %253 = vector.load %arg7[%c48_259, %c384_260] : memref<108x512xbf16, #tpu.memory_space<vmem>>, vector<4x128xbf16>
    tpu.vector_store %arg7[%c48_259, %c384_260], %252 {strides = array<i32>} : memref<108x512xbf16, #tpu.memory_space<vmem>>, vector<4x128xbf16>,
    %c84_261 = arith.constant 84 : index
    %c256_262 = arith.constant 256 : index
    %254 = vector.load %arg7[%c84_261, %c256_262] : memref<108x512xbf16, #tpu.memory_space<vmem>>, vector<4x128xbf16>
    tpu.vector_store %arg7[%c84_261, %c256_262], %252 {strides = array<i32>} : memref<108x512xbf16, #tpu.memory_space<vmem>>, vector<4x128xbf16>,
    %c0_263 = arith.constant 0 : index
    %255 = arith.index_cast %230 : i32 to index
    %c0_264 = arith.constant 0 : index
    %c13_265 = arith.constant 13 : index
    %256 = vector.load %arg2[%c0_263, %255, %c0_264, %c13_265] : memref<1x10x4x256xbf16, #tpu.memory_space<vmem>>, vector<1x1x4x128xbf16>
    %257 = vector.shape_cast %256 : vector<1x1x4x128xbf16> to vector<1x4x128xbf16>
    %258 = vector.shape_cast %257 : vector<1x4x128xbf16> to vector<4x128xbf16>
    %c52_266 = arith.constant 52 : index
    %c384_267 = arith.constant 384 : index
    %259 = vector.load %arg7[%c52_266, %c384_267] : memref<108x512xbf16, #tpu.memory_space<vmem>>, vector<4x128xbf16>
    tpu.vector_store %arg7[%c52_266, %c384_267], %258 {strides = array<i32>} : memref<108x512xbf16, #tpu.memory_space<vmem>>, vector<4x128xbf16>,
    %c88_268 = arith.constant 88 : index
    %c256_269 = arith.constant 256 : index
    %260 = vector.load %arg7[%c88_268, %c256_269] : memref<108x512xbf16, #tpu.memory_space<vmem>>, vector<4x128xbf16>
    tpu.vector_store %arg7[%c88_268, %c256_269], %258 {strides = array<i32>} : memref<108x512xbf16, #tpu.memory_space<vmem>>, vector<4x128xbf16>,
    %c0_270 = arith.constant 0 : index
    %261 = arith.index_cast %230 : i32 to index
    %c0_271 = arith.constant 0 : index
    %c14_272 = arith.constant 14 : index
    %262 = vector.load %arg2[%c0_270, %261, %c0_271, %c14_272] : memref<1x10x4x256xbf16, #tpu.memory_space<vmem>>, vector<1x1x4x128xbf16>
    %263 = vector.shape_cast %262 : vector<1x1x4x128xbf16> to vector<1x4x128xbf16>
    %264 = vector.shape_cast %263 : vector<1x4x128xbf16> to vector<4x128xbf16>
    %c56_273 = arith.constant 56 : index
    %c384_274 = arith.constant 384 : index
    %265 = vector.load %arg7[%c56_273, %c384_274] : memref<108x512xbf16, #tpu.memory_space<vmem>>, vector<4x128xbf16>
    tpu.vector_store %arg7[%c56_273, %c384_274], %264 {strides = array<i32>} : memref<108x512xbf16, #tpu.memory_space<vmem>>, vector<4x128xbf16>,
    %c92_275 = arith.constant 92 : index
    %c256_276 = arith.constant 256 : index
    %266 = vector.load %arg7[%c92_275, %c256_276] : memref<108x512xbf16, #tpu.memory_space<vmem>>, vector<4x128xbf16>
    tpu.vector_store %arg7[%c92_275, %c256_276], %264 {strides = array<i32>} : memref<108x512xbf16, #tpu.memory_space<vmem>>, vector<4x128xbf16>,
    %c0_277 = arith.constant 0 : index
    %267 = arith.index_cast %230 : i32 to index
    %c0_278 = arith.constant 0 : index
    %c24_279 = arith.constant 24 : index
    %268 = vector.load %arg2[%c0_277, %267, %c0_278, %c24_279] : memref<1x10x4x256xbf16, #tpu.memory_space<vmem>>, vector<1x1x4x128xbf16>
    %269 = vector.shape_cast %268 : vector<1x1x4x128xbf16> to vector<1x4x128xbf16>
    %270 = vector.shape_cast %269 : vector<1x4x128xbf16> to vector<4x128xbf16>
    %c60_280 = arith.constant 60 : index
    %c384_281 = arith.constant 384 : index
    %271 = vector.load %arg7[%c60_280, %c384_281] : memref<108x512xbf16, #tpu.memory_space<vmem>>, vector<4x128xbf16>
    tpu.vector_store %arg7[%c60_280, %c384_281], %270 {strides = array<i32>} : memref<108x512xbf16, #tpu.memory_space<vmem>>, vector<4x128xbf16>,
    %c96_282 = arith.constant 96 : index
    %c256_283 = arith.constant 256 : index
    %272 = vector.load %arg7[%c96_282, %c256_283] : memref<108x512xbf16, #tpu.memory_space<vmem>>, vector<4x128xbf16>
    tpu.vector_store %arg7[%c96_282, %c256_283], %270 {strides = array<i32>} : memref<108x512xbf16, #tpu.memory_space<vmem>>, vector<4x128xbf16>,
    %c0_284 = arith.constant 0 : index
    %273 = arith.index_cast %230 : i32 to index
    %c0_285 = arith.constant 0 : index
    %c25_286 = arith.constant 25 : index
    %274 = vector.load %arg2[%c0_284, %273, %c0_285, %c25_286] : memref<1x10x4x256xbf16, #tpu.memory_space<vmem>>, vector<1x1x4x128xbf16>
    %275 = vector.shape_cast %274 : vector<1x1x4x128xbf16> to vector<1x4x128xbf16>
    %276 = vector.shape_cast %275 : vector<1x4x128xbf16> to vector<4x128xbf16>
    %c64_287 = arith.constant 64 : index
    %c384_288 = arith.constant 384 : index
    %277 = vector.load %arg7[%c64_287, %c384_288] : memref<108x512xbf16, #tpu.memory_space<vmem>>, vector<4x128xbf16>
    tpu.vector_store %arg7[%c64_287, %c384_288], %276 {strides = array<i32>} : memref<108x512xbf16, #tpu.memory_space<vmem>>, vector<4x128xbf16>,
    %c100_289 = arith.constant 100 : index
    %c256_290 = arith.constant 256 : index
    %278 = vector.load %arg7[%c100_289, %c256_290] : memref<108x512xbf16, #tpu.memory_space<vmem>>, vector<4x128xbf16>
    tpu.vector_store %arg7[%c100_289, %c256_290], %276 {strides = array<i32>} : memref<108x512xbf16, #tpu.memory_space<vmem>>, vector<4x128xbf16>,
    %c0_291 = arith.constant 0 : index
    %279 = arith.index_cast %230 : i32 to index
    %c0_292 = arith.constant 0 : index
    %c26_293 = arith.constant 26 : index
    %280 = vector.load %arg2[%c0_291, %279, %c0_292, %c26_293] : memref<1x10x4x256xbf16, #tpu.memory_space<vmem>>, vector<1x1x4x128xbf16>
    %281 = vector.shape_cast %280 : vector<1x1x4x128xbf16> to vector<1x4x128xbf16>
    %282 = vector.shape_cast %281 : vector<1x4x128xbf16> to vector<4x128xbf16>
    %c68_294 = arith.constant 68 : index
    %c384_295 = arith.constant 384 : index
    %283 = vector.load %arg7[%c68_294, %c384_295] : memref<108x512xbf16, #tpu.memory_space<vmem>>, vector<4x128xbf16>
    tpu.vector_store %arg7[%c68_294, %c384_295], %282 {strides = array<i32>} : memref<108x512xbf16, #tpu.memory_space<vmem>>, vector<4x128xbf16>,
    %c104_296 = arith.constant 104 : index
    %c256_297 = arith.constant 256 : index
    %284 = vector.load %arg7[%c104_296, %c256_297] : memref<108x512xbf16, #tpu.memory_space<vmem>>, vector<4x128xbf16>
    tpu.vector_store %arg7[%c104_296, %c256_297], %282 {strides = array<i32>} : memref<108x512xbf16, #tpu.memory_space<vmem>>, vector<4x128xbf16>,
    %c5_i32 = arith.constant 5 : i32
    %285 = arith.addi %0, %c5_i32 : i32
    %c0_298 = arith.constant 0 : index
    %286 = arith.index_cast %285 : i32 to index
    %c0_299 = arith.constant 0 : index
    %c0_300 = arith.constant 0 : index
    %287 = vector.load %arg2[%c0_298, %286, %c0_299, %c0_300] : memref<1x10x4x256xbf16, #tpu.memory_space<vmem>>, vector<1x1x4x128xbf16>
    %288 = vector.shape_cast %287 : vector<1x1x4x128xbf16> to vector<1x4x128xbf16>
    %289 = vector.shape_cast %288 : vector<1x4x128xbf16> to vector<4x128xbf16>
    %c72_301 = arith.constant 72 : index
    %c384_302 = arith.constant 384 : index
    %290 = vector.load %arg7[%c72_301, %c384_302] : memref<108x512xbf16, #tpu.memory_space<vmem>>, vector<4x128xbf16>
    tpu.vector_store %arg7[%c72_301, %c384_302], %289 {strides = array<i32>} : memref<108x512xbf16, #tpu.memory_space<vmem>>, vector<4x128xbf16>,
    %c0_303 = arith.constant 0 : index
    %291 = arith.index_cast %285 : i32 to index
    %c0_304 = arith.constant 0 : index
    %c1_305 = arith.constant 1 : index
    %292 = vector.load %arg2[%c0_303, %291, %c0_304, %c1_305] : memref<1x10x4x256xbf16, #tpu.memory_space<vmem>>, vector<1x1x4x128xbf16>
    %293 = vector.shape_cast %292 : vector<1x1x4x128xbf16> to vector<1x4x128xbf16>
    %294 = vector.shape_cast %293 : vector<1x4x128xbf16> to vector<4x128xbf16>
    %c76_306 = arith.constant 76 : index
    %c384_307 = arith.constant 384 : index
    %295 = vector.load %arg7[%c76_306, %c384_307] : memref<108x512xbf16, #tpu.memory_space<vmem>>, vector<4x128xbf16>
    tpu.vector_store %arg7[%c76_306, %c384_307], %294 {strides = array<i32>} : memref<108x512xbf16, #tpu.memory_space<vmem>>, vector<4x128xbf16>,
    %c0_308 = arith.constant 0 : index
    %296 = arith.index_cast %285 : i32 to index
    %c0_309 = arith.constant 0 : index
    %c2_310 = arith.constant 2 : index
    %297 = vector.load %arg2[%c0_308, %296, %c0_309, %c2_310] : memref<1x10x4x256xbf16, #tpu.memory_space<vmem>>, vector<1x1x4x128xbf16>
    %298 = vector.shape_cast %297 : vector<1x1x4x128xbf16> to vector<1x4x128xbf16>
    %299 = vector.shape_cast %298 : vector<1x4x128xbf16> to vector<4x128xbf16>
    %c80_311 = arith.constant 80 : index
    %c384_312 = arith.constant 384 : index
    %300 = vector.load %arg7[%c80_311, %c384_312] : memref<108x512xbf16, #tpu.memory_space<vmem>>, vector<4x128xbf16>
    tpu.vector_store %arg7[%c80_311, %c384_312], %299 {strides = array<i32>} : memref<108x512xbf16, #tpu.memory_space<vmem>>, vector<4x128xbf16>,
    %c0_313 = arith.constant 0 : index
    %301 = arith.index_cast %285 : i32 to index
    %c0_314 = arith.constant 0 : index
    %c12_315 = arith.constant 12 : index
    %302 = vector.load %arg2[%c0_313, %301, %c0_314, %c12_315] : memref<1x10x4x256xbf16, #tpu.memory_space<vmem>>, vector<1x1x4x128xbf16>
    %303 = vector.shape_cast %302 : vector<1x1x4x128xbf16> to vector<1x4x128xbf16>
    %304 = vector.shape_cast %303 : vector<1x4x128xbf16> to vector<4x128xbf16>
    %c84_316 = arith.constant 84 : index
    %c384_317 = arith.constant 384 : index
    %305 = vector.load %arg7[%c84_316, %c384_317] : memref<108x512xbf16, #tpu.memory_space<vmem>>, vector<4x128xbf16>
    tpu.vector_store %arg7[%c84_316, %c384_317], %304 {strides = array<i32>} : memref<108x512xbf16, #tpu.memory_space<vmem>>, vector<4x128xbf16>,
    %c0_318 = arith.constant 0 : index
    %306 = arith.index_cast %285 : i32 to index
    %c0_319 = arith.constant 0 : index
    %c13_320 = arith.constant 13 : index
    %307 = vector.load %arg2[%c0_318, %306, %c0_319, %c13_320] : memref<1x10x4x256xbf16, #tpu.memory_space<vmem>>, vector<1x1x4x128xbf16>
    %308 = vector.shape_cast %307 : vector<1x1x4x128xbf16> to vector<1x4x128xbf16>
    %309 = vector.shape_cast %308 : vector<1x4x128xbf16> to vector<4x128xbf16>
    %c88_321 = arith.constant 88 : index
    %c384_322 = arith.constant 384 : index
    %310 = vector.load %arg7[%c88_321, %c384_322] : memref<108x512xbf16, #tpu.memory_space<vmem>>, vector<4x128xbf16>
    tpu.vector_store %arg7[%c88_321, %c384_322], %309 {strides = array<i32>} : memref<108x512xbf16, #tpu.memory_space<vmem>>, vector<4x128xbf16>,
    %c0_323 = arith.constant 0 : index
    %311 = arith.index_cast %285 : i32 to index
    %c0_324 = arith.constant 0 : index
    %c14_325 = arith.constant 14 : index
    %312 = vector.load %arg2[%c0_323, %311, %c0_324, %c14_325] : memref<1x10x4x256xbf16, #tpu.memory_space<vmem>>, vector<1x1x4x128xbf16>
    %313 = vector.shape_cast %312 : vector<1x1x4x128xbf16> to vector<1x4x128xbf16>
    %314 = vector.shape_cast %313 : vector<1x4x128xbf16> to vector<4x128xbf16>
    %c92_326 = arith.constant 92 : index
    %c384_327 = arith.constant 384 : index
    %315 = vector.load %arg7[%c92_326, %c384_327] : memref<108x512xbf16, #tpu.memory_space<vmem>>, vector<4x128xbf16>
    tpu.vector_store %arg7[%c92_326, %c384_327], %314 {strides = array<i32>} : memref<108x512xbf16, #tpu.memory_space<vmem>>, vector<4x128xbf16>,
    %c0_328 = arith.constant 0 : index
    %316 = arith.index_cast %285 : i32 to index
    %c0_329 = arith.constant 0 : index
    %c24_330 = arith.constant 24 : index
    %317 = vector.load %arg2[%c0_328, %316, %c0_329, %c24_330] : memref<1x10x4x256xbf16, #tpu.memory_space<vmem>>, vector<1x1x4x128xbf16>
    %318 = vector.shape_cast %317 : vector<1x1x4x128xbf16> to vector<1x4x128xbf16>
    %319 = vector.shape_cast %318 : vector<1x4x128xbf16> to vector<4x128xbf16>
    %c96_331 = arith.constant 96 : index
    %c384_332 = arith.constant 384 : index
    %320 = vector.load %arg7[%c96_331, %c384_332] : memref<108x512xbf16, #tpu.memory_space<vmem>>, vector<4x128xbf16>
    tpu.vector_store %arg7[%c96_331, %c384_332], %319 {strides = array<i32>} : memref<108x512xbf16, #tpu.memory_space<vmem>>, vector<4x128xbf16>,
    %c0_333 = arith.constant 0 : index
    %321 = arith.index_cast %285 : i32 to index
    %c0_334 = arith.constant 0 : index
    %c25_335 = arith.constant 25 : index
    %322 = vector.load %arg2[%c0_333, %321, %c0_334, %c25_335] : memref<1x10x4x256xbf16, #tpu.memory_space<vmem>>, vector<1x1x4x128xbf16>
    %323 = vector.shape_cast %322 : vector<1x1x4x128xbf16> to vector<1x4x128xbf16>
    %324 = vector.shape_cast %323 : vector<1x4x128xbf16> to vector<4x128xbf16>
    %c100_336 = arith.constant 100 : index
    %c384_337 = arith.constant 384 : index
    %325 = vector.load %arg7[%c100_336, %c384_337] : memref<108x512xbf16, #tpu.memory_space<vmem>>, vector<4x128xbf16>
    tpu.vector_store %arg7[%c100_336, %c384_337], %324 {strides = array<i32>} : memref<108x512xbf16, #tpu.memory_space<vmem>>, vector<4x128xbf16>,
    %c0_338 = arith.constant 0 : index
    %326 = arith.index_cast %285 : i32 to index
    %c0_339 = arith.constant 0 : index
    %c26_340 = arith.constant 26 : index
    %327 = vector.load %arg2[%c0_338, %326, %c0_339, %c26_340] : memref<1x10x4x256xbf16, #tpu.memory_space<vmem>>, vector<1x1x4x128xbf16>
    %328 = vector.shape_cast %327 : vector<1x1x4x128xbf16> to vector<1x4x128xbf16>
    %329 = vector.shape_cast %328 : vector<1x4x128xbf16> to vector<4x128xbf16>
    %c104_341 = arith.constant 104 : index
    %c384_342 = arith.constant 384 : index
    %330 = vector.load %arg7[%c104_341, %c384_342] : memref<108x512xbf16, #tpu.memory_space<vmem>>, vector<4x128xbf16>
    tpu.vector_store %arg7[%c104_341, %c384_342], %329 {strides = array<i32>} : memref<108x512xbf16, #tpu.memory_space<vmem>>, vector<4x128xbf16>,
    %c0_343 = arith.constant 0 : index
    %c0_344 = arith.constant 0 : index
    %331 = vector.load %arg3[%c0_343, %c0_344] : memref<8x108xbf16, #tpu.memory_space<vmem>>, vector<8x108xbf16>
    %c0_345 = arith.constant 0 : index
    %c0_346 = arith.constant 0 : index
    %332 = vector.load %arg7[%c0_345, %c0_346] : memref<108x512xbf16, #tpu.memory_space<vmem>>, vector<108x512xbf16>
    %cst = arith.constant dense<0.000000e+00> : vector<8x512xf32>
    %333 = tpu.matmul %331, %332, %cst {dimension_numbers = #tpu.dot_dimension_numbers<[1], [0], [0], [1], [0, 0, 1, 1], [], []>} : vector<8x108xbf16>, vector<108x512xbf16>, vector<8x512xf32> -> vector<8x512xf32>
    %c0_347 = arith.constant 0 : index
    %c0_348 = arith.constant 0 : index
    %334 = vector.load %arg4[%c0_347, %c0_348] : memref<8x1xf32, #tpu.memory_space<vmem>>, vector<8x1xf32>
    %335 = vector.broadcast %334 : vector<8x1xf32> to vector<8x512xf32>
    %336 = arith.mulf %333, %335 : vector<8x512xf32>
    %c0_349 = arith.constant 0 : index
    %c0_350 = arith.constant 0 : index
    %337 = vector.load %arg5[%c0_349, %c0_350] : memref<8x1xf32, #tpu.memory_space<vmem>>, vector<8x1xf32>
    %338 = vector.broadcast %337 : vector<8x1xf32> to vector<8x512xf32>
    %339 = arith.addf %336, %338 : vector<8x512xf32>
    %cst_351 = arith.constant 0.000000e+00 : f32
    %340 = vector.broadcast %cst_351 : f32 to vector<8x512xf32>
    %341 = arith.maximumf %339, %340 : vector<8x512xf32>
    %c0_352 = arith.constant 0 : index
    %c0_353 = arith.constant 0 : index
    %c0_354 = arith.constant 0 : index
    %342 = vector.load %arg6[%c0_352, %c0_353, %c0_354] : memref<1x8x512xf32, #tpu.memory_space<vmem>>, vector<1x8x512xf32>
    %343 = vector.shape_cast %342 : vector<1x8x512xf32> to vector<8x512xf32>
    %344 = vector.shape_cast %341 : vector<8x512xf32> to vector<1x8x512xf32>
    tpu.vector_store %arg6[%c0_352, %c0_353, %c0_354], %344 {strides = array<i32>} : memref<1x8x512xf32, #tpu.memory_space<vmem>>, vector<1x8x512xf32>,
    return
  }
  func.func @transform_0(%arg0: i32, %arg1: i32) -> (i32, i32, i32, i32) {
    %c0_i32 = arith.constant 0 : i32
    %c0_i32_0 = arith.constant 0 : i32
    %c0_i32_1 = arith.constant 0 : i32
    %c0_i32_2 = arith.constant 0 : i32
    return %arg0, %c0_i32, %c0_i32_0, %c0_i32_1 : i32, i32, i32, i32
  }
  func.func @transform_1(%arg0: i32, %arg1: i32) -> (i32, i32) {
    %c0_i32 = arith.constant 0 : i32
    %c0_i32_0 = arith.constant 0 : i32
    %c0_i32_1 = arith.constant 0 : i32
    return %c0_i32, %c0_i32_0 : i32, i32
  }
  func.func @transform_2(%arg0: i32, %arg1: i32) -> (i32, i32) {
    %c0_i32 = arith.constant 0 : i32
    %c0_i32_0 = arith.constant 0 : i32
    %c0_i32_1 = arith.constant 0 : i32
    return %c0_i32, %c0_i32_0 : i32, i32
  }
  func.func @transform_3(%arg0: i32, %arg1: i32) -> (i32, i32) {
    %c0_i32 = arith.constant 0 : i32
    %c0_i32_0 = arith.constant 0 : i32
    %c0_i32_1 = arith.constant 0 : i32
    return %c0_i32, %c0_i32_0 : i32, i32
  }
  func.func @transform_4(%arg0: i32, %arg1: i32) -> (i32, i32, i32) {
    %c0_i32 = arith.constant 0 : i32
    %c0_i32_0 = arith.constant 0 : i32
    return %arg0, %c0_i32, %arg1 : i32, i32, i32
  }
}

</mosaic_0001>

<llo_original>
// kernel: up_forward.2
$region0: #{up_forward.2}
  #allocation0 [shape = 'u32[]', space=smem, size = 0x4, offset = 0x4, fixed_abs, tag = 'smem constant byte address 0x4 - core index']
  #allocation1 [shape = 'u32[144,128]{1,0:T(1,128)}', space=vmem, size = 0x12000, scoped, tag = 'internal scratch']
  #allocation2 [shape = 'bf16[216,512]{1,0:T(8,128)(2,1)}', space=vmem, size = 0x36000, scoped, tag = 'scratch operand']
  %s0 = inlined_call_operand.vmem [shape: bf16[2,10,4,256], index: 0, kind: input, shape index: {}]
  %s1 = inlined_call_operand.vmem [shape: bf16[2,10,4,256], index: 1, kind: input, shape index: {}]
  %s2 = inlined_call_operand.vmem [shape: bf16[8,216], index: 2, kind: input, shape index: {}]
  %s3 = inlined_call_operand.vmem [shape: f32[8,1], index: 3, kind: input, shape index: {}]
  %s4 = inlined_call_operand.vmem [shape: f32[8,1], index: 4, kind: input, shape index: {}]
  %s5 = inlined_call_operand.vmem [shape: f32[2,8,1024], index: 5, kind: output, shape index: {}]
  %s6 = sld [smem:[#allocation0]]
  $region53: #{up_forward.2} parent=0
    _
  %s8 = ssub.s32 1, %s6
  %s9 = scalar_select 0, %s8, %s6
  loop: start=0, step=1, limit=6
  $region2: #{up_forward.2} parent=0 // loop_pre_header
    _
  $region3: #{up_forward.2} parent=0 // loop_header
    %s11 = sphi 0, %s15
    %p12 = scmp.ge.s32.totalorder %s11, 6
    %s18 = sphi 0, %s30
    %s19 = sphi 0, %s26
    %s20 = sphi 0, %s18
    %s21 = sphi 0, %s19
    %s22 = sphi 0, %s20
    %s23 = sphi 0, %s21
    %s33 = sphi 0, %s35
    %s36 = sphi 0, %s33
    %s37 = sphi 0, %s36
    %s53 = sphi 0, %s37
    %s59 = sphi 0, %s61
    %s62 = sphi 0, %s59
    %s63 = sphi 0, %s62
    %s79 = sphi 0, %s63
    %s83 = sphi 0, %s83
    %s85 = sphi 0, %s83
    %s86 = sphi 0, %s85
    %s100 = sphi 0, %s86
    %s104 = sphi 0, %s104
    %s106 = sphi 0, %s104
    %s107 = sphi 0, %s106
    %s121 = sphi 0, %s107
    %s125 = sphi 0, %s125
    %s127 = sphi 0, %s125
    %s128 = sphi 0, %s127
    %s142 = sphi 0, %s128
    %s150 = sphi 0, %s152
    %s153 = sphi 0, %s150
    %s154 = sphi 0, %s153
    %s170 = sphi 0, %s154
  $region4: #{up_forward.2} parent=0 // loop_header_branch
    %14 = sbr.rel (%p12) target = $region8
  $region5: #{up_forward.2} parent=0 // loop_body
    %s16 = ssub.s32 %s11, 1
    %s17 = ssub.s32 %s11, 2
    %s24 = sadd.s32 1, %s19
    %p25 = scmp.ge.s32.totalorder %s24, 2
    %s26 = scalar_select %p25, 0, %s24
    %s27 = sadd.s32 1, %s18
    %s28 = scalar_select %p25, %s27, %s18
    %p29 = scmp.ge.s32.totalorder %s28, 2
    %s30 = scalar_select %p29, 0, %s28
    %s31 = ssub.s32 %s18, %s30
    %p32 = scmp.eq.s32.totalorder %s31, 0
    %s34 = sadd.s32 %s33, 1
    %s35 = scalar_select %p32, %s33, %s34
    %p38 = pneg %p32
    %p39 = scmp.eq.s32.totalorder %s11, 3
    %p40 = por %p38, %p39
    %p41 = scmp.ne.s32.totalorder %s33, %s36
    %p42 = scmp.eq.s32.totalorder %s11, 0
    %p43 = por %p41, %p42
    %p44 = scmp.ne.s32.totalorder %s33, %s36
    %p45 = scmp.eq.s32.totalorder %s16, 3
    %p46 = por %p44, %p45
    %p47 = scmp.ne.s32.totalorder %s36, %s37
    %p48 = scmp.eq.s32.totalorder %s16, 0
    %p49 = por %p47, %p48
    %p50 = scmp.ne.s32.totalorder %s36, %s37
    %p51 = scmp.eq.s32.totalorder %s17, 3
    %p52 = por %p50, %p51
    %p54 = scmp.ne.s32.totalorder %s37, %s53
    %p55 = scmp.eq.s32.totalorder %s17, 0
    %p56 = por %p54, %p55
    %s57 = ssub.s32 %s18, %s30
    %p58 = scmp.eq.s32.totalorder %s57, 0
    %s60 = sadd.s32 %s59, 1
    %s61 = scalar_select %p58, %s59, %s60
    %p64 = pneg %p58
    %p65 = scmp.eq.s32.totalorder %s11, 3
    %p66 = por %p64, %p65
    %p67 = scmp.ne.s32.totalorder %s59, %s62
    %p68 = scmp.eq.s32.totalorder %s11, 0
    %p69 = por %p67, %p68
    %p70 = scmp.ne.s32.totalorder %s59, %s62
    %p71 = scmp.eq.s32.totalorder %s16, 3
    %p72 = por %p70, %p71
    %p73 = scmp.ne.s32.totalorder %s62, %s63
    %p74 = scmp.eq.s32.totalorder %s16, 0
    %p75 = por %p73, %p74
    %p76 = scmp.ne.s32.totalorder %s62, %s63
    %p77 = scmp.eq.s32.totalorder %s17, 3
    %p78 = por %p76, %p77
    %p80 = scmp.ne.s32.totalorder %s63, %s79
    %p81 = scmp.eq.s32.totalorder %s17, 0
    %p82 = por %p80, %p81
    %s84 = sadd.s32 %s83, 1
    %p87 = scmp.eq.s32.totalorder %s11, 3
    %p88 = scmp.ne.s32.totalorder %s83, %s85
    %p89 = scmp.eq.s32.totalorder %s11, 0
    %p90 = por %p88, %p89
    %p91 = scmp.ne.s32.totalorder %s83, %s85
    %p92 = scmp.eq.s32.totalorder %s16, 3
    %p93 = por %p91, %p92
    %p94 = scmp.ne.s32.totalorder %s85, %s86
    %p95 = scmp.eq.s32.totalorder %s16, 0
    %p96 = por %p94, %p95
    %p97 = scmp.ne.s32.totalorder %s85, %s86
    %p98 = scmp.eq.s32.totalorder %s17, 3
    %p99 = por %p97, %p98
    %p101 = scmp.ne.s32.totalorder %s86, %s100
    %p102 = scmp.eq.s32.totalorder %s17, 0
    %p103 = por %p101, %p102
    %s105 = sadd.s32 %s104, 1
    %p108 = scmp.eq.s32.totalorder %s11, 3
    %p109 = scmp.ne.s32.totalorder %s104, %s106
    %p110 = scmp.eq.s32.totalorder %s11, 0
    %p111 = por %p109, %p110
    %p112 = scmp.ne.s32.totalorder %s104, %s106
    %p113 = scmp.eq.s32.totalorder %s16, 3
    %p114 = por %p112, %p113
    %p115 = scmp.ne.s32.totalorder %s106, %s107
    %p116 = scmp.eq.s32.totalorder %s16, 0
    %p117 = por %p115, %p116
    %p118 = scmp.ne.s32.totalorder %s106, %s107
    %p119 = scmp.eq.s32.totalorder %s17, 3
    %p120 = por %p118, %p119
    %p122 = scmp.ne.s32.totalorder %s107, %s121
    %p123 = scmp.eq.s32.totalorder %s17, 0
    %p124 = por %p122, %p123
    %s126 = sadd.s32 %s125, 1
    %p129 = scmp.eq.s32.totalorder %s11, 3
    %p130 = scmp.ne.s32.totalorder %s125, %s127
    %p131 = scmp.eq.s32.totalorder %s11, 0
    %p132 = por %p130, %p131
    %p133 = scmp.ne.s32.totalorder %s125, %s127
    %p134 = scmp.eq.s32.totalorder %s16, 3
    %p135 = por %p133, %p134
    %p136 = scmp.ne.s32.totalorder %s127, %s128
    %p137 = scmp.eq.s32.totalorder %s16, 0
    %p138 = por %p136, %p137
    %p139 = scmp.ne.s32.totalorder %s127, %s128
    %p140 = scmp.eq.s32.totalorder %s17, 3
    %p141 = por %p139, %p140
    %p143 = scmp.ne.s32.totalorder %s128, %s142
    %p144 = scmp.eq.s32.totalorder %s17, 0
    %p145 = por %p143, %p144
    %s146 = ssub.s32 %s18, %s30
    %s147 = ssub.s32 %s19, %s26
    %s148 = sor.u32 %s146, %s147
    %p149 = scmp.eq.s32.totalorder %s148, 0
    %s151 = sadd.s32 %s150, 1
    %s152 = scalar_select %p149, %s150, %s151
    %p155 = pneg %p149
    %p156 = scmp.eq.s32.totalorder %s11, 3
    %p157 = por %p155, %p156
    %p158 = scmp.ne.s32.totalorder %s150, %s153
    %p159 = scmp.eq.s32.totalorder %s11, 0
    %p160 = por %p158, %p159
    %p161 = scmp.ne.s32.totalorder %s150, %s153
    %p162 = scmp.eq.s32.totalorder %s16, 3
    %p163 = por %p161, %p162
    %p164 = scmp.ne.s32.totalorder %s153, %s154
    %p165 = scmp.eq.s32.totalorder %s16, 0
    %p166 = por %p164, %p165
    %p167 = scmp.ne.s32.totalorder %s153, %s154
    %p168 = scmp.eq.s32.totalorder %s17, 3
    %p169 = por %p167, %p168
    %p171 = scmp.ne.s32.totalorder %s154, %s170
    %p172 = scmp.eq.s32.totalorder %s17, 0
    %p173 = por %p171, %p172
    %p174 = scmp.le.s32.totalorder 1, %s11
    %p175 = scmp.lt.s32.totalorder %s11, 5
    %p176 = pnand %p174, %p175
    %p177 = pneg %p176
    // Predicated region
    $region9: #{up_forward.2} parent=5 // pred_check
      _
    $region10: #{up_forward.2} parent=5 // pred_check_branch
      %179 = sbr.rel (%p176) target = $region12
    $region11: #{up_forward.2} parent=5 // pred_region
      %s180 = ssub.s32 %s11, 1
      // Predicated region
      $region13: #{up_forward.2} parent=11 // pred_check
        %p181 = pneg %p96
      $region14: #{up_forward.2} parent=11 // pred_check_branch
        %183 = sbr.rel (%p181) target = $region16
      $region15: #{up_forward.2} parent=11 // pred_region
        _
      $region16: #{up_forward.2} parent=11 // pred_fallthru
        _
      // Predicated region
      $region17: #{up_forward.2} parent=11 // pred_check
        %p184 = pneg %p117
      $region18: #{up_forward.2} parent=11 // pred_check_branch
        %186 = sbr.rel (%p184) target = $region20
      $region19: #{up_forward.2} parent=11 // pred_region
        _
      $region20: #{up_forward.2} parent=11 // pred_fallthru
        _
      // Predicated region
      $region21: #{up_forward.2} parent=11 // pred_check
        %p187 = pneg %p138
      $region22: #{up_forward.2} parent=11 // pred_check_branch
        %189 = sbr.rel (%p187) target = $region24
      $region23: #{up_forward.2} parent=11 // pred_region
        _
      $region24: #{up_forward.2} parent=11 // pred_fallthru
        _
    $region12: #{up_forward.2} parent=5 // pred_fallthru
      _
    %p190 = scmp.lt.s32.totalorder %s11, 4
    // Predicated region
    $region25: #{up_forward.2} parent=5 // pred_check
      %p191 = pneg %p190
    $region26: #{up_forward.2} parent=5 // pred_check_branch
      %193 = sbr.rel (%p191) target = $region28
    $region27: #{up_forward.2} parent=5 // pred_region
      // Predicated region
      $region29: #{up_forward.2} parent=27 // pred_check
        %p194 = pneg %p43
      $region30: #{up_forward.2} parent=27 // pred_check_branch
        %196 = sbr.rel (%p194) target = $region32
      $region31: #{up_forward.2} parent=27 // pred_region
        %p197 = scmp.lt.s32.totalorder %s18, 1
        %s198 = scalar_select %p197, %s18, 1
        %s199 = smul.addr %s198, 20
        %s200 = smul.addr %s199, 2
        %s201 = scalar_lea.vmem %s0, %s200
      $region32: #{up_forward.2} parent=27 // pred_fallthru
        _
      // Predicated region
      $region33: #{up_forward.2} parent=27 // pred_check
        %p202 = pneg %p69
      $region34: #{up_forward.2} parent=27 // pred_check_branch
        %204 = sbr.rel (%p202) target = $region36
      $region35: #{up_forward.2} parent=27 // pred_region
        %p205 = scmp.lt.s32.totalorder %s18, 1
        %s206 = scalar_select %p205, %s18, 1
        %s207 = smul.addr %s206, 20
        %s208 = smul.addr %s207, 2
        %s209 = scalar_lea.vmem %s1, %s208
      $region36: #{up_forward.2} parent=27 // pred_fallthru
        _
    $region28: #{up_forward.2} parent=5 // pred_fallthru
      _
    %p210 = scmp.le.s32.totalorder 1, %s11
    %p211 = scmp.lt.s32.totalorder %s11, 5
    %p212 = pnand %p210, %p211
    %p213 = pneg %p212
    // Predicated region
    $region37: #{up_forward.2} parent=5 // pred_check
      _
    $region38: #{up_forward.2} parent=5 // pred_check_branch
      %215 = sbr.rel (%p212) target = $region40
    $region39: #{up_forward.2} parent=5 // pred_region
      %s216 = ssub.s32 %s11, 1
      %p217 = scmp.lt.s32.totalorder %s20, 1
      %s218 = scalar_select %p217, %s20, 1
      %s219 = smul.addr %s218, 20
      %s220 = smul.addr %s219, 2
      %s221 = scalar_lea.vmem %s0, %s220
      %p222 = pneg %p49
      %p223 = pneg %p46
      %p224 = scmp.lt.s32.totalorder %s20, 1
      %s225 = scalar_select %p224, %s20, 1
      %s226 = smul.addr %s225, 20
      %s227 = smul.addr %s226, 2
      %s228 = scalar_lea.vmem %s1, %s227
      %p229 = pneg %p75
      %p230 = pneg %p72
      %p231 = pneg %p96
      %p232 = pneg %p93
      %p233 = pneg %p117
      %p234 = pneg %p114
      %p235 = pneg %p138
      %p236 = pneg %p135
      %p237 = pneg %p166
      %p238 = pneg %p163
      %s239 = smul.u32 4, %s21
      %p240 = scmp.lt.s32.totalorder %s20, 1
      %s241 = scalar_select %p240, %s20, 1
      %p242 = scmp.lt.s32.totalorder %s239, 7
      %s243 = scalar_select %p242, %s239, 7
      %s244 = smul.addr %s241, 8
      %s245 = sadd.s32 %s243, %s244
      %s246 = smul.addr %s245, 8
      %s247 = scalar_lea.vmem %s5, %s246
      %p248 = scmp.lt.s32.totalorder %s20, 1
      %s249 = scalar_select %p248, %s20, 1
      %s250 = smul.addr %s249, 20
      %s251 = smul.addr %s250, 2
      %s252 = scalar_lea.vmem %s0, %s251
      %p253 = scmp.lt.s32.totalorder %s20, 1
      %s254 = scalar_select %p253, %s20, 1
      %s255 = smul.addr %s254, 20
      %s256 = smul.addr %s255, 2
      %s257 = scalar_lea.vmem %s1, %s256
      %s258 = smul.u32 4, %s21
      %p259 = scmp.lt.s32.totalorder %s20, 1
      %s260 = scalar_select %p259, %s20, 1
      %p261 = scmp.lt.s32.totalorder %s258, 7
      %s262 = scalar_select %p261, %s258, 7
      %s263 = smul.addr %s260, 8
      %s264 = sadd.s32 %s262, %s263
      %s265 = smul.addr %s264, 8
      %s266 = scalar_lea.vmem %s5, %s265
      %s267 = smul.u32 4, %s21
      %s269 = smul.u32 %s21, 4
      %s270 = smul.u32 %s269, 2
      %s271 = smul.addr %s270, 2
      %s272 = scalar_lea.vmem %s252, %s271
      %v273 = vld [vmem:[%s272] sm:$0x3]
      %274 = vst [vmem:[#allocation2] sm:$0x3] %v273
      %s275 = smul.addr %s270, 2
      %s276 = scalar_lea.vmem %s257, %s275
      %v277 = vld [vmem:[%s276] sm:$0x3]
      %v279 = vcombine.low %v277, %v277
      %v281 = vunpack.c.l.s4 1983009808
      %v282 = vunpack.c.0.s8 %v281
      %v283 = vlaneseq
      %v284 = vshrl.u32 %v283, 7
      %v285 = vsub.s32 %v282, %v284
      %v286 = vrot.slane %v279, %v285
      %288 = vst [vmem:[#allocation2] sm:$0xc] %v286
      %v289 = vld [vmem:[%s272] sm:$0xf]
      %v292 = vunpack.c.l.s4 1983009808
      %v293 = vunpack.c.0.s8 %v292
      %v294 = vlaneseq
      %v295 = vshrl.u32 %v294, 7
      %v296 = vsub.s32 %v293, %v295
      %v297 = vrot.slane %v289, %v296
      %298 = vrot.lane.b32.xlu0 %v297, 127
      %v299 = vpop.permute.xlu0 %298
      %v300 = vrot.slane %v299, 4
      %vm301 = vcmask 1039360
      %v302 = vsel %vm301, %v299, %v300
      %304 = vst [vmem:[#allocation2 + $0x10] sm:$0x3] %v302
      %v305 = vld [vmem:[%s276] sm:$0xf]
      %v307 = vcombine.low %v305, %v305
      %v309 = vunpack.c.l.s4 1983009808
      %v310 = vunpack.c.0.s8 %v309
      %v311 = vlaneseq
      %v312 = vshrl.u32 %v311, 7
      %v313 = vsub.s32 %v310, %v312
      %v314 = vrot.slane %v307, %v313
      %315 = vrot.lane.b32.xlu0 %v314, 127
      %v316 = vpop.permute.xlu0 %315
      %v317 = vrot.slane %v316, 4
      %v318 = vsel %vm301, %v316, %v317
      %320 = vst [vmem:[#allocation2 + $0x10] sm:$0xc] %v318
      %v321 = vld [vmem:[%s272] sm:$0xf]
      %v324 = vunpack.c.l.s4 1983009808
      %v325 = vunpack.c.0.s8 %v324
      %v326 = vlaneseq
      %v327 = vshrl.u32 %v326, 7
      %v328 = vsub.s32 %v325, %v327
      %v329 = vrot.slane %v321, %v328
      %330 = vrot.lane.b32.xlu0 %v329, 126
      %v331 = vpop.permute.xlu0 %330
      %v332 = vrot.slane %v331, 4
      %vm333 = vcmask 1031168
      %v334 = vsel %vm333, %v331, %v332
      %336 = vst [vmem:[#allocation2 + $0x20] sm:$0x3] %v334
      %v337 = vld [vmem:[%s276] sm:$0xf]
      %v339 = vcombine.low %v337, %v337
      %v341 = vunpack.c.l.s4 1983009808
      %v342 = vunpack.c.0.s8 %v341
      %v343 = vlaneseq
      %v344 = vshrl.u32 %v343, 7
      %v345 = vsub.s32 %v342, %v344
      %v346 = vrot.slane %v339, %v345
      %347 = vrot.lane.b32.xlu0 %v346, 126
      %v348 = vpop.permute.xlu0 %347
      %v349 = vrot.slane %v348, 4
      %v350 = vsel %vm333, %v348, %v349
      %352 = vst [vmem:[#allocation2 + $0x20] sm:$0xc] %v350
      %v353 = vld [vmem:[%s272] sm:$0xf]
      %v356 = vunpack.c.l.s4 1983009808
      %v357 = vunpack.c.0.s8 %v356
      %v358 = vlaneseq
      %v359 = vshrl.u32 %v358, 7
      %v360 = vsub.s32 %v357, %v359
      %v361 = vrot.slane %v353, %v360
      %362 = vrot.lane.b32.xlu0 %v361, 116
      %v363 = vpop.permute.xlu0 %362
      %v364 = vrot.slane %v363, 4
      %vm365 = vcmask 949248
      %v366 = vsel %vm365, %v363, %v364
      %368 = vst [vmem:[#allocation2 + $0x30] sm:$0x3] %v366
      %v369 = vld [vmem:[%s276] sm:$0xf]
      %v371 = vcombine.low %v369, %v369
      %v373 = vunpack.c.l.s4 1983009808
      %v374 = vunpack.c.0.s8 %v373
      %v375 = vlaneseq
      %v376 = vshrl.u32 %v375, 7
      %v377 = vsub.s32 %v374, %v376
      %v378 = vrot.slane %v371, %v377
      %379 = vrot.lane.b32.xlu0 %v378, 116
      %v380 = vpop.permute.xlu0 %379
      %v381 = vrot.slane %v380, 4
      %v382 = vsel %vm365, %v380, %v381
      %384 = vst [vmem:[#allocation2 + $0x30] sm:$0xc] %v382
      %v385 = vld [vmem:[%s272] sm:$0xf]
      %v388 = vunpack.c.l.s4 1983009808
      %v389 = vunpack.c.0.s8 %v388
      %v390 = vlaneseq
      %v391 = vshrl.u32 %v390, 7
      %v392 = vsub.s32 %v389, %v391
      %v393 = vrot.slane %v385, %v392
      %394 = vrot.lane.b32.xlu0 %v393, 115
      %v395 = vpop.permute.xlu0 %394
      %v396 = vrot.slane %v395, 4
      %vm397 = vcmask 941056
      %v398 = vsel %vm397, %v395, %v396
      %400 = vst [vmem:[#allocation2 + $0x40] sm:$0x3] %v398
      %v401 = vld [vmem:[%s276] sm:$0xf]
      %v403 = vcombine.low %v401, %v401
      %v405 = vunpack.c.l.s4 1983009808
      %v406 = vunpack.c.0.s8 %v405
      %v407 = vlaneseq
      %v408 = vshrl.u32 %v407, 7
      %v409 = vsub.s32 %v406, %v408
      %v410 = vrot.slane %v403, %v409
      %411 = vrot.lane.b32.xlu0 %v410, 115
      %v412 = vpop.permute.xlu0 %411
      %v413 = vrot.slane %v412, 4
      %v414 = vsel %vm397, %v412, %v413
      %416 = vst [vmem:[#allocation2 + $0x40] sm:$0xc] %v414
      %v417 = vld [vmem:[%s272] sm:$0xf]
      %v420 = vunpack.c.l.s4 1983009808
      %v421 = vunpack.c.0.s8 %v420
      %v422 = vlaneseq
      %v423 = vshrl.u32 %v422, 7
      %v424 = vsub.s32 %v421, %v423
      %v425 = vrot.slane %v417, %v424
      %426 = vrot.lane.b32.xlu0 %v425, 114
      %v427 = vpop.permute.xlu0 %426
      %v428 = vrot.slane %v427, 4
      %vm429 = vcmask 932864
      %v430 = vsel %vm429, %v427, %v428
      %432 = vst [vmem:[#allocation2 + $0x50] sm:$0x3] %v430
      %v433 = vld [vmem:[%s276] sm:$0xf]
      %v435 = vcombine.low %v433, %v433
      %v437 = vunpack.c.l.s4 1983009808
      %v438 = vunpack.c.0.s8 %v437
      %v439 = vlaneseq
      %v440 = vshrl.u32 %v439, 7
      %v441 = vsub.s32 %v438, %v440
      %v442 = vrot.slane %v435, %v441
      %443 = vrot.lane.b32.xlu0 %v442, 114
      %v444 = vpop.permute.xlu0 %443
      %v445 = vrot.slane %v444, 4
      %v446 = vsel %vm429, %v444, %v445
      %448 = vst [vmem:[#allocation2 + $0x50] sm:$0xc] %v446
      %v449 = vld [vmem:[%s272] sm:$0xf]
      %v452 = vunpack.c.l.s4 1983009808
      %v453 = vunpack.c.0.s8 %v452
      %v454 = vlaneseq
      %v455 = vshrl.u32 %v454, 7
      %v456 = vsub.s32 %v453, %v455
      %v457 = vrot.slane %v449, %v456
      %458 = vrot.lane.b32.xlu0 %v457, 104
      %v459 = vpop.permute.xlu0 %458
      %v460 = vrot.slane %v459, 4
      %vm461 = vcmask 850944
      %v462 = vsel %vm461, %v459, %v460
      %464 = vst [vmem:[#allocation2 + $0x60] sm:$0x3] %v462
      %v465 = vld [vmem:[%s276] sm:$0xf]
      %v467 = vcombine.low %v465, %v465
      %v469 = vunpack.c.l.s4 1983009808
      %v470 = vunpack.c.0.s8 %v469
      %v471 = vlaneseq
      %v472 = vshrl.u32 %v471, 7
      %v473 = vsub.s32 %v470, %v472
      %v474 = vrot.slane %v467, %v473
      %475 = vrot.lane.b32.xlu0 %v474, 104
      %v476 = vpop.permute.xlu0 %475
      %v477 = vrot.slane %v476, 4
      %v478 = vsel %vm461, %v476, %v477
      %480 = vst [vmem:[#allocation2 + $0x60] sm:$0xc] %v478
      %v481 = vld [vmem:[%s272] sm:$0xf]
      %v484 = vunpack.c.l.s4 1983009808
      %v485 = vunpack.c.0.s8 %v484
      %v486 = vlaneseq
      %v487 = vshrl.u32 %v486, 7
      %v488 = vsub.s32 %v485, %v487
      %v489 = vrot.slane %v481, %v488
      %490 = vrot.lane.b32.xlu0 %v489, 103
      %v491 = vpop.permute.xlu0 %490
      %v492 = vrot.slane %v491, 4
      %vm493 = vcmask 842752
      %v494 = vsel %vm493, %v491, %v492
      %496 = vst [vmem:[#allocation2 + $0x70] sm:$0x3] %v494
      %v497 = vld [vmem:[%s276] sm:$0xf]
      %v499 = vcombine.low %v497, %v497
      %v501 = vunpack.c.l.s4 1983009808
      %v502 = vunpack.c.0.s8 %v501
      %v503 = vlaneseq
      %v504 = vshrl.u32 %v503, 7
      %v505 = vsub.s32 %v502, %v504
      %v506 = vrot.slane %v499, %v505
      %507 = vrot.lane.b32.xlu0 %v506, 103
      %v508 = vpop.permute.xlu0 %507
      %v509 = vrot.slane %v508, 4
      %v510 = vsel %vm493, %v508, %v509
      %512 = vst [vmem:[#allocation2 + $0x70] sm:$0xc] %v510
      %v513 = vld [vmem:[%s272] sm:$0xf]
      %v516 = vunpack.c.l.s4 1983009808
      %v517 = vunpack.c.0.s8 %v516
      %v518 = vlaneseq
      %v519 = vshrl.u32 %v518, 7
      %v520 = vsub.s32 %v517, %v519
      %v521 = vrot.slane %v513, %v520
      %522 = vrot.lane.b32.xlu0 %v521, 102
      %v523 = vpop.permute.xlu0 %522
      %v524 = vrot.slane %v523, 4
      %vm525 = vcmask 834560
      %v526 = vsel %vm525, %v523, %v524
      %528 = vst [vmem:[#allocation2 + $0x80] sm:$0x3] %v526
      %v529 = vld [vmem:[%s276] sm:$0xf]
      %v531 = vcombine.low %v529, %v529
      %v533 = vunpack.c.l.s4 1983009808
      %v534 = vunpack.c.0.s8 %v533
      %v535 = vlaneseq
      %v536 = vshrl.u32 %v535, 7
      %v537 = vsub.s32 %v534, %v536
      %v538 = vrot.slane %v531, %v537
      %539 = vrot.lane.b32.xlu0 %v538, 102
      %v540 = vpop.permute.xlu0 %539
      %v541 = vrot.slane %v540, 4
      %v542 = vsel %vm525, %v540, %v541
      %544 = vst [vmem:[#allocation2 + $0x80] sm:$0xc] %v542
      %s545 = sadd.s32 %s269, 1
      %s546 = smul.u32 %s545, 2
      %s547 = smul.addr %s546, 2
      %s548 = scalar_lea.vmem %s252, %s547
      %v549 = vld [vmem:[%s548] sm:$0x3]
      %550 = vst [vmem:[#allocation2 + $0x4] sm:$0x3] %v549
      %551 = vst [vmem:[#allocation2 + $0x90] sm:$0x3] %v549
      %s552 = smul.addr %s546, 2
      %s553 = scalar_lea.vmem %s257, %s552
      %v554 = vld [vmem:[%s553] sm:$0x3]
      %v556 = vcombine.low %v554, %v554
      %v558 = vunpack.c.l.s4 1983009808
      %v559 = vunpack.c.0.s8 %v558
      %v560 = vlaneseq
      %v561 = vshrl.u32 %v560, 7
      %v562 = vsub.s32 %v559, %v561
      %v563 = vrot.slane %v556, %v562
      %565 = vst [vmem:[#allocation2 + $0x4] sm:$0xc] %v563
      %566 = vst [vmem:[#allocation2 + $0x90] sm:$0xc] %v563
      %v567 = vld [vmem:[%s548] sm:$0xf]
      %v570 = vunpack.c.l.s4 1983009808
      %v571 = vunpack.c.0.s8 %v570
      %v572 = vlaneseq
      %v573 = vshrl.u32 %v572, 7
      %v574 = vsub.s32 %v571, %v573
      %v575 = vrot.slane %v567, %v574
      %576 = vrot.lane.b32.xlu0 %v575, 127
      %v577 = vpop.permute.xlu0 %576
      %v578 = vrot.slane %v577, 4
      %v579 = vsel %vm301, %v577, %v578
      %581 = vst [vmem:[#allocation2 + $0x14] sm:$0x3] %v579
      %582 = vst [vmem:[#allocation2 + $0xa0] sm:$0x3] %v579
      %v583 = vld [vmem:[%s553] sm:$0xf]
      %v585 = vcombine.low %v583, %v583
      %v587 = vunpack.c.l.s4 1983009808
      %v588 = vunpack.c.0.s8 %v587
      %v589 = vlaneseq
      %v590 = vshrl.u32 %v589, 7
      %v591 = vsub.s32 %v588, %v590
      %v592 = vrot.slane %v585, %v591
      %593 = vrot.lane.b32.xlu0 %v592, 127
      %v594 = vpop.permute.xlu0 %593
      %v595 = vrot.slane %v594, 4
      %v596 = vsel %vm301, %v594, %v595
      %598 = vst [vmem:[#allocation2 + $0x14] sm:$0xc] %v596
      %599 = vst [vmem:[#allocation2 + $0xa0] sm:$0xc] %v596
      %v600 = vld [vmem:[%s548] sm:$0xf]
      %v603 = vunpack.c.l.s4 1983009808
      %v604 = vunpack.c.0.s8 %v603
      %v605 = vlaneseq
      %v606 = vshrl.u32 %v605, 7
      %v607 = vsub.s32 %v604, %v606
      %v608 = vrot.slane %v600, %v607
      %609 = vrot.lane.b32.xlu0 %v608, 126
      %v610 = vpop.permute.xlu0 %609
      %v611 = vrot.slane %v610, 4
      %v612 = vsel %vm333, %v610, %v611
      %614 = vst [vmem:[#allocation2 + $0x24] sm:$0x3] %v612
      %615 = vst [vmem:[#allocation2 + $0xb0] sm:$0x3] %v612
      %v616 = vld [vmem:[%s553] sm:$0xf]
      %v618 = vcombine.low %v616, %v616
      %v620 = vunpack.c.l.s4 1983009808
      %v621 = vunpack.c.0.s8 %v620
      %v622 = vlaneseq
      %v623 = vshrl.u32 %v622, 7
      %v624 = vsub.s32 %v621, %v623
      %v625 = vrot.slane %v618, %v624
      %626 = vrot.lane.b32.xlu0 %v625, 126
      %v627 = vpop.permute.xlu0 %626
      %v628 = vrot.slane %v627, 4
      %v629 = vsel %vm333, %v627, %v628
      %631 = vst [vmem:[#allocation2 + $0x24] sm:$0xc] %v629
      %632 = vst [vmem:[#allocation2 + $0xb0] sm:$0xc] %v629
      %v633 = vld [vmem:[%s548] sm:$0xf]
      %v636 = vunpack.c.l.s4 1983009808
      %v637 = vunpack.c.0.s8 %v636
      %v638 = vlaneseq
      %v639 = vshrl.u32 %v638, 7
      %v640 = vsub.s32 %v637, %v639
      %v641 = vrot.slane %v633, %v640
      %642 = vrot.lane.b32.xlu0 %v641, 116
      %v643 = vpop.permute.xlu0 %642
      %v644 = vrot.slane %v643, 4
      %v645 = vsel %vm365, %v643, %v644
      %647 = vst [vmem:[#allocation2 + $0x34] sm:$0x3] %v645
      %648 = vst [vmem:[#allocation2 + $0xc0] sm:$0x3] %v645
      %v649 = vld [vmem:[%s553] sm:$0xf]
      %v651 = vcombine.low %v649, %v649
      %v653 = vunpack.c.l.s4 1983009808
      %v654 = vunpack.c.0.s8 %v653
      %v655 = vlaneseq
      %v656 = vshrl.u32 %v655, 7
      %v657 = vsub.s32 %v654, %v656
      %v658 = vrot.slane %v651, %v657
      %659 = vrot.lane.b32.xlu0 %v658, 116
      %v660 = vpop.permute.xlu0 %659
      %v661 = vrot.slane %v660, 4
      %v662 = vsel %vm365, %v660, %v661
      %664 = vst [vmem:[#allocation2 + $0x34] sm:$0xc] %v662
      %665 = vst [vmem:[#allocation2 + $0xc0] sm:$0xc] %v662
      %v666 = vld [vmem:[%s548] sm:$0xf]
      %v669 = vunpack.c.l.s4 1983009808
      %v670 = vunpack.c.0.s8 %v669
      %v671 = vlaneseq
      %v672 = vshrl.u32 %v671, 7
      %v673 = vsub.s32 %v670, %v672
      %v674 = vrot.slane %v666, %v673
      %675 = vrot.lane.b32.xlu0 %v674, 115
      %v676 = vpop.permute.xlu0 %675
      %v677 = vrot.slane %v676, 4
      %v678 = vsel %vm397, %v676, %v677
      %680 = vst [vmem:[#allocation2 + $0x44] sm:$0x3] %v678
      %681 = vst [vmem:[#allocation2 + $0xd0] sm:$0x3] %v678
      %v682 = vld [vmem:[%s553] sm:$0xf]
      %v684 = vcombine.low %v682, %v682
      %v686 = vunpack.c.l.s4 1983009808
      %v687 = vunpack.c.0.s8 %v686
      %v688 = vlaneseq
      %v689 = vshrl.u32 %v688, 7
      %v690 = vsub.s32 %v687, %v689
      %v691 = vrot.slane %v684, %v690
      %692 = vrot.lane.b32.xlu0 %v691, 115
      %v693 = vpop.permute.xlu0 %692
      %v694 = vrot.slane %v693, 4
      %v695 = vsel %vm397, %v693, %v694
      %697 = vst [vmem:[#allocation2 + $0x44] sm:$0xc] %v695
      %698 = vst [vmem:[#allocation2 + $0xd0] sm:$0xc] %v695
      %v699 = vld [vmem:[%s548] sm:$0xf]
      %v702 = vunpack.c.l.s4 1983009808
      %v703 = vunpack.c.0.s8 %v702
      %v704 = vlaneseq
      %v705 = vshrl.u32 %v704, 7
      %v706 = vsub.s32 %v703, %v705
      %v707 = vrot.slane %v699, %v706
      %708 = vrot.lane.b32.xlu0 %v707, 114
      %v709 = vpop.permute.xlu0 %708
      %v710 = vrot.slane %v709, 4
      %v711 = vsel %vm429, %v709, %v710
      %713 = vst [vmem:[#allocation2 + $0x54] sm:$0x3] %v711
      %714 = vst [vmem:[#allocation2 + $0xe0] sm:$0x3] %v711
      %v715 = vld [vmem:[%s553] sm:$0xf]
      %v717 = vcombine.low %v715, %v715
      %v719 = vunpack.c.l.s4 1983009808
      %v720 = vunpack.c.0.s8 %v719
      %v721 = vlaneseq
      %v722 = vshrl.u32 %v721, 7
      %v723 = vsub.s32 %v720, %v722
      %v724 = vrot.slane %v717, %v723
      %725 = vrot.lane.b32.xlu0 %v724, 114
      %v726 = vpop.permute.xlu0 %725
      %v727 = vrot.slane %v726, 4
      %v728 = vsel %vm429, %v726, %v727
      %730 = vst [vmem:[#allocation2 + $0x54] sm:$0xc] %v728
      %731 = vst [vmem:[#allocation2 + $0xe0] sm:$0xc] %v728
      %v732 = vld [vmem:[%s548] sm:$0xf]
      %v735 = vunpack.c.l.s4 1983009808
      %v736 = vunpack.c.0.s8 %v735
      %v737 = vlaneseq
      %v738 = vshrl.u32 %v737, 7
      %v739 = vsub.s32 %v736, %v738
      %v740 = vrot.slane %v732, %v739
      %741 = vrot.lane.b32.xlu0 %v740, 104
      %v742 = vpop.permute.xlu0 %741
      %v743 = vrot.slane %v742, 4
      %v744 = vsel %vm461, %v742, %v743
      %746 = vst [vmem:[#allocation2 + $0x64] sm:$0x3] %v744
      %747 = vst [vmem:[#allocation2 + $0xf0] sm:$0x3] %v744
      %v748 = vld [vmem:[%s553] sm:$0xf]
      %v750 = vcombine.low %v748, %v748
      %v752 = vunpack.c.l.s4 1983009808
      %v753 = vunpack.c.0.s8 %v752
      %v754 = vlaneseq
      %v755 = vshrl.u32 %v754, 7
      %v756 = vsub.s32 %v753, %v755
      %v757 = vrot.slane %v750, %v756
      %758 = vrot.lane.b32.xlu0 %v757, 104
      %v759 = vpop.permute.xlu0 %758
      %v760 = vrot.slane %v759, 4
      %v761 = vsel %vm461, %v759, %v760
      %763 = vst [vmem:[#allocation2 + $0x64] sm:$0xc] %v761
      %764 = vst [vmem:[#allocation2 + $0xf0] sm:$0xc] %v761
      %v765 = vld [vmem:[%s548] sm:$0xf]
      %v768 = vunpack.c.l.s4 1983009808
      %v769 = vunpack.c.0.s8 %v768
      %v770 = vlaneseq
      %v771 = vshrl.u32 %v770, 7
      %v772 = vsub.s32 %v769, %v771
      %v773 = vrot.slane %v765, %v772
      %774 = vrot.lane.b32.xlu0 %v773, 103
      %v775 = vpop.permute.xlu0 %774
      %v776 = vrot.slane %v775, 4
      %v777 = vsel %vm493, %v775, %v776
      %779 = vst [vmem:[#allocation2 + $0x74] sm:$0x3] %v777
      %780 = vst [vmem:[#allocation2 + $0x100] sm:$0x3] %v777
      %v781 = vld [vmem:[%s553] sm:$0xf]
      %v783 = vcombine.low %v781, %v781
      %v785 = vunpack.c.l.s4 1983009808
      %v786 = vunpack.c.0.s8 %v785
      %v787 = vlaneseq
      %v788 = vshrl.u32 %v787, 7
      %v789 = vsub.s32 %v786, %v788
      %v790 = vrot.slane %v783, %v789
      %791 = vrot.lane.b32.xlu0 %v790, 103
      %v792 = vpop.permute.xlu0 %791
      %v793 = vrot.slane %v792, 4
      %v794 = vsel %vm493, %v792, %v793
      %796 = vst [vmem:[#allocation2 + $0x74] sm:$0xc] %v794
      %797 = vst [vmem:[#allocation2 + $0x100] sm:$0xc] %v794
      %v798 = vld [vmem:[%s548] sm:$0xf]
      %v801 = vunpack.c.l.s4 1983009808
      %v802 = vunpack.c.0.s8 %v801
      %v803 = vlaneseq
      %v804 = vshrl.u32 %v803, 7
      %v805 = vsub.s32 %v802, %v804
      %v806 = vrot.slane %v798, %v805
      %807 = vrot.lane.b32.xlu0 %v806, 102
      %v808 = vpop.permute.xlu0 %807
      %v809 = vrot.slane %v808, 4
      %v810 = vsel %vm525, %v808, %v809
      %812 = vst [vmem:[#allocation2 + $0x84] sm:$0x3] %v810
      %813 = vst [vmem:[#allocation2 + $0x110] sm:$0x3] %v810
      %v814 = vld [vmem:[%s553] sm:$0xf]
      %v816 = vcombine.low %v814, %v814
      %v818 = vunpack.c.l.s4 1983009808
      %v819 = vunpack.c.0.s8 %v818
      %v820 = vlaneseq
      %v821 = vshrl.u32 %v820, 7
      %v822 = vsub.s32 %v819, %v821
      %v823 = vrot.slane %v816, %v822
      %824 = vrot.lane.b32.xlu0 %v823, 102
      %v825 = vpop.permute.xlu0 %824
      %v826 = vrot.slane %v825, 4
      %v827 = vsel %vm525, %v825, %v826
      %829 = vst [vmem:[#allocation2 + $0x84] sm:$0xc] %v827
      %830 = vst [vmem:[#allocation2 + $0x110] sm:$0xc] %v827
      %s831 = sadd.s32 %s269, 2
      %s832 = smul.u32 %s831, 2
      %s833 = smul.addr %s832, 2
      %s834 = scalar_lea.vmem %s252, %s833
      %v835 = vld [vmem:[%s834] sm:$0x3]
      %836 = vst [vmem:[#allocation2 + $0x8] sm:$0x3] %v835
      %837 = vst [vmem:[#allocation2 + $0x94] sm:$0x3] %v835
      %838 = vst [vmem:[#allocation2 + $0x120] sm:$0x3] %v835
      %s839 = smul.addr %s832, 2
      %s840 = scalar_lea.vmem %s257, %s839
      %v841 = vld [vmem:[%s840] sm:$0x3]
      %v843 = vcombine.low %v841, %v841
      %v845 = vunpack.c.l.s4 1983009808
      %v846 = vunpack.c.0.s8 %v845
      %v847 = vlaneseq
      %v848 = vshrl.u32 %v847, 7
      %v849 = vsub.s32 %v846, %v848
      %v850 = vrot.slane %v843, %v849
      %852 = vst [vmem:[#allocation2 + $0x8] sm:$0xc] %v850
      %853 = vst [vmem:[#allocation2 + $0x94] sm:$0xc] %v850
      %854 = vst [vmem:[#allocation2 + $0x120] sm:$0xc] %v850
      %v855 = vld [vmem:[%s834] sm:$0xf]
      %v858 = vunpack.c.l.s4 1983009808
      %v859 = vunpack.c.0.s8 %v858
      %v860 = vlaneseq
      %v861 = vshrl.u32 %v860, 7
      %v862 = vsub.s32 %v859, %v861
      %v863 = vrot.slane %v855, %v862
      %864 = vrot.lane.b32.xlu0 %v863, 127
      %v865 = vpop.permute.xlu0 %864
      %v866 = vrot.slane %v865, 4
      %v867 = vsel %vm301, %v865, %v866
      %869 = vst [vmem:[#allocation2 + $0x18] sm:$0x3] %v867
      %870 = vst [vmem:[#allocation2 + $0xa4] sm:$0x3] %v867
      %871 = vst [vmem:[#allocation2 + $0x130] sm:$0x3] %v867
      %v872 = vld [vmem:[%s840] sm:$0xf]
      %v874 = vcombine.low %v872, %v872
      %v876 = vunpack.c.l.s4 1983009808
      %v877 = vunpack.c.0.s8 %v876
      %v878 = vlaneseq
      %v879 = vshrl.u32 %v878, 7
      %v880 = vsub.s32 %v877, %v879
      %v881 = vrot.slane %v874, %v880
      %882 = vrot.lane.b32.xlu0 %v881, 127
      %v883 = vpop.permute.xlu0 %882
      %v884 = vrot.slane %v883, 4
      %v885 = vsel %vm301, %v883, %v884
      %887 = vst [vmem:[#allocation2 + $0x18] sm:$0xc] %v885
      %888 = vst [vmem:[#allocation2 + $0xa4] sm:$0xc] %v885
      %889 = vst [vmem:[#allocation2 + $0x130] sm:$0xc] %v885
      %v890 = vld [vmem:[%s834] sm:$0xf]
      %v893 = vunpack.c.l.s4 1983009808
      %v894 = vunpack.c.0.s8 %v893
      %v895 = vlaneseq
      %v896 = vshrl.u32 %v895, 7
      %v897 = vsub.s32 %v894, %v896
      %v898 = vrot.slane %v890, %v897
      %899 = vrot.lane.b32.xlu0 %v898, 126
      %v900 = vpop.permute.xlu0 %899
      %v901 = vrot.slane %v900, 4
      %v902 = vsel %vm333, %v900, %v901
      %904 = vst [vmem:[#allocation2 + $0x28] sm:$0x3] %v902
      %905 = vst [vmem:[#allocation2 + $0xb4] sm:$0x3] %v902
      %906 = vst [vmem:[#allocation2 + $0x140] sm:$0x3] %v902
      %v907 = vld [vmem:[%s840] sm:$0xf]
      %v909 = vcombine.low %v907, %v907
      %v911 = vunpack.c.l.s4 1983009808
      %v912 = vunpack.c.0.s8 %v911
      %v913 = vlaneseq
      %v914 = vshrl.u32 %v913, 7
      %v915 = vsub.s32 %v912, %v914
      %v916 = vrot.slane %v909, %v915
      %917 = vrot.lane.b32.xlu0 %v916, 126
      %v918 = vpop.permute.xlu0 %917
      %v919 = vrot.slane %v918, 4
      %v920 = vsel %vm333, %v918, %v919
      %922 = vst [vmem:[#allocation2 + $0x28] sm:$0xc] %v920
      %923 = vst [vmem:[#allocation2 + $0xb4] sm:$0xc] %v920
      %924 = vst [vmem:[#allocation2 + $0x140] sm:$0xc] %v920
      %v925 = vld [vmem:[%s834] sm:$0xf]
      %v928 = vunpack.c.l.s4 1983009808
      %v929 = vunpack.c.0.s8 %v928
      %v930 = vlaneseq
      %v931 = vshrl.u32 %v930, 7
      %v932 = vsub.s32 %v929, %v931
      %v933 = vrot.slane %v925, %v932
      %934 = vrot.lane.b32.xlu0 %v933, 116
      %v935 = vpop.permute.xlu0 %934
      %v936 = vrot.slane %v935, 4
      %v937 = vsel %vm365, %v935, %v936
      %939 = vst [vmem:[#allocation2 + $0x38] sm:$0x3] %v937
      %940 = vst [vmem:[#allocation2 + $0xc4] sm:$0x3] %v937
      %941 = vst [vmem:[#allocation2 + $0x150] sm:$0x3] %v937
      %v942 = vld [vmem:[%s840] sm:$0xf]
      %v944 = vcombine.low %v942, %v942
      %v946 = vunpack.c.l.s4 1983009808
      %v947 = vunpack.c.0.s8 %v946
      %v948 = vlaneseq
      %v949 = vshrl.u32 %v948, 7
      %v950 = vsub.s32 %v947, %v949
      %v951 = vrot.slane %v944, %v950
      %952 = vrot.lane.b32.xlu0 %v951, 116
      %v953 = vpop.permute.xlu0 %952
      %v954 = vrot.slane %v953, 4
      %v955 = vsel %vm365, %v953, %v954
      %957 = vst [vmem:[#allocation2 + $0x38] sm:$0xc] %v955
      %958 = vst [vmem:[#allocation2 + $0xc4] sm:$0xc] %v955
      %959 = vst [vmem:[#allocation2 + $0x150] sm:$0xc] %v955
      %v960 = vld [vmem:[%s834] sm:$0xf]
      %v963 = vunpack.c.l.s4 1983009808
      %v964 = vunpack.c.0.s8 %v963
      %v965 = vlaneseq
      %v966 = vshrl.u32 %v965, 7
      %v967 = vsub.s32 %v964, %v966
      %v968 = vrot.slane %v960, %v967
      %969 = vrot.lane.b32.xlu0 %v968, 115
      %v970 = vpop.permute.xlu0 %969
      %v971 = vrot.slane %v970, 4
      %v972 = vsel %vm397, %v970, %v971
      %974 = vst [vmem:[#allocation2 + $0x48] sm:$0x3] %v972
      %975 = vst [vmem:[#allocation2 + $0xd4] sm:$0x3] %v972
      %976 = vst [vmem:[#allocation2 + $0x160] sm:$0x3] %v972
      %v977 = vld [vmem:[%s840] sm:$0xf]
      %v979 = vcombine.low %v977, %v977
      %v981 = vunpack.c.l.s4 1983009808
      %v982 = vunpack.c.0.s8 %v981
      %v983 = vlaneseq
      %v984 = vshrl.u32 %v983, 7
      %v985 = vsub.s32 %v982, %v984
      %v986 = vrot.slane %v979, %v985
      %987 = vrot.lane.b32.xlu0 %v986, 115
      %v988 = vpop.permute.xlu0 %987
      %v989 = vrot.slane %v988, 4
      %v990 = vsel %vm397, %v988, %v989
      %992 = vst [vmem:[#allocation2 + $0x48] sm:$0xc] %v990
      %993 = vst [vmem:[#allocation2 + $0xd4] sm:$0xc] %v990
      %994 = vst [vmem:[#allocation2 + $0x160] sm:$0xc] %v990
      %v995 = vld [vmem:[%s834] sm:$0xf]
      %v998 = vunpack.c.l.s4 1983009808
      %v999 = vunpack.c.0.s8 %v998
      %v1000 = vlaneseq
      %v1001 = vshrl.u32 %v1000, 7
      %v1002 = vsub.s32 %v999, %v1001
      %v1003 = vrot.slane %v995, %v1002
      %1004 = vrot.lane.b32.xlu0 %v1003, 114
      %v1005 = vpop.permute.xlu0 %1004
      %v1006 = vrot.slane %v1005, 4
      %v1007 = vsel %vm429, %v1005, %v1006
      %1009 = vst [vmem:[#allocation2 + $0x58] sm:$0x3] %v1007
      %1010 = vst [vmem:[#allocation2 + $0xe4] sm:$0x3] %v1007
      %1011 = vst [vmem:[#allocation2 + $0x170] sm:$0x3] %v1007
      %v1012 = vld [vmem:[%s840] sm:$0xf]
      %v1014 = vcombine.low %v1012, %v1012
      %v1016 = vunpack.c.l.s4 1983009808
      %v1017 = vunpack.c.0.s8 %v1016
      %v1018 = vlaneseq
      %v1019 = vshrl.u32 %v1018, 7
      %v1020 = vsub.s32 %v1017, %v1019
      %v1021 = vrot.slane %v1014, %v1020
      %1022 = vrot.lane.b32.xlu0 %v1021, 114
      %v1023 = vpop.permute.xlu0 %1022
      %v1024 = vrot.slane %v1023, 4
      %v1025 = vsel %vm429, %v1023, %v1024
      %1027 = vst [vmem:[#allocation2 + $0x58] sm:$0xc] %v1025
      %1028 = vst [vmem:[#allocation2 + $0xe4] sm:$0xc] %v1025
      %1029 = vst [vmem:[#allocation2 + $0x170] sm:$0xc] %v1025
      %v1030 = vld [vmem:[%s834] sm:$0xf]
      %v1033 = vunpack.c.l.s4 1983009808
      %v1034 = vunpack.c.0.s8 %v1033
      %v1035 = vlaneseq
      %v1036 = vshrl.u32 %v1035, 7
      %v1037 = vsub.s32 %v1034, %v1036
      %v1038 = vrot.slane %v1030, %v1037
      %1039 = vrot.lane.b32.xlu0 %v1038, 104
      %v1040 = vpop.permute.xlu0 %1039
      %v1041 = vrot.slane %v1040, 4
      %v1042 = vsel %vm461, %v1040, %v1041
      %1044 = vst [vmem:[#allocation2 + $0x68] sm:$0x3] %v1042
      %1045 = vst [vmem:[#allocation2 + $0xf4] sm:$0x3] %v1042
      %1046 = vst [vmem:[#allocation2 + $0x180] sm:$0x3] %v1042
      %v1047 = vld [vmem:[%s840] sm:$0xf]
      %v1049 = vcombine.low %v1047, %v1047
      %v1051 = vunpack.c.l.s4 1983009808
      %v1052 = vunpack.c.0.s8 %v1051
      %v1053 = vlaneseq
      %v1054 = vshrl.u32 %v1053, 7
      %v1055 = vsub.s32 %v1052, %v1054
      %v1056 = vrot.slane %v1049, %v1055
      %1057 = vrot.lane.b32.xlu0 %v1056, 104
      %v1058 = vpop.permute.xlu0 %1057
      %v1059 = vrot.slane %v1058, 4
      %v1060 = vsel %vm461, %v1058, %v1059
      %1062 = vst [vmem:[#allocation2 + $0x68] sm:$0xc] %v1060
      %1063 = vst [vmem:[#allocation2 + $0xf4] sm:$0xc] %v1060
      %1064 = vst [vmem:[#allocation2 + $0x180] sm:$0xc] %v1060
      %v1065 = vld [vmem:[%s834] sm:$0xf]
      %v1068 = vunpack.c.l.s4 1983009808
      %v1069 = vunpack.c.0.s8 %v1068
      %v1070 = vlaneseq
      %v1071 = vshrl.u32 %v1070, 7
      %v1072 = vsub.s32 %v1069, %v1071
      %v1073 = vrot.slane %v1065, %v1072
      %1074 = vrot.lane.b32.xlu0 %v1073, 103
      %v1075 = vpop.permute.xlu0 %1074
      %v1076 = vrot.slane %v1075, 4
      %v1077 = vsel %vm493, %v1075, %v1076
      %1079 = vst [vmem:[#allocation2 + $0x78] sm:$0x3] %v1077
      %1080 = vst [vmem:[#allocation2 + $0x104] sm:$0x3] %v1077
      %1081 = vst [vmem:[#allocation2 + $0x190] sm:$0x3] %v1077
      %v1082 = vld [vmem:[%s840] sm:$0xf]
      %v1084 = vcombine.low %v1082, %v1082
      %v1086 = vunpack.c.l.s4 1983009808
      %v1087 = vunpack.c.0.s8 %v1086
      %v1088 = vlaneseq
      %v1089 = vshrl.u32 %v1088, 7
      %v1090 = vsub.s32 %v1087, %v1089
      %v1091 = vrot.slane %v1084, %v1090
      %1092 = vrot.lane.b32.xlu0 %v1091, 103
      %v1093 = vpop.permute.xlu0 %1092
      %v1094 = vrot.slane %v1093, 4
      %v1095 = vsel %vm493, %v1093, %v1094
      %1097 = vst [vmem:[#allocation2 + $0x78] sm:$0xc] %v1095
      %1098 = vst [vmem:[#allocation2 + $0x104] sm:$0xc] %v1095
      %1099 = vst [vmem:[#allocation2 + $0x190] sm:$0xc] %v1095
      %v1100 = vld [vmem:[%s834] sm:$0xf]
      %v1103 = vunpack.c.l.s4 1983009808
      %v1104 = vunpack.c.0.s8 %v1103
      %v1105 = vlaneseq
      %v1106 = vshrl.u32 %v1105, 7
      %v1107 = vsub.s32 %v1104, %v1106
      %v1108 = vrot.slane %v1100, %v1107
      %1109 = vrot.lane.b32.xlu0 %v1108, 102
      %v1110 = vpop.permute.xlu0 %1109
      %v1111 = vrot.slane %v1110, 4
      %v1112 = vsel %vm525, %v1110, %v1111
      %1114 = vst [vmem:[#allocation2 + $0x88] sm:$0x3] %v1112
      %1115 = vst [vmem:[#allocation2 + $0x114] sm:$0x3] %v1112
      %1116 = vst [vmem:[#allocation2 + $0x1a0] sm:$0x3] %v1112
      %v1117 = vld [vmem:[%s840] sm:$0xf]
      %v1119 = vcombine.low %v1117, %v1117
      %v1121 = vunpack.c.l.s4 1983009808
      %v1122 = vunpack.c.0.s8 %v1121
      %v1123 = vlaneseq
      %v1124 = vshrl.u32 %v1123, 7
      %v1125 = vsub.s32 %v1122, %v1124
      %v1126 = vrot.slane %v1119, %v1125
      %1127 = vrot.lane.b32.xlu0 %v1126, 102
      %v1128 = vpop.permute.xlu0 %1127
      %v1129 = vrot.slane %v1128, 4
      %v1130 = vsel %vm525, %v1128, %v1129
      %1132 = vst [vmem:[#allocation2 + $0x88] sm:$0xc] %v1130
      %1133 = vst [vmem:[#allocation2 + $0x114] sm:$0xc] %v1130
      %1134 = vst [vmem:[#allocation2 + $0x1a0] sm:$0xc] %v1130
      %s1135 = sadd.s32 %s269, 3
      %s1136 = smul.u32 %s1135, 2
      %s1137 = smul.addr %s1136, 2
      %s1138 = scalar_lea.vmem %s252, %s1137
      %v1139 = vld [vmem:[%s1138] sm:$0x3]
      %1140 = vst [vmem:[#allocation2 + $0xc] sm:$0x3] %v1139
      %1141 = vst [vmem:[#allocation2 + $0x98] sm:$0x3] %v1139
      %1142 = vst [vmem:[#allocation2 + $0x124] sm:$0x3] %v1139
      %s1143 = smul.addr %s1136, 2
      %s1144 = scalar_lea.vmem %s257, %s1143
      %v1145 = vld [vmem:[%s1144] sm:$0x3]
      %v1147 = vcombine.low %v1145, %v1145
      %v1149 = vunpack.c.l.s4 1983009808
      %v1150 = vunpack.c.0.s8 %v1149
      %v1151 = vlaneseq
      %v1152 = vshrl.u32 %v1151, 7
      %v1153 = vsub.s32 %v1150, %v1152
      %v1154 = vrot.slane %v1147, %v1153
      %1156 = vst [vmem:[#allocation2 + $0xc] sm:$0xc] %v1154
      %1157 = vst [vmem:[#allocation2 + $0x98] sm:$0xc] %v1154
      %1158 = vst [vmem:[#allocation2 + $0x124] sm:$0xc] %v1154
      %v1159 = vld [vmem:[%s1138] sm:$0xf]
      %v1162 = vunpack.c.l.s4 1983009808
      %v1163 = vunpack.c.0.s8 %v1162
      %v1164 = vlaneseq
      %v1165 = vshrl.u32 %v1164, 7
      %v1166 = vsub.s32 %v1163, %v1165
      %v1167 = vrot.slane %v1159, %v1166
      %1168 = vrot.lane.b32.xlu0 %v1167, 127
      %v1169 = vpop.permute.xlu0 %1168
      %v1170 = vrot.slane %v1169, 4
      %v1171 = vsel %vm301, %v1169, %v1170
      %1173 = vst [vmem:[#allocation2 + $0x1c] sm:$0x3] %v1171
      %1174 = vst [vmem:[#allocation2 + $0xa8] sm:$0x3] %v1171
      %1175 = vst [vmem:[#allocation2 + $0x134] sm:$0x3] %v1171
      %v1176 = vld [vmem:[%s1144] sm:$0xf]
      %v1178 = vcombine.low %v1176, %v1176
      %v1180 = vunpack.c.l.s4 1983009808
      %v1181 = vunpack.c.0.s8 %v1180
      %v1182 = vlaneseq
      %v1183 = vshrl.u32 %v1182, 7
      %v1184 = vsub.s32 %v1181, %v1183
      %v1185 = vrot.slane %v1178, %v1184
      %1186 = vrot.lane.b32.xlu0 %v1185, 127
      %v1187 = vpop.permute.xlu0 %1186
      %v1188 = vrot.slane %v1187, 4
      %v1189 = vsel %vm301, %v1187, %v1188
      %1191 = vst [vmem:[#allocation2 + $0x1c] sm:$0xc] %v1189
      %1192 = vst [vmem:[#allocation2 + $0xa8] sm:$0xc] %v1189
      %1193 = vst [vmem:[#allocation2 + $0x134] sm:$0xc] %v1189
      %v1194 = vld [vmem:[%s1138] sm:$0xf]
      %v1197 = vunpack.c.l.s4 1983009808
      %v1198 = vunpack.c.0.s8 %v1197
      %v1199 = vlaneseq
      %v1200 = vshrl.u32 %v1199, 7
      %v1201 = vsub.s32 %v1198, %v1200
      %v1202 = vrot.slane %v1194, %v1201
      %1203 = vrot.lane.b32.xlu0 %v1202, 126
      %v1204 = vpop.permute.xlu0 %1203
      %v1205 = vrot.slane %v1204, 4
      %v1206 = vsel %vm333, %v1204, %v1205
      %1208 = vst [vmem:[#allocation2 + $0x2c] sm:$0x3] %v1206
      %1209 = vst [vmem:[#allocation2 + $0xb8] sm:$0x3] %v1206
      %1210 = vst [vmem:[#allocation2 + $0x144] sm:$0x3] %v1206
      %v1211 = vld [vmem:[%s1144] sm:$0xf]
      %v1213 = vcombine.low %v1211, %v1211
      %v1215 = vunpack.c.l.s4 1983009808
      %v1216 = vunpack.c.0.s8 %v1215
      %v1217 = vlaneseq
      %v1218 = vshrl.u32 %v1217, 7
      %v1219 = vsub.s32 %v1216, %v1218
      %v1220 = vrot.slane %v1213, %v1219
      %1221 = vrot.lane.b32.xlu0 %v1220, 126
      %v1222 = vpop.permute.xlu0 %1221
      %v1223 = vrot.slane %v1222, 4
      %v1224 = vsel %vm333, %v1222, %v1223
      %1226 = vst [vmem:[#allocation2 + $0x2c] sm:$0xc] %v1224
      %1227 = vst [vmem:[#allocation2 + $0xb8] sm:$0xc] %v1224
      %1228 = vst [vmem:[#allocation2 + $0x144] sm:$0xc] %v1224
      %v1229 = vld [vmem:[%s1138] sm:$0xf]
      %v1232 = vunpack.c.l.s4 1983009808
      %v1233 = vunpack.c.0.s8 %v1232
      %v1234 = vlaneseq
      %v1235 = vshrl.u32 %v1234, 7
      %v1236 = vsub.s32 %v1233, %v1235
      %v1237 = vrot.slane %v1229, %v1236
      %1238 = vrot.lane.b32.xlu0 %v1237, 116
      %v1239 = vpop.permute.xlu0 %1238
      %v1240 = vrot.slane %v1239, 4
      %v1241 = vsel %vm365, %v1239, %v1240
      %1243 = vst [vmem:[#allocation2 + $0x3c] sm:$0x3] %v1241
      %1244 = vst [vmem:[#allocation2 + $0xc8] sm:$0x3] %v1241
      %1245 = vst [vmem:[#allocation2 + $0x154] sm:$0x3] %v1241
      %v1246 = vld [vmem:[%s1144] sm:$0xf]
      %v1248 = vcombine.low %v1246, %v1246
      %v1250 = vunpack.c.l.s4 1983009808
      %v1251 = vunpack.c.0.s8 %v1250
      %v1252 = vlaneseq
      %v1253 = vshrl.u32 %v1252, 7
      %v1254 = vsub.s32 %v1251, %v1253
      %v1255 = vrot.slane %v1248, %v1254
      %1256 = vrot.lane.b32.xlu0 %v1255, 116
      %v1257 = vpop.permute.xlu0 %1256
      %v1258 = vrot.slane %v1257, 4
      %v1259 = vsel %vm365, %v1257, %v1258
      %1261 = vst [vmem:[#allocation2 + $0x3c] sm:$0xc] %v1259
      %1262 = vst [vmem:[#allocation2 + $0xc8] sm:$0xc] %v1259
      %1263 = vst [vmem:[#allocation2 + $0x154] sm:$0xc] %v1259
      %v1264 = vld [vmem:[%s1138] sm:$0xf]
      %v1267 = vunpack.c.l.s4 1983009808
      %v1268 = vunpack.c.0.s8 %v1267
      %v1269 = vlaneseq
      %v1270 = vshrl.u32 %v1269, 7
      %v1271 = vsub.s32 %v1268, %v1270
      %v1272 = vrot.slane %v1264, %v1271
      %1273 = vrot.lane.b32.xlu0 %v1272, 115
      %v1274 = vpop.permute.xlu0 %1273
      %v1275 = vrot.slane %v1274, 4
      %v1276 = vsel %vm397, %v1274, %v1275
      %1278 = vst [vmem:[#allocation2 + $0x4c] sm:$0x3] %v1276
      %1279 = vst [vmem:[#allocation2 + $0xd8] sm:$0x3] %v1276
      %1280 = vst [vmem:[#allocation2 + $0x164] sm:$0x3] %v1276
      %v1281 = vld [vmem:[%s1144] sm:$0xf]
      %v1283 = vcombine.low %v1281, %v1281
      %v1285 = vunpack.c.l.s4 1983009808
      %v1286 = vunpack.c.0.s8 %v1285
      %v1287 = vlaneseq
      %v1288 = vshrl.u32 %v1287, 7
      %v1289 = vsub.s32 %v1286, %v1288
      %v1290 = vrot.slane %v1283, %v1289
      %1291 = vrot.lane.b32.xlu0 %v1290, 115
      %v1292 = vpop.permute.xlu0 %1291
      %v1293 = vrot.slane %v1292, 4
      %v1294 = vsel %vm397, %v1292, %v1293
      %1296 = vst [vmem:[#allocation2 + $0x4c] sm:$0xc] %v1294
      %1297 = vst [vmem:[#allocation2 + $0xd8] sm:$0xc] %v1294
      %1298 = vst [vmem:[#allocation2 + $0x164] sm:$0xc] %v1294
      %v1299 = vld [vmem:[%s1138] sm:$0xf]
      %v1302 = vunpack.c.l.s4 1983009808
      %v1303 = vunpack.c.0.s8 %v1302
      %v1304 = vlaneseq
      %v1305 = vshrl.u32 %v1304, 7
      %v1306 = vsub.s32 %v1303, %v1305
      %v1307 = vrot.slane %v1299, %v1306
      %1308 = vrot.lane.b32.xlu0 %v1307, 114
      %v1309 = vpop.permute.xlu0 %1308
      %v1310 = vrot.slane %v1309, 4
      %v1311 = vsel %vm429, %v1309, %v1310
      %1313 = vst [vmem:[#allocation2 + $0x5c] sm:$0x3] %v1311
      %1314 = vst [vmem:[#allocation2 + $0xe8] sm:$0x3] %v1311
      %1315 = vst [vmem:[#allocation2 + $0x174] sm:$0x3] %v1311
      %v1316 = vld [vmem:[%s1144] sm:$0xf]
      %v1318 = vcombine.low %v1316, %v1316
      %v1320 = vunpack.c.l.s4 1983009808
      %v1321 = vunpack.c.0.s8 %v1320
      %v1322 = vlaneseq
      %v1323 = vshrl.u32 %v1322, 7
      %v1324 = vsub.s32 %v1321, %v1323
      %v1325 = vrot.slane %v1318, %v1324
      %1326 = vrot.lane.b32.xlu0 %v1325, 114
      %v1327 = vpop.permute.xlu0 %1326
      %v1328 = vrot.slane %v1327, 4
      %v1329 = vsel %vm429, %v1327, %v1328
      %1331 = vst [vmem:[#allocation2 + $0x5c] sm:$0xc] %v1329
      %1332 = vst [vmem:[#allocation2 + $0xe8] sm:$0xc] %v1329
      %1333 = vst [vmem:[#allocation2 + $0x174] sm:$0xc] %v1329
      %v1334 = vld [vmem:[%s1138] sm:$0xf]
      %v1337 = vunpack.c.l.s4 1983009808
      %v1338 = vunpack.c.0.s8 %v1337
      %v1339 = vlaneseq
      %v1340 = vshrl.u32 %v1339, 7
      %v1341 = vsub.s32 %v1338, %v1340
      %v1342 = vrot.slane %v1334, %v1341
      %1343 = vrot.lane.b32.xlu0 %v1342, 104
      %v1344 = vpop.permute.xlu0 %1343
      %v1345 = vrot.slane %v1344, 4
      %v1346 = vsel %vm461, %v1344, %v1345
      %1348 = vst [vmem:[#allocation2 + $0x6c] sm:$0x3] %v1346
      %1349 = vst [vmem:[#allocation2 + $0xf8] sm:$0x3] %v1346
      %1350 = vst [vmem:[#allocation2 + $0x184] sm:$0x3] %v1346
      %v1351 = vld [vmem:[%s1144] sm:$0xf]
      %v1353 = vcombine.low %v1351, %v1351
      %v1355 = vunpack.c.l.s4 1983009808
      %v1356 = vunpack.c.0.s8 %v1355
      %v1357 = vlaneseq
      %v1358 = vshrl.u32 %v1357, 7
      %v1359 = vsub.s32 %v1356, %v1358
      %v1360 = vrot.slane %v1353, %v1359
      %1361 = vrot.lane.b32.xlu0 %v1360, 104
      %v1362 = vpop.permute.xlu0 %1361
      %v1363 = vrot.slane %v1362, 4
      %v1364 = vsel %vm461, %v1362, %v1363
      %1366 = vst [vmem:[#allocation2 + $0x6c] sm:$0xc] %v1364
      %1367 = vst [vmem:[#allocation2 + $0xf8] sm:$0xc] %v1364
      %1368 = vst [vmem:[#allocation2 + $0x184] sm:$0xc] %v1364
      %v1369 = vld [vmem:[%s1138] sm:$0xf]
      %v1372 = vunpack.c.l.s4 1983009808
      %v1373 = vunpack.c.0.s8 %v1372
      %v1374 = vlaneseq
      %v1375 = vshrl.u32 %v1374, 7
      %v1376 = vsub.s32 %v1373, %v1375
      %v1377 = vrot.slane %v1369, %v1376
      %1378 = vrot.lane.b32.xlu0 %v1377, 103
      %v1379 = vpop.permute.xlu0 %1378
      %v1380 = vrot.slane %v1379, 4
      %v1381 = vsel %vm493, %v1379, %v1380
      %1383 = vst [vmem:[#allocation2 + $0x7c] sm:$0x3] %v1381
      %1384 = vst [vmem:[#allocation2 + $0x108] sm:$0x3] %v1381
      %1385 = vst [vmem:[#allocation2 + $0x194] sm:$0x3] %v1381
      %v1386 = vld [vmem:[%s1144] sm:$0xf]
      %v1388 = vcombine.low %v1386, %v1386
      %v1390 = vunpack.c.l.s4 1983009808
      %v1391 = vunpack.c.0.s8 %v1390
      %v1392 = vlaneseq
      %v1393 = vshrl.u32 %v1392, 7
      %v1394 = vsub.s32 %v1391, %v1393
      %v1395 = vrot.slane %v1388, %v1394
      %1396 = vrot.lane.b32.xlu0 %v1395, 103
      %v1397 = vpop.permute.xlu0 %1396
      %v1398 = vrot.slane %v1397, 4
      %v1399 = vsel %vm493, %v1397, %v1398
      %1401 = vst [vmem:[#allocation2 + $0x7c] sm:$0xc] %v1399
      %1402 = vst [vmem:[#allocation2 + $0x108] sm:$0xc] %v1399
      %1403 = vst [vmem:[#allocation2 + $0x194] sm:$0xc] %v1399
      %v1404 = vld [vmem:[%s1138] sm:$0xf]
      %v1407 = vunpack.c.l.s4 1983009808
      %v1408 = vunpack.c.0.s8 %v1407
      %v1409 = vlaneseq
      %v1410 = vshrl.u32 %v1409, 7
      %v1411 = vsub.s32 %v1408, %v1410
      %v1412 = vrot.slane %v1404, %v1411
      %1413 = vrot.lane.b32.xlu0 %v1412, 102
      %v1414 = vpop.permute.xlu0 %1413
      %v1415 = vrot.slane %v1414, 4
      %v1416 = vsel %vm525, %v1414, %v1415
      %1418 = vst [vmem:[#allocation2 + $0x8c] sm:$0x3] %v1416
      %1419 = vst [vmem:[#allocation2 + $0x118] sm:$0x3] %v1416
      %1420 = vst [vmem:[#allocation2 + $0x1a4] sm:$0x3] %v1416
      %v1421 = vld [vmem:[%s1144] sm:$0xf]
      %v1423 = vcombine.low %v1421, %v1421
      %v1425 = vunpack.c.l.s4 1983009808
      %v1426 = vunpack.c.0.s8 %v1425
      %v1427 = vlaneseq
      %v1428 = vshrl.u32 %v1427, 7
      %v1429 = vsub.s32 %v1426, %v1428
      %v1430 = vrot.slane %v1423, %v1429
      %1431 = vrot.lane.b32.xlu0 %v1430, 102
      %v1432 = vpop.permute.xlu0 %1431
      %v1433 = vrot.slane %v1432, 4
      %v1434 = vsel %vm525, %v1432, %v1433
      %1436 = vst [vmem:[#allocation2 + $0x8c] sm:$0xc] %v1434
      %1437 = vst [vmem:[#allocation2 + $0x118] sm:$0xc] %v1434
      %1438 = vst [vmem:[#allocation2 + $0x1a4] sm:$0xc] %v1434
      %s1439 = sadd.s32 %s269, 4
      %s1440 = smul.u32 %s1439, 2
      %s1441 = smul.addr %s1440, 2
      %s1442 = scalar_lea.vmem %s252, %s1441
      %v1443 = vld [vmem:[%s1442] sm:$0x3]
      %1444 = vst [vmem:[#allocation2 + $0x9c] sm:$0x3] %v1443
      %1445 = vst [vmem:[#allocation2 + $0x128] sm:$0x3] %v1443
      %s1446 = smul.addr %s1440, 2
      %s1447 = scalar_lea.vmem %s257, %s1446
      %v1448 = vld [vmem:[%s1447] sm:$0x3]
      %v1450 = vcombine.low %v1448, %v1448
      %v1452 = vunpack.c.l.s4 1983009808
      %v1453 = vunpack.c.0.s8 %v1452
      %v1454 = vlaneseq
      %v1455 = vshrl.u32 %v1454, 7
      %v1456 = vsub.s32 %v1453, %v1455
      %v1457 = vrot.slane %v1450, %v1456
      %1459 = vst [vmem:[#allocation2 + $0x9c] sm:$0xc] %v1457
      %1460 = vst [vmem:[#allocation2 + $0x128] sm:$0xc] %v1457
      %v1461 = vld [vmem:[%s1442] sm:$0xf]
      %v1464 = vunpack.c.l.s4 1983009808
      %v1465 = vunpack.c.0.s8 %v1464
      %v1466 = vlaneseq
      %v1467 = vshrl.u32 %v1466, 7
      %v1468 = vsub.s32 %v1465, %v1467
      %v1469 = vrot.slane %v1461, %v1468
      %1470 = vrot.lane.b32.xlu0 %v1469, 127
      %v1471 = vpop.permute.xlu0 %1470
      %v1472 = vrot.slane %v1471, 4
      %v1473 = vsel %vm301, %v1471, %v1472
      %1475 = vst [vmem:[#allocation2 + $0xac] sm:$0x3] %v1473
      %1476 = vst [vmem:[#allocation2 + $0x138] sm:$0x3] %v1473
      %v1477 = vld [vmem:[%s1447] sm:$0xf]
      %v1479 = vcombine.low %v1477, %v1477
      %v1481 = vunpack.c.l.s4 1983009808
      %v1482 = vunpack.c.0.s8 %v1481
      %v1483 = vlaneseq
      %v1484 = vshrl.u32 %v1483, 7
      %v1485 = vsub.s32 %v1482, %v1484
      %v1486 = vrot.slane %v1479, %v1485
      %1487 = vrot.lane.b32.xlu0 %v1486, 127
      %v1488 = vpop.permute.xlu0 %1487
      %v1489 = vrot.slane %v1488, 4
      %v1490 = vsel %vm301, %v1488, %v1489
      %1492 = vst [vmem:[#allocation2 + $0xac] sm:$0xc] %v1490
      %1493 = vst [vmem:[#allocation2 + $0x138] sm:$0xc] %v1490
      %v1494 = vld [vmem:[%s1442] sm:$0xf]
      %v1497 = vunpack.c.l.s4 1983009808
      %v1498 = vunpack.c.0.s8 %v1497
      %v1499 = vlaneseq
      %v1500 = vshrl.u32 %v1499, 7
      %v1501 = vsub.s32 %v1498, %v1500
      %v1502 = vrot.slane %v1494, %v1501
      %1503 = vrot.lane.b32.xlu0 %v1502, 126
      %v1504 = vpop.permute.xlu0 %1503
      %v1505 = vrot.slane %v1504, 4
      %v1506 = vsel %vm333, %v1504, %v1505
      %1508 = vst [vmem:[#allocation2 + $0xbc] sm:$0x3] %v1506
      %1509 = vst [vmem:[#allocation2 + $0x148] sm:$0x3] %v1506
      %v1510 = vld [vmem:[%s1447] sm:$0xf]
      %v1512 = vcombine.low %v1510, %v1510
      %v1514 = vunpack.c.l.s4 1983009808
      %v1515 = vunpack.c.0.s8 %v1514
      %v1516 = vlaneseq
      %v1517 = vshrl.u32 %v1516, 7
      %v1518 = vsub.s32 %v1515, %v1517
      %v1519 = vrot.slane %v1512, %v1518
      %1520 = vrot.lane.b32.xlu0 %v1519, 126
      %v1521 = vpop.permute.xlu0 %1520
      %v1522 = vrot.slane %v1521, 4
      %v1523 = vsel %vm333, %v1521, %v1522
      %1525 = vst [vmem:[#allocation2 + $0xbc] sm:$0xc] %v1523
      %1526 = vst [vmem:[#allocation2 + $0x148] sm:$0xc] %v1523
      %v1527 = vld [vmem:[%s1442] sm:$0xf]
      %v1530 = vunpack.c.l.s4 1983009808
      %v1531 = vunpack.c.0.s8 %v1530
      %v1532 = vlaneseq
      %v1533 = vshrl.u32 %v1532, 7
      %v1534 = vsub.s32 %v1531, %v1533
      %v1535 = vrot.slane %v1527, %v1534
      %1536 = vrot.lane.b32.xlu0 %v1535, 116
      %v1537 = vpop.permute.xlu0 %1536
      %v1538 = vrot.slane %v1537, 4
      %v1539 = vsel %vm365, %v1537, %v1538
      %1541 = vst [vmem:[#allocation2 + $0xcc] sm:$0x3] %v1539
      %1542 = vst [vmem:[#allocation2 + $0x158] sm:$0x3] %v1539
      %v1543 = vld [vmem:[%s1447] sm:$0xf]
      %v1545 = vcombine.low %v1543, %v1543
      %v1547 = vunpack.c.l.s4 1983009808
      %v1548 = vunpack.c.0.s8 %v1547
      %v1549 = vlaneseq
      %v1550 = vshrl.u32 %v1549, 7
      %v1551 = vsub.s32 %v1548, %v1550
      %v1552 = vrot.slane %v1545, %v1551
      %1553 = vrot.lane.b32.xlu0 %v1552, 116
      %v1554 = vpop.permute.xlu0 %1553
      %v1555 = vrot.slane %v1554, 4
      %v1556 = vsel %vm365, %v1554, %v1555
      %1558 = vst [vmem:[#allocation2 + $0xcc] sm:$0xc] %v1556
      %1559 = vst [vmem:[#allocation2 + $0x158] sm:$0xc] %v1556
      %v1560 = vld [vmem:[%s1442] sm:$0xf]
      %v1563 = vunpack.c.l.s4 1983009808
      %v1564 = vunpack.c.0.s8 %v1563
      %v1565 = vlaneseq
      %v1566 = vshrl.u32 %v1565, 7
      %v1567 = vsub.s32 %v1564, %v1566
      %v1568 = vrot.slane %v1560, %v1567
      %1569 = vrot.lane.b32.xlu0 %v1568, 115
      %v1570 = vpop.permute.xlu0 %1569
      %v1571 = vrot.slane %v1570, 4
      %v1572 = vsel %vm397, %v1570, %v1571
      %1574 = vst [vmem:[#allocation2 + $0xdc] sm:$0x3] %v1572
      %1575 = vst [vmem:[#allocation2 + $0x168] sm:$0x3] %v1572
      %v1576 = vld [vmem:[%s1447] sm:$0xf]
      %v1578 = vcombine.low %v1576, %v1576
      %v1580 = vunpack.c.l.s4 1983009808
      %v1581 = vunpack.c.0.s8 %v1580
      %v1582 = vlaneseq
      %v1583 = vshrl.u32 %v1582, 7
      %v1584 = vsub.s32 %v1581, %v1583
      %v1585 = vrot.slane %v1578, %v1584
      %1586 = vrot.lane.b32.xlu0 %v1585, 115
      %v1587 = vpop.permute.xlu0 %1586
      %v1588 = vrot.slane %v1587, 4
      %v1589 = vsel %vm397, %v1587, %v1588
      %1591 = vst [vmem:[#allocation2 + $0xdc] sm:$0xc] %v1589
      %1592 = vst [vmem:[#allocation2 + $0x168] sm:$0xc] %v1589
      %v1593 = vld [vmem:[%s1442] sm:$0xf]
      %v1596 = vunpack.c.l.s4 1983009808
      %v1597 = vunpack.c.0.s8 %v1596
      %v1598 = vlaneseq
      %v1599 = vshrl.u32 %v1598, 7
      %v1600 = vsub.s32 %v1597, %v1599
      %v1601 = vrot.slane %v1593, %v1600
      %1602 = vrot.lane.b32.xlu0 %v1601, 114
      %v1603 = vpop.permute.xlu0 %1602
      %v1604 = vrot.slane %v1603, 4
      %v1605 = vsel %vm429, %v1603, %v1604
      %1607 = vst [vmem:[#allocation2 + $0xec] sm:$0x3] %v1605
      %1608 = vst [vmem:[#allocation2 + $0x178] sm:$0x3] %v1605
      %v1609 = vld [vmem:[%s1447] sm:$0xf]
      %v1611 = vcombine.low %v1609, %v1609
      %v1613 = vunpack.c.l.s4 1983009808
      %v1614 = vunpack.c.0.s8 %v1613
      %v1615 = vlaneseq
      %v1616 = vshrl.u32 %v1615, 7
      %v1617 = vsub.s32 %v1614, %v1616
      %v1618 = vrot.slane %v1611, %v1617
      %1619 = vrot.lane.b32.xlu0 %v1618, 114
      %v1620 = vpop.permute.xlu0 %1619
      %v1621 = vrot.slane %v1620, 4
      %v1622 = vsel %vm429, %v1620, %v1621
      %1624 = vst [vmem:[#allocation2 + $0xec] sm:$0xc] %v1622
      %1625 = vst [vmem:[#allocation2 + $0x178] sm:$0xc] %v1622
      %v1626 = vld [vmem:[%s1442] sm:$0xf]
      %v1629 = vunpack.c.l.s4 1983009808
      %v1630 = vunpack.c.0.s8 %v1629
      %v1631 = vlaneseq
      %v1632 = vshrl.u32 %v1631, 7
      %v1633 = vsub.s32 %v1630, %v1632
      %v1634 = vrot.slane %v1626, %v1633
      %1635 = vrot.lane.b32.xlu0 %v1634, 104
      %v1636 = vpop.permute.xlu0 %1635
      %v1637 = vrot.slane %v1636, 4
      %v1638 = vsel %vm461, %v1636, %v1637
      %1640 = vst [vmem:[#allocation2 + $0xfc] sm:$0x3] %v1638
      %1641 = vst [vmem:[#allocation2 + $0x188] sm:$0x3] %v1638
      %v1642 = vld [vmem:[%s1447] sm:$0xf]
      %v1644 = vcombine.low %v1642, %v1642
      %v1646 = vunpack.c.l.s4 1983009808
      %v1647 = vunpack.c.0.s8 %v1646
      %v1648 = vlaneseq
      %v1649 = vshrl.u32 %v1648, 7
      %v1650 = vsub.s32 %v1647, %v1649
      %v1651 = vrot.slane %v1644, %v1650
      %1652 = vrot.lane.b32.xlu0 %v1651, 104
      %v1653 = vpop.permute.xlu0 %1652
      %v1654 = vrot.slane %v1653, 4
      %v1655 = vsel %vm461, %v1653, %v1654
      %1657 = vst [vmem:[#allocation2 + $0xfc] sm:$0xc] %v1655
      %1658 = vst [vmem:[#allocation2 + $0x188] sm:$0xc] %v1655
      %v1659 = vld [vmem:[%s1442] sm:$0xf]
      %v1662 = vunpack.c.l.s4 1983009808
      %v1663 = vunpack.c.0.s8 %v1662
      %v1664 = vlaneseq
      %v1665 = vshrl.u32 %v1664, 7
      %v1666 = vsub.s32 %v1663, %v1665
      %v1667 = vrot.slane %v1659, %v1666
      %1668 = vrot.lane.b32.xlu0 %v1667, 103
      %v1669 = vpop.permute.xlu0 %1668
      %v1670 = vrot.slane %v1669, 4
      %v1671 = vsel %vm493, %v1669, %v1670
      %1673 = vst [vmem:[#allocation2 + $0x10c] sm:$0x3] %v1671
      %1674 = vst [vmem:[#allocation2 + $0x198] sm:$0x3] %v1671
      %v1675 = vld [vmem:[%s1447] sm:$0xf]
      %v1677 = vcombine.low %v1675, %v1675
      %v1679 = vunpack.c.l.s4 1983009808
      %v1680 = vunpack.c.0.s8 %v1679
      %v1681 = vlaneseq
      %v1682 = vshrl.u32 %v1681, 7
      %v1683 = vsub.s32 %v1680, %v1682
      %v1684 = vrot.slane %v1677, %v1683
      %1685 = vrot.lane.b32.xlu0 %v1684, 103
      %v1686 = vpop.permute.xlu0 %1685
      %v1687 = vrot.slane %v1686, 4
      %v1688 = vsel %vm493, %v1686, %v1687
      %1690 = vst [vmem:[#allocation2 + $0x10c] sm:$0xc] %v1688
      %1691 = vst [vmem:[#allocation2 + $0x198] sm:$0xc] %v1688
      %v1692 = vld [vmem:[%s1442] sm:$0xf]
      %v1695 = vunpack.c.l.s4 1983009808
      %v1696 = vunpack.c.0.s8 %v1695
      %v1697 = vlaneseq
      %v1698 = vshrl.u32 %v1697, 7
      %v1699 = vsub.s32 %v1696, %v1698
      %v1700 = vrot.slane %v1692, %v1699
      %1701 = vrot.lane.b32.xlu0 %v1700, 102
      %v1702 = vpop.permute.xlu0 %1701
      %v1703 = vrot.slane %v1702, 4
      %v1704 = vsel %vm525, %v1702, %v1703
      %1706 = vst [vmem:[#allocation2 + $0x11c] sm:$0x3] %v1704
      %1707 = vst [vmem:[#allocation2 + $0x1a8] sm:$0x3] %v1704
      %v1708 = vld [vmem:[%s1447] sm:$0xf]
      %v1710 = vcombine.low %v1708, %v1708
      %v1712 = vunpack.c.l.s4 1983009808
      %v1713 = vunpack.c.0.s8 %v1712
      %v1714 = vlaneseq
      %v1715 = vshrl.u32 %v1714, 7
      %v1716 = vsub.s32 %v1713, %v1715
      %v1717 = vrot.slane %v1710, %v1716
      %1718 = vrot.lane.b32.xlu0 %v1717, 102
      %v1719 = vpop.permute.xlu0 %1718
      %v1720 = vrot.slane %v1719, 4
      %v1721 = vsel %vm525, %v1719, %v1720
      %1723 = vst [vmem:[#allocation2 + $0x11c] sm:$0xc] %v1721
      %1724 = vst [vmem:[#allocation2 + $0x1a8] sm:$0xc] %v1721
      %s1725 = sadd.s32 %s269, 5
      %s1726 = smul.u32 %s1725, 2
      %s1727 = smul.addr %s1726, 2
      %s1728 = scalar_lea.vmem %s252, %s1727
      %v1729 = vld [vmem:[%s1728] sm:$0x3]
      %1730 = vst [vmem:[#allocation2 + $0x12c] sm:$0x3] %v1729
      %s1731 = smul.addr %s1726, 2
      %s1732 = scalar_lea.vmem %s257, %s1731
      %v1733 = vld [vmem:[%s1732] sm:$0x3]
      %v1735 = vcombine.low %v1733, %v1733
      %v1737 = vunpack.c.l.s4 1983009808
      %v1738 = vunpack.c.0.s8 %v1737
      %v1739 = vlaneseq
      %v1740 = vshrl.u32 %v1739, 7
      %v1741 = vsub.s32 %v1738, %v1740
      %v1742 = vrot.slane %v1735, %v1741
      %1744 = vst [vmem:[#allocation2 + $0x12c] sm:$0xc] %v1742
      %v1745 = vld [vmem:[%s1728] sm:$0xf]
      %v1748 = vunpack.c.l.s4 1983009808
      %v1749 = vunpack.c.0.s8 %v1748
      %v1750 = vlaneseq
      %v1751 = vshrl.u32 %v1750, 7
      %v1752 = vsub.s32 %v1749, %v1751
      %v1753 = vrot.slane %v1745, %v1752
      %1754 = vrot.lane.b32.xlu0 %v1753, 127
      %v1755 = vpop.permute.xlu0 %1754
      %v1756 = vrot.slane %v1755, 4
      %v1757 = vsel %vm301, %v1755, %v1756
      %1759 = vst [vmem:[#allocation2 + $0x13c] sm:$0x3] %v1757
      %v1760 = vld [vmem:[%s1732] sm:$0xf]
      %v1762 = vcombine.low %v1760, %v1760
      %v1764 = vunpack.c.l.s4 1983009808
      %v1765 = vunpack.c.0.s8 %v1764
      %v1766 = vlaneseq
      %v1767 = vshrl.u32 %v1766, 7
      %v1768 = vsub.s32 %v1765, %v1767
      %v1769 = vrot.slane %v1762, %v1768
      %1770 = vrot.lane.b32.xlu0 %v1769, 127
      %v1771 = vpop.permute.xlu0 %1770
      %v1772 = vrot.slane %v1771, 4
      %v1773 = vsel %vm301, %v1771, %v1772
      %1775 = vst [vmem:[#allocation2 + $0x13c] sm:$0xc] %v1773
      %v1776 = vld [vmem:[%s1728] sm:$0xf]
      %v1779 = vunpack.c.l.s4 1983009808
      %v1780 = vunpack.c.0.s8 %v1779
      %v1781 = vlaneseq
      %v1782 = vshrl.u32 %v1781, 7
      %v1783 = vsub.s32 %v1780, %v1782
      %v1784 = vrot.slane %v1776, %v1783
      %1785 = vrot.lane.b32.xlu0 %v1784, 126
      %v1786 = vpop.permute.xlu0 %1785
      %v1787 = vrot.slane %v1786, 4
      %v1788 = vsel %vm333, %v1786, %v1787
      %1790 = vst [vmem:[#allocation2 + $0x14c] sm:$0x3] %v1788
      %v1791 = vld [vmem:[%s1732] sm:$0xf]
      %v1793 = vcombine.low %v1791, %v1791
      %v1795 = vunpack.c.l.s4 1983009808
      %v1796 = vunpack.c.0.s8 %v1795
      %v1797 = vlaneseq
      %v1798 = vshrl.u32 %v1797, 7
      %v1799 = vsub.s32 %v1796, %v1798
      %v1800 = vrot.slane %v1793, %v1799
      %1801 = vrot.lane.b32.xlu0 %v1800, 126
      %v1802 = vpop.permute.xlu0 %1801
      %v1803 = vrot.slane %v1802, 4
      %v1804 = vsel %vm333, %v1802, %v1803
      %1806 = vst [vmem:[#allocation2 + $0x14c] sm:$0xc] %v1804
      %v1807 = vld [vmem:[%s1728] sm:$0xf]
      %v1810 = vunpack.c.l.s4 1983009808
      %v1811 = vunpack.c.0.s8 %v1810
      %v1812 = vlaneseq
      %v1813 = vshrl.u32 %v1812, 7
      %v1814 = vsub.s32 %v1811, %v1813
      %v1815 = vrot.slane %v1807, %v1814
      %1816 = vrot.lane.b32.xlu0 %v1815, 116
      %v1817 = vpop.permute.xlu0 %1816
      %v1818 = vrot.slane %v1817, 4
      %v1819 = vsel %vm365, %v1817, %v1818
      %1821 = vst [vmem:[#allocation2 + $0x15c] sm:$0x3] %v1819
      %v1822 = vld [vmem:[%s1732] sm:$0xf]
      %v1824 = vcombine.low %v1822, %v1822
      %v1826 = vunpack.c.l.s4 1983009808
      %v1827 = vunpack.c.0.s8 %v1826
      %v1828 = vlaneseq
      %v1829 = vshrl.u32 %v1828, 7
      %v1830 = vsub.s32 %v1827, %v1829
      %v1831 = vrot.slane %v1824, %v1830
      %1832 = vrot.lane.b32.xlu0 %v1831, 116
      %v1833 = vpop.permute.xlu0 %1832
      %v1834 = vrot.slane %v1833, 4
      %v1835 = vsel %vm365, %v1833, %v1834
      %1837 = vst [vmem:[#allocation2 + $0x15c] sm:$0xc] %v1835
      %v1838 = vld [vmem:[%s1728] sm:$0xf]
      %v1841 = vunpack.c.l.s4 1983009808
      %v1842 = vunpack.c.0.s8 %v1841
      %v1843 = vlaneseq
      %v1844 = vshrl.u32 %v1843, 7
      %v1845 = vsub.s32 %v1842, %v1844
      %v1846 = vrot.slane %v1838, %v1845
      %1847 = vrot.lane.b32.xlu0 %v1846, 115
      %v1848 = vpop.permute.xlu0 %1847
      %v1849 = vrot.slane %v1848, 4
      %v1850 = vsel %vm397, %v1848, %v1849
      %1852 = vst [vmem:[#allocation2 + $0x16c] sm:$0x3] %v1850
      %v1853 = vld [vmem:[%s1732] sm:$0xf]
      %v1855 = vcombine.low %v1853, %v1853
      %v1857 = vunpack.c.l.s4 1983009808
      %v1858 = vunpack.c.0.s8 %v1857
      %v1859 = vlaneseq
      %v1860 = vshrl.u32 %v1859, 7
      %v1861 = vsub.s32 %v1858, %v1860
      %v1862 = vrot.slane %v1855, %v1861
      %1863 = vrot.lane.b32.xlu0 %v1862, 115
      %v1864 = vpop.permute.xlu0 %1863
      %v1865 = vrot.slane %v1864, 4
      %v1866 = vsel %vm397, %v1864, %v1865
      %1868 = vst [vmem:[#allocation2 + $0x16c] sm:$0xc] %v1866
      %v1869 = vld [vmem:[%s1728] sm:$0xf]
      %v1872 = vunpack.c.l.s4 1983009808
      %v1873 = vunpack.c.0.s8 %v1872
      %v1874 = vlaneseq
      %v1875 = vshrl.u32 %v1874, 7
      %v1876 = vsub.s32 %v1873, %v1875
      %v1877 = vrot.slane %v1869, %v1876
      %1878 = vrot.lane.b32.xlu0 %v1877, 114
      %v1879 = vpop.permute.xlu0 %1878
      %v1880 = vrot.slane %v1879, 4
      %v1881 = vsel %vm429, %v1879, %v1880
      %1883 = vst [vmem:[#allocation2 + $0x17c] sm:$0x3] %v1881
      %v1884 = vld [vmem:[%s1732] sm:$0xf]
      %v1886 = vcombine.low %v1884, %v1884
      %v1888 = vunpack.c.l.s4 1983009808
      %v1889 = vunpack.c.0.s8 %v1888
      %v1890 = vlaneseq
      %v1891 = vshrl.u32 %v1890, 7
      %v1892 = vsub.s32 %v1889, %v1891
      %v1893 = vrot.slane %v1886, %v1892
      %1894 = vrot.lane.b32.xlu0 %v1893, 114
      %v1895 = vpop.permute.xlu0 %1894
      %v1896 = vrot.slane %v1895, 4
      %v1897 = vsel %vm429, %v1895, %v1896
      %1899 = vst [vmem:[#allocation2 + $0x17c] sm:$0xc] %v1897
      %v1900 = vld [vmem:[%s1728] sm:$0xf]
      %v1903 = vunpack.c.l.s4 1983009808
      %v1904 = vunpack.c.0.s8 %v1903
      %v1905 = vlaneseq
      %v1906 = vshrl.u32 %v1905, 7
      %v1907 = vsub.s32 %v1904, %v1906
      %v1908 = vrot.slane %v1900, %v1907
      %1909 = vrot.lane.b32.xlu0 %v1908, 104
      %v1910 = vpop.permute.xlu0 %1909
      %v1911 = vrot.slane %v1910, 4
      %v1912 = vsel %vm461, %v1910, %v1911
      %1914 = vst [vmem:[#allocation2 + $0x18c] sm:$0x3] %v1912
      %v1915 = vld [vmem:[%s1732] sm:$0xf]
      %v1917 = vcombine.low %v1915, %v1915
      %v1919 = vunpack.c.l.s4 1983009808
      %v1920 = vunpack.c.0.s8 %v1919
      %v1921 = vlaneseq
      %v1922 = vshrl.u32 %v1921, 7
      %v1923 = vsub.s32 %v1920, %v1922
      %v1924 = vrot.slane %v1917, %v1923
      %1925 = vrot.lane.b32.xlu0 %v1924, 104
      %v1926 = vpop.permute.xlu0 %1925
      %v1927 = vrot.slane %v1926, 4
      %v1928 = vsel %vm461, %v1926, %v1927
      %1930 = vst [vmem:[#allocation2 + $0x18c] sm:$0xc] %v1928
      %v1931 = vld [vmem:[%s1728] sm:$0xf]
      %v1934 = vunpack.c.l.s4 1983009808
      %v1935 = vunpack.c.0.s8 %v1934
      %v1936 = vlaneseq
      %v1937 = vshrl.u32 %v1936, 7
      %v1938 = vsub.s32 %v1935, %v1937
      %v1939 = vrot.slane %v1931, %v1938
      %1940 = vrot.lane.b32.xlu0 %v1939, 103
      %v1941 = vpop.permute.xlu0 %1940
      %v1942 = vrot.slane %v1941, 4
      %v1943 = vsel %vm493, %v1941, %v1942
      %1945 = vst [vmem:[#allocation2 + $0x19c] sm:$0x3] %v1943
      %v1946 = vld [vmem:[%s1732] sm:$0xf]
      %v1948 = vcombine.low %v1946, %v1946
      %v1950 = vunpack.c.l.s4 1983009808
      %v1951 = vunpack.c.0.s8 %v1950
      %v1952 = vlaneseq
      %v1953 = vshrl.u32 %v1952, 7
      %v1954 = vsub.s32 %v1951, %v1953
      %v1955 = vrot.slane %v1948, %v1954
      %1956 = vrot.lane.b32.xlu0 %v1955, 103
      %v1957 = vpop.permute.xlu0 %1956
      %v1958 = vrot.slane %v1957, 4
      %v1959 = vsel %vm493, %v1957, %v1958
      %1961 = vst [vmem:[#allocation2 + $0x19c] sm:$0xc] %v1959
      %v1962 = vld [vmem:[%s1728] sm:$0xf]
      %v1965 = vunpack.c.l.s4 1983009808
      %v1966 = vunpack.c.0.s8 %v1965
      %v1967 = vlaneseq
      %v1968 = vshrl.u32 %v1967, 7
      %v1969 = vsub.s32 %v1966, %v1968
      %v1970 = vrot.slane %v1962, %v1969
      %1971 = vrot.lane.b32.xlu0 %v1970, 102
      %v1972 = vpop.permute.xlu0 %1971
      %v1973 = vrot.slane %v1972, 4
      %v1974 = vsel %vm525, %v1972, %v1973
      %1976 = vst [vmem:[#allocation2 + $0x1ac] sm:$0x3] %v1974
      %v1977 = vld [vmem:[%s1732] sm:$0xf]
      %v1979 = vcombine.low %v1977, %v1977
      %v1981 = vunpack.c.l.s4 1983009808
      %v1982 = vunpack.c.0.s8 %v1981
      %v1983 = vlaneseq
      %v1984 = vshrl.u32 %v1983, 7
      %v1985 = vsub.s32 %v1982, %v1984
      %v1986 = vrot.slane %v1979, %v1985
      %1987 = vrot.lane.b32.xlu0 %v1986, 102
      %v1988 = vpop.permute.xlu0 %1987
      %v1989 = vrot.slane %v1988, 4
      %v1990 = vsel %vm525, %v1988, %v1989
      %1992 = vst [vmem:[#allocation2 + $0x1ac] sm:$0xc] %v1990
      %v1993 = vld [vmem:[%s2] sm:$0xff]
      %v1994 = vld [vmem:[#allocation2] sm:$0xff]
      %v1995 = vld [vmem:[#allocation2 + $0x8] sm:$0xff]
      %v1996 = vld [vmem:[#allocation2 + $0x10] sm:$0xff]
      %v1997 = vld [vmem:[#allocation2 + $0x18] sm:$0xff]
      %v1998 = vld [vmem:[#allocation2 + $0x20] sm:$0xff]
      %v1999 = vld [vmem:[#allocation2 + $0x28] sm:$0xff]
      %v2000 = vld [vmem:[#allocation2 + $0x30] sm:$0xff]
      %v2001 = vld [vmem:[#allocation2 + $0x38] sm:$0xff]
      %v2002 = vld [vmem:[#allocation2 + $0x40] sm:$0xff]
      %v2003 = vld [vmem:[#allocation2 + $0x48] sm:$0xff]
      %v2004 = vld [vmem:[#allocation2 + $0x50] sm:$0xff]
      %v2005 = vld [vmem:[#allocation2 + $0x58] sm:$0xff]
      %v2006 = vld [vmem:[#allocation2 + $0x60] sm:$0xff]
      %v2007 = vld [vmem:[#allocation2 + $0x68] sm:$0xff]
      %v2008 = vld [vmem:[#allocation2 + $0x70] sm:$0xff]
      %v2009 = vld [vmem:[#allocation2 + $0x78] sm:$0xff]
      %v2010 = vld [vmem:[#allocation2 + $0x80] sm:$0xff]
      %v2011 = vld [vmem:[#allocation2 + $0x88] sm:$0xff]
      %v2012 = vld [vmem:[#allocation2 + $0x90] sm:$0xff]
      %v2013 = vld [vmem:[#allocation2 + $0x98] sm:$0xff]
      %v2014 = vld [vmem:[#allocation2 + $0xa0] sm:$0xff]
      %v2015 = vld [vmem:[#allocation2 + $0xa8] sm:$0xff]
      %v2016 = vld [vmem:[#allocation2 + $0xb0] sm:$0xff]
      %v2017 = vld [vmem:[#allocation2 + $0xb8] sm:$0xff]
      %v2018 = vld [vmem:[#allocation2 + $0xc0] sm:$0xff]
      %v2019 = vld [vmem:[#allocation2 + $0xc8] sm:$0xff]
      %v2020 = vld [vmem:[#allocation2 + $0xd0] sm:$0xff]
      %v2021 = vld [vmem:[#allocation2 + $0xd8] sm:$0xff]
      %v2022 = vld [vmem:[#allocation2 + $0xe0] sm:$0xff]
      %v2023 = vld [vmem:[#allocation2 + $0xe8] sm:$0xff]
      %v2024 = vld [vmem:[#allocation2 + $0xf0] sm:$0xff]
      %v2025 = vld [vmem:[#allocation2 + $0xf8] sm:$0xff]
      %v2026 = vld [vmem:[#allocation2 + $0x100] sm:$0xff]
      %v2027 = vld [vmem:[#allocation2 + $0x108] sm:$0xff]
      %v2028 = vld [vmem:[#allocation2 + $0x110] sm:$0xff]
      %v2029 = vld [vmem:[#allocation2 + $0x118] sm:$0xff]
      %v2030 = vld [vmem:[#allocation2 + $0x120] sm:$0xff]
      %v2031 = vld [vmem:[#allocation2 + $0x128] sm:$0xff]
      %v2032 = vld [vmem:[#allocation2 + $0x130] sm:$0xff]
      %v2033 = vld [vmem:[#allocation2 + $0x138] sm:$0xff]
      %v2034 = vld [vmem:[#allocation2 + $0x140] sm:$0xff]
      %v2035 = vld [vmem:[#allocation2 + $0x148] sm:$0xff]
      %v2036 = vld [vmem:[#allocation2 + $0x150] sm:$0xff]
      %v2037 = vld [vmem:[#allocation2 + $0x158] sm:$0xff]
      %v2038 = vld [vmem:[#allocation2 + $0x160] sm:$0xff]
      %v2039 = vld [vmem:[#allocation2 + $0x168] sm:$0xff]
      %v2040 = vld [vmem:[#allocation2 + $0x170] sm:$0xff]
      %v2041 = vld [vmem:[#allocation2 + $0x178] sm:$0xff]
      %v2042 = vld [vmem:[#allocation2 + $0x180] sm:$0xff]
      %v2043 = vld [vmem:[#allocation2 + $0x188] sm:$0xff]
      %v2044 = vld [vmem:[#allocation2 + $0x190] sm:$0xff]
      %v2045 = vld [vmem:[#allocation2 + $0x198] sm:$0xff]
      %v2046 = vld [vmem:[#allocation2 + $0x1a0] sm:$0xff]
      %v2047 = vld [vmem:[#allocation2 + $0x1a8] sm:$0xff]
      %v2049 = vunpack.c.l.b16 %v1993
      %v2050 = vunpack.c.h.b16 %v1993
      %v2051 = vpack.c.b16 %v2049, %v2049
      %v2052 = vpack.c.b16 %v2050, %v2050
      %v2108 = vunpack.c.l.b16 %v1994
      %v2109 = vunpack.c.h.b16 %v1994
      %v2110 = vunpack.c.l.b16 %v1995
      %v2111 = vunpack.c.h.b16 %v1995
      %v2112 = vunpack.c.l.b16 %v1996
      %v2113 = vunpack.c.h.b16 %v1996
      %v2114 = vunpack.c.l.b16 %v1997
      %v2115 = vunpack.c.h.b16 %v1997
      %v2116 = vunpack.c.l.b16 %v1998
      %v2117 = vunpack.c.h.b16 %v1998
      %v2118 = vunpack.c.l.b16 %v1999
      %v2119 = vunpack.c.h.b16 %v1999
      %v2120 = vunpack.c.l.b16 %v2000
      %v2121 = vunpack.c.h.b16 %v2000
      %v2122 = vunpack.c.l.b16 %v2001
      %v2123 = vunpack.c.h.b16 %v2001
      %v2124 = vunpack.c.l.b16 %v2002
      %v2125 = vunpack.c.h.b16 %v2002
      %v2126 = vunpack.c.l.b16 %v2003
      %v2127 = vunpack.c.h.b16 %v2003
      %v2128 = vunpack.c.l.b16 %v2004
      %v2129 = vunpack.c.h.b16 %v2004
      %v2130 = vunpack.c.l.b16 %v2005
      %v2131 = vunpack.c.h.b16 %v2005
      %v2132 = vunpack.c.l.b16 %v2006
      %v2133 = vunpack.c.h.b16 %v2006
      %v2134 = vunpack.c.l.b16 %v2007
      %v2135 = vunpack.c.h.b16 %v2007
      %v2136 = vunpack.c.l.b16 %v2008
      %v2137 = vunpack.c.h.b16 %v2008
      %v2138 = vunpack.c.l.b16 %v2009
      %v2139 = vunpack.c.h.b16 %v2009
      %v2140 = vunpack.c.l.b16 %v2010
      %v2141 = vunpack.c.h.b16 %v2010
      %v2142 = vunpack.c.l.b16 %v2011
      %v2143 = vunpack.c.h.b16 %v2011
      %v2144 = vunpack.c.l.b16 %v2012
      %v2145 = vunpack.c.h.b16 %v2012
      %v2146 = vunpack.c.l.b16 %v2013
      %v2147 = vunpack.c.h.b16 %v2013
      %v2148 = vunpack.c.l.b16 %v2014
      %v2149 = vunpack.c.h.b16 %v2014
      %v2150 = vunpack.c.l.b16 %v2015
      %v2151 = vunpack.c.h.b16 %v2015
      %v2152 = vunpack.c.l.b16 %v2016
      %v2153 = vunpack.c.h.b16 %v2016
      %v2154 = vunpack.c.l.b16 %v2017
      %v2155 = vunpack.c.h.b16 %v2017
      %v2156 = vunpack.c.l.b16 %v2018
      %v2157 = vunpack.c.h.b16 %v2018
      %v2158 = vunpack.c.l.b16 %v2019
      %v2159 = vunpack.c.h.b16 %v2019
      %v2160 = vunpack.c.l.b16 %v2020
      %v2161 = vunpack.c.h.b16 %v2020
      %v2162 = vunpack.c.l.b16 %v2021
      %v2163 = vunpack.c.h.b16 %v2021
      %v2164 = vunpack.c.l.b16 %v2022
      %v2165 = vunpack.c.h.b16 %v2022
      %v2166 = vunpack.c.l.b16 %v2023
      %v2167 = vunpack.c.h.b16 %v2023
      %v2168 = vunpack.c.l.b16 %v2024
      %v2169 = vunpack.c.h.b16 %v2024
      %v2170 = vunpack.c.l.b16 %v2025
      %v2171 = vunpack.c.h.b16 %v2025
      %v2172 = vunpack.c.l.b16 %v2026
      %v2173 = vunpack.c.h.b16 %v2026
      %v2174 = vunpack.c.l.b16 %v2027
      %v2175 = vunpack.c.h.b16 %v2027
      %v2176 = vunpack.c.l.b16 %v2028
      %v2177 = vunpack.c.h.b16 %v2028
      %v2178 = vunpack.c.l.b16 %v2029
      %v2179 = vunpack.c.h.b16 %v2029
      %v2180 = vunpack.c.l.b16 %v2030
      %v2181 = vunpack.c.h.b16 %v2030
      %v2182 = vunpack.c.l.b16 %v2031
      %v2183 = vunpack.c.h.b16 %v2031
      %v2184 = vunpack.c.l.b16 %v2032
      %v2185 = vunpack.c.h.b16 %v2032
      %v2186 = vunpack.c.l.b16 %v2033
      %v2187 = vunpack.c.h.b16 %v2033
      %v2188 = vunpack.c.l.b16 %v2034
      %v2189 = vunpack.c.h.b16 %v2034
      %v2190 = vunpack.c.l.b16 %v2035
      %v2191 = vunpack.c.h.b16 %v2035
      %v2192 = vunpack.c.l.b16 %v2036
      %v2193 = vunpack.c.h.b16 %v2036
      %v2194 = vunpack.c.l.b16 %v2037
      %v2195 = vunpack.c.h.b16 %v2037
      %v2196 = vunpack.c.l.b16 %v2038
      %v2197 = vunpack.c.h.b16 %v2038
      %v2198 = vunpack.c.l.b16 %v2039
      %v2199 = vunpack.c.h.b16 %v2039
      %v2200 = vunpack.c.l.b16 %v2040
      %v2201 = vunpack.c.h.b16 %v2040
      %v2202 = vunpack.c.l.b16 %v2041
      %v2203 = vunpack.c.h.b16 %v2041
      %v2204 = vunpack.c.l.b16 %v2042
      %v2205 = vunpack.c.h.b16 %v2042
      %v2206 = vunpack.c.l.b16 %v2043
      %v2207 = vunpack.c.h.b16 %v2043
      %v2208 = vunpack.c.l.b16 %v2044
      %v2209 = vunpack.c.h.b16 %v2044
      %v2210 = vunpack.c.l.b16 %v2045
      %v2211 = vunpack.c.h.b16 %v2045
      %v2212 = vunpack.c.l.b16 %v2046
      %v2213 = vunpack.c.h.b16 %v2046
      %v2214 = vunpack.c.l.b16 %v2047
      %v2215 = vunpack.c.h.b16 %v2047
      %v2216 = vpack.c.b16 %v2112, %v2108
      %v2217 = vpack.c.b16 %v2113, %v2109
      %v2218 = vpack.c.b16 %v2114, %v2110
      %v2219 = vpack.c.b16 %v2115, %v2111
      %v2220 = vpack.c.b16 %v2120, %v2116
      %v2221 = vpack.c.b16 %v2121, %v2117
      %v2222 = vpack.c.b16 %v2122, %v2118
      %v2223 = vpack.c.b16 %v2123, %v2119
      %v2224 = vpack.c.b16 %v2128, %v2124
      %v2225 = vpack.c.b16 %v2129, %v2125
      %v2226 = vpack.c.b16 %v2130, %v2126
      %v2227 = vpack.c.b16 %v2131, %v2127
      %v2228 = vpack.c.b16 %v2136, %v2132
      %v2229 = vpack.c.b16 %v2137, %v2133
      %v2230 = vpack.c.b16 %v2138, %v2134
      %v2231 = vpack.c.b16 %v2139, %v2135
      %v2232 = vpack.c.b16 %v2144, %v2140
      %v2233 = vpack.c.b16 %v2145, %v2141
      %v2234 = vpack.c.b16 %v2146, %v2142
      %v2235 = vpack.c.b16 %v2147, %v2143
      %v2236 = vpack.c.b16 %v2152, %v2148
      %v2237 = vpack.c.b16 %v2153, %v2149
      %v2238 = vpack.c.b16 %v2154, %v2150
      %v2239 = vpack.c.b16 %v2155, %v2151
      %v2240 = vpack.c.b16 %v2160, %v2156
      %v2241 = vpack.c.b16 %v2161, %v2157
      %v2242 = vpack.c.b16 %v2162, %v2158
      %v2243 = vpack.c.b16 %v2163, %v2159
      %v2244 = vpack.c.b16 %v2168, %v2164
      %v2245 = vpack.c.b16 %v2169, %v2165
      %v2246 = vpack.c.b16 %v2170, %v2166
      %v2247 = vpack.c.b16 %v2171, %v2167
      %v2248 = vpack.c.b16 %v2176, %v2172
      %v2249 = vpack.c.b16 %v2177, %v2173
      %v2250 = vpack.c.b16 %v2178, %v2174
      %v2251 = vpack.c.b16 %v2179, %v2175
      %v2252 = vpack.c.b16 %v2184, %v2180
      %v2253 = vpack.c.b16 %v2185, %v2181
      %v2254 = vpack.c.b16 %v2186, %v2182
      %v2255 = vpack.c.b16 %v2187, %v2183
      %v2256 = vpack.c.b16 %v2192, %v2188
      %v2257 = vpack.c.b16 %v2193, %v2189
      %v2258 = vpack.c.b16 %v2194, %v2190
      %v2259 = vpack.c.b16 %v2195, %v2191
      %v2260 = vpack.c.b16 %v2200, %v2196
      %v2261 = vpack.c.b16 %v2201, %v2197
      %v2262 = vpack.c.b16 %v2202, %v2198
      %v2263 = vpack.c.b16 %v2203, %v2199
      %v2264 = vpack.c.b16 %v2208, %v2204
      %v2265 = vpack.c.b16 %v2209, %v2205
      %v2266 = vpack.c.b16 %v2210, %v2206
      %v2267 = vpack.c.b16 %v2211, %v2207
      %v2268 = vpack.c.b16 %v2212, %v2212
      %v2269 = vpack.c.b16 %v2213, %v2213
      %v2270 = vpack.c.b16 %v2214, %v2214
      %v2271 = vpack.c.b16 %v2215, %v2215
      %vm2324 = vcmask 719872
      %v2326 = vsel %vm2324, %v2052, 0
      %vm2328 = vcmask 1043456
      %v2330 = vsel %vm2328, %v2268, 0
      %v2333 = vsel %vm2328, %v2269, 0
      %v2336 = vsel %vm2328, %v2270, 0
      %v2339 = vsel %vm2328, %v2271, 0
      %2341 = vmatprep.subr.bf16.mxu0 %v2217
      %2342 = vmatpush1.bf16.msra.mxu0 %v2216
      %2343 = vmatprep.subr.bf16.mxu0 %v2221
      %2344 = vmatpush1.bf16.msra.mxu0 %v2220
      %2345 = vmatprep.subr.bf16.mxu0 %v2225
      %2346 = vmatpush1.bf16.msra.mxu0 %v2224
      %2347 = vmatprep.subr.bf16.mxu0 %v2229
      %2348 = vmatpush1.bf16.msra.mxu0 %v2228
      %2349 = vmatprep.subr.bf16.mxu0 %v2233
      %2350 = vmatpush1.bf16.msra.mxu0 %v2232
      %2351 = vmatprep.subr.bf16.mxu0 %v2237
      %2352 = vmatpush1.bf16.msra.mxu0 %v2236
      %2353 = vmatprep.subr.bf16.mxu0 %v2241
      %2354 = vmatpush1.bf16.msra.mxu0 %v2240
      %2355 = vmatprep.subr.bf16.mxu0 %v2245
      %2356 = vmatpush1.bf16.msra.mxu0 %v2244
      %2357 = vmatprep.subr.bf16.mxu0 %v2249
      %2358 = vmatpush1.bf16.msra.mxu0 %v2248
      %2359 = vmatprep.subr.bf16.mxu0 %v2253
      %2360 = vmatpush1.bf16.msra.mxu0 %v2252
      %2361 = vmatprep.subr.bf16.mxu0 %v2257
      %2362 = vmatpush1.bf16.msra.mxu0 %v2256
      %2363 = vmatprep.subr.bf16.mxu0 %v2261
      %2364 = vmatpush1.bf16.msra.mxu0 %v2260
      %2365 = vmatprep.subr.bf16.mxu0 %v2265
      %2366 = vmatpush1.bf16.msra.mxu0 %v2264
      %2367 = vmatprep.subr.bf16.mxu0 %v2333
      %2368 = vmatpush1.bf16.msra.mxu0 %v2330
      %2369 = vmatprep.subr.bf16.mxu0 0
      %2370 = vmatpush1.bf16.msra.mxu0 0
      %2371 = vmatprep.subr.bf16.mxu0 0
      %2372 = vmatpush1.bf16.msra.mxu0 0
      %2373 = vmatprep.mubr.bf16.mxu0 %v2326
      %2374 = vmatmul.mubr.bf16.gmra.mrb[0].mxu0 %v2051
      %v2375 = vpop.f32.mrb[0].mxu0
      %v2376 = vadd.f32 0.0, %v2375
      %v2377 = vpop.f32.mrb[0].mxu0
      %v2378 = vadd.f32 0.0, %v2377
      %v2379 = vpop.f32.mrb[0].mxu0
      %v2380 = vpop.f32.mrb[0].mxu0
      %2381 = vdwg.mxu0
      %2382 = vmatprep.subr.bf16.mxu0 %v2219
      %2383 = vmatpush1.bf16.msra.mxu0 %v2218
      %2384 = vmatprep.subr.bf16.mxu0 %v2223
      %2385 = vmatpush1.bf16.msra.mxu0 %v2222
      %2386 = vmatprep.subr.bf16.mxu0 %v2227
      %2387 = vmatpush1.bf16.msra.mxu0 %v2226
      %2388 = vmatprep.subr.bf16.mxu0 %v2231
      %2389 = vmatpush1.bf16.msra.mxu0 %v2230
      %2390 = vmatprep.subr.bf16.mxu0 %v2235
      %2391 = vmatpush1.bf16.msra.mxu0 %v2234
      %2392 = vmatprep.subr.bf16.mxu0 %v2239
      %2393 = vmatpush1.bf16.msra.mxu0 %v2238
      %2394 = vmatprep.subr.bf16.mxu0 %v2243
      %2395 = vmatpush1.bf16.msra.mxu0 %v2242
      %2396 = vmatprep.subr.bf16.mxu0 %v2247
      %2397 = vmatpush1.bf16.msra.mxu0 %v2246
      %2398 = vmatprep.subr.bf16.mxu0 %v2251
      %2399 = vmatpush1.bf16.msra.mxu0 %v2250
      %2400 = vmatprep.subr.bf16.mxu0 %v2255
      %2401 = vmatpush1.bf16.msra.mxu0 %v2254
      %2402 = vmatprep.subr.bf16.mxu0 %v2259
      %2403 = vmatpush1.bf16.msra.mxu0 %v2258
      %2404 = vmatprep.subr.bf16.mxu0 %v2263
      %2405 = vmatpush1.bf16.msra.mxu0 %v2262
      %2406 = vmatprep.subr.bf16.mxu0 %v2267
      %2407 = vmatpush1.bf16.msra.mxu0 %v2266
      %2408 = vmatprep.subr.bf16.mxu0 %v2339
      %2409 = vmatpush1.bf16.msra.mxu0 %v2336
      %2410 = vmatprep.subr.bf16.mxu0 0
      %2411 = vmatpush1.bf16.msra.mxu0 0
      %2412 = vmatprep.subr.bf16.mxu0 0
      %2413 = vmatpush1.bf16.msra.mxu0 0
      %2414 = vmatprep.mubr.bf16.mxu0 %v2326
      %2415 = vmatmul.mubr.bf16.gmra.mrb[0].mxu0 %v2051
      %v2416 = vpop.f32.mrb[0].mxu0
      %v2417 = vadd.f32 0.0, %v2416
      %v2418 = vpop.f32.mrb[0].mxu0
      %v2419 = vadd.f32 0.0, %v2418
      %v2420 = vpop.f32.mrb[0].mxu0
      %v2421 = vpop.f32.mrb[0].mxu0
      %2422 = vdwg.mxu0
      %v2423 = vld [vmem:[%s3] sm:$0xff]
      %2425 = vset.pattern.permute.xlu0 0
      %2426 = vperm.xlu0 %2425, %v2423
      %v2427 = vpop.permute.xlu0 %2426
      %v2429 = vmul.f32 %v2376, %v2427
      %v2430 = vmul.f32 %v2378, %v2427
      %v2431 = vmul.f32 %v2417, %v2427
      %v2432 = vmul.f32 %v2419, %v2427
      %v2433 = vld [vmem:[%s4] sm:$0xff]
      %2435 = vset.pattern.permute.xlu0 0
      %2436 = vperm.xlu0 %2435, %v2433
      %v2437 = vpop.permute.xlu0 %2436
      %v2439 = vadd.f32 %v2429, %v2437
      %v2440 = vadd.f32 %v2430, %v2437
      %v2441 = vadd.f32 %v2431, %v2437
      %v2442 = vadd.f32 %v2432, %v2437
      %v2443 = vmax.f32 %v2439, 0.0
      %v2444 = vmax.f32 %v2440, 0.0
      %v2445 = vmax.f32 %v2441, 0.0
      %v2446 = vmax.f32 %v2442, 0.0
      %2447 = vst [vmem:[%s266] sm:$0xff] %v2443
      %2448 = vst [vmem:[%s266 + $0x8] sm:$0xff] %v2444
      %2449 = vst [vmem:[%s266 + $0x10] sm:$0xff] %v2445
      %2450 = vst [vmem:[%s266 + $0x18] sm:$0xff] %v2446
      %s2451 = smul.u32 4, %s21
      %p2452 = scmp.lt.s32.totalorder %s20, 1
      %s2453 = scalar_select %p2452, %s20, 1
      %p2454 = scmp.lt.s32.totalorder %s2451, 7
      %s2455 = scalar_select %p2454, %s2451, 7
      %s2456 = smul.addr %s2453, 8
      %s2457 = sadd.s32 %s2455, %s2456
      %s2458 = smul.addr %s2457, 8
      %s2459 = scalar_lea.vmem %s5, %s2458
      // Predicated region
      $region41: #{up_forward.2} parent=39 // pred_check
        %p2460 = pneg %p163
      $region42: #{up_forward.2} parent=39 // pred_check_branch
        %2462 = sbr.rel (%p2460) target = $region44
      $region43: #{up_forward.2} parent=39 // pred_region
        %s2463 = smul.u32 4, %s21
      $region44: #{up_forward.2} parent=39 // pred_fallthru
        _
    $region40: #{up_forward.2} parent=5 // pred_fallthru
      _
    %p2464 = scmp.le.s32.totalorder 2, %s11
    // Predicated region
    $region45: #{up_forward.2} parent=5 // pred_check
      %p2465 = pneg %p2464
    $region46: #{up_forward.2} parent=5 // pred_check_branch
      %2467 = sbr.rel (%p2465) target = $region48
    $region47: #{up_forward.2} parent=5 // pred_region
      %s2468 = ssub.s32 %s11, 2
      // Predicated region
      $region49: #{up_forward.2} parent=47 // pred_check
        %p2469 = pneg %p169
      $region50: #{up_forward.2} parent=47 // pred_check_branch
        %2471 = sbr.rel (%p2469) target = $region52
      $region51: #{up_forward.2} parent=47 // pred_region
        %s2472 = smul.u32 4, %s23
        %p2473 = scmp.lt.s32.totalorder %s22, 1
        %s2474 = scalar_select %p2473, %s22, 1
        %p2475 = scmp.lt.s32.totalorder %s2472, 7
        %s2476 = scalar_select %p2475, %s2472, 7
        %s2477 = smul.addr %s2474, 8
        %s2478 = sadd.s32 %s2476, %s2477
        %s2479 = smul.addr %s2478, 8
        %s2480 = scalar_lea.vmem %s5, %s2479
      $region52: #{up_forward.2} parent=47 // pred_fallthru
        _
    $region48: #{up_forward.2} parent=5 // pred_fallthru
      _
  $region6: #{up_forward.2} parent=0 // loop_footer
    %s15 = sadd.s32 1, %s11
  $region7: #{up_forward.2} parent=0 // loop_footer_branch
    %10 = sbr.rel target = $region3
  $region8: #{up_forward.2} parent=0 // loop_exit
    _

// kernel: up_forward.3
$region0: #{up_forward.3}
  #allocation0 [shape = 'u32[]', space=smem, size = 0x4, offset = 0x4, fixed_abs, tag = 'smem constant byte address 0x4 - core index']
  #allocation1 [shape = 'u32[144,128]{1,0:T(1,128)}', space=vmem, size = 0x12000, scoped, tag = 'internal scratch']
  #allocation2 [shape = 'bf16[108,512]{1,0:T(8,128)(2,1)}', space=vmem, size = 0x1c000, scoped, tag = 'scratch operand']
  %s0 = inlined_call_operand.vmem [shape: bf16[2,10,4,256], index: 0, kind: input, shape index: {}]
  %s1 = inlined_call_operand.vmem [shape: bf16[8,108], index: 1, kind: input, shape index: {}]
  %s2 = inlined_call_operand.vmem [shape: f32[8,1], index: 2, kind: input, shape index: {}]
  %s3 = inlined_call_operand.vmem [shape: f32[8,1], index: 3, kind: input, shape index: {}]
  %s4 = inlined_call_operand.vmem [shape: f32[2,8,1024], index: 4, kind: output, shape index: {}]
  %s5 = sld [smem:[#allocation0]]
  $region49: #{up_forward.3} parent=0
    _
  %s7 = ssub.s32 1, %s5
  %s8 = scalar_select 0, %s7, %s5
  loop: start=0, step=1, limit=6
  $region2: #{up_forward.3} parent=0 // loop_pre_header
    _
  $region3: #{up_forward.3} parent=0 // loop_header
    %s10 = sphi 0, %s14
    %p11 = scmp.ge.s32.totalorder %s10, 6
    %s17 = sphi 0, %s29
    %s18 = sphi 0, %s25
    %s19 = sphi 0, %s17
    %s20 = sphi 0, %s18
    %s21 = sphi 0, %s19
    %s22 = sphi 0, %s20
    %s32 = sphi 0, %s34
    %s35 = sphi 0, %s32
    %s36 = sphi 0, %s35
    %s52 = sphi 0, %s36
    %s56 = sphi 0, %s56
    %s58 = sphi 0, %s56
    %s59 = sphi 0, %s58
    %s73 = sphi 0, %s59
    %s77 = sphi 0, %s77
    %s79 = sphi 0, %s77
    %s80 = sphi 0, %s79
    %s94 = sphi 0, %s80
    %s98 = sphi 0, %s98
    %s100 = sphi 0, %s98
    %s101 = sphi 0, %s100
    %s115 = sphi 0, %s101
    %s123 = sphi 0, %s125
    %s126 = sphi 0, %s123
    %s127 = sphi 0, %s126
    %s143 = sphi 0, %s127
  $region4: #{up_forward.3} parent=0 // loop_header_branch
    %13 = sbr.rel (%p11) target = $region8
  $region5: #{up_forward.3} parent=0 // loop_body
    %s15 = ssub.s32 %s10, 1
    %s16 = ssub.s32 %s10, 2
    %s23 = sadd.s32 1, %s18
    %p24 = scmp.ge.s32.totalorder %s23, 2
    %s25 = scalar_select %p24, 0, %s23
    %s26 = sadd.s32 1, %s17
    %s27 = scalar_select %p24, %s26, %s17
    %p28 = scmp.ge.s32.totalorder %s27, 2
    %s29 = scalar_select %p28, 0, %s27
    %s30 = ssub.s32 %s17, %s29
    %p31 = scmp.eq.s32.totalorder %s30, 0
    %s33 = sadd.s32 %s32, 1
    %s34 = scalar_select %p31, %s32, %s33
    %p37 = pneg %p31
    %p38 = scmp.eq.s32.totalorder %s10, 3
    %p39 = por %p37, %p38
    %p40 = scmp.ne.s32.totalorder %s32, %s35
    %p41 = scmp.eq.s32.totalorder %s10, 0
    %p42 = por %p40, %p41
    %p43 = scmp.ne.s32.totalorder %s32, %s35
    %p44 = scmp.eq.s32.totalorder %s15, 3
    %p45 = por %p43, %p44
    %p46 = scmp.ne.s32.totalorder %s35, %s36
    %p47 = scmp.eq.s32.totalorder %s15, 0
    %p48 = por %p46, %p47
    %p49 = scmp.ne.s32.totalorder %s35, %s36
    %p50 = scmp.eq.s32.totalorder %s16, 3
    %p51 = por %p49, %p50
    %p53 = scmp.ne.s32.totalorder %s36, %s52
    %p54 = scmp.eq.s32.totalorder %s16, 0
    %p55 = por %p53, %p54
    %s57 = sadd.s32 %s56, 1
    %p60 = scmp.eq.s32.totalorder %s10, 3
    %p61 = scmp.ne.s32.totalorder %s56, %s58
    %p62 = scmp.eq.s32.totalorder %s10, 0
    %p63 = por %p61, %p62
    %p64 = scmp.ne.s32.totalorder %s56, %s58
    %p65 = scmp.eq.s32.totalorder %s15, 3
    %p66 = por %p64, %p65
    %p67 = scmp.ne.s32.totalorder %s58, %s59
    %p68 = scmp.eq.s32.totalorder %s15, 0
    %p69 = por %p67, %p68
    %p70 = scmp.ne.s32.totalorder %s58, %s59
    %p71 = scmp.eq.s32.totalorder %s16, 3
    %p72 = por %p70, %p71
    %p74 = scmp.ne.s32.totalorder %s59, %s73
    %p75 = scmp.eq.s32.totalorder %s16, 0
    %p76 = por %p74, %p75
    %s78 = sadd.s32 %s77, 1
    %p81 = scmp.eq.s32.totalorder %s10, 3
    %p82 = scmp.ne.s32.totalorder %s77, %s79
    %p83 = scmp.eq.s32.totalorder %s10, 0
    %p84 = por %p82, %p83
    %p85 = scmp.ne.s32.totalorder %s77, %s79
    %p86 = scmp.eq.s32.totalorder %s15, 3
    %p87 = por %p85, %p86
    %p88 = scmp.ne.s32.totalorder %s79, %s80
    %p89 = scmp.eq.s32.totalorder %s15, 0
    %p90 = por %p88, %p89
    %p91 = scmp.ne.s32.totalorder %s79, %s80
    %p92 = scmp.eq.s32.totalorder %s16, 3
    %p93 = por %p91, %p92
    %p95 = scmp.ne.s32.totalorder %s80, %s94
    %p96 = scmp.eq.s32.totalorder %s16, 0
    %p97 = por %p95, %p96
    %s99 = sadd.s32 %s98, 1
    %p102 = scmp.eq.s32.totalorder %s10, 3
    %p103 = scmp.ne.s32.totalorder %s98, %s100
    %p104 = scmp.eq.s32.totalorder %s10, 0
    %p105 = por %p103, %p104
    %p106 = scmp.ne.s32.totalorder %s98, %s100
    %p107 = scmp.eq.s32.totalorder %s15, 3
    %p108 = por %p106, %p107
    %p109 = scmp.ne.s32.totalorder %s100, %s101
    %p110 = scmp.eq.s32.totalorder %s15, 0
    %p111 = por %p109, %p110
    %p112 = scmp.ne.s32.totalorder %s100, %s101
    %p113 = scmp.eq.s32.totalorder %s16, 3
    %p114 = por %p112, %p113
    %p116 = scmp.ne.s32.totalorder %s101, %s115
    %p117 = scmp.eq.s32.totalorder %s16, 0
    %p118 = por %p116, %p117
    %s119 = ssub.s32 %s17, %s29
    %s120 = ssub.s32 %s18, %s25
    %s121 = sor.u32 %s119, %s120
    %p122 = scmp.eq.s32.totalorder %s121, 0
    %s124 = sadd.s32 %s123, 1
    %s125 = scalar_select %p122, %s123, %s124
    %p128 = pneg %p122
    %p129 = scmp.eq.s32.totalorder %s10, 3
    %p130 = por %p128, %p129
    %p131 = scmp.ne.s32.totalorder %s123, %s126
    %p132 = scmp.eq.s32.totalorder %s10, 0
    %p133 = por %p131, %p132
    %p134 = scmp.ne.s32.totalorder %s123, %s126
    %p135 = scmp.eq.s32.totalorder %s15, 3
    %p136 = por %p134, %p135
    %p137 = scmp.ne.s32.totalorder %s126, %s127
    %p138 = scmp.eq.s32.totalorder %s15, 0
    %p139 = por %p137, %p138
    %p140 = scmp.ne.s32.totalorder %s126, %s127
    %p141 = scmp.eq.s32.totalorder %s16, 3
    %p142 = por %p140, %p141
    %p144 = scmp.ne.s32.totalorder %s127, %s143
    %p145 = scmp.eq.s32.totalorder %s16, 0
    %p146 = por %p144, %p145
    %p147 = scmp.le.s32.totalorder 1, %s10
    %p148 = scmp.lt.s32.totalorder %s10, 5
    %p149 = pnand %p147, %p148
    %p150 = pneg %p149
    // Predicated region
    $region9: #{up_forward.3} parent=5 // pred_check
      _
    $region10: #{up_forward.3} parent=5 // pred_check_branch
      %152 = sbr.rel (%p149) target = $region12
    $region11: #{up_forward.3} parent=5 // pred_region
      %s153 = ssub.s32 %s10, 1
      // Predicated region
      $region13: #{up_forward.3} parent=11 // pred_check
        %p154 = pneg %p69
      $region14: #{up_forward.3} parent=11 // pred_check_branch
        %156 = sbr.rel (%p154) target = $region16
      $region15: #{up_forward.3} parent=11 // pred_region
        _
      $region16: #{up_forward.3} parent=11 // pred_fallthru
        _
      // Predicated region
      $region17: #{up_forward.3} parent=11 // pred_check
        %p157 = pneg %p90
      $region18: #{up_forward.3} parent=11 // pred_check_branch
        %159 = sbr.rel (%p157) target = $region20
      $region19: #{up_forward.3} parent=11 // pred_region
        _
      $region20: #{up_forward.3} parent=11 // pred_fallthru
        _
      // Predicated region
      $region21: #{up_forward.3} parent=11 // pred_check
        %p160 = pneg %p111
      $region22: #{up_forward.3} parent=11 // pred_check_branch
        %162 = sbr.rel (%p160) target = $region24
      $region23: #{up_forward.3} parent=11 // pred_region
        _
      $region24: #{up_forward.3} parent=11 // pred_fallthru
        _
    $region12: #{up_forward.3} parent=5 // pred_fallthru
      _
    %p163 = scmp.lt.s32.totalorder %s10, 4
    // Predicated region
    $region25: #{up_forward.3} parent=5 // pred_check
      %p164 = pneg %p163
    $region26: #{up_forward.3} parent=5 // pred_check_branch
      %166 = sbr.rel (%p164) target = $region28
    $region27: #{up_forward.3} parent=5 // pred_region
      // Predicated region
      $region29: #{up_forward.3} parent=27 // pred_check
        %p167 = pneg %p42
      $region30: #{up_forward.3} parent=27 // pred_check_branch
        %169 = sbr.rel (%p167) target = $region32
      $region31: #{up_forward.3} parent=27 // pred_region
        %p170 = scmp.lt.s32.totalorder %s17, 1
        %s171 = scalar_select %p170, %s17, 1
        %s172 = smul.addr %s171, 20
        %s173 = smul.addr %s172, 2
        %s174 = scalar_lea.vmem %s0, %s173
      $region32: #{up_forward.3} parent=27 // pred_fallthru
        _
    $region28: #{up_forward.3} parent=5 // pred_fallthru
      _
    %p175 = scmp.le.s32.totalorder 1, %s10
    %p176 = scmp.lt.s32.totalorder %s10, 5
    %p177 = pnand %p175, %p176
    %p178 = pneg %p177
    // Predicated region
    $region33: #{up_forward.3} parent=5 // pred_check
      _
    $region34: #{up_forward.3} parent=5 // pred_check_branch
      %180 = sbr.rel (%p177) target = $region36
    $region35: #{up_forward.3} parent=5 // pred_region
      %s181 = ssub.s32 %s10, 1
      %p182 = scmp.lt.s32.totalorder %s19, 1
      %s183 = scalar_select %p182, %s19, 1
      %s184 = smul.addr %s183, 20
      %s185 = smul.addr %s184, 2
      %s186 = scalar_lea.vmem %s0, %s185
      %p187 = pneg %p48
      %p188 = pneg %p45
      %p189 = pneg %p69
      %p190 = pneg %p66
      %p191 = pneg %p90
      %p192 = pneg %p87
      %p193 = pneg %p111
      %p194 = pneg %p108
      %p195 = pneg %p139
      %p196 = pneg %p136
      %s197 = smul.u32 4, %s20
      %p198 = scmp.lt.s32.totalorder %s19, 1
      %s199 = scalar_select %p198, %s19, 1
      %p200 = scmp.lt.s32.totalorder %s197, 7
      %s201 = scalar_select %p200, %s197, 7
      %s202 = smul.addr %s199, 8
      %s203 = sadd.s32 %s201, %s202
      %s204 = smul.addr %s203, 8
      %s205 = scalar_lea.vmem %s4, %s204
      %p206 = scmp.lt.s32.totalorder %s19, 1
      %s207 = scalar_select %p206, %s19, 1
      %s208 = smul.addr %s207, 20
      %s209 = smul.addr %s208, 2
      %s210 = scalar_lea.vmem %s0, %s209
      %s211 = smul.u32 4, %s20
      %p212 = scmp.lt.s32.totalorder %s19, 1
      %s213 = scalar_select %p212, %s19, 1
      %p214 = scmp.lt.s32.totalorder %s211, 7
      %s215 = scalar_select %p214, %s211, 7
      %s216 = smul.addr %s213, 8
      %s217 = sadd.s32 %s215, %s216
      %s218 = smul.addr %s217, 8
      %s219 = scalar_lea.vmem %s4, %s218
      %s220 = smul.u32 4, %s20
      %s222 = smul.u32 %s20, 4
      %s223 = smul.u32 %s222, 2
      %s224 = smul.addr %s223, 2
      %s225 = scalar_lea.vmem %s210, %s224
      %v226 = vld [vmem:[%s225] sm:$0x3]
      %227 = vst [vmem:[#allocation2] sm:$0x3] %v226
      %v228 = vld [vmem:[%s225] sm:$0xf]
      %v230 = vcombine.low %v228, %v228
      %v232 = vunpack.c.l.s4 1983009808
      %v233 = vunpack.c.0.s8 %v232
      %v234 = vlaneseq
      %v235 = vshrl.u32 %v234, 7
      %v236 = vsub.s32 %v233, %v235
      %v237 = vrot.slane %v230, %v236
      %238 = vrot.lane.b32.xlu0 %v237, 127
      %v239 = vpop.permute.xlu0 %238
      %v240 = vrot.slane %v239, 4
      %vm241 = vcmask 1039360
      %v242 = vsel %vm241, %v239, %v240
      %244 = vst [vmem:[#allocation2] sm:$0xc] %v242
      %v245 = vld [vmem:[%s225] sm:$0xf]
      %v248 = vunpack.c.l.s4 1983009808
      %v249 = vunpack.c.0.s8 %v248
      %v250 = vlaneseq
      %v251 = vshrl.u32 %v250, 7
      %v252 = vsub.s32 %v249, %v251
      %v253 = vrot.slane %v245, %v252
      %254 = vrot.lane.b32.xlu0 %v253, 126
      %v255 = vpop.permute.xlu0 %254
      %v256 = vrot.slane %v255, 4
      %vm257 = vcmask 1031168
      %v258 = vsel %vm257, %v255, %v256
      %260 = vst [vmem:[#allocation2 + $0x10] sm:$0x3] %v258
      %v261 = vld [vmem:[%s225] sm:$0xf]
      %v263 = vcombine.low %v261, %v261
      %v265 = vunpack.c.l.s4 1983009808
      %v266 = vunpack.c.0.s8 %v265
      %v267 = vlaneseq
      %v268 = vshrl.u32 %v267, 7
      %v269 = vsub.s32 %v266, %v268
      %v270 = vrot.slane %v263, %v269
      %271 = vrot.lane.b32.xlu0 %v270, 116
      %v272 = vpop.permute.xlu0 %271
      %v273 = vrot.slane %v272, 4
      %vm274 = vcmask 949248
      %v275 = vsel %vm274, %v272, %v273
      %277 = vst [vmem:[#allocation2 + $0x10] sm:$0xc] %v275
      %v278 = vld [vmem:[%s225] sm:$0xf]
      %v281 = vunpack.c.l.s4 1983009808
      %v282 = vunpack.c.0.s8 %v281
      %v283 = vlaneseq
      %v284 = vshrl.u32 %v283, 7
      %v285 = vsub.s32 %v282, %v284
      %v286 = vrot.slane %v278, %v285
      %287 = vrot.lane.b32.xlu0 %v286, 115
      %v288 = vpop.permute.xlu0 %287
      %v289 = vrot.slane %v288, 4
      %vm290 = vcmask 941056
      %v291 = vsel %vm290, %v288, %v289
      %293 = vst [vmem:[#allocation2 + $0x20] sm:$0x3] %v291
      %v294 = vld [vmem:[%s225] sm:$0xf]
      %v296 = vcombine.low %v294, %v294
      %v298 = vunpack.c.l.s4 1983009808
      %v299 = vunpack.c.0.s8 %v298
      %v300 = vlaneseq
      %v301 = vshrl.u32 %v300, 7
      %v302 = vsub.s32 %v299, %v301
      %v303 = vrot.slane %v296, %v302
      %304 = vrot.lane.b32.xlu0 %v303, 114
      %v305 = vpop.permute.xlu0 %304
      %v306 = vrot.slane %v305, 4
      %vm307 = vcmask 932864
      %v308 = vsel %vm307, %v305, %v306
      %310 = vst [vmem:[#allocation2 + $0x20] sm:$0xc] %v308
      %v311 = vld [vmem:[%s225] sm:$0xf]
      %v314 = vunpack.c.l.s4 1983009808
      %v315 = vunpack.c.0.s8 %v314
      %v316 = vlaneseq
      %v317 = vshrl.u32 %v316, 7
      %v318 = vsub.s32 %v315, %v317
      %v319 = vrot.slane %v311, %v318
      %320 = vrot.lane.b32.xlu0 %v319, 104
      %v321 = vpop.permute.xlu0 %320
      %v322 = vrot.slane %v321, 4
      %vm323 = vcmask 850944
      %v324 = vsel %vm323, %v321, %v322
      %326 = vst [vmem:[#allocation2 + $0x30] sm:$0x3] %v324
      %v327 = vld [vmem:[%s225] sm:$0xf]
      %v329 = vcombine.low %v327, %v327
      %v331 = vunpack.c.l.s4 1983009808
      %v332 = vunpack.c.0.s8 %v331
      %v333 = vlaneseq
      %v334 = vshrl.u32 %v333, 7
      %v335 = vsub.s32 %v332, %v334
      %v336 = vrot.slane %v329, %v335
      %337 = vrot.lane.b32.xlu0 %v336, 103
      %v338 = vpop.permute.xlu0 %337
      %v339 = vrot.slane %v338, 4
      %vm340 = vcmask 842752
      %v341 = vsel %vm340, %v338, %v339
      %343 = vst [vmem:[#allocation2 + $0x30] sm:$0xc] %v341
      %v344 = vld [vmem:[%s225] sm:$0xf]
      %v347 = vunpack.c.l.s4 1983009808
      %v348 = vunpack.c.0.s8 %v347
      %v349 = vlaneseq
      %v350 = vshrl.u32 %v349, 7
      %v351 = vsub.s32 %v348, %v350
      %v352 = vrot.slane %v344, %v351
      %353 = vrot.lane.b32.xlu0 %v352, 102
      %v354 = vpop.permute.xlu0 %353
      %v355 = vrot.slane %v354, 4
      %vm356 = vcmask 834560
      %v357 = vsel %vm356, %v354, %v355
      %359 = vst [vmem:[#allocation2 + $0x40] sm:$0x3] %v357
      %s360 = sadd.s32 %s222, 1
      %s361 = smul.u32 %s360, 2
      %s362 = smul.addr %s361, 2
      %s363 = scalar_lea.vmem %s210, %s362
      %v364 = vld [vmem:[%s363] sm:$0x3]
      %365 = vst [vmem:[#allocation2 + $0x4] sm:$0x3] %v364
      %v367 = vcombine.low %v364, %v364
      %v369 = vunpack.c.l.s4 1983009808
      %v370 = vunpack.c.0.s8 %v369
      %v371 = vlaneseq
      %v372 = vshrl.u32 %v371, 7
      %v373 = vsub.s32 %v370, %v372
      %v374 = vrot.slane %v367, %v373
      %376 = vst [vmem:[#allocation2 + $0x40] sm:$0xc] %v374
      %v377 = vld [vmem:[%s363] sm:$0xf]
      %v379 = vcombine.low %v377, %v377
      %v381 = vunpack.c.l.s4 1983009808
      %v382 = vunpack.c.0.s8 %v381
      %v383 = vlaneseq
      %v384 = vshrl.u32 %v383, 7
      %v385 = vsub.s32 %v382, %v384
      %v386 = vrot.slane %v379, %v385
      %387 = vrot.lane.b32.xlu0 %v386, 127
      %v388 = vpop.permute.xlu0 %387
      %v389 = vrot.slane %v388, 4
      %v390 = vsel %vm241, %v388, %v389
      %392 = vst [vmem:[#allocation2 + $0x4] sm:$0xc] %v390
      %v394 = vunpack.c.l.s4 1983009808
      %v395 = vunpack.c.0.s8 %v394
      %v396 = vlaneseq
      %v397 = vshrl.u32 %v396, 7
      %v398 = vsub.s32 %v395, %v397
      %v399 = vrot.slane %v377, %v398
      %400 = vrot.lane.b32.xlu0 %v399, 127
      %v401 = vpop.permute.xlu0 %400
      %v402 = vrot.slane %v401, 4
      %v403 = vsel %vm241, %v401, %v402
      %405 = vst [vmem:[#allocation2 + $0x50] sm:$0x3] %v403
      %v406 = vld [vmem:[%s363] sm:$0xf]
      %v409 = vunpack.c.l.s4 1983009808
      %v410 = vunpack.c.0.s8 %v409
      %v411 = vlaneseq
      %v412 = vshrl.u32 %v411, 7
      %v413 = vsub.s32 %v410, %v412
      %v414 = vrot.slane %v406, %v413
      %415 = vrot.lane.b32.xlu0 %v414, 126
      %v416 = vpop.permute.xlu0 %415
      %v417 = vrot.slane %v416, 4
      %v418 = vsel %vm257, %v416, %v417
      %420 = vst [vmem:[#allocation2 + $0x14] sm:$0x3] %v418
      %v421 = vcombine.low %v406, %v406
      %v423 = vunpack.c.l.s4 1983009808
      %v424 = vunpack.c.0.s8 %v423
      %v425 = vlaneseq
      %v426 = vshrl.u32 %v425, 7
      %v427 = vsub.s32 %v424, %v426
      %v428 = vrot.slane %v421, %v427
      %429 = vrot.lane.b32.xlu0 %v428, 126
      %v430 = vpop.permute.xlu0 %429
      %v431 = vrot.slane %v430, 4
      %v432 = vsel %vm257, %v430, %v431
      %434 = vst [vmem:[#allocation2 + $0x50] sm:$0xc] %v432
      %v435 = vld [vmem:[%s363] sm:$0xf]
      %v437 = vcombine.low %v435, %v435
      %v439 = vunpack.c.l.s4 1983009808
      %v440 = vunpack.c.0.s8 %v439
      %v441 = vlaneseq
      %v442 = vshrl.u32 %v441, 7
      %v443 = vsub.s32 %v440, %v442
      %v444 = vrot.slane %v437, %v443
      %445 = vrot.lane.b32.xlu0 %v444, 116
      %v446 = vpop.permute.xlu0 %445
      %v447 = vrot.slane %v446, 4
      %v448 = vsel %vm274, %v446, %v447
      %450 = vst [vmem:[#allocation2 + $0x14] sm:$0xc] %v448
      %v452 = vunpack.c.l.s4 1983009808
      %v453 = vunpack.c.0.s8 %v452
      %v454 = vlaneseq
      %v455 = vshrl.u32 %v454, 7
      %v456 = vsub.s32 %v453, %v455
      %v457 = vrot.slane %v435, %v456
      %458 = vrot.lane.b32.xlu0 %v457, 116
      %v459 = vpop.permute.xlu0 %458
      %v460 = vrot.slane %v459, 4
      %v461 = vsel %vm274, %v459, %v460
      %463 = vst [vmem:[#allocation2 + $0x60] sm:$0x3] %v461
      %v464 = vld [vmem:[%s363] sm:$0xf]
      %v467 = vunpack.c.l.s4 1983009808
      %v468 = vunpack.c.0.s8 %v467
      %v469 = vlaneseq
      %v470 = vshrl.u32 %v469, 7
      %v471 = vsub.s32 %v468, %v470
      %v472 = vrot.slane %v464, %v471
      %473 = vrot.lane.b32.xlu0 %v472, 115
      %v474 = vpop.permute.xlu0 %473
      %v475 = vrot.slane %v474, 4
      %v476 = vsel %vm290, %v474, %v475
      %478 = vst [vmem:[#allocation2 + $0x24] sm:$0x3] %v476
      %v479 = vcombine.low %v464, %v464
      %v481 = vunpack.c.l.s4 1983009808
      %v482 = vunpack.c.0.s8 %v481
      %v483 = vlaneseq
      %v484 = vshrl.u32 %v483, 7
      %v485 = vsub.s32 %v482, %v484
      %v486 = vrot.slane %v479, %v485
      %487 = vrot.lane.b32.xlu0 %v486, 115
      %v488 = vpop.permute.xlu0 %487
      %v489 = vrot.slane %v488, 4
      %v490 = vsel %vm290, %v488, %v489
      %492 = vst [vmem:[#allocation2 + $0x60] sm:$0xc] %v490
      %v493 = vld [vmem:[%s363] sm:$0xf]
      %v495 = vcombine.low %v493, %v493
      %v497 = vunpack.c.l.s4 1983009808
      %v498 = vunpack.c.0.s8 %v497
      %v499 = vlaneseq
      %v500 = vshrl.u32 %v499, 7
      %v501 = vsub.s32 %v498, %v500
      %v502 = vrot.slane %v495, %v501
      %503 = vrot.lane.b32.xlu0 %v502, 114
      %v504 = vpop.permute.xlu0 %503
      %v505 = vrot.slane %v504, 4
      %v506 = vsel %vm307, %v504, %v505
      %508 = vst [vmem:[#allocation2 + $0x24] sm:$0xc] %v506
      %v510 = vunpack.c.l.s4 1983009808
      %v511 = vunpack.c.0.s8 %v510
      %v512 = vlaneseq
      %v513 = vshrl.u32 %v512, 7
      %v514 = vsub.s32 %v511, %v513
      %v515 = vrot.slane %v493, %v514
      %516 = vrot.lane.b32.xlu0 %v515, 114
      %v517 = vpop.permute.xlu0 %516
      %v518 = vrot.slane %v517, 4
      %v519 = vsel %vm307, %v517, %v518
      %521 = vst [vmem:[#allocation2 + $0x70] sm:$0x3] %v519
      %v522 = vld [vmem:[%s363] sm:$0xf]
      %v525 = vunpack.c.l.s4 1983009808
      %v526 = vunpack.c.0.s8 %v525
      %v527 = vlaneseq
      %v528 = vshrl.u32 %v527, 7
      %v529 = vsub.s32 %v526, %v528
      %v530 = vrot.slane %v522, %v529
      %531 = vrot.lane.b32.xlu0 %v530, 104
      %v532 = vpop.permute.xlu0 %531
      %v533 = vrot.slane %v532, 4
      %v534 = vsel %vm323, %v532, %v533
      %536 = vst [vmem:[#allocation2 + $0x34] sm:$0x3] %v534
      %v537 = vcombine.low %v522, %v522
      %v539 = vunpack.c.l.s4 1983009808
      %v540 = vunpack.c.0.s8 %v539
      %v541 = vlaneseq
      %v542 = vshrl.u32 %v541, 7
      %v543 = vsub.s32 %v540, %v542
      %v544 = vrot.slane %v537, %v543
      %545 = vrot.lane.b32.xlu0 %v544, 104
      %v546 = vpop.permute.xlu0 %545
      %v547 = vrot.slane %v546, 4
      %v548 = vsel %vm323, %v546, %v547
      %550 = vst [vmem:[#allocation2 + $0x70] sm:$0xc] %v548
      %v551 = vld [vmem:[%s363] sm:$0xf]
      %v553 = vcombine.low %v551, %v551
      %v555 = vunpack.c.l.s4 1983009808
      %v556 = vunpack.c.0.s8 %v555
      %v557 = vlaneseq
      %v558 = vshrl.u32 %v557, 7
      %v559 = vsub.s32 %v556, %v558
      %v560 = vrot.slane %v553, %v559
      %561 = vrot.lane.b32.xlu0 %v560, 103
      %v562 = vpop.permute.xlu0 %561
      %v563 = vrot.slane %v562, 4
      %v564 = vsel %vm340, %v562, %v563
      %566 = vst [vmem:[#allocation2 + $0x34] sm:$0xc] %v564
      %v568 = vunpack.c.l.s4 1983009808
      %v569 = vunpack.c.0.s8 %v568
      %v570 = vlaneseq
      %v571 = vshrl.u32 %v570, 7
      %v572 = vsub.s32 %v569, %v571
      %v573 = vrot.slane %v551, %v572
      %574 = vrot.lane.b32.xlu0 %v573, 103
      %v575 = vpop.permute.xlu0 %574
      %v576 = vrot.slane %v575, 4
      %v577 = vsel %vm340, %v575, %v576
      %579 = vst [vmem:[#allocation2 + $0x80] sm:$0x3] %v577
      %v580 = vld [vmem:[%s363] sm:$0xf]
      %v583 = vunpack.c.l.s4 1983009808
      %v584 = vunpack.c.0.s8 %v583
      %v585 = vlaneseq
      %v586 = vshrl.u32 %v585, 7
      %v587 = vsub.s32 %v584, %v586
      %v588 = vrot.slane %v580, %v587
      %589 = vrot.lane.b32.xlu0 %v588, 102
      %v590 = vpop.permute.xlu0 %589
      %v591 = vrot.slane %v590, 4
      %v592 = vsel %vm356, %v590, %v591
      %594 = vst [vmem:[#allocation2 + $0x44] sm:$0x3] %v592
      %v595 = vcombine.low %v580, %v580
      %v597 = vunpack.c.l.s4 1983009808
      %v598 = vunpack.c.0.s8 %v597
      %v599 = vlaneseq
      %v600 = vshrl.u32 %v599, 7
      %v601 = vsub.s32 %v598, %v600
      %v602 = vrot.slane %v595, %v601
      %603 = vrot.lane.b32.xlu0 %v602, 102
      %v604 = vpop.permute.xlu0 %603
      %v605 = vrot.slane %v604, 4
      %v606 = vsel %vm356, %v604, %v605
      %608 = vst [vmem:[#allocation2 + $0x80] sm:$0xc] %v606
      %s609 = sadd.s32 %s222, 2
      %s610 = smul.u32 %s609, 2
      %s611 = smul.addr %s610, 2
      %s612 = scalar_lea.vmem %s210, %s611
      %v613 = vld [vmem:[%s612] sm:$0x3]
      %614 = vst [vmem:[#allocation2 + $0x8] sm:$0x3] %v613
      %v616 = vcombine.low %v613, %v613
      %v618 = vunpack.c.l.s4 1983009808
      %v619 = vunpack.c.0.s8 %v618
      %v620 = vlaneseq
      %v621 = vshrl.u32 %v620, 7
      %v622 = vsub.s32 %v619, %v621
      %v623 = vrot.slane %v616, %v622
      %625 = vst [vmem:[#allocation2 + $0x44] sm:$0xc] %v623
      %626 = vst [vmem:[#allocation2 + $0x90] sm:$0x3] %v613
      %v627 = vld [vmem:[%s612] sm:$0xf]
      %v629 = vcombine.low %v627, %v627
      %v631 = vunpack.c.l.s4 1983009808
      %v632 = vunpack.c.0.s8 %v631
      %v633 = vlaneseq
      %v634 = vshrl.u32 %v633, 7
      %v635 = vsub.s32 %v632, %v634
      %v636 = vrot.slane %v629, %v635
      %637 = vrot.lane.b32.xlu0 %v636, 127
      %v638 = vpop.permute.xlu0 %637
      %v639 = vrot.slane %v638, 4
      %v640 = vsel %vm241, %v638, %v639
      %642 = vst [vmem:[#allocation2 + $0x8] sm:$0xc] %v640
      %v644 = vunpack.c.l.s4 1983009808
      %v645 = vunpack.c.0.s8 %v644
      %v646 = vlaneseq
      %v647 = vshrl.u32 %v646, 7
      %v648 = vsub.s32 %v645, %v647
      %v649 = vrot.slane %v627, %v648
      %650 = vrot.lane.b32.xlu0 %v649, 127
      %v651 = vpop.permute.xlu0 %650
      %v652 = vrot.slane %v651, 4
      %v653 = vsel %vm241, %v651, %v652
      %655 = vst [vmem:[#allocation2 + $0x54] sm:$0x3] %v653
      %656 = vst [vmem:[#allocation2 + $0x90] sm:$0xc] %v640
      %v657 = vld [vmem:[%s612] sm:$0xf]
      %v660 = vunpack.c.l.s4 1983009808
      %v661 = vunpack.c.0.s8 %v660
      %v662 = vlaneseq
      %v663 = vshrl.u32 %v662, 7
      %v664 = vsub.s32 %v661, %v663
      %v665 = vrot.slane %v657, %v664
      %666 = vrot.lane.b32.xlu0 %v665, 126
      %v667 = vpop.permute.xlu0 %666
      %v668 = vrot.slane %v667, 4
      %v669 = vsel %vm257, %v667, %v668
      %671 = vst [vmem:[#allocation2 + $0x18] sm:$0x3] %v669
      %v672 = vcombine.low %v657, %v657
      %v674 = vunpack.c.l.s4 1983009808
      %v675 = vunpack.c.0.s8 %v674
      %v676 = vlaneseq
      %v677 = vshrl.u32 %v676, 7
      %v678 = vsub.s32 %v675, %v677
      %v679 = vrot.slane %v672, %v678
      %680 = vrot.lane.b32.xlu0 %v679, 126
      %v681 = vpop.permute.xlu0 %680
      %v682 = vrot.slane %v681, 4
      %v683 = vsel %vm257, %v681, %v682
      %685 = vst [vmem:[#allocation2 + $0x54] sm:$0xc] %v683
      %686 = vst [vmem:[#allocation2 + $0xa0] sm:$0x3] %v669
      %v687 = vld [vmem:[%s612] sm:$0xf]
      %v689 = vcombine.low %v687, %v687
      %v691 = vunpack.c.l.s4 1983009808
      %v692 = vunpack.c.0.s8 %v691
      %v693 = vlaneseq
      %v694 = vshrl.u32 %v693, 7
      %v695 = vsub.s32 %v692, %v694
      %v696 = vrot.slane %v689, %v695
      %697 = vrot.lane.b32.xlu0 %v696, 116
      %v698 = vpop.permute.xlu0 %697
      %v699 = vrot.slane %v698, 4
      %v700 = vsel %vm274, %v698, %v699
      %702 = vst [vmem:[#allocation2 + $0x18] sm:$0xc] %v700
      %v704 = vunpack.c.l.s4 1983009808
      %v705 = vunpack.c.0.s8 %v704
      %v706 = vlaneseq
      %v707 = vshrl.u32 %v706, 7
      %v708 = vsub.s32 %v705, %v707
      %v709 = vrot.slane %v687, %v708
      %710 = vrot.lane.b32.xlu0 %v709, 116
      %v711 = vpop.permute.xlu0 %710
      %v712 = vrot.slane %v711, 4
      %v713 = vsel %vm274, %v711, %v712
      %715 = vst [vmem:[#allocation2 + $0x64] sm:$0x3] %v713
      %716 = vst [vmem:[#allocation2 + $0xa0] sm:$0xc] %v700
      %v717 = vld [vmem:[%s612] sm:$0xf]
      %v720 = vunpack.c.l.s4 1983009808
      %v721 = vunpack.c.0.s8 %v720
      %v722 = vlaneseq
      %v723 = vshrl.u32 %v722, 7
      %v724 = vsub.s32 %v721, %v723
      %v725 = vrot.slane %v717, %v724
      %726 = vrot.lane.b32.xlu0 %v725, 115
      %v727 = vpop.permute.xlu0 %726
      %v728 = vrot.slane %v727, 4
      %v729 = vsel %vm290, %v727, %v728
      %731 = vst [vmem:[#allocation2 + $0x28] sm:$0x3] %v729
      %v732 = vcombine.low %v717, %v717
      %v734 = vunpack.c.l.s4 1983009808
      %v735 = vunpack.c.0.s8 %v734
      %v736 = vlaneseq
      %v737 = vshrl.u32 %v736, 7
      %v738 = vsub.s32 %v735, %v737
      %v739 = vrot.slane %v732, %v738
      %740 = vrot.lane.b32.xlu0 %v739, 115
      %v741 = vpop.permute.xlu0 %740
      %v742 = vrot.slane %v741, 4
      %v743 = vsel %vm290, %v741, %v742
      %745 = vst [vmem:[#allocation2 + $0x64] sm:$0xc] %v743
      %746 = vst [vmem:[#allocation2 + $0xb0] sm:$0x3] %v729
      %v747 = vld [vmem:[%s612] sm:$0xf]
      %v749 = vcombine.low %v747, %v747
      %v751 = vunpack.c.l.s4 1983009808
      %v752 = vunpack.c.0.s8 %v751
      %v753 = vlaneseq
      %v754 = vshrl.u32 %v753, 7
      %v755 = vsub.s32 %v752, %v754
      %v756 = vrot.slane %v749, %v755
      %757 = vrot.lane.b32.xlu0 %v756, 114
      %v758 = vpop.permute.xlu0 %757
      %v759 = vrot.slane %v758, 4
      %v760 = vsel %vm307, %v758, %v759
      %762 = vst [vmem:[#allocation2 + $0x28] sm:$0xc] %v760
      %v764 = vunpack.c.l.s4 1983009808
      %v765 = vunpack.c.0.s8 %v764
      %v766 = vlaneseq
      %v767 = vshrl.u32 %v766, 7
      %v768 = vsub.s32 %v765, %v767
      %v769 = vrot.slane %v747, %v768
      %770 = vrot.lane.b32.xlu0 %v769, 114
      %v771 = vpop.permute.xlu0 %770
      %v772 = vrot.slane %v771, 4
      %v773 = vsel %vm307, %v771, %v772
      %775 = vst [vmem:[#allocation2 + $0x74] sm:$0x3] %v773
      %776 = vst [vmem:[#allocation2 + $0xb0] sm:$0xc] %v760
      %v777 = vld [vmem:[%s612] sm:$0xf]
      %v780 = vunpack.c.l.s4 1983009808
      %v781 = vunpack.c.0.s8 %v780
      %v782 = vlaneseq
      %v783 = vshrl.u32 %v782, 7
      %v784 = vsub.s32 %v781, %v783
      %v785 = vrot.slane %v777, %v784
      %786 = vrot.lane.b32.xlu0 %v785, 104
      %v787 = vpop.permute.xlu0 %786
      %v788 = vrot.slane %v787, 4
      %v789 = vsel %vm323, %v787, %v788
      %791 = vst [vmem:[#allocation2 + $0x38] sm:$0x3] %v789
      %v792 = vcombine.low %v777, %v777
      %v794 = vunpack.c.l.s4 1983009808
      %v795 = vunpack.c.0.s8 %v794
      %v796 = vlaneseq
      %v797 = vshrl.u32 %v796, 7
      %v798 = vsub.s32 %v795, %v797
      %v799 = vrot.slane %v792, %v798
      %800 = vrot.lane.b32.xlu0 %v799, 104
      %v801 = vpop.permute.xlu0 %800
      %v802 = vrot.slane %v801, 4
      %v803 = vsel %vm323, %v801, %v802
      %805 = vst [vmem:[#allocation2 + $0x74] sm:$0xc] %v803
      %806 = vst [vmem:[#allocation2 + $0xc0] sm:$0x3] %v789
      %v807 = vld [vmem:[%s612] sm:$0xf]
      %v809 = vcombine.low %v807, %v807
      %v811 = vunpack.c.l.s4 1983009808
      %v812 = vunpack.c.0.s8 %v811
      %v813 = vlaneseq
      %v814 = vshrl.u32 %v813, 7
      %v815 = vsub.s32 %v812, %v814
      %v816 = vrot.slane %v809, %v815
      %817 = vrot.lane.b32.xlu0 %v816, 103
      %v818 = vpop.permute.xlu0 %817
      %v819 = vrot.slane %v818, 4
      %v820 = vsel %vm340, %v818, %v819
      %822 = vst [vmem:[#allocation2 + $0x38] sm:$0xc] %v820
      %v824 = vunpack.c.l.s4 1983009808
      %v825 = vunpack.c.0.s8 %v824
      %v826 = vlaneseq
      %v827 = vshrl.u32 %v826, 7
      %v828 = vsub.s32 %v825, %v827
      %v829 = vrot.slane %v807, %v828
      %830 = vrot.lane.b32.xlu0 %v829, 103
      %v831 = vpop.permute.xlu0 %830
      %v832 = vrot.slane %v831, 4
      %v833 = vsel %vm340, %v831, %v832
      %835 = vst [vmem:[#allocation2 + $0x84] sm:$0x3] %v833
      %836 = vst [vmem:[#allocation2 + $0xc0] sm:$0xc] %v820
      %v837 = vld [vmem:[%s612] sm:$0xf]
      %v840 = vunpack.c.l.s4 1983009808
      %v841 = vunpack.c.0.s8 %v840
      %v842 = vlaneseq
      %v843 = vshrl.u32 %v842, 7
      %v844 = vsub.s32 %v841, %v843
      %v845 = vrot.slane %v837, %v844
      %846 = vrot.lane.b32.xlu0 %v845, 102
      %v847 = vpop.permute.xlu0 %846
      %v848 = vrot.slane %v847, 4
      %v849 = vsel %vm356, %v847, %v848
      %851 = vst [vmem:[#allocation2 + $0x48] sm:$0x3] %v849
      %v852 = vcombine.low %v837, %v837
      %v854 = vunpack.c.l.s4 1983009808
      %v855 = vunpack.c.0.s8 %v854
      %v856 = vlaneseq
      %v857 = vshrl.u32 %v856, 7
      %v858 = vsub.s32 %v855, %v857
      %v859 = vrot.slane %v852, %v858
      %860 = vrot.lane.b32.xlu0 %v859, 102
      %v861 = vpop.permute.xlu0 %860
      %v862 = vrot.slane %v861, 4
      %v863 = vsel %vm356, %v861, %v862
      %865 = vst [vmem:[#allocation2 + $0x84] sm:$0xc] %v863
      %866 = vst [vmem:[#allocation2 + $0xd0] sm:$0x3] %v849
      %s867 = sadd.s32 %s222, 3
      %s868 = smul.u32 %s867, 2
      %s869 = smul.addr %s868, 2
      %s870 = scalar_lea.vmem %s210, %s869
      %v871 = vld [vmem:[%s870] sm:$0x3]
      %872 = vst [vmem:[#allocation2 + $0xc] sm:$0x3] %v871
      %v874 = vcombine.low %v871, %v871
      %v876 = vunpack.c.l.s4 1983009808
      %v877 = vunpack.c.0.s8 %v876
      %v878 = vlaneseq
      %v879 = vshrl.u32 %v878, 7
      %v880 = vsub.s32 %v877, %v879
      %v881 = vrot.slane %v874, %v880
      %883 = vst [vmem:[#allocation2 + $0x48] sm:$0xc] %v881
      %884 = vst [vmem:[#allocation2 + $0x94] sm:$0x3] %v871
      %v885 = vld [vmem:[%s870] sm:$0xf]
      %v887 = vcombine.low %v885, %v885
      %v889 = vunpack.c.l.s4 1983009808
      %v890 = vunpack.c.0.s8 %v889
      %v891 = vlaneseq
      %v892 = vshrl.u32 %v891, 7
      %v893 = vsub.s32 %v890, %v892
      %v894 = vrot.slane %v887, %v893
      %895 = vrot.lane.b32.xlu0 %v894, 127
      %v896 = vpop.permute.xlu0 %895
      %v897 = vrot.slane %v896, 4
      %v898 = vsel %vm241, %v896, %v897
      %900 = vst [vmem:[#allocation2 + $0xc] sm:$0xc] %v898
      %v902 = vunpack.c.l.s4 1983009808
      %v903 = vunpack.c.0.s8 %v902
      %v904 = vlaneseq
      %v905 = vshrl.u32 %v904, 7
      %v906 = vsub.s32 %v903, %v905
      %v907 = vrot.slane %v885, %v906
      %908 = vrot.lane.b32.xlu0 %v907, 127
      %v909 = vpop.permute.xlu0 %908
      %v910 = vrot.slane %v909, 4
      %v911 = vsel %vm241, %v909, %v910
      %913 = vst [vmem:[#allocation2 + $0x58] sm:$0x3] %v911
      %914 = vst [vmem:[#allocation2 + $0x94] sm:$0xc] %v898
      %v915 = vld [vmem:[%s870] sm:$0xf]
      %v918 = vunpack.c.l.s4 1983009808
      %v919 = vunpack.c.0.s8 %v918
      %v920 = vlaneseq
      %v921 = vshrl.u32 %v920, 7
      %v922 = vsub.s32 %v919, %v921
      %v923 = vrot.slane %v915, %v922
      %924 = vrot.lane.b32.xlu0 %v923, 126
      %v925 = vpop.permute.xlu0 %924
      %v926 = vrot.slane %v925, 4
      %v927 = vsel %vm257, %v925, %v926
      %929 = vst [vmem:[#allocation2 + $0x1c] sm:$0x3] %v927
      %v930 = vcombine.low %v915, %v915
      %v932 = vunpack.c.l.s4 1983009808
      %v933 = vunpack.c.0.s8 %v932
      %v934 = vlaneseq
      %v935 = vshrl.u32 %v934, 7
      %v936 = vsub.s32 %v933, %v935
      %v937 = vrot.slane %v930, %v936
      %938 = vrot.lane.b32.xlu0 %v937, 126
      %v939 = vpop.permute.xlu0 %938
      %v940 = vrot.slane %v939, 4
      %v941 = vsel %vm257, %v939, %v940
      %943 = vst [vmem:[#allocation2 + $0x58] sm:$0xc] %v941
      %944 = vst [vmem:[#allocation2 + $0xa4] sm:$0x3] %v927
      %v945 = vld [vmem:[%s870] sm:$0xf]
      %v947 = vcombine.low %v945, %v945
      %v949 = vunpack.c.l.s4 1983009808
      %v950 = vunpack.c.0.s8 %v949
      %v951 = vlaneseq
      %v952 = vshrl.u32 %v951, 7
      %v953 = vsub.s32 %v950, %v952
      %v954 = vrot.slane %v947, %v953
      %955 = vrot.lane.b32.xlu0 %v954, 116
      %v956 = vpop.permute.xlu0 %955
      %v957 = vrot.slane %v956, 4
      %v958 = vsel %vm274, %v956, %v957
      %960 = vst [vmem:[#allocation2 + $0x1c] sm:$0xc] %v958
      %v962 = vunpack.c.l.s4 1983009808
      %v963 = vunpack.c.0.s8 %v962
      %v964 = vlaneseq
      %v965 = vshrl.u32 %v964, 7
      %v966 = vsub.s32 %v963, %v965
      %v967 = vrot.slane %v945, %v966
      %968 = vrot.lane.b32.xlu0 %v967, 116
      %v969 = vpop.permute.xlu0 %968
      %v970 = vrot.slane %v969, 4
      %v971 = vsel %vm274, %v969, %v970
      %973 = vst [vmem:[#allocation2 + $0x68] sm:$0x3] %v971
      %974 = vst [vmem:[#allocation2 + $0xa4] sm:$0xc] %v958
      %v975 = vld [vmem:[%s870] sm:$0xf]
      %v978 = vunpack.c.l.s4 1983009808
      %v979 = vunpack.c.0.s8 %v978
      %v980 = vlaneseq
      %v981 = vshrl.u32 %v980, 7
      %v982 = vsub.s32 %v979, %v981
      %v983 = vrot.slane %v975, %v982
      %984 = vrot.lane.b32.xlu0 %v983, 115
      %v985 = vpop.permute.xlu0 %984
      %v986 = vrot.slane %v985, 4
      %v987 = vsel %vm290, %v985, %v986
      %989 = vst [vmem:[#allocation2 + $0x2c] sm:$0x3] %v987
      %v990 = vcombine.low %v975, %v975
      %v992 = vunpack.c.l.s4 1983009808
      %v993 = vunpack.c.0.s8 %v992
      %v994 = vlaneseq
      %v995 = vshrl.u32 %v994, 7
      %v996 = vsub.s32 %v993, %v995
      %v997 = vrot.slane %v990, %v996
      %998 = vrot.lane.b32.xlu0 %v997, 115
      %v999 = vpop.permute.xlu0 %998
      %v1000 = vrot.slane %v999, 4
      %v1001 = vsel %vm290, %v999, %v1000
      %1003 = vst [vmem:[#allocation2 + $0x68] sm:$0xc] %v1001
      %1004 = vst [vmem:[#allocation2 + $0xb4] sm:$0x3] %v987
      %v1005 = vld [vmem:[%s870] sm:$0xf]
      %v1007 = vcombine.low %v1005, %v1005
      %v1009 = vunpack.c.l.s4 1983009808
      %v1010 = vunpack.c.0.s8 %v1009
      %v1011 = vlaneseq
      %v1012 = vshrl.u32 %v1011, 7
      %v1013 = vsub.s32 %v1010, %v1012
      %v1014 = vrot.slane %v1007, %v1013
      %1015 = vrot.lane.b32.xlu0 %v1014, 114
      %v1016 = vpop.permute.xlu0 %1015
      %v1017 = vrot.slane %v1016, 4
      %v1018 = vsel %vm307, %v1016, %v1017
      %1020 = vst [vmem:[#allocation2 + $0x2c] sm:$0xc] %v1018
      %v1022 = vunpack.c.l.s4 1983009808
      %v1023 = vunpack.c.0.s8 %v1022
      %v1024 = vlaneseq
      %v1025 = vshrl.u32 %v1024, 7
      %v1026 = vsub.s32 %v1023, %v1025
      %v1027 = vrot.slane %v1005, %v1026
      %1028 = vrot.lane.b32.xlu0 %v1027, 114
      %v1029 = vpop.permute.xlu0 %1028
      %v1030 = vrot.slane %v1029, 4
      %v1031 = vsel %vm307, %v1029, %v1030
      %1033 = vst [vmem:[#allocation2 + $0x78] sm:$0x3] %v1031
      %1034 = vst [vmem:[#allocation2 + $0xb4] sm:$0xc] %v1018
      %v1035 = vld [vmem:[%s870] sm:$0xf]
      %v1038 = vunpack.c.l.s4 1983009808
      %v1039 = vunpack.c.0.s8 %v1038
      %v1040 = vlaneseq
      %v1041 = vshrl.u32 %v1040, 7
      %v1042 = vsub.s32 %v1039, %v1041
      %v1043 = vrot.slane %v1035, %v1042
      %1044 = vrot.lane.b32.xlu0 %v1043, 104
      %v1045 = vpop.permute.xlu0 %1044
      %v1046 = vrot.slane %v1045, 4
      %v1047 = vsel %vm323, %v1045, %v1046
      %1049 = vst [vmem:[#allocation2 + $0x3c] sm:$0x3] %v1047
      %v1050 = vcombine.low %v1035, %v1035
      %v1052 = vunpack.c.l.s4 1983009808
      %v1053 = vunpack.c.0.s8 %v1052
      %v1054 = vlaneseq
      %v1055 = vshrl.u32 %v1054, 7
      %v1056 = vsub.s32 %v1053, %v1055
      %v1057 = vrot.slane %v1050, %v1056
      %1058 = vrot.lane.b32.xlu0 %v1057, 104
      %v1059 = vpop.permute.xlu0 %1058
      %v1060 = vrot.slane %v1059, 4
      %v1061 = vsel %vm323, %v1059, %v1060
      %1063 = vst [vmem:[#allocation2 + $0x78] sm:$0xc] %v1061
      %1064 = vst [vmem:[#allocation2 + $0xc4] sm:$0x3] %v1047
      %v1065 = vld [vmem:[%s870] sm:$0xf]
      %v1067 = vcombine.low %v1065, %v1065
      %v1069 = vunpack.c.l.s4 1983009808
      %v1070 = vunpack.c.0.s8 %v1069
      %v1071 = vlaneseq
      %v1072 = vshrl.u32 %v1071, 7
      %v1073 = vsub.s32 %v1070, %v1072
      %v1074 = vrot.slane %v1067, %v1073
      %1075 = vrot.lane.b32.xlu0 %v1074, 103
      %v1076 = vpop.permute.xlu0 %1075
      %v1077 = vrot.slane %v1076, 4
      %v1078 = vsel %vm340, %v1076, %v1077
      %1080 = vst [vmem:[#allocation2 + $0x3c] sm:$0xc] %v1078
      %v1082 = vunpack.c.l.s4 1983009808
      %v1083 = vunpack.c.0.s8 %v1082
      %v1084 = vlaneseq
      %v1085 = vshrl.u32 %v1084, 7
      %v1086 = vsub.s32 %v1083, %v1085
      %v1087 = vrot.slane %v1065, %v1086
      %1088 = vrot.lane.b32.xlu0 %v1087, 103
      %v1089 = vpop.permute.xlu0 %1088
      %v1090 = vrot.slane %v1089, 4
      %v1091 = vsel %vm340, %v1089, %v1090
      %1093 = vst [vmem:[#allocation2 + $0x88] sm:$0x3] %v1091
      %1094 = vst [vmem:[#allocation2 + $0xc4] sm:$0xc] %v1078
      %v1095 = vld [vmem:[%s870] sm:$0xf]
      %v1098 = vunpack.c.l.s4 1983009808
      %v1099 = vunpack.c.0.s8 %v1098
      %v1100 = vlaneseq
      %v1101 = vshrl.u32 %v1100, 7
      %v1102 = vsub.s32 %v1099, %v1101
      %v1103 = vrot.slane %v1095, %v1102
      %1104 = vrot.lane.b32.xlu0 %v1103, 102
      %v1105 = vpop.permute.xlu0 %1104
      %v1106 = vrot.slane %v1105, 4
      %v1107 = vsel %vm356, %v1105, %v1106
      %1109 = vst [vmem:[#allocation2 + $0x4c] sm:$0x3] %v1107
      %v1110 = vcombine.low %v1095, %v1095
      %v1112 = vunpack.c.l.s4 1983009808
      %v1113 = vunpack.c.0.s8 %v1112
      %v1114 = vlaneseq
      %v1115 = vshrl.u32 %v1114, 7
      %v1116 = vsub.s32 %v1113, %v1115
      %v1117 = vrot.slane %v1110, %v1116
      %1118 = vrot.lane.b32.xlu0 %v1117, 102
      %v1119 = vpop.permute.xlu0 %1118
      %v1120 = vrot.slane %v1119, 4
      %v1121 = vsel %vm356, %v1119, %v1120
      %1123 = vst [vmem:[#allocation2 + $0x88] sm:$0xc] %v1121
      %1124 = vst [vmem:[#allocation2 + $0xd4] sm:$0x3] %v1107
      %s1125 = sadd.s32 %s222, 4
      %s1126 = smul.u32 %s1125, 2
      %s1127 = smul.addr %s1126, 2
      %s1128 = scalar_lea.vmem %s210, %s1127
      %v1129 = vld [vmem:[%s1128] sm:$0x3]
      %v1131 = vcombine.low %v1129, %v1129
      %v1133 = vunpack.c.l.s4 1983009808
      %v1134 = vunpack.c.0.s8 %v1133
      %v1135 = vlaneseq
      %v1136 = vshrl.u32 %v1135, 7
      %v1137 = vsub.s32 %v1134, %v1136
      %v1138 = vrot.slane %v1131, %v1137
      %1140 = vst [vmem:[#allocation2 + $0x4c] sm:$0xc] %v1138
      %1141 = vst [vmem:[#allocation2 + $0x98] sm:$0x3] %v1129
      %v1142 = vld [vmem:[%s1128] sm:$0xf]
      %v1145 = vunpack.c.l.s4 1983009808
      %v1146 = vunpack.c.0.s8 %v1145
      %v1147 = vlaneseq
      %v1148 = vshrl.u32 %v1147, 7
      %v1149 = vsub.s32 %v1146, %v1148
      %v1150 = vrot.slane %v1142, %v1149
      %1151 = vrot.lane.b32.xlu0 %v1150, 127
      %v1152 = vpop.permute.xlu0 %1151
      %v1153 = vrot.slane %v1152, 4
      %v1154 = vsel %vm241, %v1152, %v1153
      %1156 = vst [vmem:[#allocation2 + $0x5c] sm:$0x3] %v1154
      %v1157 = vcombine.low %v1142, %v1142
      %v1159 = vunpack.c.l.s4 1983009808
      %v1160 = vunpack.c.0.s8 %v1159
      %v1161 = vlaneseq
      %v1162 = vshrl.u32 %v1161, 7
      %v1163 = vsub.s32 %v1160, %v1162
      %v1164 = vrot.slane %v1157, %v1163
      %1165 = vrot.lane.b32.xlu0 %v1164, 127
      %v1166 = vpop.permute.xlu0 %1165
      %v1167 = vrot.slane %v1166, 4
      %v1168 = vsel %vm241, %v1166, %v1167
      %1170 = vst [vmem:[#allocation2 + $0x98] sm:$0xc] %v1168
      %v1171 = vld [vmem:[%s1128] sm:$0xf]
      %v1173 = vcombine.low %v1171, %v1171
      %v1175 = vunpack.c.l.s4 1983009808
      %v1176 = vunpack.c.0.s8 %v1175
      %v1177 = vlaneseq
      %v1178 = vshrl.u32 %v1177, 7
      %v1179 = vsub.s32 %v1176, %v1178
      %v1180 = vrot.slane %v1173, %v1179
      %1181 = vrot.lane.b32.xlu0 %v1180, 126
      %v1182 = vpop.permute.xlu0 %1181
      %v1183 = vrot.slane %v1182, 4
      %v1184 = vsel %vm257, %v1182, %v1183
      %1186 = vst [vmem:[#allocation2 + $0x5c] sm:$0xc] %v1184
      %v1188 = vunpack.c.l.s4 1983009808
      %v1189 = vunpack.c.0.s8 %v1188
      %v1190 = vlaneseq
      %v1191 = vshrl.u32 %v1190, 7
      %v1192 = vsub.s32 %v1189, %v1191
      %v1193 = vrot.slane %v1171, %v1192
      %1194 = vrot.lane.b32.xlu0 %v1193, 126
      %v1195 = vpop.permute.xlu0 %1194
      %v1196 = vrot.slane %v1195, 4
      %v1197 = vsel %vm257, %v1195, %v1196
      %1199 = vst [vmem:[#allocation2 + $0xa8] sm:$0x3] %v1197
      %v1200 = vld [vmem:[%s1128] sm:$0xf]
      %v1203 = vunpack.c.l.s4 1983009808
      %v1204 = vunpack.c.0.s8 %v1203
      %v1205 = vlaneseq
      %v1206 = vshrl.u32 %v1205, 7
      %v1207 = vsub.s32 %v1204, %v1206
      %v1208 = vrot.slane %v1200, %v1207
      %1209 = vrot.lane.b32.xlu0 %v1208, 116
      %v1210 = vpop.permute.xlu0 %1209
      %v1211 = vrot.slane %v1210, 4
      %v1212 = vsel %vm274, %v1210, %v1211
      %1214 = vst [vmem:[#allocation2 + $0x6c] sm:$0x3] %v1212
      %v1215 = vcombine.low %v1200, %v1200
      %v1217 = vunpack.c.l.s4 1983009808
      %v1218 = vunpack.c.0.s8 %v1217
      %v1219 = vlaneseq
      %v1220 = vshrl.u32 %v1219, 7
      %v1221 = vsub.s32 %v1218, %v1220
      %v1222 = vrot.slane %v1215, %v1221
      %1223 = vrot.lane.b32.xlu0 %v1222, 116
      %v1224 = vpop.permute.xlu0 %1223
      %v1225 = vrot.slane %v1224, 4
      %v1226 = vsel %vm274, %v1224, %v1225
      %1228 = vst [vmem:[#allocation2 + $0xa8] sm:$0xc] %v1226
      %v1229 = vld [vmem:[%s1128] sm:$0xf]
      %v1231 = vcombine.low %v1229, %v1229
      %v1233 = vunpack.c.l.s4 1983009808
      %v1234 = vunpack.c.0.s8 %v1233
      %v1235 = vlaneseq
      %v1236 = vshrl.u32 %v1235, 7
      %v1237 = vsub.s32 %v1234, %v1236
      %v1238 = vrot.slane %v1231, %v1237
      %1239 = vrot.lane.b32.xlu0 %v1238, 115
      %v1240 = vpop.permute.xlu0 %1239
      %v1241 = vrot.slane %v1240, 4
      %v1242 = vsel %vm290, %v1240, %v1241
      %1244 = vst [vmem:[#allocation2 + $0x6c] sm:$0xc] %v1242
      %v1246 = vunpack.c.l.s4 1983009808
      %v1247 = vunpack.c.0.s8 %v1246
      %v1248 = vlaneseq
      %v1249 = vshrl.u32 %v1248, 7
      %v1250 = vsub.s32 %v1247, %v1249
      %v1251 = vrot.slane %v1229, %v1250
      %1252 = vrot.lane.b32.xlu0 %v1251, 115
      %v1253 = vpop.permute.xlu0 %1252
      %v1254 = vrot.slane %v1253, 4
      %v1255 = vsel %vm290, %v1253, %v1254
      %1257 = vst [vmem:[#allocation2 + $0xb8] sm:$0x3] %v1255
      %v1258 = vld [vmem:[%s1128] sm:$0xf]
      %v1261 = vunpack.c.l.s4 1983009808
      %v1262 = vunpack.c.0.s8 %v1261
      %v1263 = vlaneseq
      %v1264 = vshrl.u32 %v1263, 7
      %v1265 = vsub.s32 %v1262, %v1264
      %v1266 = vrot.slane %v1258, %v1265
      %1267 = vrot.lane.b32.xlu0 %v1266, 114
      %v1268 = vpop.permute.xlu0 %1267
      %v1269 = vrot.slane %v1268, 4
      %v1270 = vsel %vm307, %v1268, %v1269
      %1272 = vst [vmem:[#allocation2 + $0x7c] sm:$0x3] %v1270
      %v1273 = vcombine.low %v1258, %v1258
      %v1275 = vunpack.c.l.s4 1983009808
      %v1276 = vunpack.c.0.s8 %v1275
      %v1277 = vlaneseq
      %v1278 = vshrl.u32 %v1277, 7
      %v1279 = vsub.s32 %v1276, %v1278
      %v1280 = vrot.slane %v1273, %v1279
      %1281 = vrot.lane.b32.xlu0 %v1280, 114
      %v1282 = vpop.permute.xlu0 %1281
      %v1283 = vrot.slane %v1282, 4
      %v1284 = vsel %vm307, %v1282, %v1283
      %1286 = vst [vmem:[#allocation2 + $0xb8] sm:$0xc] %v1284
      %v1287 = vld [vmem:[%s1128] sm:$0xf]
      %v1289 = vcombine.low %v1287, %v1287
      %v1291 = vunpack.c.l.s4 1983009808
      %v1292 = vunpack.c.0.s8 %v1291
      %v1293 = vlaneseq
      %v1294 = vshrl.u32 %v1293, 7
      %v1295 = vsub.s32 %v1292, %v1294
      %v1296 = vrot.slane %v1289, %v1295
      %1297 = vrot.lane.b32.xlu0 %v1296, 104
      %v1298 = vpop.permute.xlu0 %1297
      %v1299 = vrot.slane %v1298, 4
      %v1300 = vsel %vm323, %v1298, %v1299
      %1302 = vst [vmem:[#allocation2 + $0x7c] sm:$0xc] %v1300
      %v1304 = vunpack.c.l.s4 1983009808
      %v1305 = vunpack.c.0.s8 %v1304
      %v1306 = vlaneseq
      %v1307 = vshrl.u32 %v1306, 7
      %v1308 = vsub.s32 %v1305, %v1307
      %v1309 = vrot.slane %v1287, %v1308
      %1310 = vrot.lane.b32.xlu0 %v1309, 104
      %v1311 = vpop.permute.xlu0 %1310
      %v1312 = vrot.slane %v1311, 4
      %v1313 = vsel %vm323, %v1311, %v1312
      %1315 = vst [vmem:[#allocation2 + $0xc8] sm:$0x3] %v1313
      %v1316 = vld [vmem:[%s1128] sm:$0xf]
      %v1319 = vunpack.c.l.s4 1983009808
      %v1320 = vunpack.c.0.s8 %v1319
      %v1321 = vlaneseq
      %v1322 = vshrl.u32 %v1321, 7
      %v1323 = vsub.s32 %v1320, %v1322
      %v1324 = vrot.slane %v1316, %v1323
      %1325 = vrot.lane.b32.xlu0 %v1324, 103
      %v1326 = vpop.permute.xlu0 %1325
      %v1327 = vrot.slane %v1326, 4
      %v1328 = vsel %vm340, %v1326, %v1327
      %1330 = vst [vmem:[#allocation2 + $0x8c] sm:$0x3] %v1328
      %v1331 = vcombine.low %v1316, %v1316
      %v1333 = vunpack.c.l.s4 1983009808
      %v1334 = vunpack.c.0.s8 %v1333
      %v1335 = vlaneseq
      %v1336 = vshrl.u32 %v1335, 7
      %v1337 = vsub.s32 %v1334, %v1336
      %v1338 = vrot.slane %v1331, %v1337
      %1339 = vrot.lane.b32.xlu0 %v1338, 103
      %v1340 = vpop.permute.xlu0 %1339
      %v1341 = vrot.slane %v1340, 4
      %v1342 = vsel %vm340, %v1340, %v1341
      %1344 = vst [vmem:[#allocation2 + $0xc8] sm:$0xc] %v1342
      %v1345 = vld [vmem:[%s1128] sm:$0xf]
      %v1347 = vcombine.low %v1345, %v1345
      %v1349 = vunpack.c.l.s4 1983009808
      %v1350 = vunpack.c.0.s8 %v1349
      %v1351 = vlaneseq
      %v1352 = vshrl.u32 %v1351, 7
      %v1353 = vsub.s32 %v1350, %v1352
      %v1354 = vrot.slane %v1347, %v1353
      %1355 = vrot.lane.b32.xlu0 %v1354, 102
      %v1356 = vpop.permute.xlu0 %1355
      %v1357 = vrot.slane %v1356, 4
      %v1358 = vsel %vm356, %v1356, %v1357
      %1360 = vst [vmem:[#allocation2 + $0x8c] sm:$0xc] %v1358
      %v1362 = vunpack.c.l.s4 1983009808
      %v1363 = vunpack.c.0.s8 %v1362
      %v1364 = vlaneseq
      %v1365 = vshrl.u32 %v1364, 7
      %v1366 = vsub.s32 %v1363, %v1365
      %v1367 = vrot.slane %v1345, %v1366
      %1368 = vrot.lane.b32.xlu0 %v1367, 102
      %v1369 = vpop.permute.xlu0 %1368
      %v1370 = vrot.slane %v1369, 4
      %v1371 = vsel %vm356, %v1369, %v1370
      %1373 = vst [vmem:[#allocation2 + $0xd8] sm:$0x3] %v1371
      %s1374 = sadd.s32 %s222, 5
      %s1375 = smul.u32 %s1374, 2
      %s1376 = smul.addr %s1375, 2
      %s1377 = scalar_lea.vmem %s210, %s1376
      %v1378 = vld [vmem:[%s1377] sm:$0x3]
      %1379 = vst [vmem:[#allocation2 + $0x9c] sm:$0x3] %v1378
      %v1380 = vld [vmem:[%s1377] sm:$0xf]
      %v1382 = vcombine.low %v1380, %v1380
      %v1384 = vunpack.c.l.s4 1983009808
      %v1385 = vunpack.c.0.s8 %v1384
      %v1386 = vlaneseq
      %v1387 = vshrl.u32 %v1386, 7
      %v1388 = vsub.s32 %v1385, %v1387
      %v1389 = vrot.slane %v1382, %v1388
      %1390 = vrot.lane.b32.xlu0 %v1389, 127
      %v1391 = vpop.permute.xlu0 %1390
      %v1392 = vrot.slane %v1391, 4
      %v1393 = vsel %vm241, %v1391, %v1392
      %1395 = vst [vmem:[#allocation2 + $0x9c] sm:$0xc] %v1393
      %v1396 = vld [vmem:[%s1377] sm:$0xf]
      %v1399 = vunpack.c.l.s4 1983009808
      %v1400 = vunpack.c.0.s8 %v1399
      %v1401 = vlaneseq
      %v1402 = vshrl.u32 %v1401, 7
      %v1403 = vsub.s32 %v1400, %v1402
      %v1404 = vrot.slane %v1396, %v1403
      %1405 = vrot.lane.b32.xlu0 %v1404, 126
      %v1406 = vpop.permute.xlu0 %1405
      %v1407 = vrot.slane %v1406, 4
      %v1408 = vsel %vm257, %v1406, %v1407
      %1410 = vst [vmem:[#allocation2 + $0xac] sm:$0x3] %v1408
      %v1411 = vld [vmem:[%s1377] sm:$0xf]
      %v1413 = vcombine.low %v1411, %v1411
      %v1415 = vunpack.c.l.s4 1983009808
      %v1416 = vunpack.c.0.s8 %v1415
      %v1417 = vlaneseq
      %v1418 = vshrl.u32 %v1417, 7
      %v1419 = vsub.s32 %v1416, %v1418
      %v1420 = vrot.slane %v1413, %v1419
      %1421 = vrot.lane.b32.xlu0 %v1420, 116
      %v1422 = vpop.permute.xlu0 %1421
      %v1423 = vrot.slane %v1422, 4
      %v1424 = vsel %vm274, %v1422, %v1423
      %1426 = vst [vmem:[#allocation2 + $0xac] sm:$0xc] %v1424
      %v1427 = vld [vmem:[%s1377] sm:$0xf]
      %v1430 = vunpack.c.l.s4 1983009808
      %v1431 = vunpack.c.0.s8 %v1430
      %v1432 = vlaneseq
      %v1433 = vshrl.u32 %v1432, 7
      %v1434 = vsub.s32 %v1431, %v1433
      %v1435 = vrot.slane %v1427, %v1434
      %1436 = vrot.lane.b32.xlu0 %v1435, 115
      %v1437 = vpop.permute.xlu0 %1436
      %v1438 = vrot.slane %v1437, 4
      %v1439 = vsel %vm290, %v1437, %v1438
      %1441 = vst [vmem:[#allocation2 + $0xbc] sm:$0x3] %v1439
      %v1442 = vld [vmem:[%s1377] sm:$0xf]
      %v1444 = vcombine.low %v1442, %v1442
      %v1446 = vunpack.c.l.s4 1983009808
      %v1447 = vunpack.c.0.s8 %v1446
      %v1448 = vlaneseq
      %v1449 = vshrl.u32 %v1448, 7
      %v1450 = vsub.s32 %v1447, %v1449
      %v1451 = vrot.slane %v1444, %v1450
      %1452 = vrot.lane.b32.xlu0 %v1451, 114
      %v1453 = vpop.permute.xlu0 %1452
      %v1454 = vrot.slane %v1453, 4
      %v1455 = vsel %vm307, %v1453, %v1454
      %1457 = vst [vmem:[#allocation2 + $0xbc] sm:$0xc] %v1455
      %v1458 = vld [vmem:[%s1377] sm:$0xf]
      %v1461 = vunpack.c.l.s4 1983009808
      %v1462 = vunpack.c.0.s8 %v1461
      %v1463 = vlaneseq
      %v1464 = vshrl.u32 %v1463, 7
      %v1465 = vsub.s32 %v1462, %v1464
      %v1466 = vrot.slane %v1458, %v1465
      %1467 = vrot.lane.b32.xlu0 %v1466, 104
      %v1468 = vpop.permute.xlu0 %1467
      %v1469 = vrot.slane %v1468, 4
      %v1470 = vsel %vm323, %v1468, %v1469
      %1472 = vst [vmem:[#allocation2 + $0xcc] sm:$0x3] %v1470
      %v1473 = vld [vmem:[%s1377] sm:$0xf]
      %v1475 = vcombine.low %v1473, %v1473
      %v1477 = vunpack.c.l.s4 1983009808
      %v1478 = vunpack.c.0.s8 %v1477
      %v1479 = vlaneseq
      %v1480 = vshrl.u32 %v1479, 7
      %v1481 = vsub.s32 %v1478, %v1480
      %v1482 = vrot.slane %v1475, %v1481
      %1483 = vrot.lane.b32.xlu0 %v1482, 103
      %v1484 = vpop.permute.xlu0 %1483
      %v1485 = vrot.slane %v1484, 4
      %v1486 = vsel %vm340, %v1484, %v1485
      %1488 = vst [vmem:[#allocation2 + $0xcc] sm:$0xc] %v1486
      %v1489 = vld [vmem:[%s1377] sm:$0xf]
      %v1492 = vunpack.c.l.s4 1983009808
      %v1493 = vunpack.c.0.s8 %v1492
      %v1494 = vlaneseq
      %v1495 = vshrl.u32 %v1494, 7
      %v1496 = vsub.s32 %v1493, %v1495
      %v1497 = vrot.slane %v1489, %v1496
      %1498 = vrot.lane.b32.xlu0 %v1497, 102
      %v1499 = vpop.permute.xlu0 %1498
      %v1500 = vrot.slane %v1499, 4
      %v1501 = vsel %vm356, %v1499, %v1500
      %1503 = vst [vmem:[#allocation2 + $0xdc] sm:$0x3] %v1501
      %v1504 = vld [vmem:[%s1] sm:$0xf]
      %v1505 = vld [vmem:[#allocation2] sm:$0xff]
      %v1506 = vld [vmem:[#allocation2 + $0x8] sm:$0xff]
      %v1507 = vld [vmem:[#allocation2 + $0x10] sm:$0xff]
      %v1508 = vld [vmem:[#allocation2 + $0x18] sm:$0xff]
      %v1509 = vld [vmem:[#allocation2 + $0x20] sm:$0xff]
      %v1510 = vld [vmem:[#allocation2 + $0x28] sm:$0xff]
      %v1511 = vld [vmem:[#allocation2 + $0x30] sm:$0xff]
      %v1512 = vld [vmem:[#allocation2 + $0x38] sm:$0xff]
      %v1513 = vld [vmem:[#allocation2 + $0x40] sm:$0xff]
      %v1514 = vld [vmem:[#allocation2 + $0x48] sm:$0xff]
      %v1515 = vld [vmem:[#allocation2 + $0x50] sm:$0xff]
      %v1516 = vld [vmem:[#allocation2 + $0x58] sm:$0xff]
      %v1517 = vld [vmem:[#allocation2 + $0x60] sm:$0xff]
      %v1518 = vld [vmem:[#allocation2 + $0x68] sm:$0xff]
      %v1519 = vld [vmem:[#allocation2 + $0x70] sm:$0xff]
      %v1520 = vld [vmem:[#allocation2 + $0x78] sm:$0xff]
      %v1521 = vld [vmem:[#allocation2 + $0x80] sm:$0xff]
      %v1522 = vld [vmem:[#allocation2 + $0x88] sm:$0xff]
      %v1523 = vld [vmem:[#allocation2 + $0x90] sm:$0xff]
      %v1524 = vld [vmem:[#allocation2 + $0x98] sm:$0xff]
      %v1525 = vld [vmem:[#allocation2 + $0xa0] sm:$0xff]
      %v1526 = vld [vmem:[#allocation2 + $0xa8] sm:$0xff]
      %v1527 = vld [vmem:[#allocation2 + $0xb0] sm:$0xff]
      %v1528 = vld [vmem:[#allocation2 + $0xb8] sm:$0xff]
      %v1529 = vld [vmem:[#allocation2 + $0xc0] sm:$0xff]
      %v1530 = vld [vmem:[#allocation2 + $0xc8] sm:$0xff]
      %v1531 = vld [vmem:[#allocation2 + $0xd0] sm:$0x33]
      %v1532 = vld [vmem:[#allocation2 + $0xd8] sm:$0x33]
      %v1561 = vunpack.c.l.b16 %v1505
      %v1562 = vunpack.c.h.b16 %v1505
      %v1563 = vunpack.c.l.b16 %v1506
      %v1564 = vunpack.c.h.b16 %v1506
      %v1565 = vunpack.c.l.b16 %v1507
      %v1566 = vunpack.c.h.b16 %v1507
      %v1567 = vunpack.c.l.b16 %v1508
      %v1568 = vunpack.c.h.b16 %v1508
      %v1569 = vunpack.c.l.b16 %v1509
      %v1570 = vunpack.c.h.b16 %v1509
      %v1571 = vunpack.c.l.b16 %v1510
      %v1572 = vunpack.c.h.b16 %v1510
      %v1573 = vunpack.c.l.b16 %v1511
      %v1574 = vunpack.c.h.b16 %v1511
      %v1575 = vunpack.c.l.b16 %v1512
      %v1576 = vunpack.c.h.b16 %v1512
      %v1577 = vunpack.c.l.b16 %v1513
      %v1578 = vunpack.c.h.b16 %v1513
      %v1579 = vunpack.c.l.b16 %v1514
      %v1580 = vunpack.c.h.b16 %v1514
      %v1581 = vunpack.c.l.b16 %v1515
      %v1582 = vunpack.c.h.b16 %v1515
      %v1583 = vunpack.c.l.b16 %v1516
      %v1584 = vunpack.c.h.b16 %v1516
      %v1585 = vunpack.c.l.b16 %v1517
      %v1586 = vunpack.c.h.b16 %v1517
      %v1587 = vunpack.c.l.b16 %v1518
      %v1588 = vunpack.c.h.b16 %v1518
      %v1589 = vunpack.c.l.b16 %v1519
      %v1590 = vunpack.c.h.b16 %v1519
      %v1591 = vunpack.c.l.b16 %v1520
      %v1592 = vunpack.c.h.b16 %v1520
      %v1593 = vunpack.c.l.b16 %v1521
      %v1594 = vunpack.c.h.b16 %v1521
      %v1595 = vunpack.c.l.b16 %v1522
      %v1596 = vunpack.c.h.b16 %v1522
      %v1597 = vunpack.c.l.b16 %v1523
      %v1598 = vunpack.c.h.b16 %v1523
      %v1599 = vunpack.c.l.b16 %v1524
      %v1600 = vunpack.c.h.b16 %v1524
      %v1601 = vunpack.c.l.b16 %v1525
      %v1602 = vunpack.c.h.b16 %v1525
      %v1603 = vunpack.c.l.b16 %v1526
      %v1604 = vunpack.c.h.b16 %v1526
      %v1605 = vunpack.c.l.b16 %v1527
      %v1606 = vunpack.c.h.b16 %v1527
      %v1607 = vunpack.c.l.b16 %v1528
      %v1608 = vunpack.c.h.b16 %v1528
      %v1609 = vunpack.c.l.b16 %v1529
      %v1610 = vunpack.c.h.b16 %v1529
      %v1611 = vunpack.c.l.b16 %v1530
      %v1612 = vunpack.c.h.b16 %v1530
      %v1613 = vunpack.c.l.b16 %v1531
      %v1614 = vunpack.c.h.b16 %v1531
      %v1615 = vunpack.c.l.b16 %v1532
      %v1616 = vunpack.c.h.b16 %v1532
      %v1617 = vpack.c.b16 %v1565, %v1561
      %v1618 = vpack.c.b16 %v1566, %v1562
      %v1619 = vpack.c.b16 %v1567, %v1563
      %v1620 = vpack.c.b16 %v1568, %v1564
      %v1621 = vpack.c.b16 %v1573, %v1569
      %v1622 = vpack.c.b16 %v1574, %v1570
      %v1623 = vpack.c.b16 %v1575, %v1571
      %v1624 = vpack.c.b16 %v1576, %v1572
      %v1625 = vpack.c.b16 %v1581, %v1577
      %v1626 = vpack.c.b16 %v1582, %v1578
      %v1627 = vpack.c.b16 %v1583, %v1579
      %v1628 = vpack.c.b16 %v1584, %v1580
      %v1629 = vpack.c.b16 %v1589, %v1585
      %v1630 = vpack.c.b16 %v1590, %v1586
      %v1631 = vpack.c.b16 %v1591, %v1587
      %v1632 = vpack.c.b16 %v1592, %v1588
      %v1633 = vpack.c.b16 %v1597, %v1593
      %v1634 = vpack.c.b16 %v1598, %v1594
      %v1635 = vpack.c.b16 %v1599, %v1595
      %v1636 = vpack.c.b16 %v1600, %v1596
      %v1637 = vpack.c.b16 %v1605, %v1601
      %v1638 = vpack.c.b16 %v1606, %v1602
      %v1639 = vpack.c.b16 %v1607, %v1603
      %v1640 = vpack.c.b16 %v1608, %v1604
      %v1641 = vpack.c.b16 %v1613, %v1609
      %v1642 = vpack.c.b16 %v1614, %v1610
      %v1643 = vpack.c.b16 %v1615, %v1611
      %v1644 = vpack.c.b16 %v1616, %v1612
      %vm1669 = vcmask 883712
      %v1671 = vsel %vm1669, %v1504, 0
      %vm1673 = vcmask 1045504
      %v1675 = vsel %vm1673, %v1641, 0
      %v1678 = vsel %vm1673, %v1642, 0
      %v1681 = vsel %vm1673, %v1643, 0
      %v1684 = vsel %vm1673, %v1644, 0
      %1686 = vmatprep.subr.bf16.mxu0 %v1618
      %1687 = vmatpush1.bf16.msra.mxu0 %v1617
      %1688 = vmatprep.subr.bf16.mxu0 %v1622
      %1689 = vmatpush1.bf16.msra.mxu0 %v1621
      %1690 = vmatprep.subr.bf16.mxu0 %v1626
      %1691 = vmatpush1.bf16.msra.mxu0 %v1625
      %1692 = vmatprep.subr.bf16.mxu0 %v1630
      %1693 = vmatpush1.bf16.msra.mxu0 %v1629
      %1694 = vmatprep.subr.bf16.mxu0 %v1634
      %1695 = vmatpush1.bf16.msra.mxu0 %v1633
      %1696 = vmatprep.subr.bf16.mxu0 %v1638
      %1697 = vmatpush1.bf16.msra.mxu0 %v1637
      %1698 = vmatprep.subr.bf16.mxu0 %v1678
      %1699 = vmatpush1.bf16.msra.mxu0 %v1675
      %1700 = vmatprep.subr.bf16.mxu0 0
      %1701 = vmatpush1.bf16.msra.mxu0 0
      %1702 = vmatprep.subr.bf16.mxu0 0
      %1703 = vmatpush1.bf16.msra.mxu0 0
      %1704 = vmatprep.subr.bf16.mxu0 0
      %1705 = vmatpush1.bf16.msra.mxu0 0
      %1706 = vmatprep.subr.bf16.mxu0 0
      %1707 = vmatpush1.bf16.msra.mxu0 0
      %1708 = vmatprep.subr.bf16.mxu0 0
      %1709 = vmatpush1.bf16.msra.mxu0 0
      %1710 = vmatprep.subr.bf16.mxu0 0
      %1711 = vmatpush1.bf16.msra.mxu0 0
      %1712 = vmatprep.subr.bf16.mxu0 0
      %1713 = vmatpush1.bf16.msra.mxu0 0
      %1714 = vmatprep.subr.bf16.mxu0 0
      %1715 = vmatpush1.bf16.msra.mxu0 0
      %1716 = vmatprep.subr.bf16.mxu0 0
      %1717 = vmatpush1.bf16.msra.mxu0 0
      %1718 = vmatprep.mubr.bf16.mxu0 0
      %1719 = vmatmul.mubr.bf16.gmra.mrb[0].mxu0 %v1671
      %v1720 = vpop.f32.mrb[0].mxu0
      %v1721 = vadd.f32 0.0, %v1720
      %v1722 = vpop.f32.mrb[0].mxu0
      %v1723 = vadd.f32 0.0, %v1722
      %v1724 = vpop.f32.mrb[0].mxu0
      %v1725 = vpop.f32.mrb[0].mxu0
      %1726 = vdwg.mxu0
      %1727 = vmatprep.subr.bf16.mxu0 %v1620
      %1728 = vmatpush1.bf16.msra.mxu0 %v1619
      %1729 = vmatprep.subr.bf16.mxu0 %v1624
      %1730 = vmatpush1.bf16.msra.mxu0 %v1623
      %1731 = vmatprep.subr.bf16.mxu0 %v1628
      %1732 = vmatpush1.bf16.msra.mxu0 %v1627
      %1733 = vmatprep.subr.bf16.mxu0 %v1632
      %1734 = vmatpush1.bf16.msra.mxu0 %v1631
      %1735 = vmatprep.subr.bf16.mxu0 %v1636
      %1736 = vmatpush1.bf16.msra.mxu0 %v1635
      %1737 = vmatprep.subr.bf16.mxu0 %v1640
      %1738 = vmatpush1.bf16.msra.mxu0 %v1639
      %1739 = vmatprep.subr.bf16.mxu0 %v1684
      %1740 = vmatpush1.bf16.msra.mxu0 %v1681
      %1741 = vmatprep.subr.bf16.mxu0 0
      %1742 = vmatpush1.bf16.msra.mxu0 0
      %1743 = vmatprep.subr.bf16.mxu0 0
      %1744 = vmatpush1.bf16.msra.mxu0 0
      %1745 = vmatprep.subr.bf16.mxu0 0
      %1746 = vmatpush1.bf16.msra.mxu0 0
      %1747 = vmatprep.subr.bf16.mxu0 0
      %1748 = vmatpush1.bf16.msra.mxu0 0
      %1749 = vmatprep.subr.bf16.mxu0 0
      %1750 = vmatpush1.bf16.msra.mxu0 0
      %1751 = vmatprep.subr.bf16.mxu0 0
      %1752 = vmatpush1.bf16.msra.mxu0 0
      %1753 = vmatprep.subr.bf16.mxu0 0
      %1754 = vmatpush1.bf16.msra.mxu0 0
      %1755 = vmatprep.subr.bf16.mxu0 0
      %1756 = vmatpush1.bf16.msra.mxu0 0
      %1757 = vmatprep.subr.bf16.mxu0 0
      %1758 = vmatpush1.bf16.msra.mxu0 0
      %1759 = vmatprep.mubr.bf16.mxu0 0
      %1760 = vmatmul.mubr.bf16.gmra.mrb[0].mxu0 %v1671
      %v1761 = vpop.f32.mrb[0].mxu0
      %v1762 = vadd.f32 0.0, %v1761
      %v1763 = vpop.f32.mrb[0].mxu0
      %v1764 = vadd.f32 0.0, %v1763
      %v1765 = vpop.f32.mrb[0].mxu0
      %v1766 = vpop.f32.mrb[0].mxu0
      %1767 = vdwg.mxu0
      %v1768 = vld [vmem:[%s2] sm:$0xff]
      %1770 = vset.pattern.permute.xlu0 0
      %1771 = vperm.xlu0 %1770, %v1768
      %v1772 = vpop.permute.xlu0 %1771
      %v1774 = vmul.f32 %v1721, %v1772
      %v1775 = vmul.f32 %v1723, %v1772
      %v1776 = vmul.f32 %v1762, %v1772
      %v1777 = vmul.f32 %v1764, %v1772
      %v1778 = vld [vmem:[%s3] sm:$0xff]
      %1780 = vset.pattern.permute.xlu0 0
      %1781 = vperm.xlu0 %1780, %v1778
      %v1782 = vpop.permute.xlu0 %1781
      %v1784 = vadd.f32 %v1774, %v1782
      %v1785 = vadd.f32 %v1775, %v1782
      %v1786 = vadd.f32 %v1776, %v1782
      %v1787 = vadd.f32 %v1777, %v1782
      %v1788 = vmax.f32 %v1784, 0.0
      %v1789 = vmax.f32 %v1785, 0.0
      %v1790 = vmax.f32 %v1786, 0.0
      %v1791 = vmax.f32 %v1787, 0.0
      %1792 = vst [vmem:[%s219] sm:$0xff] %v1788
      %1793 = vst [vmem:[%s219 + $0x8] sm:$0xff] %v1789
      %1794 = vst [vmem:[%s219 + $0x10] sm:$0xff] %v1790
      %1795 = vst [vmem:[%s219 + $0x18] sm:$0xff] %v1791
      %s1796 = smul.u32 4, %s20
      %p1797 = scmp.lt.s32.totalorder %s19, 1
      %s1798 = scalar_select %p1797, %s19, 1
      %p1799 = scmp.lt.s32.totalorder %s1796, 7
      %s1800 = scalar_select %p1799, %s1796, 7
      %s1801 = smul.addr %s1798, 8
      %s1802 = sadd.s32 %s1800, %s1801
      %s1803 = smul.addr %s1802, 8
      %s1804 = scalar_lea.vmem %s4, %s1803
      // Predicated region
      $region37: #{up_forward.3} parent=35 // pred_check
        %p1805 = pneg %p136
      $region38: #{up_forward.3} parent=35 // pred_check_branch
        %1807 = sbr.rel (%p1805) target = $region40
      $region39: #{up_forward.3} parent=35 // pred_region
        %s1808 = smul.u32 4, %s20
      $region40: #{up_forward.3} parent=35 // pred_fallthru
        _
    $region36: #{up_forward.3} parent=5 // pred_fallthru
      _
    %p1809 = scmp.le.s32.totalorder 2, %s10
    // Predicated region
    $region41: #{up_forward.3} parent=5 // pred_check
      %p1810 = pneg %p1809
    $region42: #{up_forward.3} parent=5 // pred_check_branch
      %1812 = sbr.rel (%p1810) target = $region44
    $region43: #{up_forward.3} parent=5 // pred_region
      %s1813 = ssub.s32 %s10, 2
      // Predicated region
      $region45: #{up_forward.3} parent=43 // pred_check
        %p1814 = pneg %p142
      $region46: #{up_forward.3} parent=43 // pred_check_branch
        %1816 = sbr.rel (%p1814) target = $region48
      $region47: #{up_forward.3} parent=43 // pred_region
        %s1817 = smul.u32 4, %s22
        %p1818 = scmp.lt.s32.totalorder %s21, 1
        %s1819 = scalar_select %p1818, %s21, 1
        %p1820 = scmp.lt.s32.totalorder %s1817, 7
        %s1821 = scalar_select %p1820, %s1817, 7
        %s1822 = smul.addr %s1819, 8
        %s1823 = sadd.s32 %s1821, %s1822
        %s1824 = smul.addr %s1823, 8
        %s1825 = scalar_lea.vmem %s4, %s1824
      $region48: #{up_forward.3} parent=43 // pred_fallthru
        _
    $region44: #{up_forward.3} parent=5 // pred_fallthru
      _
  $region6: #{up_forward.3} parent=0 // loop_footer
    %s14 = sadd.s32 1, %s10
  $region7: #{up_forward.3} parent=0 // loop_footer_branch
    %9 = sbr.rel target = $region3
  $region8: #{up_forward.3} parent=0 // loop_exit
    _

</llo_original>
